<compile_context>
chip_gen: v5e
topology: v5e:2x2
jax: 0.10.0
libtpu: 0.0.40
codegen_flags: <defaults>
</compile_context>

<pallas_src>
from functools import partial
import math

import jax
import jax.numpy as jnp
from jax.experimental import pallas as pl
from jax.experimental.pallas import tpu as pltpu


_VMEM_LIMIT = 32 * 1024 * 1024   # explicit scoped-VMEM budget (safe on v5e/v6e/v7x)


def _round_up(x, m):
    return ((x + m - 1) // m) * m


# ----------------------------------------------------------------------------------
# Kernel 1: 3x3 same-pad conv (+ optional ReLU); one batch image per grid step.
#   x_ref : (1, H+2, W8+2, Cin)  zero-padded input, bf16
#   w_ref : (9, Cin, Cout)       bf16  (tap-major: t = 3*ky + kx)
#   b_ref : (1, Cout)            f32
#   o_ref : (1, H, W8, Cout)
# The 9 taps are accumulated as MXU matmuls on (H*W8, Cin) x (Cin, Cout).
# ----------------------------------------------------------------------------------
def _conv3x3_kernel(x_ref, w_ref, b_ref, o_ref, *, relu):
    _, H, W8, Cout = o_ref.shape
    Cin = x_ref.shape[-1]
    xp = x_ref[0]                                            # (H+2, W8+2, Cin) bf16
    acc = jnp.zeros((H * W8, Cout), jnp.float32)
    for t in range(9):
        ky, kx = divmod(t, 3)
        patch = xp[ky:ky + H, kx:kx + W8, :].reshape(H * W8, Cin)
        acc = acc + jnp.dot(patch, w_ref[t], preferred_element_type=jnp.float32)
    acc = acc + b_ref[...]
    if relu:
        acc = jnp.maximum(acc, 0.0)
    o_ref[0] = acc.reshape(H, W8, Cout).astype(o_ref.dtype)


def conv3x3(x, w, b, *, relu=False, out_dtype=jnp.bfloat16):
    """x: (B,H,W,Cin); w: (9,Cin,Cout) bf16; b: (1,Cout) f32. Same-padded 3x3 conv."""
    B, H, W, Cin = x.shape
    Cout = w.shape[-1]
    W8 = _round_up(W, 8)                                     # keep in-kernel reshapes tile-aligned
    xp = jnp.pad(x.astype(jnp.bfloat16),
                 ((0, 0), (1, 1), (1, 1 + W8 - W), (0, 0)))
    out = pl.pallas_call(
        partial(_conv3x3_kernel, relu=relu),
        out_shape=jax.ShapeDtypeStruct((B, H, W8, Cout), out_dtype),
        grid=(B,),
        in_specs=[
            pl.BlockSpec((1, H + 2, W8 + 2, Cin), lambda i: (i, 0, 0, 0)),
            pl.BlockSpec((9, Cin, Cout), lambda i: (0, 0, 0)),
            pl.BlockSpec((1, Cout), lambda i: (0, 0)),
        ],
        out_specs=pl.BlockSpec((1, H, W8, Cout), lambda i: (i, 0, 0, 0)),
        compiler_params=pltpu.CompilerParams(
            dimension_semantics=("parallel",),
            vmem_limit_bytes=_VMEM_LIMIT),
    )(xp, w, b)
    if W8 != W:
        out = out[:, :, :W, :]
    return out


# ----------------------------------------------------------------------------------
# Kernel 2: fused residual block.
#   out = relu( conv3x3( relu(conv3x3(x)+b1) ) + b2 + x )
# conv1 is computed on a halo-extended (H+2, We) domain of the input (padded by
# 2), then the halo / width-padding is zero-masked so conv2 sees exactly the
# zero-padded intermediate.  Everything stays value-level (slices + matmuls +
# where) — no partial stores, no HBM roundtrip for the intermediate.
#   x_ref : (1, H+4, We+2, C)  zero-padded input, bf16   (We = W8 + 8)
# ----------------------------------------------------------------------------------
def _resblock_kernel(x_ref, w1_ref, b1_ref, w2_ref, b2_ref, o_ref, *, valid_w):
    _, H, W8, C = o_ref.shape
    He = H + 2
    We = x_ref.shape[2] - 2
    xp = x_ref[0]                                            # (H+4, We+2, C) bf16

    # conv1 + ReLU on the extended (He, We) domain (f32 acc, bf16 MXU operands)
    acc = jnp.zeros((He * We, C), jnp.float32)
    for t in range(9):
        ky, kx = divmod(t, 3)
        patch = xp[ky:ky + He, kx:kx + We, :].reshape(He * We, C)
        acc = acc + jnp.dot(patch, w1_ref[t], preferred_element_type=jnp.float32)
    h_full = jnp.maximum(acc + b1_ref[...], 0.0).reshape(He, We, C)

    # zero the 1-pixel halo ring and the width-alignment columns -> true zero pad
    row = jax.lax.broadcasted_iota(jnp.int32, (He, We, C), 0)
    col = jax.lax.broadcasted_iota(jnp.int32, (He, We, C), 1)
    keep = (row >= 1) & (row <= H) & (col >= 1) & (col <= valid_w)
    hp = jnp.where(keep, h_full, 0.0).astype(jnp.bfloat16)   # padded intermediate

    # conv2 + skip + ReLU on the (H, W8) output domain
    acc2 = jnp.zeros((H * W8, C), jnp.float32)
    for t in range(9):
        ky, kx = divmod(t, 3)
        patch = hp[ky:ky + H, kx:kx + W8, :].reshape(H * W8, C)
        acc2 = acc2 + jnp.dot(patch, w2_ref[t], preferred_element_type=jnp.float32)
    skip = xp[2:2 + H, 2:2 + W8, :].reshape(H * W8, C).astype(jnp.float32)
    out = jnp.maximum(acc2 + b2_ref[...] + skip, 0.0)
    o_ref[0] = out.reshape(H, W8, C).astype(o_ref.dtype)


def residual_block(x, w1, b1, w2, b2):
    B, H, W, C = x.shape
    W8 = _round_up(W, 8)
    We = W8 + 8                         # extended width (multiple of 8, fits all taps)
    xp = jnp.pad(x.astype(jnp.bfloat16),
                 ((0, 0), (2, 2), (2, We - W), (0, 0)))
    out = pl.pallas_call(
        partial(_resblock_kernel, valid_w=W),
        out_shape=jax.ShapeDtypeStruct((B, H, W8, C), jnp.bfloat16),
        grid=(B,),
        in_specs=[
            pl.BlockSpec((1, H + 4, We + 2, C), lambda i: (i, 0, 0, 0)),
            pl.BlockSpec((9, C, C), lambda i: (0, 0, 0)),
            pl.BlockSpec((1, C), lambda i: (0, 0)),
            pl.BlockSpec((9, C, C), lambda i: (0, 0, 0)),
            pl.BlockSpec((1, C), lambda i: (0, 0)),
        ],
        out_specs=pl.BlockSpec((1, H, W8, C), lambda i: (i, 0, 0, 0)),
        compiler_params=pltpu.CompilerParams(
            dimension_semantics=("parallel",),
            vmem_limit_bytes=_VMEM_LIMIT),
    )(xp, w1, b1, w2, b2)
    if W8 != W:
        out = out[:, :, :W, :]
    return out


# ----------------------------------------------------------------------------------
# Kernel 3: 1x1 conv over an implicit channel-concat of n components.
# Avoids materialising the growing concat: out = sum_j comp_j @ W_j + b.
# Row-tiled GEMM (rows padded to a multiple of TM).
# ----------------------------------------------------------------------------------
def _make_cat1x1_kernel(n):
    def kernel(*refs):
        comps = refs[:n]
        w_ref, b_ref, o_ref = refs[n], refs[n + 1], refs[n + 2]
        acc = jnp.zeros(o_ref.shape, jnp.float32)
        for j in range(n):
            acc = acc + jnp.dot(comps[j][...], w_ref[j],
                                preferred_element_type=jnp.float32)
        o_ref[...] = (acc + b_ref[...]).astype(o_ref.dtype)
    return kernel


def cat_conv1x1(components, w, b):
    """components: list of (B,H,W,C) bf16; w: (n,C,Cout) bf16; b: (1,Cout) f32."""
    n = len(components)
    B, H, W, C = components[0].shape
    Cout = w.shape[-1]
    M = B * H * W
    comps2d = [c.reshape(M, C) for c in components]
    TM = min(1024, _round_up(M, 8))
    Mp = _round_up(M, TM)
    if Mp != M:
        comps2d = [jnp.pad(c, ((0, Mp - M), (0, 0))) for c in comps2d]
    in_specs = [pl.BlockSpec((TM, C), lambda i: (i, 0)) for _ in range(n)]
    in_specs += [pl.BlockSpec((n, C, Cout), lambda i: (0, 0, 0)),
                 pl.BlockSpec((1, Cout), lambda i: (0, 0))]
    out = pl.pallas_call(
        _make_cat1x1_kernel(n),
        out_shape=jax.ShapeDtypeStruct((Mp, Cout), jnp.bfloat16),
        grid=(Mp // TM,),
        in_specs=in_specs,
        out_specs=pl.BlockSpec((TM, Cout), lambda i: (i, 0)),
        compiler_params=pltpu.CompilerParams(
            dimension_semantics=("parallel",),
            vmem_limit_bytes=_VMEM_LIMIT),
    )(*comps2d, w, b)
    return out[:M].reshape(B, H, W, Cout)


# ----------------------------------------------------------------------------------
# Layout glue (pure data movement, plain JAX)
# ----------------------------------------------------------------------------------
def pixel_shuffle(x, r):
    """NHWC equivalent of torch.nn.PixelShuffle(r)."""
    B, H, W, C = x.shape
    Cout = C // (r * r)
    x = x.reshape(B, H, W, Cout, r, r)
    x = x.transpose(0, 1, 4, 2, 5, 3)
    return x.reshape(B, H * r, W * r, Cout)


# ----------------------------------------------------------------------------------
# Parameter init (deterministic, synthetic). Weights bf16 (MXU), biases (1,C) f32.
# ----------------------------------------------------------------------------------
def _conv3x3_params(key, cin, cout):
    kw, kb = jax.random.split(key)
    w = (jax.random.normal(kw, (9, cin, cout), jnp.float32) * 0.05).astype(jnp.bfloat16)
    b = jax.random.normal(kb, (1, cout), jnp.float32) * 0.01
    return w, b


def _conv1x1_params(key, n, cin_per, cout):
    kw, kb = jax.random.split(key)
    w = (jax.random.normal(kw, (n, cin_per, cout), jnp.float32) * 0.05).astype(jnp.bfloat16)
    b = jax.random.normal(kb, (1, cout), jnp.float32) * 0.01
    return w, b


def init_carn_params(key, in_channels, out_channels, scale_factor, num_channels, num_blocks):
    keys = iter(jax.random.split(key, 64))
    p = {"head": _conv3x3_params(next(keys), in_channels, num_channels)}
    blocks = []
    for i in range(num_blocks):
        blocks.append({
            "res1": _conv3x3_params(next(keys), num_channels, num_channels),
            "res2": _conv3x3_params(next(keys), num_channels, num_channels),
            "cat":  _conv1x1_params(next(keys), i + 2, num_channels, num_channels),
        })
    p["blocks"] = blocks
    # Upsample params hold ONLY arrays (no Python ints) so the pytree jits
    # cleanly; the pixel-shuffle factor is recovered from the static weight shape.
    ups = []
    if scale_factor == 3:
        ups.append(_conv3x3_params(next(keys), num_channels, 9 * num_channels))
    else:
        for _ in range(int(math.log2(scale_factor))):
            ups.append(_conv3x3_params(next(keys), num_channels, 4 * num_channels))
    p["upsample"] = ups
    p["tail"] = _conv3x3_params(next(keys), num_channels, out_channels)
    return p


# ----------------------------------------------------------------------------------
# CARN forward
# ----------------------------------------------------------------------------------
def carn_forward(params, x_nchw):
    x = jnp.transpose(x_nchw, (0, 2, 3, 1)).astype(jnp.bfloat16)   # NCHW -> NHWC

    # head
    hw, hb = params["head"]
    x = conv3x3(x, hw, hb)

    # cascading blocks — the growing concat r is kept as a component list
    comps = [x]
    for blk in params["blocks"]:
        w1, b1 = blk["res1"]
        w2, b2 = blk["res2"]
        x_ = residual_block(x, w1, b1, w2, b2)       # fused 2x conv3x3 + skip + ReLU
        comps.append(x_)
        cw, cb = blk["cat"]
        x = cat_conv1x1(comps, cw, cb)

    # upsample: conv3x3+ReLU -> PixelShuffle(r); r from static weight shapes
    for uw, ub in params["upsample"]:
        r = int(math.isqrt(int(uw.shape[2]) // int(uw.shape[1])))
        x = conv3x3(x, uw, ub, relu=True)
        x = pixel_shuffle(x, r)

    # tail
    tw, tb = params["tail"]
    x = conv3x3(x, tw, tb, out_dtype=jnp.float32)

    return jnp.transpose(x, (0, 3, 1, 2))            # NHWC -> NCHW


# ----------------------------------------------------------------------------------
if __name__ == "__main__":
    # CARN(in=3, out=3, scale_factor=2, num_channels=16, num_blocks=2, inner_block=ResidualBlock)
    in_channels, out_channels = 3, 3
    scale_factor, num_channels, num_blocks = 2, 16, 2
    B, H, W = 2, 8, 8

    key = jax.random.PRNGKey(0)
    kx, kp = jax.random.split(key)
    x = jax.random.normal(kx, (B, in_channels, H, W), jnp.float32)
    params = init_carn_params(kp, in_channels, out_channels, scale_factor,
                              num_channels, num_blocks)

    fwd = jax.jit(carn_forward)
    out = jax.block_until_ready(fwd(params, x))
    assert out.shape == (B, out_channels, H * scale_factor, W * scale_factor), out.shape
    assert bool(jnp.all(jnp.isfinite(out)))
    print("KERNEL_OK")
</pallas_src>

<mosaic_0001>
module attributes {stable_mosaic.version = 11 : i64} {
  func.func @_resblock_kernel(%arg0: i32, %arg1: memref<1x12x18x16xbf16, #tpu.memory_space<vmem>>, %arg2: memref<9x16x16xbf16, #tpu.memory_space<vmem>>, %arg3: memref<1x16xf32, #tpu.memory_space<vmem>>, %arg4: memref<9x16x16xbf16, #tpu.memory_space<vmem>>, %arg5: memref<1x16xf32, #tpu.memory_space<vmem>>, %arg6: memref<1x8x8x16xbf16, #tpu.memory_space<vmem>>) attributes {dimension_semantics = [#tpu.dimension_semantics<parallel>], iteration_bounds = array<i64: 2>, scalar_prefetch = 0 : i64, scratch_operands = 0 : i64, tpu.core_type = #tpu.core_type<tc>, window_params = [{transform_indices = @transform_0, window_bounds = array<i64: 1, 12, 18, 16>}, {pipeline_mode = #tpu.pipeline_mode<synchronous>, transform_indices = @transform_1, window_bounds = array<i64: 9, 16, 16>}, {pipeline_mode = #tpu.pipeline_mode<synchronous>, transform_indices = @transform_2, window_bounds = array<i64: 1, 16>}, {pipeline_mode = #tpu.pipeline_mode<synchronous>, transform_indices = @transform_3, window_bounds = array<i64: 9, 16, 16>}, {pipeline_mode = #tpu.pipeline_mode<synchronous>, transform_indices = @transform_4, window_bounds = array<i64: 1, 16>}, {transform_indices = @transform_5, window_bounds = array<i64: 1, 8, 8, 16>}]} {
    %c0 = arith.constant 0 : index
    %c0_0 = arith.constant 0 : index
    %c0_1 = arith.constant 0 : index
    %c0_2 = arith.constant 0 : index
    %0 = vector.load %arg1[%c0, %c0_0, %c0_1, %c0_2] : memref<1x12x18x16xbf16, #tpu.memory_space<vmem>>, vector<1x12x18x16xbf16>
    %1 = vector.shape_cast %0 : vector<1x12x18x16xbf16> to vector<12x18x16xbf16>
    %cst = arith.constant 0.000000e+00 : f32
    %2 = vector.broadcast %cst : f32 to vector<160x16xf32>
    %3 = vector.extract_strided_slice %1 {offsets = [0, 0, 0], sizes = [10, 16, 16], strides = [1, 1, 1]} : vector<12x18x16xbf16> to vector<10x16x16xbf16>
    %4 = vector.shape_cast %3 : vector<10x16x16xbf16> to vector<160x16xbf16>
    %c0_3 = arith.constant 0 : index
    %c0_4 = arith.constant 0 : index
    %c0_5 = arith.constant 0 : index
    %5 = vector.load %arg2[%c0_3, %c0_4, %c0_5] : memref<9x16x16xbf16, #tpu.memory_space<vmem>>, vector<1x16x16xbf16>
    %6 = vector.shape_cast %5 : vector<1x16x16xbf16> to vector<16x16xbf16>
    %cst_6 = arith.constant dense<0.000000e+00> : vector<160x16xf32>
    %7 = tpu.matmul %4, %6, %cst_6 {dimension_numbers = #tpu.dot_dimension_numbers<[1], [0], [0], [1], [0, 0, 1, 1], [], []>} : vector<160x16xbf16>, vector<16x16xbf16>, vector<160x16xf32> -> vector<160x16xf32>
    %8 = arith.addf %2, %7 : vector<160x16xf32>
    %9 = vector.extract_strided_slice %1 {offsets = [0, 1, 0], sizes = [10, 16, 16], strides = [1, 1, 1]} : vector<12x18x16xbf16> to vector<10x16x16xbf16>
    %10 = vector.shape_cast %9 : vector<10x16x16xbf16> to vector<160x16xbf16>
    %c1 = arith.constant 1 : index
    %c0_7 = arith.constant 0 : index
    %c0_8 = arith.constant 0 : index
    %11 = vector.load %arg2[%c1, %c0_7, %c0_8] : memref<9x16x16xbf16, #tpu.memory_space<vmem>>, vector<1x16x16xbf16>
    %12 = vector.shape_cast %11 : vector<1x16x16xbf16> to vector<16x16xbf16>
    %cst_9 = arith.constant dense<0.000000e+00> : vector<160x16xf32>
    %13 = tpu.matmul %10, %12, %cst_9 {dimension_numbers = #tpu.dot_dimension_numbers<[1], [0], [0], [1], [0, 0, 1, 1], [], []>} : vector<160x16xbf16>, vector<16x16xbf16>, vector<160x16xf32> -> vector<160x16xf32>
    %14 = arith.addf %8, %13 : vector<160x16xf32>
    %15 = vector.extract_strided_slice %1 {offsets = [0, 2, 0], sizes = [10, 16, 16], strides = [1, 1, 1]} : vector<12x18x16xbf16> to vector<10x16x16xbf16>
    %16 = vector.shape_cast %15 : vector<10x16x16xbf16> to vector<160x16xbf16>
    %c2 = arith.constant 2 : index
    %c0_10 = arith.constant 0 : index
    %c0_11 = arith.constant 0 : index
    %17 = vector.load %arg2[%c2, %c0_10, %c0_11] : memref<9x16x16xbf16, #tpu.memory_space<vmem>>, vector<1x16x16xbf16>
    %18 = vector.shape_cast %17 : vector<1x16x16xbf16> to vector<16x16xbf16>
    %cst_12 = arith.constant dense<0.000000e+00> : vector<160x16xf32>
    %19 = tpu.matmul %16, %18, %cst_12 {dimension_numbers = #tpu.dot_dimension_numbers<[1], [0], [0], [1], [0, 0, 1, 1], [], []>} : vector<160x16xbf16>, vector<16x16xbf16>, vector<160x16xf32> -> vector<160x16xf32>
    %20 = arith.addf %14, %19 : vector<160x16xf32>
    %21 = vector.extract_strided_slice %1 {offsets = [1, 0, 0], sizes = [10, 16, 16], strides = [1, 1, 1]} : vector<12x18x16xbf16> to vector<10x16x16xbf16>
    %22 = vector.shape_cast %21 : vector<10x16x16xbf16> to vector<160x16xbf16>
    %c3 = arith.constant 3 : index
    %c0_13 = arith.constant 0 : index
    %c0_14 = arith.constant 0 : index
    %23 = vector.load %arg2[%c3, %c0_13, %c0_14] : memref<9x16x16xbf16, #tpu.memory_space<vmem>>, vector<1x16x16xbf16>
    %24 = vector.shape_cast %23 : vector<1x16x16xbf16> to vector<16x16xbf16>
    %cst_15 = arith.constant dense<0.000000e+00> : vector<160x16xf32>
    %25 = tpu.matmul %22, %24, %cst_15 {dimension_numbers = #tpu.dot_dimension_numbers<[1], [0], [0], [1], [0, 0, 1, 1], [], []>} : vector<160x16xbf16>, vector<16x16xbf16>, vector<160x16xf32> -> vector<160x16xf32>
    %26 = arith.addf %20, %25 : vector<160x16xf32>
    %27 = vector.extract_strided_slice %1 {offsets = [1, 1, 0], sizes = [10, 16, 16], strides = [1, 1, 1]} : vector<12x18x16xbf16> to vector<10x16x16xbf16>
    %28 = vector.shape_cast %27 : vector<10x16x16xbf16> to vector<160x16xbf16>
    %c4 = arith.constant 4 : index
    %c0_16 = arith.constant 0 : index
    %c0_17 = arith.constant 0 : index
    %29 = vector.load %arg2[%c4, %c0_16, %c0_17] : memref<9x16x16xbf16, #tpu.memory_space<vmem>>, vector<1x16x16xbf16>
    %30 = vector.shape_cast %29 : vector<1x16x16xbf16> to vector<16x16xbf16>
    %cst_18 = arith.constant dense<0.000000e+00> : vector<160x16xf32>
    %31 = tpu.matmul %28, %30, %cst_18 {dimension_numbers = #tpu.dot_dimension_numbers<[1], [0], [0], [1], [0, 0, 1, 1], [], []>} : vector<160x16xbf16>, vector<16x16xbf16>, vector<160x16xf32> -> vector<160x16xf32>
    %32 = arith.addf %26, %31 : vector<160x16xf32>
    %33 = vector.extract_strided_slice %1 {offsets = [1, 2, 0], sizes = [10, 16, 16], strides = [1, 1, 1]} : vector<12x18x16xbf16> to vector<10x16x16xbf16>
    %34 = vector.shape_cast %33 : vector<10x16x16xbf16> to vector<160x16xbf16>
    %c5 = arith.constant 5 : index
    %c0_19 = arith.constant 0 : index
    %c0_20 = arith.constant 0 : index
    %35 = vector.load %arg2[%c5, %c0_19, %c0_20] : memref<9x16x16xbf16, #tpu.memory_space<vmem>>, vector<1x16x16xbf16>
    %36 = vector.shape_cast %35 : vector<1x16x16xbf16> to vector<16x16xbf16>
    %cst_21 = arith.constant dense<0.000000e+00> : vector<160x16xf32>
    %37 = tpu.matmul %34, %36, %cst_21 {dimension_numbers = #tpu.dot_dimension_numbers<[1], [0], [0], [1], [0, 0, 1, 1], [], []>} : vector<160x16xbf16>, vector<16x16xbf16>, vector<160x16xf32> -> vector<160x16xf32>
    %38 = arith.addf %32, %37 : vector<160x16xf32>
    %39 = vector.extract_strided_slice %1 {offsets = [2, 0, 0], sizes = [10, 16, 16], strides = [1, 1, 1]} : vector<12x18x16xbf16> to vector<10x16x16xbf16>
    %40 = vector.shape_cast %39 : vector<10x16x16xbf16> to vector<160x16xbf16>
    %c6 = arith.constant 6 : index
    %c0_22 = arith.constant 0 : index
    %c0_23 = arith.constant 0 : index
    %41 = vector.load %arg2[%c6, %c0_22, %c0_23] : memref<9x16x16xbf16, #tpu.memory_space<vmem>>, vector<1x16x16xbf16>
    %42 = vector.shape_cast %41 : vector<1x16x16xbf16> to vector<16x16xbf16>
    %cst_24 = arith.constant dense<0.000000e+00> : vector<160x16xf32>
    %43 = tpu.matmul %40, %42, %cst_24 {dimension_numbers = #tpu.dot_dimension_numbers<[1], [0], [0], [1], [0, 0, 1, 1], [], []>} : vector<160x16xbf16>, vector<16x16xbf16>, vector<160x16xf32> -> vector<160x16xf32>
    %44 = arith.addf %38, %43 : vector<160x16xf32>
    %45 = vector.extract_strided_slice %1 {offsets = [2, 1, 0], sizes = [10, 16, 16], strides = [1, 1, 1]} : vector<12x18x16xbf16> to vector<10x16x16xbf16>
    %46 = vector.shape_cast %45 : vector<10x16x16xbf16> to vector<160x16xbf16>
    %c7 = arith.constant 7 : index
    %c0_25 = arith.constant 0 : index
    %c0_26 = arith.constant 0 : index
    %47 = vector.load %arg2[%c7, %c0_25, %c0_26] : memref<9x16x16xbf16, #tpu.memory_space<vmem>>, vector<1x16x16xbf16>
    %48 = vector.shape_cast %47 : vector<1x16x16xbf16> to vector<16x16xbf16>
    %cst_27 = arith.constant dense<0.000000e+00> : vector<160x16xf32>
    %49 = tpu.matmul %46, %48, %cst_27 {dimension_numbers = #tpu.dot_dimension_numbers<[1], [0], [0], [1], [0, 0, 1, 1], [], []>} : vector<160x16xbf16>, vector<16x16xbf16>, vector<160x16xf32> -> vector<160x16xf32>
    %50 = arith.addf %44, %49 : vector<160x16xf32>
    %51 = vector.extract_strided_slice %1 {offsets = [2, 2, 0], sizes = [10, 16, 16], strides = [1, 1, 1]} : vector<12x18x16xbf16> to vector<10x16x16xbf16>
    %52 = vector.shape_cast %51 : vector<10x16x16xbf16> to vector<160x16xbf16>
    %c8 = arith.constant 8 : index
    %c0_28 = arith.constant 0 : index
    %c0_29 = arith.constant 0 : index
    %53 = vector.load %arg2[%c8, %c0_28, %c0_29] : memref<9x16x16xbf16, #tpu.memory_space<vmem>>, vector<1x16x16xbf16>
    %54 = vector.shape_cast %53 : vector<1x16x16xbf16> to vector<16x16xbf16>
    %cst_30 = arith.constant dense<0.000000e+00> : vector<160x16xf32>
    %55 = tpu.matmul %52, %54, %cst_30 {dimension_numbers = #tpu.dot_dimension_numbers<[1], [0], [0], [1], [0, 0, 1, 1], [], []>} : vector<160x16xbf16>, vector<16x16xbf16>, vector<160x16xf32> -> vector<160x16xf32>
    %56 = arith.addf %50, %55 : vector<160x16xf32>
    %c0_31 = arith.constant 0 : index
    %c0_32 = arith.constant 0 : index
    %57 = vector.load %arg3[%c0_31, %c0_32] : memref<1x16xf32, #tpu.memory_space<vmem>>, vector<1x16xf32>
    %58 = vector.broadcast %57 : vector<1x16xf32> to vector<160x16xf32>
    %59 = arith.addf %56, %58 : vector<160x16xf32>
    %cst_33 = arith.constant 0.000000e+00 : f32
    %60 = vector.broadcast %cst_33 : f32 to vector<160x16xf32>
    %61 = arith.maximumf %59, %60 : vector<160x16xf32>
    %62 = vector.shape_cast %61 : vector<160x16xf32> to vector<10x16x16xf32>
    %63 = tpu.iota {dimensions = array<i32: 0>} : vector<10x16x16xi32>
    %64 = tpu.iota {dimensions = array<i32: 1>} : vector<10x16x16xi32>
    %c1_i32 = arith.constant 1 : i32
    %65 = vector.broadcast %c1_i32 : i32 to vector<10x16x16xi32>
    %66 = arith.cmpi sge, %63, %65 : vector<10x16x16xi32>
    %c8_i32 = arith.constant 8 : i32
    %67 = vector.broadcast %c8_i32 : i32 to vector<10x16x16xi32>
    %68 = arith.cmpi sle, %63, %67 : vector<10x16x16xi32>
    %69 = arith.andi %66, %68 : vector<10x16x16xi1>
    %c1_i32_34 = arith.constant 1 : i32
    %70 = vector.broadcast %c1_i32_34 : i32 to vector<10x16x16xi32>
    %71 = arith.cmpi sge, %64, %70 : vector<10x16x16xi32>
    %72 = arith.andi %69, %71 : vector<10x16x16xi1>
    %c8_i32_35 = arith.constant 8 : i32
    %73 = vector.broadcast %c8_i32_35 : i32 to vector<10x16x16xi32>
    %74 = arith.cmpi sle, %64, %73 : vector<10x16x16xi32>
    %75 = arith.andi %72, %74 : vector<10x16x16xi1>
    %cst_36 = arith.constant 0.000000e+00 : f32
    %76 = vector.broadcast %cst_36 : f32 to vector<10x16x16xf32>
    %77 = arith.select %75, %62, %76 : vector<10x16x16xi1>, vector<10x16x16xf32>
    %78 = arith.truncf %77 : vector<10x16x16xf32> to vector<10x16x16xbf16>
    %cst_37 = arith.constant 0.000000e+00 : f32
    %79 = vector.broadcast %cst_37 : f32 to vector<64x16xf32>
    %80 = vector.extract_strided_slice %78 {offsets = [0, 0, 0], sizes = [8, 8, 16], strides = [1, 1, 1]} : vector<10x16x16xbf16> to vector<8x8x16xbf16>
    %81 = vector.shape_cast %80 : vector<8x8x16xbf16> to vector<64x16xbf16>
    %c0_38 = arith.constant 0 : index
    %c0_39 = arith.constant 0 : index
    %c0_40 = arith.constant 0 : index
    %82 = vector.load %arg4[%c0_38, %c0_39, %c0_40] : memref<9x16x16xbf16, #tpu.memory_space<vmem>>, vector<1x16x16xbf16>
    %83 = vector.shape_cast %82 : vector<1x16x16xbf16> to vector<16x16xbf16>
    %cst_41 = arith.constant dense<0.000000e+00> : vector<64x16xf32>
    %84 = tpu.matmul %81, %83, %cst_41 {dimension_numbers = #tpu.dot_dimension_numbers<[1], [0], [0], [1], [0, 0, 1, 1], [], []>} : vector<64x16xbf16>, vector<16x16xbf16>, vector<64x16xf32> -> vector<64x16xf32>
    %85 = arith.addf %79, %84 : vector<64x16xf32>
    %86 = vector.extract_strided_slice %78 {offsets = [0, 1, 0], sizes = [8, 8, 16], strides = [1, 1, 1]} : vector<10x16x16xbf16> to vector<8x8x16xbf16>
    %87 = vector.shape_cast %86 : vector<8x8x16xbf16> to vector<64x16xbf16>
    %c1_42 = arith.constant 1 : index
    %c0_43 = arith.constant 0 : index
    %c0_44 = arith.constant 0 : index
    %88 = vector.load %arg4[%c1_42, %c0_43, %c0_44] : memref<9x16x16xbf16, #tpu.memory_space<vmem>>, vector<1x16x16xbf16>
    %89 = vector.shape_cast %88 : vector<1x16x16xbf16> to vector<16x16xbf16>
    %cst_45 = arith.constant dense<0.000000e+00> : vector<64x16xf32>
    %90 = tpu.matmul %87, %89, %cst_45 {dimension_numbers = #tpu.dot_dimension_numbers<[1], [0], [0], [1], [0, 0, 1, 1], [], []>} : vector<64x16xbf16>, vector<16x16xbf16>, vector<64x16xf32> -> vector<64x16xf32>
    %91 = arith.addf %85, %90 : vector<64x16xf32>
    %92 = vector.extract_strided_slice %78 {offsets = [0, 2, 0], sizes = [8, 8, 16], strides = [1, 1, 1]} : vector<10x16x16xbf16> to vector<8x8x16xbf16>
    %93 = vector.shape_cast %92 : vector<8x8x16xbf16> to vector<64x16xbf16>
    %c2_46 = arith.constant 2 : index
    %c0_47 = arith.constant 0 : index
    %c0_48 = arith.constant 0 : index
    %94 = vector.load %arg4[%c2_46, %c0_47, %c0_48] : memref<9x16x16xbf16, #tpu.memory_space<vmem>>, vector<1x16x16xbf16>
    %95 = vector.shape_cast %94 : vector<1x16x16xbf16> to vector<16x16xbf16>
    %cst_49 = arith.constant dense<0.000000e+00> : vector<64x16xf32>
    %96 = tpu.matmul %93, %95, %cst_49 {dimension_numbers = #tpu.dot_dimension_numbers<[1], [0], [0], [1], [0, 0, 1, 1], [], []>} : vector<64x16xbf16>, vector<16x16xbf16>, vector<64x16xf32> -> vector<64x16xf32>
    %97 = arith.addf %91, %96 : vector<64x16xf32>
    %98 = vector.extract_strided_slice %78 {offsets = [1, 0, 0], sizes = [8, 8, 16], strides = [1, 1, 1]} : vector<10x16x16xbf16> to vector<8x8x16xbf16>
    %99 = vector.shape_cast %98 : vector<8x8x16xbf16> to vector<64x16xbf16>
    %c3_50 = arith.constant 3 : index
    %c0_51 = arith.constant 0 : index
    %c0_52 = arith.constant 0 : index
    %100 = vector.load %arg4[%c3_50, %c0_51, %c0_52] : memref<9x16x16xbf16, #tpu.memory_space<vmem>>, vector<1x16x16xbf16>
    %101 = vector.shape_cast %100 : vector<1x16x16xbf16> to vector<16x16xbf16>
    %cst_53 = arith.constant dense<0.000000e+00> : vector<64x16xf32>
    %102 = tpu.matmul %99, %101, %cst_53 {dimension_numbers = #tpu.dot_dimension_numbers<[1], [0], [0], [1], [0, 0, 1, 1], [], []>} : vector<64x16xbf16>, vector<16x16xbf16>, vector<64x16xf32> -> vector<64x16xf32>
    %103 = arith.addf %97, %102 : vector<64x16xf32>
    %104 = vector.extract_strided_slice %78 {offsets = [1, 1, 0], sizes = [8, 8, 16], strides = [1, 1, 1]} : vector<10x16x16xbf16> to vector<8x8x16xbf16>
    %105 = vector.shape_cast %104 : vector<8x8x16xbf16> to vector<64x16xbf16>
    %c4_54 = arith.constant 4 : index
    %c0_55 = arith.constant 0 : index
    %c0_56 = arith.constant 0 : index
    %106 = vector.load %arg4[%c4_54, %c0_55, %c0_56] : memref<9x16x16xbf16, #tpu.memory_space<vmem>>, vector<1x16x16xbf16>
    %107 = vector.shape_cast %106 : vector<1x16x16xbf16> to vector<16x16xbf16>
    %cst_57 = arith.constant dense<0.000000e+00> : vector<64x16xf32>
    %108 = tpu.matmul %105, %107, %cst_57 {dimension_numbers = #tpu.dot_dimension_numbers<[1], [0], [0], [1], [0, 0, 1, 1], [], []>} : vector<64x16xbf16>, vector<16x16xbf16>, vector<64x16xf32> -> vector<64x16xf32>
    %109 = arith.addf %103, %108 : vector<64x16xf32>
    %110 = vector.extract_strided_slice %78 {offsets = [1, 2, 0], sizes = [8, 8, 16], strides = [1, 1, 1]} : vector<10x16x16xbf16> to vector<8x8x16xbf16>
    %111 = vector.shape_cast %110 : vector<8x8x16xbf16> to vector<64x16xbf16>
    %c5_58 = arith.constant 5 : index
    %c0_59 = arith.constant 0 : index
    %c0_60 = arith.constant 0 : index
    %112 = vector.load %arg4[%c5_58, %c0_59, %c0_60] : memref<9x16x16xbf16, #tpu.memory_space<vmem>>, vector<1x16x16xbf16>
    %113 = vector.shape_cast %112 : vector<1x16x16xbf16> to vector<16x16xbf16>
    %cst_61 = arith.constant dense<0.000000e+00> : vector<64x16xf32>
    %114 = tpu.matmul %111, %113, %cst_61 {dimension_numbers = #tpu.dot_dimension_numbers<[1], [0], [0], [1], [0, 0, 1, 1], [], []>} : vector<64x16xbf16>, vector<16x16xbf16>, vector<64x16xf32> -> vector<64x16xf32>
    %115 = arith.addf %109, %114 : vector<64x16xf32>
    %116 = vector.extract_strided_slice %78 {offsets = [2, 0, 0], sizes = [8, 8, 16], strides = [1, 1, 1]} : vector<10x16x16xbf16> to vector<8x8x16xbf16>
    %117 = vector.shape_cast %116 : vector<8x8x16xbf16> to vector<64x16xbf16>
    %c6_62 = arith.constant 6 : index
    %c0_63 = arith.constant 0 : index
    %c0_64 = arith.constant 0 : index
    %118 = vector.load %arg4[%c6_62, %c0_63, %c0_64] : memref<9x16x16xbf16, #tpu.memory_space<vmem>>, vector<1x16x16xbf16>
    %119 = vector.shape_cast %118 : vector<1x16x16xbf16> to vector<16x16xbf16>
    %cst_65 = arith.constant dense<0.000000e+00> : vector<64x16xf32>
    %120 = tpu.matmul %117, %119, %cst_65 {dimension_numbers = #tpu.dot_dimension_numbers<[1], [0], [0], [1], [0, 0, 1, 1], [], []>} : vector<64x16xbf16>, vector<16x16xbf16>, vector<64x16xf32> -> vector<64x16xf32>
    %121 = arith.addf %115, %120 : vector<64x16xf32>
    %122 = vector.extract_strided_slice %78 {offsets = [2, 1, 0], sizes = [8, 8, 16], strides = [1, 1, 1]} : vector<10x16x16xbf16> to vector<8x8x16xbf16>
    %123 = vector.shape_cast %122 : vector<8x8x16xbf16> to vector<64x16xbf16>
    %c7_66 = arith.constant 7 : index
    %c0_67 = arith.constant 0 : index
    %c0_68 = arith.constant 0 : index
    %124 = vector.load %arg4[%c7_66, %c0_67, %c0_68] : memref<9x16x16xbf16, #tpu.memory_space<vmem>>, vector<1x16x16xbf16>
    %125 = vector.shape_cast %124 : vector<1x16x16xbf16> to vector<16x16xbf16>
    %cst_69 = arith.constant dense<0.000000e+00> : vector<64x16xf32>
    %126 = tpu.matmul %123, %125, %cst_69 {dimension_numbers = #tpu.dot_dimension_numbers<[1], [0], [0], [1], [0, 0, 1, 1], [], []>} : vector<64x16xbf16>, vector<16x16xbf16>, vector<64x16xf32> -> vector<64x16xf32>
    %127 = arith.addf %121, %126 : vector<64x16xf32>
    %128 = vector.extract_strided_slice %78 {offsets = [2, 2, 0], sizes = [8, 8, 16], strides = [1, 1, 1]} : vector<10x16x16xbf16> to vector<8x8x16xbf16>
    %129 = vector.shape_cast %128 : vector<8x8x16xbf16> to vector<64x16xbf16>
    %c8_70 = arith.constant 8 : index
    %c0_71 = arith.constant 0 : index
    %c0_72 = arith.constant 0 : index
    %130 = vector.load %arg4[%c8_70, %c0_71, %c0_72] : memref<9x16x16xbf16, #tpu.memory_space<vmem>>, vector<1x16x16xbf16>
    %131 = vector.shape_cast %130 : vector<1x16x16xbf16> to vector<16x16xbf16>
    %cst_73 = arith.constant dense<0.000000e+00> : vector<64x16xf32>
    %132 = tpu.matmul %129, %131, %cst_73 {dimension_numbers = #tpu.dot_dimension_numbers<[1], [0], [0], [1], [0, 0, 1, 1], [], []>} : vector<64x16xbf16>, vector<16x16xbf16>, vector<64x16xf32> -> vector<64x16xf32>
    %133 = arith.addf %127, %132 : vector<64x16xf32>
    %134 = vector.extract_strided_slice %1 {offsets = [2, 2, 0], sizes = [8, 8, 16], strides = [1, 1, 1]} : vector<12x18x16xbf16> to vector<8x8x16xbf16>
    %135 = vector.shape_cast %134 : vector<8x8x16xbf16> to vector<64x16xbf16>
    %136 = arith.extf %135 : vector<64x16xbf16> to vector<64x16xf32>
    %c0_74 = arith.constant 0 : index
    %c0_75 = arith.constant 0 : index
    %137 = vector.load %arg5[%c0_74, %c0_75] : memref<1x16xf32, #tpu.memory_space<vmem>>, vector<1x16xf32>
    %138 = vector.broadcast %137 : vector<1x16xf32> to vector<64x16xf32>
    %139 = arith.addf %133, %138 : vector<64x16xf32>
    %140 = arith.addf %139, %136 : vector<64x16xf32>
    %cst_76 = arith.constant 0.000000e+00 : f32
    %141 = vector.broadcast %cst_76 : f32 to vector<64x16xf32>
    %142 = arith.maximumf %140, %141 : vector<64x16xf32>
    %143 = vector.shape_cast %142 : vector<64x16xf32> to vector<8x8x16xf32>
    %144 = arith.truncf %143 : vector<8x8x16xf32> to vector<8x8x16xbf16>
    %c0_77 = arith.constant 0 : index
    %c0_78 = arith.constant 0 : index
    %c0_79 = arith.constant 0 : index
    %c0_80 = arith.constant 0 : index
    %145 = vector.load %arg6[%c0_77, %c0_78, %c0_79, %c0_80] : memref<1x8x8x16xbf16, #tpu.memory_space<vmem>>, vector<1x8x8x16xbf16>
    %146 = vector.shape_cast %145 : vector<1x8x8x16xbf16> to vector<8x8x16xbf16>
    %147 = vector.shape_cast %144 : vector<8x8x16xbf16> to vector<1x8x8x16xbf16>
    tpu.vector_store %arg6[%c0_77, %c0_78, %c0_79, %c0_80], %147 {strides = array<i32>} : memref<1x8x8x16xbf16, #tpu.memory_space<vmem>>, vector<1x8x8x16xbf16>,
    return
  }
  func.func @transform_0(%arg0: i32) -> (i32, i32, i32, i32) {
    %c0_i32 = arith.constant 0 : i32
    %c0_i32_0 = arith.constant 0 : i32
    %c0_i32_1 = arith.constant 0 : i32
    %c0_i32_2 = arith.constant 0 : i32
    return %arg0, %c0_i32, %c0_i32_0, %c0_i32_1 : i32, i32, i32, i32
  }
  func.func @transform_1(%arg0: i32) -> (i32, i32, i32) {
    %c0_i32 = arith.constant 0 : i32
    %c0_i32_0 = arith.constant 0 : i32
    %c0_i32_1 = arith.constant 0 : i32
    %c0_i32_2 = arith.constant 0 : i32
    return %c0_i32, %c0_i32_0, %c0_i32_1 : i32, i32, i32
  }
  func.func @transform_2(%arg0: i32) -> (i32, i32) {
    %c0_i32 = arith.constant 0 : i32
    %c0_i32_0 = arith.constant 0 : i32
    %c0_i32_1 = arith.constant 0 : i32
    return %c0_i32, %c0_i32_0 : i32, i32
  }
  func.func @transform_3(%arg0: i32) -> (i32, i32, i32) {
    %c0_i32 = arith.constant 0 : i32
    %c0_i32_0 = arith.constant 0 : i32
    %c0_i32_1 = arith.constant 0 : i32
    %c0_i32_2 = arith.constant 0 : i32
    return %c0_i32, %c0_i32_0, %c0_i32_1 : i32, i32, i32
  }
  func.func @transform_4(%arg0: i32) -> (i32, i32) {
    %c0_i32 = arith.constant 0 : i32
    %c0_i32_0 = arith.constant 0 : i32
    %c0_i32_1 = arith.constant 0 : i32
    return %c0_i32, %c0_i32_0 : i32, i32
  }
  func.func @transform_5(%arg0: i32) -> (i32, i32, i32, i32) {
    %c0_i32 = arith.constant 0 : i32
    %c0_i32_0 = arith.constant 0 : i32
    %c0_i32_1 = arith.constant 0 : i32
    %c0_i32_2 = arith.constant 0 : i32
    return %arg0, %c0_i32, %c0_i32_0, %c0_i32_1 : i32, i32, i32, i32
  }
}

module attributes {stable_mosaic.version = 11 : i64} {
  func.func @kernel(%arg0: i32, %arg1: memref<128x16xbf16, #tpu.memory_space<vmem>>, %arg2: memref<128x16xbf16, #tpu.memory_space<vmem>>, %arg3: memref<2x16x16xbf16, #tpu.memory_space<vmem>>, %arg4: memref<1x16xf32, #tpu.memory_space<vmem>>, %arg5: memref<128x16xbf16, #tpu.memory_space<vmem>>) attributes {dimension_semantics = [#tpu.dimension_semantics<parallel>], iteration_bounds = array<i64: 1>, scalar_prefetch = 0 : i64, scratch_operands = 0 : i64, tpu.core_type = #tpu.core_type<tc>, window_params = [{transform_indices = @transform_0, window_bounds = array<i64: 128, 16>}, {transform_indices = @transform_1, window_bounds = array<i64: 128, 16>}, {pipeline_mode = #tpu.pipeline_mode<synchronous>, transform_indices = @transform_2, window_bounds = array<i64: 2, 16, 16>}, {pipeline_mode = #tpu.pipeline_mode<synchronous>, transform_indices = @transform_3, window_bounds = array<i64: 1, 16>}, {transform_indices = @transform_4, window_bounds = array<i64: 128, 16>}]} {
    %cst = arith.constant 0.000000e+00 : f32
    %0 = vector.broadcast %cst : f32 to vector<128x16xf32>
    %c0 = arith.constant 0 : index
    %c0_0 = arith.constant 0 : index
    %1 = vector.load %arg1[%c0, %c0_0] : memref<128x16xbf16, #tpu.memory_space<vmem>>, vector<128x16xbf16>
    %c0_1 = arith.constant 0 : index
    %c0_2 = arith.constant 0 : index
    %c0_3 = arith.constant 0 : index
    %2 = vector.load %arg3[%c0_1, %c0_2, %c0_3] : memref<2x16x16xbf16, #tpu.memory_space<vmem>>, vector<1x16x16xbf16>
    %3 = vector.shape_cast %2 : vector<1x16x16xbf16> to vector<16x16xbf16>
    %cst_4 = arith.constant dense<0.000000e+00> : vector<128x16xf32>
    %4 = tpu.matmul %1, %3, %cst_4 {dimension_numbers = #tpu.dot_dimension_numbers<[1], [0], [0], [1], [0, 0, 1, 1], [], []>} : vector<128x16xbf16>, vector<16x16xbf16>, vector<128x16xf32> -> vector<128x16xf32>
    %5 = arith.addf %0, %4 : vector<128x16xf32>
    %c0_5 = arith.constant 0 : index
    %c0_6 = arith.constant 0 : index
    %6 = vector.load %arg2[%c0_5, %c0_6] : memref<128x16xbf16, #tpu.memory_space<vmem>>, vector<128x16xbf16>
    %c1 = arith.constant 1 : index
    %c0_7 = arith.constant 0 : index
    %c0_8 = arith.constant 0 : index
    %7 = vector.load %arg3[%c1, %c0_7, %c0_8] : memref<2x16x16xbf16, #tpu.memory_space<vmem>>, vector<1x16x16xbf16>
    %8 = vector.shape_cast %7 : vector<1x16x16xbf16> to vector<16x16xbf16>
    %cst_9 = arith.constant dense<0.000000e+00> : vector<128x16xf32>
    %9 = tpu.matmul %6, %8, %cst_9 {dimension_numbers = #tpu.dot_dimension_numbers<[1], [0], [0], [1], [0, 0, 1, 1], [], []>} : vector<128x16xbf16>, vector<16x16xbf16>, vector<128x16xf32> -> vector<128x16xf32>
    %10 = arith.addf %5, %9 : vector<128x16xf32>
    %c0_10 = arith.constant 0 : index
    %c0_11 = arith.constant 0 : index
    %11 = vector.load %arg4[%c0_10, %c0_11] : memref<1x16xf32, #tpu.memory_space<vmem>>, vector<1x16xf32>
    %12 = vector.broadcast %11 : vector<1x16xf32> to vector<128x16xf32>
    %13 = arith.addf %10, %12 : vector<128x16xf32>
    %14 = arith.truncf %13 : vector<128x16xf32> to vector<128x16xbf16>
    %c0_12 = arith.constant 0 : index
    %c0_13 = arith.constant 0 : index
    %15 = vector.load %arg5[%c0_12, %c0_13] : memref<128x16xbf16, #tpu.memory_space<vmem>>, vector<128x16xbf16>
    tpu.vector_store %arg5[%c0_12, %c0_13], %14 {strides = array<i32>} : memref<128x16xbf16, #tpu.memory_space<vmem>>, vector<128x16xbf16>,
    return
  }
  func.func @transform_0(%arg0: i32) -> (i32, i32) {
    %c0_i32 = arith.constant 0 : i32
    %c0_i32_0 = arith.constant 0 : i32
    return %arg0, %c0_i32 : i32, i32
  }
  func.func @transform_1(%arg0: i32) -> (i32, i32) {
    %c0_i32 = arith.constant 0 : i32
    %c0_i32_0 = arith.constant 0 : i32
    return %arg0, %c0_i32 : i32, i32
  }
  func.func @transform_2(%arg0: i32) -> (i32, i32, i32) {
    %c0_i32 = arith.constant 0 : i32
    %c0_i32_0 = arith.constant 0 : i32
    %c0_i32_1 = arith.constant 0 : i32
    %c0_i32_2 = arith.constant 0 : i32
    return %c0_i32, %c0_i32_0, %c0_i32_1 : i32, i32, i32
  }
  func.func @transform_3(%arg0: i32) -> (i32, i32) {
    %c0_i32 = arith.constant 0 : i32
    %c0_i32_0 = arith.constant 0 : i32
    %c0_i32_1 = arith.constant 0 : i32
    return %c0_i32, %c0_i32_0 : i32, i32
  }
  func.func @transform_4(%arg0: i32) -> (i32, i32) {
    %c0_i32 = arith.constant 0 : i32
    %c0_i32_0 = arith.constant 0 : i32
    return %arg0, %c0_i32 : i32, i32
  }
}

module attributes {stable_mosaic.version = 11 : i64} {
  func.func @_conv3x3_kernel(%arg0: i32, %arg1: memref<1x10x10x3xbf16, #tpu.memory_space<vmem>>, %arg2: memref<9x3x16xbf16, #tpu.memory_space<vmem>>, %arg3: memref<1x16xf32, #tpu.memory_space<vmem>>, %arg4: memref<1x8x8x16xbf16, #tpu.memory_space<vmem>>) attributes {dimension_semantics = [#tpu.dimension_semantics<parallel>], iteration_bounds = array<i64: 2>, scalar_prefetch = 0 : i64, scratch_operands = 0 : i64, tpu.core_type = #tpu.core_type<tc>, window_params = [{transform_indices = @transform_0, window_bounds = array<i64: 1, 10, 10, 3>}, {pipeline_mode = #tpu.pipeline_mode<synchronous>, transform_indices = @transform_1, window_bounds = array<i64: 9, 3, 16>}, {pipeline_mode = #tpu.pipeline_mode<synchronous>, transform_indices = @transform_2, window_bounds = array<i64: 1, 16>}, {transform_indices = @transform_3, window_bounds = array<i64: 1, 8, 8, 16>}]} {
    %c0 = arith.constant 0 : index
    %c0_0 = arith.constant 0 : index
    %c0_1 = arith.constant 0 : index
    %c0_2 = arith.constant 0 : index
    %0 = vector.load %arg1[%c0, %c0_0, %c0_1, %c0_2] : memref<1x10x10x3xbf16, #tpu.memory_space<vmem>>, vector<1x10x10x3xbf16>
    %1 = vector.shape_cast %0 : vector<1x10x10x3xbf16> to vector<10x10x3xbf16>
    %cst = arith.constant 0.000000e+00 : f32
    %2 = vector.broadcast %cst : f32 to vector<64x16xf32>
    %3 = vector.extract_strided_slice %1 {offsets = [0, 0, 0], sizes = [8, 8, 3], strides = [1, 1, 1]} : vector<10x10x3xbf16> to vector<8x8x3xbf16>
    %4 = vector.shape_cast %3 : vector<8x8x3xbf16> to vector<64x3xbf16>
    %c0_3 = arith.constant 0 : index
    %c0_4 = arith.constant 0 : index
    %c0_5 = arith.constant 0 : index
    %5 = vector.load %arg2[%c0_3, %c0_4, %c0_5] : memref<9x3x16xbf16, #tpu.memory_space<vmem>>, vector<1x3x16xbf16>
    %6 = vector.shape_cast %5 : vector<1x3x16xbf16> to vector<3x16xbf16>
    %cst_6 = arith.constant dense<0.000000e+00> : vector<64x16xf32>
    %7 = tpu.matmul %4, %6, %cst_6 {dimension_numbers = #tpu.dot_dimension_numbers<[1], [0], [0], [1], [0, 0, 1, 1], [], []>} : vector<64x3xbf16>, vector<3x16xbf16>, vector<64x16xf32> -> vector<64x16xf32>
    %8 = arith.addf %2, %7 : vector<64x16xf32>
    %9 = vector.extract_strided_slice %1 {offsets = [0, 1, 0], sizes = [8, 8, 3], strides = [1, 1, 1]} : vector<10x10x3xbf16> to vector<8x8x3xbf16>
    %10 = vector.shape_cast %9 : vector<8x8x3xbf16> to vector<64x3xbf16>
    %c1 = arith.constant 1 : index
    %c0_7 = arith.constant 0 : index
    %c0_8 = arith.constant 0 : index
    %11 = vector.load %arg2[%c1, %c0_7, %c0_8] : memref<9x3x16xbf16, #tpu.memory_space<vmem>>, vector<1x3x16xbf16>
    %12 = vector.shape_cast %11 : vector<1x3x16xbf16> to vector<3x16xbf16>
    %cst_9 = arith.constant dense<0.000000e+00> : vector<64x16xf32>
    %13 = tpu.matmul %10, %12, %cst_9 {dimension_numbers = #tpu.dot_dimension_numbers<[1], [0], [0], [1], [0, 0, 1, 1], [], []>} : vector<64x3xbf16>, vector<3x16xbf16>, vector<64x16xf32> -> vector<64x16xf32>
    %14 = arith.addf %8, %13 : vector<64x16xf32>
    %15 = vector.extract_strided_slice %1 {offsets = [0, 2, 0], sizes = [8, 8, 3], strides = [1, 1, 1]} : vector<10x10x3xbf16> to vector<8x8x3xbf16>
    %16 = vector.shape_cast %15 : vector<8x8x3xbf16> to vector<64x3xbf16>
    %c2 = arith.constant 2 : index
    %c0_10 = arith.constant 0 : index
    %c0_11 = arith.constant 0 : index
    %17 = vector.load %arg2[%c2, %c0_10, %c0_11] : memref<9x3x16xbf16, #tpu.memory_space<vmem>>, vector<1x3x16xbf16>
    %18 = vector.shape_cast %17 : vector<1x3x16xbf16> to vector<3x16xbf16>
    %cst_12 = arith.constant dense<0.000000e+00> : vector<64x16xf32>
    %19 = tpu.matmul %16, %18, %cst_12 {dimension_numbers = #tpu.dot_dimension_numbers<[1], [0], [0], [1], [0, 0, 1, 1], [], []>} : vector<64x3xbf16>, vector<3x16xbf16>, vector<64x16xf32> -> vector<64x16xf32>
    %20 = arith.addf %14, %19 : vector<64x16xf32>
    %21 = vector.extract_strided_slice %1 {offsets = [1, 0, 0], sizes = [8, 8, 3], strides = [1, 1, 1]} : vector<10x10x3xbf16> to vector<8x8x3xbf16>
    %22 = vector.shape_cast %21 : vector<8x8x3xbf16> to vector<64x3xbf16>
    %c3 = arith.constant 3 : index
    %c0_13 = arith.constant 0 : index
    %c0_14 = arith.constant 0 : index
    %23 = vector.load %arg2[%c3, %c0_13, %c0_14] : memref<9x3x16xbf16, #tpu.memory_space<vmem>>, vector<1x3x16xbf16>
    %24 = vector.shape_cast %23 : vector<1x3x16xbf16> to vector<3x16xbf16>
    %cst_15 = arith.constant dense<0.000000e+00> : vector<64x16xf32>
    %25 = tpu.matmul %22, %24, %cst_15 {dimension_numbers = #tpu.dot_dimension_numbers<[1], [0], [0], [1], [0, 0, 1, 1], [], []>} : vector<64x3xbf16>, vector<3x16xbf16>, vector<64x16xf32> -> vector<64x16xf32>
    %26 = arith.addf %20, %25 : vector<64x16xf32>
    %27 = vector.extract_strided_slice %1 {offsets = [1, 1, 0], sizes = [8, 8, 3], strides = [1, 1, 1]} : vector<10x10x3xbf16> to vector<8x8x3xbf16>
    %28 = vector.shape_cast %27 : vector<8x8x3xbf16> to vector<64x3xbf16>
    %c4 = arith.constant 4 : index
    %c0_16 = arith.constant 0 : index
    %c0_17 = arith.constant 0 : index
    %29 = vector.load %arg2[%c4, %c0_16, %c0_17] : memref<9x3x16xbf16, #tpu.memory_space<vmem>>, vector<1x3x16xbf16>
    %30 = vector.shape_cast %29 : vector<1x3x16xbf16> to vector<3x16xbf16>
    %cst_18 = arith.constant dense<0.000000e+00> : vector<64x16xf32>
    %31 = tpu.matmul %28, %30, %cst_18 {dimension_numbers = #tpu.dot_dimension_numbers<[1], [0], [0], [1], [0, 0, 1, 1], [], []>} : vector<64x3xbf16>, vector<3x16xbf16>, vector<64x16xf32> -> vector<64x16xf32>
    %32 = arith.addf %26, %31 : vector<64x16xf32>
    %33 = vector.extract_strided_slice %1 {offsets = [1, 2, 0], sizes = [8, 8, 3], strides = [1, 1, 1]} : vector<10x10x3xbf16> to vector<8x8x3xbf16>
    %34 = vector.shape_cast %33 : vector<8x8x3xbf16> to vector<64x3xbf16>
    %c5 = arith.constant 5 : index
    %c0_19 = arith.constant 0 : index
    %c0_20 = arith.constant 0 : index
    %35 = vector.load %arg2[%c5, %c0_19, %c0_20] : memref<9x3x16xbf16, #tpu.memory_space<vmem>>, vector<1x3x16xbf16>
    %36 = vector.shape_cast %35 : vector<1x3x16xbf16> to vector<3x16xbf16>
    %cst_21 = arith.constant dense<0.000000e+00> : vector<64x16xf32>
    %37 = tpu.matmul %34, %36, %cst_21 {dimension_numbers = #tpu.dot_dimension_numbers<[1], [0], [0], [1], [0, 0, 1, 1], [], []>} : vector<64x3xbf16>, vector<3x16xbf16>, vector<64x16xf32> -> vector<64x16xf32>
    %38 = arith.addf %32, %37 : vector<64x16xf32>
    %39 = vector.extract_strided_slice %1 {offsets = [2, 0, 0], sizes = [8, 8, 3], strides = [1, 1, 1]} : vector<10x10x3xbf16> to vector<8x8x3xbf16>
    %40 = vector.shape_cast %39 : vector<8x8x3xbf16> to vector<64x3xbf16>
    %c6 = arith.constant 6 : index
    %c0_22 = arith.constant 0 : index
    %c0_23 = arith.constant 0 : index
    %41 = vector.load %arg2[%c6, %c0_22, %c0_23] : memref<9x3x16xbf16, #tpu.memory_space<vmem>>, vector<1x3x16xbf16>
    %42 = vector.shape_cast %41 : vector<1x3x16xbf16> to vector<3x16xbf16>
    %cst_24 = arith.constant dense<0.000000e+00> : vector<64x16xf32>
    %43 = tpu.matmul %40, %42, %cst_24 {dimension_numbers = #tpu.dot_dimension_numbers<[1], [0], [0], [1], [0, 0, 1, 1], [], []>} : vector<64x3xbf16>, vector<3x16xbf16>, vector<64x16xf32> -> vector<64x16xf32>
    %44 = arith.addf %38, %43 : vector<64x16xf32>
    %45 = vector.extract_strided_slice %1 {offsets = [2, 1, 0], sizes = [8, 8, 3], strides = [1, 1, 1]} : vector<10x10x3xbf16> to vector<8x8x3xbf16>
    %46 = vector.shape_cast %45 : vector<8x8x3xbf16> to vector<64x3xbf16>
    %c7 = arith.constant 7 : index
    %c0_25 = arith.constant 0 : index
    %c0_26 = arith.constant 0 : index
    %47 = vector.load %arg2[%c7, %c0_25, %c0_26] : memref<9x3x16xbf16, #tpu.memory_space<vmem>>, vector<1x3x16xbf16>
    %48 = vector.shape_cast %47 : vector<1x3x16xbf16> to vector<3x16xbf16>
    %cst_27 = arith.constant dense<0.000000e+00> : vector<64x16xf32>
    %49 = tpu.matmul %46, %48, %cst_27 {dimension_numbers = #tpu.dot_dimension_numbers<[1], [0], [0], [1], [0, 0, 1, 1], [], []>} : vector<64x3xbf16>, vector<3x16xbf16>, vector<64x16xf32> -> vector<64x16xf32>
    %50 = arith.addf %44, %49 : vector<64x16xf32>
    %51 = vector.extract_strided_slice %1 {offsets = [2, 2, 0], sizes = [8, 8, 3], strides = [1, 1, 1]} : vector<10x10x3xbf16> to vector<8x8x3xbf16>
    %52 = vector.shape_cast %51 : vector<8x8x3xbf16> to vector<64x3xbf16>
    %c8 = arith.constant 8 : index
    %c0_28 = arith.constant 0 : index
    %c0_29 = arith.constant 0 : index
    %53 = vector.load %arg2[%c8, %c0_28, %c0_29] : memref<9x3x16xbf16, #tpu.memory_space<vmem>>, vector<1x3x16xbf16>
    %54 = vector.shape_cast %53 : vector<1x3x16xbf16> to vector<3x16xbf16>
    %cst_30 = arith.constant dense<0.000000e+00> : vector<64x16xf32>
    %55 = tpu.matmul %52, %54, %cst_30 {dimension_numbers = #tpu.dot_dimension_numbers<[1], [0], [0], [1], [0, 0, 1, 1], [], []>} : vector<64x3xbf16>, vector<3x16xbf16>, vector<64x16xf32> -> vector<64x16xf32>
    %56 = arith.addf %50, %55 : vector<64x16xf32>
    %c0_31 = arith.constant 0 : index
    %c0_32 = arith.constant 0 : index
    %57 = vector.load %arg3[%c0_31, %c0_32] : memref<1x16xf32, #tpu.memory_space<vmem>>, vector<1x16xf32>
    %58 = vector.broadcast %57 : vector<1x16xf32> to vector<64x16xf32>
    %59 = arith.addf %56, %58 : vector<64x16xf32>
    %60 = vector.shape_cast %59 : vector<64x16xf32> to vector<8x8x16xf32>
    %61 = arith.truncf %60 : vector<8x8x16xf32> to vector<8x8x16xbf16>
    %c0_33 = arith.constant 0 : index
    %c0_34 = arith.constant 0 : index
    %c0_35 = arith.constant 0 : index
    %c0_36 = arith.constant 0 : index
    %62 = vector.load %arg4[%c0_33, %c0_34, %c0_35, %c0_36] : memref<1x8x8x16xbf16, #tpu.memory_space<vmem>>, vector<1x8x8x16xbf16>
    %63 = vector.shape_cast %62 : vector<1x8x8x16xbf16> to vector<8x8x16xbf16>
    %64 = vector.shape_cast %61 : vector<8x8x16xbf16> to vector<1x8x8x16xbf16>
    tpu.vector_store %arg4[%c0_33, %c0_34, %c0_35, %c0_36], %64 {strides = array<i32>} : memref<1x8x8x16xbf16, #tpu.memory_space<vmem>>, vector<1x8x8x16xbf16>,
    return
  }
  func.func @transform_0(%arg0: i32) -> (i32, i32, i32, i32) {
    %c0_i32 = arith.constant 0 : i32
    %c0_i32_0 = arith.constant 0 : i32
    %c0_i32_1 = arith.constant 0 : i32
    %c0_i32_2 = arith.constant 0 : i32
    return %arg0, %c0_i32, %c0_i32_0, %c0_i32_1 : i32, i32, i32, i32
  }
  func.func @transform_1(%arg0: i32) -> (i32, i32, i32) {
    %c0_i32 = arith.constant 0 : i32
    %c0_i32_0 = arith.constant 0 : i32
    %c0_i32_1 = arith.constant 0 : i32
    %c0_i32_2 = arith.constant 0 : i32
    return %c0_i32, %c0_i32_0, %c0_i32_1 : i32, i32, i32
  }
  func.func @transform_2(%arg0: i32) -> (i32, i32) {
    %c0_i32 = arith.constant 0 : i32
    %c0_i32_0 = arith.constant 0 : i32
    %c0_i32_1 = arith.constant 0 : i32
    return %c0_i32, %c0_i32_0 : i32, i32
  }
  func.func @transform_3(%arg0: i32) -> (i32, i32, i32, i32) {
    %c0_i32 = arith.constant 0 : i32
    %c0_i32_0 = arith.constant 0 : i32
    %c0_i32_1 = arith.constant 0 : i32
    %c0_i32_2 = arith.constant 0 : i32
    return %arg0, %c0_i32, %c0_i32_0, %c0_i32_1 : i32, i32, i32, i32
  }
}

module attributes {stable_mosaic.version = 11 : i64} {
  func.func @kernel(%arg0: i32, %arg1: memref<128x16xbf16, #tpu.memory_space<vmem>>, %arg2: memref<128x16xbf16, #tpu.memory_space<vmem>>, %arg3: memref<128x16xbf16, #tpu.memory_space<vmem>>, %arg4: memref<3x16x16xbf16, #tpu.memory_space<vmem>>, %arg5: memref<1x16xf32, #tpu.memory_space<vmem>>, %arg6: memref<128x16xbf16, #tpu.memory_space<vmem>>) attributes {dimension_semantics = [#tpu.dimension_semantics<parallel>], iteration_bounds = array<i64: 1>, scalar_prefetch = 0 : i64, scratch_operands = 0 : i64, tpu.core_type = #tpu.core_type<tc>, window_params = [{transform_indices = @transform_0, window_bounds = array<i64: 128, 16>}, {transform_indices = @transform_1, window_bounds = array<i64: 128, 16>}, {transform_indices = @transform_2, window_bounds = array<i64: 128, 16>}, {pipeline_mode = #tpu.pipeline_mode<synchronous>, transform_indices = @transform_3, window_bounds = array<i64: 3, 16, 16>}, {pipeline_mode = #tpu.pipeline_mode<synchronous>, transform_indices = @transform_4, window_bounds = array<i64: 1, 16>}, {transform_indices = @transform_5, window_bounds = array<i64: 128, 16>}]} {
    %cst = arith.constant 0.000000e+00 : f32
    %0 = vector.broadcast %cst : f32 to vector<128x16xf32>
    %c0 = arith.constant 0 : index
    %c0_0 = arith.constant 0 : index
    %1 = vector.load %arg1[%c0, %c0_0] : memref<128x16xbf16, #tpu.memory_space<vmem>>, vector<128x16xbf16>
    %c0_1 = arith.constant 0 : index
    %c0_2 = arith.constant 0 : index
    %c0_3 = arith.constant 0 : index
    %2 = vector.load %arg4[%c0_1, %c0_2, %c0_3] : memref<3x16x16xbf16, #tpu.memory_space<vmem>>, vector<1x16x16xbf16>
    %3 = vector.shape_cast %2 : vector<1x16x16xbf16> to vector<16x16xbf16>
    %cst_4 = arith.constant dense<0.000000e+00> : vector<128x16xf32>
    %4 = tpu.matmul %1, %3, %cst_4 {dimension_numbers = #tpu.dot_dimension_numbers<[1], [0], [0], [1], [0, 0, 1, 1], [], []>} : vector<128x16xbf16>, vector<16x16xbf16>, vector<128x16xf32> -> vector<128x16xf32>
    %5 = arith.addf %0, %4 : vector<128x16xf32>
    %c0_5 = arith.constant 0 : index
    %c0_6 = arith.constant 0 : index
    %6 = vector.load %arg2[%c0_5, %c0_6] : memref<128x16xbf16, #tpu.memory_space<vmem>>, vector<128x16xbf16>
    %c1 = arith.constant 1 : index
    %c0_7 = arith.constant 0 : index
    %c0_8 = arith.constant 0 : index
    %7 = vector.load %arg4[%c1, %c0_7, %c0_8] : memref<3x16x16xbf16, #tpu.memory_space<vmem>>, vector<1x16x16xbf16>
    %8 = vector.shape_cast %7 : vector<1x16x16xbf16> to vector<16x16xbf16>
    %cst_9 = arith.constant dense<0.000000e+00> : vector<128x16xf32>
    %9 = tpu.matmul %6, %8, %cst_9 {dimension_numbers = #tpu.dot_dimension_numbers<[1], [0], [0], [1], [0, 0, 1, 1], [], []>} : vector<128x16xbf16>, vector<16x16xbf16>, vector<128x16xf32> -> vector<128x16xf32>
    %10 = arith.addf %5, %9 : vector<128x16xf32>
    %c0_10 = arith.constant 0 : index
    %c0_11 = arith.constant 0 : index
    %11 = vector.load %arg3[%c0_10, %c0_11] : memref<128x16xbf16, #tpu.memory_space<vmem>>, vector<128x16xbf16>
    %c2 = arith.constant 2 : index
    %c0_12 = arith.constant 0 : index
    %c0_13 = arith.constant 0 : index
    %12 = vector.load %arg4[%c2, %c0_12, %c0_13] : memref<3x16x16xbf16, #tpu.memory_space<vmem>>, vector<1x16x16xbf16>
    %13 = vector.shape_cast %12 : vector<1x16x16xbf16> to vector<16x16xbf16>
    %cst_14 = arith.constant dense<0.000000e+00> : vector<128x16xf32>
    %14 = tpu.matmul %11, %13, %cst_14 {dimension_numbers = #tpu.dot_dimension_numbers<[1], [0], [0], [1], [0, 0, 1, 1], [], []>} : vector<128x16xbf16>, vector<16x16xbf16>, vector<128x16xf32> -> vector<128x16xf32>
    %15 = arith.addf %10, %14 : vector<128x16xf32>
    %c0_15 = arith.constant 0 : index
    %c0_16 = arith.constant 0 : index
    %16 = vector.load %arg5[%c0_15, %c0_16] : memref<1x16xf32, #tpu.memory_space<vmem>>, vector<1x16xf32>
    %17 = vector.broadcast %16 : vector<1x16xf32> to vector<128x16xf32>
    %18 = arith.addf %15, %17 : vector<128x16xf32>
    %19 = arith.truncf %18 : vector<128x16xf32> to vector<128x16xbf16>
    %c0_17 = arith.constant 0 : index
    %c0_18 = arith.constant 0 : index
    %20 = vector.load %arg6[%c0_17, %c0_18] : memref<128x16xbf16, #tpu.memory_space<vmem>>, vector<128x16xbf16>
    tpu.vector_store %arg6[%c0_17, %c0_18], %19 {strides = array<i32>} : memref<128x16xbf16, #tpu.memory_space<vmem>>, vector<128x16xbf16>,
    return
  }
  func.func @transform_0(%arg0: i32) -> (i32, i32) {
    %c0_i32 = arith.constant 0 : i32
    %c0_i32_0 = arith.constant 0 : i32
    return %arg0, %c0_i32 : i32, i32
  }
  func.func @transform_1(%arg0: i32) -> (i32, i32) {
    %c0_i32 = arith.constant 0 : i32
    %c0_i32_0 = arith.constant 0 : i32
    return %arg0, %c0_i32 : i32, i32
  }
  func.func @transform_2(%arg0: i32) -> (i32, i32) {
    %c0_i32 = arith.constant 0 : i32
    %c0_i32_0 = arith.constant 0 : i32
    return %arg0, %c0_i32 : i32, i32
  }
  func.func @transform_3(%arg0: i32) -> (i32, i32, i32) {
    %c0_i32 = arith.constant 0 : i32
    %c0_i32_0 = arith.constant 0 : i32
    %c0_i32_1 = arith.constant 0 : i32
    %c0_i32_2 = arith.constant 0 : i32
    return %c0_i32, %c0_i32_0, %c0_i32_1 : i32, i32, i32
  }
  func.func @transform_4(%arg0: i32) -> (i32, i32) {
    %c0_i32 = arith.constant 0 : i32
    %c0_i32_0 = arith.constant 0 : i32
    %c0_i32_1 = arith.constant 0 : i32
    return %c0_i32, %c0_i32_0 : i32, i32
  }
  func.func @transform_5(%arg0: i32) -> (i32, i32) {
    %c0_i32 = arith.constant 0 : i32
    %c0_i32_0 = arith.constant 0 : i32
    return %arg0, %c0_i32 : i32, i32
  }
}

module attributes {stable_mosaic.version = 11 : i64} {
  func.func @_conv3x3_kernel(%arg0: i32, %arg1: memref<1x10x10x16xbf16, #tpu.memory_space<vmem>>, %arg2: memref<9x16x64xbf16, #tpu.memory_space<vmem>>, %arg3: memref<1x64xf32, #tpu.memory_space<vmem>>, %arg4: memref<1x8x8x64xbf16, #tpu.memory_space<vmem>>) attributes {dimension_semantics = [#tpu.dimension_semantics<parallel>], iteration_bounds = array<i64: 2>, scalar_prefetch = 0 : i64, scratch_operands = 0 : i64, tpu.core_type = #tpu.core_type<tc>, window_params = [{transform_indices = @transform_0, window_bounds = array<i64: 1, 10, 10, 16>}, {pipeline_mode = #tpu.pipeline_mode<synchronous>, transform_indices = @transform_1, window_bounds = array<i64: 9, 16, 64>}, {pipeline_mode = #tpu.pipeline_mode<synchronous>, transform_indices = @transform_2, window_bounds = array<i64: 1, 64>}, {transform_indices = @transform_3, window_bounds = array<i64: 1, 8, 8, 64>}]} {
    %c0 = arith.constant 0 : index
    %c0_0 = arith.constant 0 : index
    %c0_1 = arith.constant 0 : index
    %c0_2 = arith.constant 0 : index
    %0 = vector.load %arg1[%c0, %c0_0, %c0_1, %c0_2] : memref<1x10x10x16xbf16, #tpu.memory_space<vmem>>, vector<1x10x10x16xbf16>
    %1 = vector.shape_cast %0 : vector<1x10x10x16xbf16> to vector<10x10x16xbf16>
    %cst = arith.constant 0.000000e+00 : f32
    %2 = vector.broadcast %cst : f32 to vector<64x64xf32>
    %3 = vector.extract_strided_slice %1 {offsets = [0, 0, 0], sizes = [8, 8, 16], strides = [1, 1, 1]} : vector<10x10x16xbf16> to vector<8x8x16xbf16>
    %4 = vector.shape_cast %3 : vector<8x8x16xbf16> to vector<64x16xbf16>
    %c0_3 = arith.constant 0 : index
    %c0_4 = arith.constant 0 : index
    %c0_5 = arith.constant 0 : index
    %5 = vector.load %arg2[%c0_3, %c0_4, %c0_5] : memref<9x16x64xbf16, #tpu.memory_space<vmem>>, vector<1x16x64xbf16>
    %6 = vector.shape_cast %5 : vector<1x16x64xbf16> to vector<16x64xbf16>
    %cst_6 = arith.constant dense<0.000000e+00> : vector<64x64xf32>
    %7 = tpu.matmul %4, %6, %cst_6 {dimension_numbers = #tpu.dot_dimension_numbers<[1], [0], [0], [1], [0, 0, 1, 1], [], []>} : vector<64x16xbf16>, vector<16x64xbf16>, vector<64x64xf32> -> vector<64x64xf32>
    %8 = arith.addf %2, %7 : vector<64x64xf32>
    %9 = vector.extract_strided_slice %1 {offsets = [0, 1, 0], sizes = [8, 8, 16], strides = [1, 1, 1]} : vector<10x10x16xbf16> to vector<8x8x16xbf16>
    %10 = vector.shape_cast %9 : vector<8x8x16xbf16> to vector<64x16xbf16>
    %c1 = arith.constant 1 : index
    %c0_7 = arith.constant 0 : index
    %c0_8 = arith.constant 0 : index
    %11 = vector.load %arg2[%c1, %c0_7, %c0_8] : memref<9x16x64xbf16, #tpu.memory_space<vmem>>, vector<1x16x64xbf16>
    %12 = vector.shape_cast %11 : vector<1x16x64xbf16> to vector<16x64xbf16>
    %cst_9 = arith.constant dense<0.000000e+00> : vector<64x64xf32>
    %13 = tpu.matmul %10, %12, %cst_9 {dimension_numbers = #tpu.dot_dimension_numbers<[1], [0], [0], [1], [0, 0, 1, 1], [], []>} : vector<64x16xbf16>, vector<16x64xbf16>, vector<64x64xf32> -> vector<64x64xf32>
    %14 = arith.addf %8, %13 : vector<64x64xf32>
    %15 = vector.extract_strided_slice %1 {offsets = [0, 2, 0], sizes = [8, 8, 16], strides = [1, 1, 1]} : vector<10x10x16xbf16> to vector<8x8x16xbf16>
    %16 = vector.shape_cast %15 : vector<8x8x16xbf16> to vector<64x16xbf16>
    %c2 = arith.constant 2 : index
    %c0_10 = arith.constant 0 : index
    %c0_11 = arith.constant 0 : index
    %17 = vector.load %arg2[%c2, %c0_10, %c0_11] : memref<9x16x64xbf16, #tpu.memory_space<vmem>>, vector<1x16x64xbf16>
    %18 = vector.shape_cast %17 : vector<1x16x64xbf16> to vector<16x64xbf16>
    %cst_12 = arith.constant dense<0.000000e+00> : vector<64x64xf32>
    %19 = tpu.matmul %16, %18, %cst_12 {dimension_numbers = #tpu.dot_dimension_numbers<[1], [0], [0], [1], [0, 0, 1, 1], [], []>} : vector<64x16xbf16>, vector<16x64xbf16>, vector<64x64xf32> -> vector<64x64xf32>
    %20 = arith.addf %14, %19 : vector<64x64xf32>
    %21 = vector.extract_strided_slice %1 {offsets = [1, 0, 0], sizes = [8, 8, 16], strides = [1, 1, 1]} : vector<10x10x16xbf16> to vector<8x8x16xbf16>
    %22 = vector.shape_cast %21 : vector<8x8x16xbf16> to vector<64x16xbf16>
    %c3 = arith.constant 3 : index
    %c0_13 = arith.constant 0 : index
    %c0_14 = arith.constant 0 : index
    %23 = vector.load %arg2[%c3, %c0_13, %c0_14] : memref<9x16x64xbf16, #tpu.memory_space<vmem>>, vector<1x16x64xbf16>
    %24 = vector.shape_cast %23 : vector<1x16x64xbf16> to vector<16x64xbf16>
    %cst_15 = arith.constant dense<0.000000e+00> : vector<64x64xf32>
    %25 = tpu.matmul %22, %24, %cst_15 {dimension_numbers = #tpu.dot_dimension_numbers<[1], [0], [0], [1], [0, 0, 1, 1], [], []>} : vector<64x16xbf16>, vector<16x64xbf16>, vector<64x64xf32> -> vector<64x64xf32>
    %26 = arith.addf %20, %25 : vector<64x64xf32>
    %27 = vector.extract_strided_slice %1 {offsets = [1, 1, 0], sizes = [8, 8, 16], strides = [1, 1, 1]} : vector<10x10x16xbf16> to vector<8x8x16xbf16>
    %28 = vector.shape_cast %27 : vector<8x8x16xbf16> to vector<64x16xbf16>
    %c4 = arith.constant 4 : index
    %c0_16 = arith.constant 0 : index
    %c0_17 = arith.constant 0 : index
    %29 = vector.load %arg2[%c4, %c0_16, %c0_17] : memref<9x16x64xbf16, #tpu.memory_space<vmem>>, vector<1x16x64xbf16>
    %30 = vector.shape_cast %29 : vector<1x16x64xbf16> to vector<16x64xbf16>
    %cst_18 = arith.constant dense<0.000000e+00> : vector<64x64xf32>
    %31 = tpu.matmul %28, %30, %cst_18 {dimension_numbers = #tpu.dot_dimension_numbers<[1], [0], [0], [1], [0, 0, 1, 1], [], []>} : vector<64x16xbf16>, vector<16x64xbf16>, vector<64x64xf32> -> vector<64x64xf32>
    %32 = arith.addf %26, %31 : vector<64x64xf32>
    %33 = vector.extract_strided_slice %1 {offsets = [1, 2, 0], sizes = [8, 8, 16], strides = [1, 1, 1]} : vector<10x10x16xbf16> to vector<8x8x16xbf16>
    %34 = vector.shape_cast %33 : vector<8x8x16xbf16> to vector<64x16xbf16>
    %c5 = arith.constant 5 : index
    %c0_19 = arith.constant 0 : index
    %c0_20 = arith.constant 0 : index
    %35 = vector.load %arg2[%c5, %c0_19, %c0_20] : memref<9x16x64xbf16, #tpu.memory_space<vmem>>, vector<1x16x64xbf16>
    %36 = vector.shape_cast %35 : vector<1x16x64xbf16> to vector<16x64xbf16>
    %cst_21 = arith.constant dense<0.000000e+00> : vector<64x64xf32>
    %37 = tpu.matmul %34, %36, %cst_21 {dimension_numbers = #tpu.dot_dimension_numbers<[1], [0], [0], [1], [0, 0, 1, 1], [], []>} : vector<64x16xbf16>, vector<16x64xbf16>, vector<64x64xf32> -> vector<64x64xf32>
    %38 = arith.addf %32, %37 : vector<64x64xf32>
    %39 = vector.extract_strided_slice %1 {offsets = [2, 0, 0], sizes = [8, 8, 16], strides = [1, 1, 1]} : vector<10x10x16xbf16> to vector<8x8x16xbf16>
    %40 = vector.shape_cast %39 : vector<8x8x16xbf16> to vector<64x16xbf16>
    %c6 = arith.constant 6 : index
    %c0_22 = arith.constant 0 : index
    %c0_23 = arith.constant 0 : index
    %41 = vector.load %arg2[%c6, %c0_22, %c0_23] : memref<9x16x64xbf16, #tpu.memory_space<vmem>>, vector<1x16x64xbf16>
    %42 = vector.shape_cast %41 : vector<1x16x64xbf16> to vector<16x64xbf16>
    %cst_24 = arith.constant dense<0.000000e+00> : vector<64x64xf32>
    %43 = tpu.matmul %40, %42, %cst_24 {dimension_numbers = #tpu.dot_dimension_numbers<[1], [0], [0], [1], [0, 0, 1, 1], [], []>} : vector<64x16xbf16>, vector<16x64xbf16>, vector<64x64xf32> -> vector<64x64xf32>
    %44 = arith.addf %38, %43 : vector<64x64xf32>
    %45 = vector.extract_strided_slice %1 {offsets = [2, 1, 0], sizes = [8, 8, 16], strides = [1, 1, 1]} : vector<10x10x16xbf16> to vector<8x8x16xbf16>
    %46 = vector.shape_cast %45 : vector<8x8x16xbf16> to vector<64x16xbf16>
    %c7 = arith.constant 7 : index
    %c0_25 = arith.constant 0 : index
    %c0_26 = arith.constant 0 : index
    %47 = vector.load %arg2[%c7, %c0_25, %c0_26] : memref<9x16x64xbf16, #tpu.memory_space<vmem>>, vector<1x16x64xbf16>
    %48 = vector.shape_cast %47 : vector<1x16x64xbf16> to vector<16x64xbf16>
    %cst_27 = arith.constant dense<0.000000e+00> : vector<64x64xf32>
    %49 = tpu.matmul %46, %48, %cst_27 {dimension_numbers = #tpu.dot_dimension_numbers<[1], [0], [0], [1], [0, 0, 1, 1], [], []>} : vector<64x16xbf16>, vector<16x64xbf16>, vector<64x64xf32> -> vector<64x64xf32>
    %50 = arith.addf %44, %49 : vector<64x64xf32>
    %51 = vector.extract_strided_slice %1 {offsets = [2, 2, 0], sizes = [8, 8, 16], strides = [1, 1, 1]} : vector<10x10x16xbf16> to vector<8x8x16xbf16>
    %52 = vector.shape_cast %51 : vector<8x8x16xbf16> to vector<64x16xbf16>
    %c8 = arith.constant 8 : index
    %c0_28 = arith.constant 0 : index
    %c0_29 = arith.constant 0 : index
    %53 = vector.load %arg2[%c8, %c0_28, %c0_29] : memref<9x16x64xbf16, #tpu.memory_space<vmem>>, vector<1x16x64xbf16>
    %54 = vector.shape_cast %53 : vector<1x16x64xbf16> to vector<16x64xbf16>
    %cst_30 = arith.constant dense<0.000000e+00> : vector<64x64xf32>
    %55 = tpu.matmul %52, %54, %cst_30 {dimension_numbers = #tpu.dot_dimension_numbers<[1], [0], [0], [1], [0, 0, 1, 1], [], []>} : vector<64x16xbf16>, vector<16x64xbf16>, vector<64x64xf32> -> vector<64x64xf32>
    %56 = arith.addf %50, %55 : vector<64x64xf32>
    %c0_31 = arith.constant 0 : index
    %c0_32 = arith.constant 0 : index
    %57 = vector.load %arg3[%c0_31, %c0_32] : memref<1x64xf32, #tpu.memory_space<vmem>>, vector<1x64xf32>
    %58 = vector.broadcast %57 : vector<1x64xf32> to vector<64x64xf32>
    %59 = arith.addf %56, %58 : vector<64x64xf32>
    %cst_33 = arith.constant 0.000000e+00 : f32
    %60 = vector.broadcast %cst_33 : f32 to vector<64x64xf32>
    %61 = arith.maximumf %59, %60 : vector<64x64xf32>
    %62 = vector.shape_cast %61 : vector<64x64xf32> to vector<8x8x64xf32>
    %63 = arith.truncf %62 : vector<8x8x64xf32> to vector<8x8x64xbf16>
    %c0_34 = arith.constant 0 : index
    %c0_35 = arith.constant 0 : index
    %c0_36 = arith.constant 0 : index
    %c0_37 = arith.constant 0 : index
    %64 = vector.load %arg4[%c0_34, %c0_35, %c0_36, %c0_37] : memref<1x8x8x64xbf16, #tpu.memory_space<vmem>>, vector<1x8x8x64xbf16>
    %65 = vector.shape_cast %64 : vector<1x8x8x64xbf16> to vector<8x8x64xbf16>
    %66 = vector.shape_cast %63 : vector<8x8x64xbf16> to vector<1x8x8x64xbf16>
    tpu.vector_store %arg4[%c0_34, %c0_35, %c0_36, %c0_37], %66 {strides = array<i32>} : memref<1x8x8x64xbf16, #tpu.memory_space<vmem>>, vector<1x8x8x64xbf16>,
    return
  }
  func.func @transform_0(%arg0: i32) -> (i32, i32, i32, i32) {
    %c0_i32 = arith.constant 0 : i32
    %c0_i32_0 = arith.constant 0 : i32
    %c0_i32_1 = arith.constant 0 : i32
    %c0_i32_2 = arith.constant 0 : i32
    return %arg0, %c0_i32, %c0_i32_0, %c0_i32_1 : i32, i32, i32, i32
  }
  func.func @transform_1(%arg0: i32) -> (i32, i32, i32) {
    %c0_i32 = arith.constant 0 : i32
    %c0_i32_0 = arith.constant 0 : i32
    %c0_i32_1 = arith.constant 0 : i32
    %c0_i32_2 = arith.constant 0 : i32
    return %c0_i32, %c0_i32_0, %c0_i32_1 : i32, i32, i32
  }
  func.func @transform_2(%arg0: i32) -> (i32, i32) {
    %c0_i32 = arith.constant 0 : i32
    %c0_i32_0 = arith.constant 0 : i32
    %c0_i32_1 = arith.constant 0 : i32
    return %c0_i32, %c0_i32_0 : i32, i32
  }
  func.func @transform_3(%arg0: i32) -> (i32, i32, i32, i32) {
    %c0_i32 = arith.constant 0 : i32
    %c0_i32_0 = arith.constant 0 : i32
    %c0_i32_1 = arith.constant 0 : i32
    %c0_i32_2 = arith.constant 0 : i32
    return %arg0, %c0_i32, %c0_i32_0, %c0_i32_1 : i32, i32, i32, i32
  }
}

module attributes {stable_mosaic.version = 11 : i64} {
  func.func @_conv3x3_kernel(%arg0: i32, %arg1: memref<1x18x18x16xbf16, #tpu.memory_space<vmem>>, %arg2: memref<9x16x3xbf16, #tpu.memory_space<vmem>>, %arg3: memref<1x3xf32, #tpu.memory_space<vmem>>, %arg4: memref<1x16x16x3xf32, #tpu.memory_space<vmem>>) attributes {dimension_semantics = [#tpu.dimension_semantics<parallel>], iteration_bounds = array<i64: 2>, scalar_prefetch = 0 : i64, scratch_operands = 0 : i64, tpu.core_type = #tpu.core_type<tc>, window_params = [{transform_indices = @transform_0, window_bounds = array<i64: 1, 18, 18, 16>}, {pipeline_mode = #tpu.pipeline_mode<synchronous>, transform_indices = @transform_1, window_bounds = array<i64: 9, 16, 3>}, {pipeline_mode = #tpu.pipeline_mode<synchronous>, transform_indices = @transform_2, window_bounds = array<i64: 1, 3>}, {transform_indices = @transform_3, window_bounds = array<i64: 1, 16, 16, 3>}]} {
    %c0 = arith.constant 0 : index
    %c0_0 = arith.constant 0 : index
    %c0_1 = arith.constant 0 : index
    %c0_2 = arith.constant 0 : index
    %0 = vector.load %arg1[%c0, %c0_0, %c0_1, %c0_2] : memref<1x18x18x16xbf16, #tpu.memory_space<vmem>>, vector<1x18x18x16xbf16>
    %1 = vector.shape_cast %0 : vector<1x18x18x16xbf16> to vector<18x18x16xbf16>
    %cst = arith.constant 0.000000e+00 : f32
    %2 = vector.broadcast %cst : f32 to vector<256x3xf32>
    %3 = vector.extract_strided_slice %1 {offsets = [0, 0, 0], sizes = [16, 16, 16], strides = [1, 1, 1]} : vector<18x18x16xbf16> to vector<16x16x16xbf16>
    %4 = vector.shape_cast %3 : vector<16x16x16xbf16> to vector<256x16xbf16>
    %c0_3 = arith.constant 0 : index
    %c0_4 = arith.constant 0 : index
    %c0_5 = arith.constant 0 : index
    %5 = vector.load %arg2[%c0_3, %c0_4, %c0_5] : memref<9x16x3xbf16, #tpu.memory_space<vmem>>, vector<1x16x3xbf16>
    %6 = vector.shape_cast %5 : vector<1x16x3xbf16> to vector<16x3xbf16>
    %cst_6 = arith.constant dense<0.000000e+00> : vector<256x3xf32>
    %7 = tpu.matmul %4, %6, %cst_6 {dimension_numbers = #tpu.dot_dimension_numbers<[1], [0], [0], [1], [0, 0, 1, 1], [], []>} : vector<256x16xbf16>, vector<16x3xbf16>, vector<256x3xf32> -> vector<256x3xf32>
    %8 = arith.addf %2, %7 : vector<256x3xf32>
    %9 = vector.extract_strided_slice %1 {offsets = [0, 1, 0], sizes = [16, 16, 16], strides = [1, 1, 1]} : vector<18x18x16xbf16> to vector<16x16x16xbf16>
    %10 = vector.shape_cast %9 : vector<16x16x16xbf16> to vector<256x16xbf16>
    %c1 = arith.constant 1 : index
    %c0_7 = arith.constant 0 : index
    %c0_8 = arith.constant 0 : index
    %11 = vector.load %arg2[%c1, %c0_7, %c0_8] : memref<9x16x3xbf16, #tpu.memory_space<vmem>>, vector<1x16x3xbf16>
    %12 = vector.shape_cast %11 : vector<1x16x3xbf16> to vector<16x3xbf16>
    %cst_9 = arith.constant dense<0.000000e+00> : vector<256x3xf32>
    %13 = tpu.matmul %10, %12, %cst_9 {dimension_numbers = #tpu.dot_dimension_numbers<[1], [0], [0], [1], [0, 0, 1, 1], [], []>} : vector<256x16xbf16>, vector<16x3xbf16>, vector<256x3xf32> -> vector<256x3xf32>
    %14 = arith.addf %8, %13 : vector<256x3xf32>
    %15 = vector.extract_strided_slice %1 {offsets = [0, 2, 0], sizes = [16, 16, 16], strides = [1, 1, 1]} : vector<18x18x16xbf16> to vector<16x16x16xbf16>
    %16 = vector.shape_cast %15 : vector<16x16x16xbf16> to vector<256x16xbf16>
    %c2 = arith.constant 2 : index
    %c0_10 = arith.constant 0 : index
    %c0_11 = arith.constant 0 : index
    %17 = vector.load %arg2[%c2, %c0_10, %c0_11] : memref<9x16x3xbf16, #tpu.memory_space<vmem>>, vector<1x16x3xbf16>
    %18 = vector.shape_cast %17 : vector<1x16x3xbf16> to vector<16x3xbf16>
    %cst_12 = arith.constant dense<0.000000e+00> : vector<256x3xf32>
    %19 = tpu.matmul %16, %18, %cst_12 {dimension_numbers = #tpu.dot_dimension_numbers<[1], [0], [0], [1], [0, 0, 1, 1], [], []>} : vector<256x16xbf16>, vector<16x3xbf16>, vector<256x3xf32> -> vector<256x3xf32>
    %20 = arith.addf %14, %19 : vector<256x3xf32>
    %21 = vector.extract_strided_slice %1 {offsets = [1, 0, 0], sizes = [16, 16, 16], strides = [1, 1, 1]} : vector<18x18x16xbf16> to vector<16x16x16xbf16>
    %22 = vector.shape_cast %21 : vector<16x16x16xbf16> to vector<256x16xbf16>
    %c3 = arith.constant 3 : index
    %c0_13 = arith.constant 0 : index
    %c0_14 = arith.constant 0 : index
    %23 = vector.load %arg2[%c3, %c0_13, %c0_14] : memref<9x16x3xbf16, #tpu.memory_space<vmem>>, vector<1x16x3xbf16>
    %24 = vector.shape_cast %23 : vector<1x16x3xbf16> to vector<16x3xbf16>
    %cst_15 = arith.constant dense<0.000000e+00> : vector<256x3xf32>
    %25 = tpu.matmul %22, %24, %cst_15 {dimension_numbers = #tpu.dot_dimension_numbers<[1], [0], [0], [1], [0, 0, 1, 1], [], []>} : vector<256x16xbf16>, vector<16x3xbf16>, vector<256x3xf32> -> vector<256x3xf32>
    %26 = arith.addf %20, %25 : vector<256x3xf32>
    %27 = vector.extract_strided_slice %1 {offsets = [1, 1, 0], sizes = [16, 16, 16], strides = [1, 1, 1]} : vector<18x18x16xbf16> to vector<16x16x16xbf16>
    %28 = vector.shape_cast %27 : vector<16x16x16xbf16> to vector<256x16xbf16>
    %c4 = arith.constant 4 : index
    %c0_16 = arith.constant 0 : index
    %c0_17 = arith.constant 0 : index
    %29 = vector.load %arg2[%c4, %c0_16, %c0_17] : memref<9x16x3xbf16, #tpu.memory_space<vmem>>, vector<1x16x3xbf16>
    %30 = vector.shape_cast %29 : vector<1x16x3xbf16> to vector<16x3xbf16>
    %cst_18 = arith.constant dense<0.000000e+00> : vector<256x3xf32>
    %31 = tpu.matmul %28, %30, %cst_18 {dimension_numbers = #tpu.dot_dimension_numbers<[1], [0], [0], [1], [0, 0, 1, 1], [], []>} : vector<256x16xbf16>, vector<16x3xbf16>, vector<256x3xf32> -> vector<256x3xf32>
    %32 = arith.addf %26, %31 : vector<256x3xf32>
    %33 = vector.extract_strided_slice %1 {offsets = [1, 2, 0], sizes = [16, 16, 16], strides = [1, 1, 1]} : vector<18x18x16xbf16> to vector<16x16x16xbf16>
    %34 = vector.shape_cast %33 : vector<16x16x16xbf16> to vector<256x16xbf16>
    %c5 = arith.constant 5 : index
    %c0_19 = arith.constant 0 : index
    %c0_20 = arith.constant 0 : index
    %35 = vector.load %arg2[%c5, %c0_19, %c0_20] : memref<9x16x3xbf16, #tpu.memory_space<vmem>>, vector<1x16x3xbf16>
    %36 = vector.shape_cast %35 : vector<1x16x3xbf16> to vector<16x3xbf16>
    %cst_21 = arith.constant dense<0.000000e+00> : vector<256x3xf32>
    %37 = tpu.matmul %34, %36, %cst_21 {dimension_numbers = #tpu.dot_dimension_numbers<[1], [0], [0], [1], [0, 0, 1, 1], [], []>} : vector<256x16xbf16>, vector<16x3xbf16>, vector<256x3xf32> -> vector<256x3xf32>
    %38 = arith.addf %32, %37 : vector<256x3xf32>
    %39 = vector.extract_strided_slice %1 {offsets = [2, 0, 0], sizes = [16, 16, 16], strides = [1, 1, 1]} : vector<18x18x16xbf16> to vector<16x16x16xbf16>
    %40 = vector.shape_cast %39 : vector<16x16x16xbf16> to vector<256x16xbf16>
    %c6 = arith.constant 6 : index
    %c0_22 = arith.constant 0 : index
    %c0_23 = arith.constant 0 : index
    %41 = vector.load %arg2[%c6, %c0_22, %c0_23] : memref<9x16x3xbf16, #tpu.memory_space<vmem>>, vector<1x16x3xbf16>
    %42 = vector.shape_cast %41 : vector<1x16x3xbf16> to vector<16x3xbf16>
    %cst_24 = arith.constant dense<0.000000e+00> : vector<256x3xf32>
    %43 = tpu.matmul %40, %42, %cst_24 {dimension_numbers = #tpu.dot_dimension_numbers<[1], [0], [0], [1], [0, 0, 1, 1], [], []>} : vector<256x16xbf16>, vector<16x3xbf16>, vector<256x3xf32> -> vector<256x3xf32>
    %44 = arith.addf %38, %43 : vector<256x3xf32>
    %45 = vector.extract_strided_slice %1 {offsets = [2, 1, 0], sizes = [16, 16, 16], strides = [1, 1, 1]} : vector<18x18x16xbf16> to vector<16x16x16xbf16>
    %46 = vector.shape_cast %45 : vector<16x16x16xbf16> to vector<256x16xbf16>
    %c7 = arith.constant 7 : index
    %c0_25 = arith.constant 0 : index
    %c0_26 = arith.constant 0 : index
    %47 = vector.load %arg2[%c7, %c0_25, %c0_26] : memref<9x16x3xbf16, #tpu.memory_space<vmem>>, vector<1x16x3xbf16>
    %48 = vector.shape_cast %47 : vector<1x16x3xbf16> to vector<16x3xbf16>
    %cst_27 = arith.constant dense<0.000000e+00> : vector<256x3xf32>
    %49 = tpu.matmul %46, %48, %cst_27 {dimension_numbers = #tpu.dot_dimension_numbers<[1], [0], [0], [1], [0, 0, 1, 1], [], []>} : vector<256x16xbf16>, vector<16x3xbf16>, vector<256x3xf32> -> vector<256x3xf32>
    %50 = arith.addf %44, %49 : vector<256x3xf32>
    %51 = vector.extract_strided_slice %1 {offsets = [2, 2, 0], sizes = [16, 16, 16], strides = [1, 1, 1]} : vector<18x18x16xbf16> to vector<16x16x16xbf16>
    %52 = vector.shape_cast %51 : vector<16x16x16xbf16> to vector<256x16xbf16>
    %c8 = arith.constant 8 : index
    %c0_28 = arith.constant 0 : index
    %c0_29 = arith.constant 0 : index
    %53 = vector.load %arg2[%c8, %c0_28, %c0_29] : memref<9x16x3xbf16, #tpu.memory_space<vmem>>, vector<1x16x3xbf16>
    %54 = vector.shape_cast %53 : vector<1x16x3xbf16> to vector<16x3xbf16>
    %cst_30 = arith.constant dense<0.000000e+00> : vector<256x3xf32>
    %55 = tpu.matmul %52, %54, %cst_30 {dimension_numbers = #tpu.dot_dimension_numbers<[1], [0], [0], [1], [0, 0, 1, 1], [], []>} : vector<256x16xbf16>, vector<16x3xbf16>, vector<256x3xf32> -> vector<256x3xf32>
    %56 = arith.addf %50, %55 : vector<256x3xf32>
    %c0_31 = arith.constant 0 : index
    %c0_32 = arith.constant 0 : index
    %57 = vector.load %arg3[%c0_31, %c0_32] : memref<1x3xf32, #tpu.memory_space<vmem>>, vector<1x3xf32>
    %58 = vector.broadcast %57 : vector<1x3xf32> to vector<256x3xf32>
    %59 = arith.addf %56, %58 : vector<256x3xf32>
    %60 = vector.shape_cast %59 : vector<256x3xf32> to vector<16x16x3xf32>
    %c0_33 = arith.constant 0 : index
    %c0_34 = arith.constant 0 : index
    %c0_35 = arith.constant 0 : index
    %c0_36 = arith.constant 0 : index
    %61 = vector.load %arg4[%c0_33, %c0_34, %c0_35, %c0_36] : memref<1x16x16x3xf32, #tpu.memory_space<vmem>>, vector<1x16x16x3xf32>
    %62 = vector.shape_cast %61 : vector<1x16x16x3xf32> to vector<16x16x3xf32>
    %63 = vector.shape_cast %60 : vector<16x16x3xf32> to vector<1x16x16x3xf32>
    tpu.vector_store %arg4[%c0_33, %c0_34, %c0_35, %c0_36], %63 {strides = array<i32>} : memref<1x16x16x3xf32, #tpu.memory_space<vmem>>, vector<1x16x16x3xf32>,
    return
  }
  func.func @transform_0(%arg0: i32) -> (i32, i32, i32, i32) {
    %c0_i32 = arith.constant 0 : i32
    %c0_i32_0 = arith.constant 0 : i32
    %c0_i32_1 = arith.constant 0 : i32
    %c0_i32_2 = arith.constant 0 : i32
    return %arg0, %c0_i32, %c0_i32_0, %c0_i32_1 : i32, i32, i32, i32
  }
  func.func @transform_1(%arg0: i32) -> (i32, i32, i32) {
    %c0_i32 = arith.constant 0 : i32
    %c0_i32_0 = arith.constant 0 : i32
    %c0_i32_1 = arith.constant 0 : i32
    %c0_i32_2 = arith.constant 0 : i32
    return %c0_i32, %c0_i32_0, %c0_i32_1 : i32, i32, i32
  }
  func.func @transform_2(%arg0: i32) -> (i32, i32) {
    %c0_i32 = arith.constant 0 : i32
    %c0_i32_0 = arith.constant 0 : i32
    %c0_i32_1 = arith.constant 0 : i32
    return %c0_i32, %c0_i32_0 : i32, i32
  }
  func.func @transform_3(%arg0: i32) -> (i32, i32, i32, i32) {
    %c0_i32 = arith.constant 0 : i32
    %c0_i32_0 = arith.constant 0 : i32
    %c0_i32_1 = arith.constant 0 : i32
    %c0_i32_2 = arith.constant 0 : i32
    return %arg0, %c0_i32, %c0_i32_0, %c0_i32_1 : i32, i32, i32, i32
  }
}

</mosaic_0001>

<llo_original>
// kernel: carn_forward.9
$region0: #{carn_forward.9}
  #allocation0 [shape = 'u32[]', space=smem, size = 0x4, offset = 0x4, fixed_abs, tag = 'smem constant byte address 0x4 - core index']
  #allocation1 [shape = 'u32[72,128]{1,0:T(1,128)}', space=vmem, size = 0x9000, scoped, tag = 'internal scratch']
  %s0 = inlined_call_operand.vmem [shape: bf16[128,16], index: 0, kind: input, shape index: {}]
  %s1 = inlined_call_operand.vmem [shape: bf16[128,16], index: 1, kind: input, shape index: {}]
  %s2 = inlined_call_operand.vmem [shape: bf16[2,16,16], index: 2, kind: input, shape index: {}]
  %s3 = inlined_call_operand.vmem [shape: f32[1,16], index: 3, kind: input, shape index: {}]
  %s4 = inlined_call_operand.vmem [shape: bf16[128,16], index: 4, kind: output, shape index: {}]
  %s5 = sld [smem:[#allocation0]]
  $region26: #{carn_forward.9} parent=0
    _
  %s7 = ssub.s32 1, %s5
  %s8 = scalar_select 0, %s7, %s5
  // Predicated region
  $region2: #{carn_forward.9} parent=0 // pred_check
    _
  $region3: #{carn_forward.9} parent=0 // pred_check_branch
    %10 = sbr.rel (0) target = $region5
  $region4: #{carn_forward.9} parent=0 // pred_region
    _
  $region5: #{carn_forward.9} parent=0 // pred_fallthru
    _
  // Predicated region
  $region6: #{carn_forward.9} parent=0 // pred_check
    _
  $region7: #{carn_forward.9} parent=0 // pred_check_branch
    %12 = sbr.rel (0) target = $region9
  $region8: #{carn_forward.9} parent=0 // pred_region
    _
  $region9: #{carn_forward.9} parent=0 // pred_fallthru
    _
  // Predicated region
  $region10: #{carn_forward.9} parent=0 // pred_check
    _
  $region11: #{carn_forward.9} parent=0 // pred_check_branch
    %14 = sbr.rel (0) target = $region13
  $region12: #{carn_forward.9} parent=0 // pred_region
    _
  $region13: #{carn_forward.9} parent=0 // pred_fallthru
    _
  // Predicated region
  $region14: #{carn_forward.9} parent=0 // pred_check
    _
  $region15: #{carn_forward.9} parent=0 // pred_check_branch
    %16 = sbr.rel (0) target = $region17
  $region16: #{carn_forward.9} parent=0 // pred_region
    _
  $region17: #{carn_forward.9} parent=0 // pred_fallthru
    _
  %v18 = vld [vmem:[%s0] sm:$0xf]
  %v19 = vld [vmem:[%s0 + $0x4] sm:$0xf]
  %v20 = vld [vmem:[%s0 + $0x8] sm:$0xf]
  %v21 = vld [vmem:[%s0 + $0xc] sm:$0xf]
  %v22 = vld [vmem:[%s0 + $0x10] sm:$0xf]
  %v23 = vld [vmem:[%s0 + $0x14] sm:$0xf]
  %v24 = vld [vmem:[%s0 + $0x18] sm:$0xf]
  %v25 = vld [vmem:[%s0 + $0x1c] sm:$0xf]
  %v26 = vld [vmem:[%s0 + $0x20] sm:$0xf]
  %v27 = vld [vmem:[%s0 + $0x24] sm:$0xf]
  %v28 = vld [vmem:[%s0 + $0x28] sm:$0xf]
  %v29 = vld [vmem:[%s0 + $0x2c] sm:$0xf]
  %v30 = vld [vmem:[%s0 + $0x30] sm:$0xf]
  %v31 = vld [vmem:[%s0 + $0x34] sm:$0xf]
  %v32 = vld [vmem:[%s0 + $0x38] sm:$0xf]
  %v33 = vld [vmem:[%s0 + $0x3c] sm:$0xf]
  %v34 = vld [vmem:[%s2] sm:$0xf]
  %v35 = vld [vmem:[%s2 + $0x4] sm:$0xf]
  %v36 = vld [vmem:[%s1] sm:$0xf]
  %v37 = vld [vmem:[%s1 + $0x4] sm:$0xf]
  %v38 = vld [vmem:[%s1 + $0x8] sm:$0xf]
  %v39 = vld [vmem:[%s1 + $0xc] sm:$0xf]
  %v40 = vld [vmem:[%s1 + $0x10] sm:$0xf]
  %v41 = vld [vmem:[%s1 + $0x14] sm:$0xf]
  %v42 = vld [vmem:[%s1 + $0x18] sm:$0xf]
  %v43 = vld [vmem:[%s1 + $0x1c] sm:$0xf]
  %v44 = vld [vmem:[%s1 + $0x20] sm:$0xf]
  %v45 = vld [vmem:[%s1 + $0x24] sm:$0xf]
  %v46 = vld [vmem:[%s1 + $0x28] sm:$0xf]
  %v47 = vld [vmem:[%s1 + $0x2c] sm:$0xf]
  %v48 = vld [vmem:[%s1 + $0x30] sm:$0xf]
  %v49 = vld [vmem:[%s1 + $0x34] sm:$0xf]
  %v50 = vld [vmem:[%s1 + $0x38] sm:$0xf]
  %v51 = vld [vmem:[%s1 + $0x3c] sm:$0xf]
  %s52 = scalar_lea.vmem %s2, 8
  %v53 = vld [vmem:[%s52] sm:$0xf]
  %v54 = vld [vmem:[%s52 + $0x4] sm:$0xf]
  %v71 = vunpack.c.l.b16 %v36
  %v72 = vunpack.c.l.b16 %v37
  %v73 = vunpack.c.l.b16 %v38
  %v74 = vunpack.c.l.b16 %v39
  %v75 = vunpack.c.l.b16 %v40
  %v76 = vunpack.c.l.b16 %v41
  %v77 = vunpack.c.l.b16 %v42
  %v78 = vunpack.c.l.b16 %v43
  %v79 = vunpack.c.l.b16 %v44
  %v80 = vunpack.c.l.b16 %v45
  %v81 = vunpack.c.l.b16 %v46
  %v82 = vunpack.c.l.b16 %v47
  %v83 = vunpack.c.l.b16 %v48
  %v84 = vunpack.c.l.b16 %v49
  %v85 = vunpack.c.l.b16 %v50
  %v86 = vunpack.c.l.b16 %v51
  %v87 = vpack.c.b16 %v72, %v71
  %v88 = vpack.c.b16 %v74, %v73
  %v89 = vpack.c.b16 %v76, %v75
  %v90 = vpack.c.b16 %v78, %v77
  %v91 = vpack.c.b16 %v80, %v79
  %v92 = vpack.c.b16 %v82, %v81
  %v93 = vpack.c.b16 %v84, %v83
  %v94 = vpack.c.b16 %v86, %v85
  %v97 = vunpack.c.l.b16 %v53
  %v98 = vunpack.c.l.b16 %v54
  %v99 = vpack.c.b16 %v98, %v97
  %vm101 = vcmask 130048
  %v103 = vsel %vm101, %v87, 0
  %v106 = vsel %vm101, %v88, 0
  %v109 = vsel %vm101, %v89, 0
  %v112 = vsel %vm101, %v90, 0
  %v115 = vsel %vm101, %v91, 0
  %v118 = vsel %vm101, %v92, 0
  %v121 = vsel %vm101, %v93, 0
  %v124 = vsel %vm101, %v94, 0
  %126 = vmatpush.bf16.msra.mxu0 0
  %127 = vmatpush.bf16.msra.mxu0 0
  %128 = vmatpush.bf16.msra.mxu0 0
  %129 = vmatpush.bf16.msra.mxu0 0
  %130 = vmatpush.bf16.msra.mxu0 0
  %131 = vmatpush.bf16.msra.mxu0 0
  %132 = vmatpush.bf16.msra.mxu0 0
  %133 = vmatpush.bf16.msra.mxu0 %v99
  %134 = vmatmul.bf16.gmra.mxu0 %v103
  %v135 = vpop.f32.mrf.mxu0
  %v136 = vadd.f32 0.0, %v135
  %v137 = vpop.f32.mrf.mxu0
  %v138 = vadd.f32 0.0, %v137
  %139 = vmatmul.bf16.gmra.mxu0 %v106
  %v140 = vpop.f32.mrf.mxu0
  %v141 = vadd.f32 0.0, %v140
  %v142 = vpop.f32.mrf.mxu0
  %v143 = vadd.f32 0.0, %v142
  %144 = vmatmul.bf16.gmra.mxu0 %v109
  %v145 = vpop.f32.mrf.mxu0
  %v146 = vadd.f32 0.0, %v145
  %v147 = vpop.f32.mrf.mxu0
  %v148 = vadd.f32 0.0, %v147
  %149 = vmatmul.bf16.gmra.mxu0 %v112
  %v150 = vpop.f32.mrf.mxu0
  %v151 = vadd.f32 0.0, %v150
  %v152 = vpop.f32.mrf.mxu0
  %v153 = vadd.f32 0.0, %v152
  %154 = vmatmul.bf16.gmra.mxu0 %v115
  %v155 = vpop.f32.mrf.mxu0
  %v156 = vadd.f32 0.0, %v155
  %v157 = vpop.f32.mrf.mxu0
  %v158 = vadd.f32 0.0, %v157
  %159 = vmatmul.bf16.gmra.mxu0 %v118
  %v160 = vpop.f32.mrf.mxu0
  %v161 = vadd.f32 0.0, %v160
  %v162 = vpop.f32.mrf.mxu0
  %v163 = vadd.f32 0.0, %v162
  %164 = vmatmul.bf16.gmra.mxu0 %v121
  %v165 = vpop.f32.mrf.mxu0
  %v166 = vadd.f32 0.0, %v165
  %v167 = vpop.f32.mrf.mxu0
  %v168 = vadd.f32 0.0, %v167
  %169 = vmatmul.bf16.gmra.mxu0 %v124
  %v170 = vpop.f32.mrf.mxu0
  %v171 = vadd.f32 0.0, %v170
  %v172 = vpop.f32.mrf.mxu0
  %v173 = vadd.f32 0.0, %v172
  %174 = vdwg.mxu0
  %v191 = vunpack.c.l.b16 %v18
  %v192 = vunpack.c.l.b16 %v19
  %v193 = vunpack.c.l.b16 %v20
  %v194 = vunpack.c.l.b16 %v21
  %v195 = vunpack.c.l.b16 %v22
  %v196 = vunpack.c.l.b16 %v23
  %v197 = vunpack.c.l.b16 %v24
  %v198 = vunpack.c.l.b16 %v25
  %v199 = vunpack.c.l.b16 %v26
  %v200 = vunpack.c.l.b16 %v27
  %v201 = vunpack.c.l.b16 %v28
  %v202 = vunpack.c.l.b16 %v29
  %v203 = vunpack.c.l.b16 %v30
  %v204 = vunpack.c.l.b16 %v31
  %v205 = vunpack.c.l.b16 %v32
  %v206 = vunpack.c.l.b16 %v33
  %v207 = vpack.c.b16 %v192, %v191
  %v208 = vpack.c.b16 %v194, %v193
  %v209 = vpack.c.b16 %v196, %v195
  %v210 = vpack.c.b16 %v198, %v197
  %v211 = vpack.c.b16 %v200, %v199
  %v212 = vpack.c.b16 %v202, %v201
  %v213 = vpack.c.b16 %v204, %v203
  %v214 = vpack.c.b16 %v206, %v205
  %v217 = vunpack.c.l.b16 %v34
  %v218 = vunpack.c.l.b16 %v35
  %v219 = vpack.c.b16 %v218, %v217
  %v222 = vsel %vm101, %v207, 0
  %v225 = vsel %vm101, %v208, 0
  %v228 = vsel %vm101, %v209, 0
  %v231 = vsel %vm101, %v210, 0
  %v234 = vsel %vm101, %v211, 0
  %v237 = vsel %vm101, %v212, 0
  %v240 = vsel %vm101, %v213, 0
  %v243 = vsel %vm101, %v214, 0
  %245 = vmatpush.bf16.msra.mxu0 0
  %246 = vmatpush.bf16.msra.mxu0 0
  %247 = vmatpush.bf16.msra.mxu0 0
  %248 = vmatpush.bf16.msra.mxu0 0
  %249 = vmatpush.bf16.msra.mxu0 0
  %250 = vmatpush.bf16.msra.mxu0 0
  %251 = vmatpush.bf16.msra.mxu0 0
  %252 = vmatpush.bf16.msra.mxu0 %v219
  %253 = vmatmul.bf16.gmra.mxu0 %v222
  %v254 = vpop.f32.mrf.mxu0
  %v255 = vadd.f32 %v136, %v254
  %v256 = vpop.f32.mrf.mxu0
  %v257 = vadd.f32 %v138, %v256
  %258 = vmatmul.bf16.gmra.mxu0 %v225
  %v259 = vpop.f32.mrf.mxu0
  %v260 = vadd.f32 %v141, %v259
  %v261 = vpop.f32.mrf.mxu0
  %v262 = vadd.f32 %v143, %v261
  %263 = vmatmul.bf16.gmra.mxu0 %v228
  %v264 = vpop.f32.mrf.mxu0
  %v265 = vadd.f32 %v146, %v264
  %v266 = vpop.f32.mrf.mxu0
  %v267 = vadd.f32 %v148, %v266
  %268 = vmatmul.bf16.gmra.mxu0 %v231
  %v269 = vpop.f32.mrf.mxu0
  %v270 = vadd.f32 %v151, %v269
  %v271 = vpop.f32.mrf.mxu0
  %v272 = vadd.f32 %v153, %v271
  %273 = vmatmul.bf16.gmra.mxu0 %v234
  %v274 = vpop.f32.mrf.mxu0
  %v275 = vadd.f32 %v156, %v274
  %v276 = vpop.f32.mrf.mxu0
  %v277 = vadd.f32 %v158, %v276
  %278 = vmatmul.bf16.gmra.mxu0 %v237
  %v279 = vpop.f32.mrf.mxu0
  %v280 = vadd.f32 %v161, %v279
  %v281 = vpop.f32.mrf.mxu0
  %v282 = vadd.f32 %v163, %v281
  %283 = vmatmul.bf16.gmra.mxu0 %v240
  %v284 = vpop.f32.mrf.mxu0
  %v285 = vadd.f32 %v166, %v284
  %v286 = vpop.f32.mrf.mxu0
  %v287 = vadd.f32 %v168, %v286
  %288 = vmatmul.bf16.gmra.mxu0 %v243
  %v289 = vpop.f32.mrf.mxu0
  %v290 = vadd.f32 %v171, %v289
  %v291 = vpop.f32.mrf.mxu0
  %v292 = vadd.f32 %v173, %v291
  %293 = vdwg.mxu0
  %v294 = vld [vmem:[%s3] sm:$0x1]
  %v296 = vperm.slane %v294, 0
  %v298 = vadd.f32 %v255, %v296
  %v299 = vadd.f32 %v257, %v296
  %v300 = vadd.f32 %v260, %v296
  %v301 = vadd.f32 %v262, %v296
  %v302 = vadd.f32 %v265, %v296
  %v303 = vadd.f32 %v267, %v296
  %v304 = vadd.f32 %v270, %v296
  %v305 = vadd.f32 %v272, %v296
  %v306 = vadd.f32 %v275, %v296
  %v307 = vadd.f32 %v277, %v296
  %v308 = vadd.f32 %v280, %v296
  %v309 = vadd.f32 %v282, %v296
  %v310 = vadd.f32 %v285, %v296
  %v311 = vadd.f32 %v287, %v296
  %v312 = vadd.f32 %v290, %v296
  %v313 = vadd.f32 %v292, %v296
  %v314 = vpack.c.bf16 %v298, %v298
  %v315 = vpack.c.bf16 %v299, %v299
  %v316 = vpack.c.bf16 %v300, %v300
  %v317 = vpack.c.bf16 %v301, %v301
  %v318 = vpack.c.bf16 %v302, %v302
  %v319 = vpack.c.bf16 %v303, %v303
  %v320 = vpack.c.bf16 %v304, %v304
  %v321 = vpack.c.bf16 %v305, %v305
  %v322 = vpack.c.bf16 %v306, %v306
  %v323 = vpack.c.bf16 %v307, %v307
  %v324 = vpack.c.bf16 %v308, %v308
  %v325 = vpack.c.bf16 %v309, %v309
  %v326 = vpack.c.bf16 %v310, %v310
  %v327 = vpack.c.bf16 %v311, %v311
  %v328 = vpack.c.bf16 %v312, %v312
  %v329 = vpack.c.bf16 %v313, %v313
  %vm330 = vcmask 125952
  %331 = vst.msk [vmem:[%s4] sm:$0xf] %vm330, %v314
  %332 = vst.msk [vmem:[%s4 + $0x4] sm:$0xf] %vm330, %v315
  %333 = vst.msk [vmem:[%s4 + $0x8] sm:$0xf] %vm330, %v316
  %334 = vst.msk [vmem:[%s4 + $0xc] sm:$0xf] %vm330, %v317
  %335 = vst.msk [vmem:[%s4 + $0x10] sm:$0xf] %vm330, %v318
  %336 = vst.msk [vmem:[%s4 + $0x14] sm:$0xf] %vm330, %v319
  %337 = vst.msk [vmem:[%s4 + $0x18] sm:$0xf] %vm330, %v320
  %338 = vst.msk [vmem:[%s4 + $0x1c] sm:$0xf] %vm330, %v321
  %339 = vst.msk [vmem:[%s4 + $0x20] sm:$0xf] %vm330, %v322
  %340 = vst.msk [vmem:[%s4 + $0x24] sm:$0xf] %vm330, %v323
  %341 = vst.msk [vmem:[%s4 + $0x28] sm:$0xf] %vm330, %v324
  %342 = vst.msk [vmem:[%s4 + $0x2c] sm:$0xf] %vm330, %v325
  %343 = vst.msk [vmem:[%s4 + $0x30] sm:$0xf] %vm330, %v326
  %344 = vst.msk [vmem:[%s4 + $0x34] sm:$0xf] %vm330, %v327
  %345 = vst.msk [vmem:[%s4 + $0x38] sm:$0xf] %vm330, %v328
  %346 = vst.msk [vmem:[%s4 + $0x3c] sm:$0xf] %vm330, %v329
  // Predicated region
  $region18: #{carn_forward.9} parent=0 // pred_check
    _
  $region19: #{carn_forward.9} parent=0 // pred_check_branch
    %348 = sbr.rel (0) target = $region21
  $region20: #{carn_forward.9} parent=0 // pred_region
    _
  $region21: #{carn_forward.9} parent=0 // pred_fallthru
    _
  // Predicated region
  $region22: #{carn_forward.9} parent=0 // pred_check
    _
  $region23: #{carn_forward.9} parent=0 // pred_check_branch
    %350 = sbr.rel (0) target = $region25
  $region24: #{carn_forward.9} parent=0 // pred_region
    _
  $region25: #{carn_forward.9} parent=0 // pred_fallthru
    _

// kernel: carn_forward.11
$region0: #{carn_forward.11}
  #allocation0 [shape = 'u32[]', space=smem, size = 0x4, offset = 0x4, fixed_abs, tag = 'smem constant byte address 0x4 - core index']
  #allocation1 [shape = 'u32[72,128]{1,0:T(1,128)}', space=vmem, size = 0x9000, scoped, tag = 'internal scratch']
  %s0 = inlined_call_operand.vmem [shape: bf16[128,16], index: 0, kind: input, shape index: {}]
  %s1 = inlined_call_operand.vmem [shape: bf16[128,16], index: 1, kind: input, shape index: {}]
  %s2 = inlined_call_operand.vmem [shape: bf16[128,16], index: 2, kind: input, shape index: {}]
  %s3 = inlined_call_operand.vmem [shape: bf16[3,16,16], index: 3, kind: input, shape index: {}]
  %s4 = inlined_call_operand.vmem [shape: f32[1,16], index: 4, kind: input, shape index: {}]
  %s5 = inlined_call_operand.vmem [shape: bf16[128,16], index: 5, kind: output, shape index: {}]
  %s6 = sld [smem:[#allocation0]]
  $region30: #{carn_forward.11} parent=0
    _
  %s8 = ssub.s32 1, %s6
  %s9 = scalar_select 0, %s8, %s6
  // Predicated region
  $region2: #{carn_forward.11} parent=0 // pred_check
    _
  $region3: #{carn_forward.11} parent=0 // pred_check_branch
    %11 = sbr.rel (0) target = $region5
  $region4: #{carn_forward.11} parent=0 // pred_region
    _
  $region5: #{carn_forward.11} parent=0 // pred_fallthru
    _
  // Predicated region
  $region6: #{carn_forward.11} parent=0 // pred_check
    _
  $region7: #{carn_forward.11} parent=0 // pred_check_branch
    %13 = sbr.rel (0) target = $region9
  $region8: #{carn_forward.11} parent=0 // pred_region
    _
  $region9: #{carn_forward.11} parent=0 // pred_fallthru
    _
  // Predicated region
  $region10: #{carn_forward.11} parent=0 // pred_check
    _
  $region11: #{carn_forward.11} parent=0 // pred_check_branch
    %15 = sbr.rel (0) target = $region13
  $region12: #{carn_forward.11} parent=0 // pred_region
    _
  $region13: #{carn_forward.11} parent=0 // pred_fallthru
    _
  // Predicated region
  $region14: #{carn_forward.11} parent=0 // pred_check
    _
  $region15: #{carn_forward.11} parent=0 // pred_check_branch
    %17 = sbr.rel (0) target = $region17
  $region16: #{carn_forward.11} parent=0 // pred_region
    _
  $region17: #{carn_forward.11} parent=0 // pred_fallthru
    _
  // Predicated region
  $region18: #{carn_forward.11} parent=0 // pred_check
    _
  $region19: #{carn_forward.11} parent=0 // pred_check_branch
    %19 = sbr.rel (0) target = $region21
  $region20: #{carn_forward.11} parent=0 // pred_region
    _
  $region21: #{carn_forward.11} parent=0 // pred_fallthru
    _
  %v21 = vld [vmem:[%s0] sm:$0xf]
  %v22 = vld [vmem:[%s0 + $0x4] sm:$0xf]
  %v23 = vld [vmem:[%s0 + $0x8] sm:$0xf]
  %v24 = vld [vmem:[%s0 + $0xc] sm:$0xf]
  %v25 = vld [vmem:[%s0 + $0x10] sm:$0xf]
  %v26 = vld [vmem:[%s0 + $0x14] sm:$0xf]
  %v27 = vld [vmem:[%s0 + $0x18] sm:$0xf]
  %v28 = vld [vmem:[%s0 + $0x1c] sm:$0xf]
  %v29 = vld [vmem:[%s0 + $0x20] sm:$0xf]
  %v30 = vld [vmem:[%s0 + $0x24] sm:$0xf]
  %v31 = vld [vmem:[%s0 + $0x28] sm:$0xf]
  %v32 = vld [vmem:[%s0 + $0x2c] sm:$0xf]
  %v33 = vld [vmem:[%s0 + $0x30] sm:$0xf]
  %v34 = vld [vmem:[%s0 + $0x34] sm:$0xf]
  %v35 = vld [vmem:[%s0 + $0x38] sm:$0xf]
  %v36 = vld [vmem:[%s0 + $0x3c] sm:$0xf]
  %v37 = vld [vmem:[%s3] sm:$0xf]
  %v38 = vld [vmem:[%s3 + $0x4] sm:$0xf]
  %v39 = vld [vmem:[%s1] sm:$0xf]
  %v40 = vld [vmem:[%s1 + $0x4] sm:$0xf]
  %v41 = vld [vmem:[%s1 + $0x8] sm:$0xf]
  %v42 = vld [vmem:[%s1 + $0xc] sm:$0xf]
  %v43 = vld [vmem:[%s1 + $0x10] sm:$0xf]
  %v44 = vld [vmem:[%s1 + $0x14] sm:$0xf]
  %v45 = vld [vmem:[%s1 + $0x18] sm:$0xf]
  %v46 = vld [vmem:[%s1 + $0x1c] sm:$0xf]
  %v47 = vld [vmem:[%s1 + $0x20] sm:$0xf]
  %v48 = vld [vmem:[%s1 + $0x24] sm:$0xf]
  %v49 = vld [vmem:[%s1 + $0x28] sm:$0xf]
  %v50 = vld [vmem:[%s1 + $0x2c] sm:$0xf]
  %v51 = vld [vmem:[%s1 + $0x30] sm:$0xf]
  %v52 = vld [vmem:[%s1 + $0x34] sm:$0xf]
  %v53 = vld [vmem:[%s1 + $0x38] sm:$0xf]
  %v54 = vld [vmem:[%s1 + $0x3c] sm:$0xf]
  %s55 = scalar_lea.vmem %s3, 8
  %v56 = vld [vmem:[%s55] sm:$0xf]
  %v57 = vld [vmem:[%s55 + $0x4] sm:$0xf]
  %v74 = vunpack.c.l.b16 %v39
  %v75 = vunpack.c.l.b16 %v40
  %v76 = vunpack.c.l.b16 %v41
  %v77 = vunpack.c.l.b16 %v42
  %v78 = vunpack.c.l.b16 %v43
  %v79 = vunpack.c.l.b16 %v44
  %v80 = vunpack.c.l.b16 %v45
  %v81 = vunpack.c.l.b16 %v46
  %v82 = vunpack.c.l.b16 %v47
  %v83 = vunpack.c.l.b16 %v48
  %v84 = vunpack.c.l.b16 %v49
  %v85 = vunpack.c.l.b16 %v50
  %v86 = vunpack.c.l.b16 %v51
  %v87 = vunpack.c.l.b16 %v52
  %v88 = vunpack.c.l.b16 %v53
  %v89 = vunpack.c.l.b16 %v54
  %v90 = vpack.c.b16 %v75, %v74
  %v91 = vpack.c.b16 %v77, %v76
  %v92 = vpack.c.b16 %v79, %v78
  %v93 = vpack.c.b16 %v81, %v80
  %v94 = vpack.c.b16 %v83, %v82
  %v95 = vpack.c.b16 %v85, %v84
  %v96 = vpack.c.b16 %v87, %v86
  %v97 = vpack.c.b16 %v89, %v88
  %v100 = vunpack.c.l.b16 %v56
  %v101 = vunpack.c.l.b16 %v57
  %v102 = vpack.c.b16 %v101, %v100
  %vm104 = vcmask 130048
  %v106 = vsel %vm104, %v90, 0
  %v109 = vsel %vm104, %v91, 0
  %v112 = vsel %vm104, %v92, 0
  %v115 = vsel %vm104, %v93, 0
  %v118 = vsel %vm104, %v94, 0
  %v121 = vsel %vm104, %v95, 0
  %v124 = vsel %vm104, %v96, 0
  %v127 = vsel %vm104, %v97, 0
  %129 = vmatpush.bf16.msra.mxu0 0
  %130 = vmatpush.bf16.msra.mxu0 0
  %131 = vmatpush.bf16.msra.mxu0 0
  %132 = vmatpush.bf16.msra.mxu0 0
  %133 = vmatpush.bf16.msra.mxu0 0
  %134 = vmatpush.bf16.msra.mxu0 0
  %135 = vmatpush.bf16.msra.mxu0 0
  %136 = vmatpush.bf16.msra.mxu0 %v102
  %137 = vmatmul.bf16.gmra.mxu0 %v106
  %v138 = vpop.f32.mrf.mxu0
  %v139 = vadd.f32 0.0, %v138
  %v140 = vpop.f32.mrf.mxu0
  %v141 = vadd.f32 0.0, %v140
  %142 = vmatmul.bf16.gmra.mxu0 %v109
  %v143 = vpop.f32.mrf.mxu0
  %v144 = vadd.f32 0.0, %v143
  %v145 = vpop.f32.mrf.mxu0
  %v146 = vadd.f32 0.0, %v145
  %147 = vmatmul.bf16.gmra.mxu0 %v112
  %v148 = vpop.f32.mrf.mxu0
  %v149 = vadd.f32 0.0, %v148
  %v150 = vpop.f32.mrf.mxu0
  %v151 = vadd.f32 0.0, %v150
  %152 = vmatmul.bf16.gmra.mxu0 %v115
  %v153 = vpop.f32.mrf.mxu0
  %v154 = vadd.f32 0.0, %v153
  %v155 = vpop.f32.mrf.mxu0
  %v156 = vadd.f32 0.0, %v155
  %157 = vmatmul.bf16.gmra.mxu0 %v118
  %v158 = vpop.f32.mrf.mxu0
  %v159 = vadd.f32 0.0, %v158
  %v160 = vpop.f32.mrf.mxu0
  %v161 = vadd.f32 0.0, %v160
  %162 = vmatmul.bf16.gmra.mxu0 %v121
  %v163 = vpop.f32.mrf.mxu0
  %v164 = vadd.f32 0.0, %v163
  %v165 = vpop.f32.mrf.mxu0
  %v166 = vadd.f32 0.0, %v165
  %167 = vmatmul.bf16.gmra.mxu0 %v124
  %v168 = vpop.f32.mrf.mxu0
  %v169 = vadd.f32 0.0, %v168
  %v170 = vpop.f32.mrf.mxu0
  %v171 = vadd.f32 0.0, %v170
  %172 = vmatmul.bf16.gmra.mxu0 %v127
  %v173 = vpop.f32.mrf.mxu0
  %v174 = vadd.f32 0.0, %v173
  %v175 = vpop.f32.mrf.mxu0
  %v176 = vadd.f32 0.0, %v175
  %177 = vdwg.mxu0
  %v194 = vunpack.c.l.b16 %v21
  %v195 = vunpack.c.l.b16 %v22
  %v196 = vunpack.c.l.b16 %v23
  %v197 = vunpack.c.l.b16 %v24
  %v198 = vunpack.c.l.b16 %v25
  %v199 = vunpack.c.l.b16 %v26
  %v200 = vunpack.c.l.b16 %v27
  %v201 = vunpack.c.l.b16 %v28
  %v202 = vunpack.c.l.b16 %v29
  %v203 = vunpack.c.l.b16 %v30
  %v204 = vunpack.c.l.b16 %v31
  %v205 = vunpack.c.l.b16 %v32
  %v206 = vunpack.c.l.b16 %v33
  %v207 = vunpack.c.l.b16 %v34
  %v208 = vunpack.c.l.b16 %v35
  %v209 = vunpack.c.l.b16 %v36
  %v210 = vpack.c.b16 %v195, %v194
  %v211 = vpack.c.b16 %v197, %v196
  %v212 = vpack.c.b16 %v199, %v198
  %v213 = vpack.c.b16 %v201, %v200
  %v214 = vpack.c.b16 %v203, %v202
  %v215 = vpack.c.b16 %v205, %v204
  %v216 = vpack.c.b16 %v207, %v206
  %v217 = vpack.c.b16 %v209, %v208
  %v220 = vunpack.c.l.b16 %v37
  %v221 = vunpack.c.l.b16 %v38
  %v222 = vpack.c.b16 %v221, %v220
  %v225 = vsel %vm104, %v210, 0
  %v228 = vsel %vm104, %v211, 0
  %v231 = vsel %vm104, %v212, 0
  %v234 = vsel %vm104, %v213, 0
  %v237 = vsel %vm104, %v214, 0
  %v240 = vsel %vm104, %v215, 0
  %v243 = vsel %vm104, %v216, 0
  %v246 = vsel %vm104, %v217, 0
  %248 = vmatpush.bf16.msra.mxu0 0
  %249 = vmatpush.bf16.msra.mxu0 0
  %250 = vmatpush.bf16.msra.mxu0 0
  %251 = vmatpush.bf16.msra.mxu0 0
  %252 = vmatpush.bf16.msra.mxu0 0
  %253 = vmatpush.bf16.msra.mxu0 0
  %254 = vmatpush.bf16.msra.mxu0 0
  %255 = vmatpush.bf16.msra.mxu0 %v222
  %256 = vmatmul.bf16.gmra.mxu0 %v225
  %v257 = vpop.f32.mrf.mxu0
  %v258 = vadd.f32 %v139, %v257
  %v259 = vpop.f32.mrf.mxu0
  %v260 = vadd.f32 %v141, %v259
  %261 = vmatmul.bf16.gmra.mxu0 %v228
  %v262 = vpop.f32.mrf.mxu0
  %v263 = vadd.f32 %v144, %v262
  %v264 = vpop.f32.mrf.mxu0
  %v265 = vadd.f32 %v146, %v264
  %266 = vmatmul.bf16.gmra.mxu0 %v231
  %v267 = vpop.f32.mrf.mxu0
  %v268 = vadd.f32 %v149, %v267
  %v269 = vpop.f32.mrf.mxu0
  %v270 = vadd.f32 %v151, %v269
  %271 = vmatmul.bf16.gmra.mxu0 %v234
  %v272 = vpop.f32.mrf.mxu0
  %v273 = vadd.f32 %v154, %v272
  %v274 = vpop.f32.mrf.mxu0
  %v275 = vadd.f32 %v156, %v274
  %276 = vmatmul.bf16.gmra.mxu0 %v237
  %v277 = vpop.f32.mrf.mxu0
  %v278 = vadd.f32 %v159, %v277
  %v279 = vpop.f32.mrf.mxu0
  %v280 = vadd.f32 %v161, %v279
  %281 = vmatmul.bf16.gmra.mxu0 %v240
  %v282 = vpop.f32.mrf.mxu0
  %v283 = vadd.f32 %v164, %v282
  %v284 = vpop.f32.mrf.mxu0
  %v285 = vadd.f32 %v166, %v284
  %286 = vmatmul.bf16.gmra.mxu0 %v243
  %v287 = vpop.f32.mrf.mxu0
  %v288 = vadd.f32 %v169, %v287
  %v289 = vpop.f32.mrf.mxu0
  %v290 = vadd.f32 %v171, %v289
  %291 = vmatmul.bf16.gmra.mxu0 %v246
  %v292 = vpop.f32.mrf.mxu0
  %v293 = vadd.f32 %v174, %v292
  %v294 = vpop.f32.mrf.mxu0
  %v295 = vadd.f32 %v176, %v294
  %296 = vdwg.mxu0
  %v297 = vld [vmem:[%s2] sm:$0xf]
  %v298 = vld [vmem:[%s2 + $0x4] sm:$0xf]
  %v299 = vld [vmem:[%s2 + $0x8] sm:$0xf]
  %v300 = vld [vmem:[%s2 + $0xc] sm:$0xf]
  %v301 = vld [vmem:[%s2 + $0x10] sm:$0xf]
  %v302 = vld [vmem:[%s2 + $0x14] sm:$0xf]
  %v303 = vld [vmem:[%s2 + $0x18] sm:$0xf]
  %v304 = vld [vmem:[%s2 + $0x1c] sm:$0xf]
  %v305 = vld [vmem:[%s2 + $0x20] sm:$0xf]
  %v306 = vld [vmem:[%s2 + $0x24] sm:$0xf]
  %v307 = vld [vmem:[%s2 + $0x28] sm:$0xf]
  %v308 = vld [vmem:[%s2 + $0x2c] sm:$0xf]
  %v309 = vld [vmem:[%s2 + $0x30] sm:$0xf]
  %v310 = vld [vmem:[%s2 + $0x34] sm:$0xf]
  %v311 = vld [vmem:[%s2 + $0x38] sm:$0xf]
  %v312 = vld [vmem:[%s2 + $0x3c] sm:$0xf]
  %s313 = scalar_lea.vmem %s3, 16
  %v314 = vld [vmem:[%s313] sm:$0xf]
  %v315 = vld [vmem:[%s313 + $0x4] sm:$0xf]
  %v332 = vunpack.c.l.b16 %v297
  %v333 = vunpack.c.l.b16 %v298
  %v334 = vunpack.c.l.b16 %v299
  %v335 = vunpack.c.l.b16 %v300
  %v336 = vunpack.c.l.b16 %v301
  %v337 = vunpack.c.l.b16 %v302
  %v338 = vunpack.c.l.b16 %v303
  %v339 = vunpack.c.l.b16 %v304
  %v340 = vunpack.c.l.b16 %v305
  %v341 = vunpack.c.l.b16 %v306
  %v342 = vunpack.c.l.b16 %v307
  %v343 = vunpack.c.l.b16 %v308
  %v344 = vunpack.c.l.b16 %v309
  %v345 = vunpack.c.l.b16 %v310
  %v346 = vunpack.c.l.b16 %v311
  %v347 = vunpack.c.l.b16 %v312
  %v348 = vpack.c.b16 %v333, %v332
  %v349 = vpack.c.b16 %v335, %v334
  %v350 = vpack.c.b16 %v337, %v336
  %v351 = vpack.c.b16 %v339, %v338
  %v352 = vpack.c.b16 %v341, %v340
  %v353 = vpack.c.b16 %v343, %v342
  %v354 = vpack.c.b16 %v345, %v344
  %v355 = vpack.c.b16 %v347, %v346
  %v358 = vunpack.c.l.b16 %v314
  %v359 = vunpack.c.l.b16 %v315
  %v360 = vpack.c.b16 %v359, %v358
  %v363 = vsel %vm104, %v348, 0
  %v366 = vsel %vm104, %v349, 0
  %v369 = vsel %vm104, %v350, 0
  %v372 = vsel %vm104, %v351, 0
  %v375 = vsel %vm104, %v352, 0
  %v378 = vsel %vm104, %v353, 0
  %v381 = vsel %vm104, %v354, 0
  %v384 = vsel %vm104, %v355, 0
  %386 = vmatpush.bf16.msra.mxu0 0
  %387 = vmatpush.bf16.msra.mxu0 0
  %388 = vmatpush.bf16.msra.mxu0 0
  %389 = vmatpush.bf16.msra.mxu0 0
  %390 = vmatpush.bf16.msra.mxu0 0
  %391 = vmatpush.bf16.msra.mxu0 0
  %392 = vmatpush.bf16.msra.mxu0 0
  %393 = vmatpush.bf16.msra.mxu0 %v360
  %394 = vmatmul.bf16.gmra.mxu0 %v363
  %v395 = vpop.f32.mrf.mxu0
  %v396 = vadd.f32 0.0, %v395
  %v397 = vpop.f32.mrf.mxu0
  %v398 = vadd.f32 0.0, %v397
  %399 = vmatmul.bf16.gmra.mxu0 %v366
  %v400 = vpop.f32.mrf.mxu0
  %v401 = vadd.f32 0.0, %v400
  %v402 = vpop.f32.mrf.mxu0
  %v403 = vadd.f32 0.0, %v402
  %404 = vmatmul.bf16.gmra.mxu0 %v369
  %v405 = vpop.f32.mrf.mxu0
  %v406 = vadd.f32 0.0, %v405
  %v407 = vpop.f32.mrf.mxu0
  %v408 = vadd.f32 0.0, %v407
  %409 = vmatmul.bf16.gmra.mxu0 %v372
  %v410 = vpop.f32.mrf.mxu0
  %v411 = vadd.f32 0.0, %v410
  %v412 = vpop.f32.mrf.mxu0
  %v413 = vadd.f32 0.0, %v412
  %414 = vmatmul.bf16.gmra.mxu0 %v375
  %v415 = vpop.f32.mrf.mxu0
  %v416 = vadd.f32 0.0, %v415
  %v417 = vpop.f32.mrf.mxu0
  %v418 = vadd.f32 0.0, %v417
  %419 = vmatmul.bf16.gmra.mxu0 %v378
  %v420 = vpop.f32.mrf.mxu0
  %v421 = vadd.f32 0.0, %v420
  %v422 = vpop.f32.mrf.mxu0
  %v423 = vadd.f32 0.0, %v422
  %424 = vmatmul.bf16.gmra.mxu0 %v381
  %v425 = vpop.f32.mrf.mxu0
  %v426 = vadd.f32 0.0, %v425
  %v427 = vpop.f32.mrf.mxu0
  %v428 = vadd.f32 0.0, %v427
  %429 = vmatmul.bf16.gmra.mxu0 %v384
  %v430 = vpop.f32.mrf.mxu0
  %v431 = vadd.f32 0.0, %v430
  %v432 = vpop.f32.mrf.mxu0
  %v433 = vadd.f32 0.0, %v432
  %434 = vdwg.mxu0
  %v435 = vadd.f32 %v258, %v396
  %v436 = vadd.f32 %v260, %v398
  %v437 = vadd.f32 %v263, %v401
  %v438 = vadd.f32 %v265, %v403
  %v439 = vadd.f32 %v268, %v406
  %v440 = vadd.f32 %v270, %v408
  %v441 = vadd.f32 %v273, %v411
  %v442 = vadd.f32 %v275, %v413
  %v443 = vadd.f32 %v278, %v416
  %v444 = vadd.f32 %v280, %v418
  %v445 = vadd.f32 %v283, %v421
  %v446 = vadd.f32 %v285, %v423
  %v447 = vadd.f32 %v288, %v426
  %v448 = vadd.f32 %v290, %v428
  %v449 = vadd.f32 %v293, %v431
  %v450 = vadd.f32 %v295, %v433
  %v451 = vld [vmem:[%s4] sm:$0x1]
  %v453 = vperm.slane %v451, 0
  %v455 = vadd.f32 %v435, %v453
  %v456 = vadd.f32 %v436, %v453
  %v457 = vadd.f32 %v437, %v453
  %v458 = vadd.f32 %v438, %v453
  %v459 = vadd.f32 %v439, %v453
  %v460 = vadd.f32 %v440, %v453
  %v461 = vadd.f32 %v441, %v453
  %v462 = vadd.f32 %v442, %v453
  %v463 = vadd.f32 %v443, %v453
  %v464 = vadd.f32 %v444, %v453
  %v465 = vadd.f32 %v445, %v453
  %v466 = vadd.f32 %v446, %v453
  %v467 = vadd.f32 %v447, %v453
  %v468 = vadd.f32 %v448, %v453
  %v469 = vadd.f32 %v449, %v453
  %v470 = vadd.f32 %v450, %v453
  %v471 = vpack.c.bf16 %v455, %v455
  %v472 = vpack.c.bf16 %v456, %v456
  %v473 = vpack.c.bf16 %v457, %v457
  %v474 = vpack.c.bf16 %v458, %v458
  %v475 = vpack.c.bf16 %v459, %v459
  %v476 = vpack.c.bf16 %v460, %v460
  %v477 = vpack.c.bf16 %v461, %v461
  %v478 = vpack.c.bf16 %v462, %v462
  %v479 = vpack.c.bf16 %v463, %v463
  %v480 = vpack.c.bf16 %v464, %v464
  %v481 = vpack.c.bf16 %v465, %v465
  %v482 = vpack.c.bf16 %v466, %v466
  %v483 = vpack.c.bf16 %v467, %v467
  %v484 = vpack.c.bf16 %v468, %v468
  %v485 = vpack.c.bf16 %v469, %v469
  %v486 = vpack.c.bf16 %v470, %v470
  %vm487 = vcmask 125952
  %488 = vst.msk [vmem:[%s5] sm:$0xf] %vm487, %v471
  %489 = vst.msk [vmem:[%s5 + $0x4] sm:$0xf] %vm487, %v472
  %490 = vst.msk [vmem:[%s5 + $0x8] sm:$0xf] %vm487, %v473
  %491 = vst.msk [vmem:[%s5 + $0xc] sm:$0xf] %vm487, %v474
  %492 = vst.msk [vmem:[%s5 + $0x10] sm:$0xf] %vm487, %v475
  %493 = vst.msk [vmem:[%s5 + $0x14] sm:$0xf] %vm487, %v476
  %494 = vst.msk [vmem:[%s5 + $0x18] sm:$0xf] %vm487, %v477
  %495 = vst.msk [vmem:[%s5 + $0x1c] sm:$0xf] %vm487, %v478
  %496 = vst.msk [vmem:[%s5 + $0x20] sm:$0xf] %vm487, %v479
  %497 = vst.msk [vmem:[%s5 + $0x24] sm:$0xf] %vm487, %v480
  %498 = vst.msk [vmem:[%s5 + $0x28] sm:$0xf] %vm487, %v481
  %499 = vst.msk [vmem:[%s5 + $0x2c] sm:$0xf] %vm487, %v482
  %500 = vst.msk [vmem:[%s5 + $0x30] sm:$0xf] %vm487, %v483
  %501 = vst.msk [vmem:[%s5 + $0x34] sm:$0xf] %vm487, %v484
  %502 = vst.msk [vmem:[%s5 + $0x38] sm:$0xf] %vm487, %v485
  %503 = vst.msk [vmem:[%s5 + $0x3c] sm:$0xf] %vm487, %v486
  // Predicated region
  $region22: #{carn_forward.11} parent=0 // pred_check
    _
  $region23: #{carn_forward.11} parent=0 // pred_check_branch
    %505 = sbr.rel (0) target = $region25
  $region24: #{carn_forward.11} parent=0 // pred_region
    _
  $region25: #{carn_forward.11} parent=0 // pred_fallthru
    _
  // Predicated region
  $region26: #{carn_forward.11} parent=0 // pred_check
    _
  $region27: #{carn_forward.11} parent=0 // pred_check_branch
    %507 = sbr.rel (0) target = $region29
  $region28: #{carn_forward.11} parent=0 // pred_region
    _
  $region29: #{carn_forward.11} parent=0 // pred_fallthru
    _

// kernel: carn_forward.7
$region0: #{carn_forward.7}
  #allocation0 [shape = 'u32[]', space=smem, size = 0x4, offset = 0x4, fixed_abs, tag = 'smem constant byte address 0x4 - core index']
  #allocation1 [shape = 'u32[72,128]{1,0:T(1,128)}', space=vmem, size = 0x9000, scoped, tag = 'internal scratch']
  %s0 = inlined_call_operand.vmem [shape: bf16[2,10,10,3], index: 0, kind: input, shape index: {}]
  %s1 = inlined_call_operand.vmem [shape: bf16[9,3,16], index: 1, kind: input, shape index: {}]
  %s2 = inlined_call_operand.vmem [shape: f32[1,16], index: 2, kind: input, shape index: {}]
  %s3 = inlined_call_operand.vmem [shape: bf16[2,8,8,16], index: 3, kind: output, shape index: {}]
  %s4 = sld [smem:[#allocation0]]
  $region45: #{carn_forward.7} parent=0
    _
  %s6 = ssub.s32 1, %s4
  %s7 = scalar_select 0, %s6, %s4
  loop: start=0, step=1, limit=4
  $region2: #{carn_forward.7} parent=0 // loop_pre_header
    _
  $region3: #{carn_forward.7} parent=0 // loop_header
    %s9 = sphi 0, %s13
    %p10 = scmp.ge.s32.totalorder %s9, 4
    %s19 = sphi 0, %s21
    %s22 = sphi 0, %s19
    %s23 = sphi 0, %s22
    %s39 = sphi 0, %s23
    %s43 = sphi 0, %s43
    %s45 = sphi 0, %s43
    %s46 = sphi 0, %s45
    %s60 = sphi 0, %s46
    %s64 = sphi 0, %s64
    %s66 = sphi 0, %s64
    %s67 = sphi 0, %s66
    %s81 = sphi 0, %s67
    %s87 = sphi 0, %s89
    %s90 = sphi 0, %s87
    %s91 = sphi 0, %s90
    %s107 = sphi 0, %s91
  $region4: #{carn_forward.7} parent=0 // loop_header_branch
    %12 = sbr.rel (%p10) target = $region8
  $region5: #{carn_forward.7} parent=0 // loop_body
    %s14 = ssub.s32 %s9, 1
    %s15 = ssub.s32 %s9, 2
    %s16 = sadd.s32 %s9, 1
    %s17 = ssub.s32 %s9, %s16
    %p18 = scmp.eq.s32.totalorder %s17, 0
    %s20 = sadd.s32 %s19, 1
    %s21 = scalar_select %p18, %s19, %s20
    %p24 = pneg %p18
    %p25 = scmp.eq.s32.totalorder %s9, 1
    %p26 = por %p24, %p25
    %p27 = scmp.ne.s32.totalorder %s19, %s22
    %p28 = scmp.eq.s32.totalorder %s9, 0
    %p29 = por %p27, %p28
    %p30 = scmp.ne.s32.totalorder %s19, %s22
    %p31 = scmp.eq.s32.totalorder %s14, 1
    %p32 = por %p30, %p31
    %p33 = scmp.ne.s32.totalorder %s22, %s23
    %p34 = scmp.eq.s32.totalorder %s14, 0
    %p35 = por %p33, %p34
    %p36 = scmp.ne.s32.totalorder %s22, %s23
    %p37 = scmp.eq.s32.totalorder %s15, 1
    %p38 = por %p36, %p37
    %p40 = scmp.ne.s32.totalorder %s23, %s39
    %p41 = scmp.eq.s32.totalorder %s15, 0
    %p42 = por %p40, %p41
    %s44 = sadd.s32 %s43, 1
    %p47 = scmp.eq.s32.totalorder %s9, 1
    %p48 = scmp.ne.s32.totalorder %s43, %s45
    %p49 = scmp.eq.s32.totalorder %s9, 0
    %p50 = por %p48, %p49
    %p51 = scmp.ne.s32.totalorder %s43, %s45
    %p52 = scmp.eq.s32.totalorder %s14, 1
    %p53 = por %p51, %p52
    %p54 = scmp.ne.s32.totalorder %s45, %s46
    %p55 = scmp.eq.s32.totalorder %s14, 0
    %p56 = por %p54, %p55
    %p57 = scmp.ne.s32.totalorder %s45, %s46
    %p58 = scmp.eq.s32.totalorder %s15, 1
    %p59 = por %p57, %p58
    %p61 = scmp.ne.s32.totalorder %s46, %s60
    %p62 = scmp.eq.s32.totalorder %s15, 0
    %p63 = por %p61, %p62
    %s65 = sadd.s32 %s64, 1
    %p68 = scmp.eq.s32.totalorder %s9, 1
    %p69 = scmp.ne.s32.totalorder %s64, %s66
    %p70 = scmp.eq.s32.totalorder %s9, 0
    %p71 = por %p69, %p70
    %p72 = scmp.ne.s32.totalorder %s64, %s66
    %p73 = scmp.eq.s32.totalorder %s14, 1
    %p74 = por %p72, %p73
    %p75 = scmp.ne.s32.totalorder %s66, %s67
    %p76 = scmp.eq.s32.totalorder %s14, 0
    %p77 = por %p75, %p76
    %p78 = scmp.ne.s32.totalorder %s66, %s67
    %p79 = scmp.eq.s32.totalorder %s15, 1
    %p80 = por %p78, %p79
    %p82 = scmp.ne.s32.totalorder %s67, %s81
    %p83 = scmp.eq.s32.totalorder %s15, 0
    %p84 = por %p82, %p83
    %s85 = ssub.s32 %s9, %s16
    %p86 = scmp.eq.s32.totalorder %s85, 0
    %s88 = sadd.s32 %s87, 1
    %s89 = scalar_select %p86, %s87, %s88
    %p92 = pneg %p86
    %p93 = scmp.eq.s32.totalorder %s9, 1
    %p94 = por %p92, %p93
    %p95 = scmp.ne.s32.totalorder %s87, %s90
    %p96 = scmp.eq.s32.totalorder %s9, 0
    %p97 = por %p95, %p96
    %p98 = scmp.ne.s32.totalorder %s87, %s90
    %p99 = scmp.eq.s32.totalorder %s14, 1
    %p100 = por %p98, %p99
    %p101 = scmp.ne.s32.totalorder %s90, %s91
    %p102 = scmp.eq.s32.totalorder %s14, 0
    %p103 = por %p101, %p102
    %p104 = scmp.ne.s32.totalorder %s90, %s91
    %p105 = scmp.eq.s32.totalorder %s15, 1
    %p106 = por %p104, %p105
    %p108 = scmp.ne.s32.totalorder %s91, %s107
    %p109 = scmp.eq.s32.totalorder %s15, 0
    %p110 = por %p108, %p109
    %p111 = scmp.le.s32.totalorder 1, %s9
    %p112 = scmp.lt.s32.totalorder %s9, 3
    %p113 = pnand %p111, %p112
    %p114 = pneg %p113
    // Predicated region
    $region9: #{carn_forward.7} parent=5 // pred_check
      _
    $region10: #{carn_forward.7} parent=5 // pred_check_branch
      %116 = sbr.rel (%p113) target = $region12
    $region11: #{carn_forward.7} parent=5 // pred_region
      %s117 = ssub.s32 %s9, 1
      // Predicated region
      $region13: #{carn_forward.7} parent=11 // pred_check
        %p118 = pneg %p56
      $region14: #{carn_forward.7} parent=11 // pred_check_branch
        %120 = sbr.rel (%p118) target = $region16
      $region15: #{carn_forward.7} parent=11 // pred_region
        _
      $region16: #{carn_forward.7} parent=11 // pred_fallthru
        _
      // Predicated region
      $region17: #{carn_forward.7} parent=11 // pred_check
        %p121 = pneg %p77
      $region18: #{carn_forward.7} parent=11 // pred_check_branch
        %123 = sbr.rel (%p121) target = $region20
      $region19: #{carn_forward.7} parent=11 // pred_region
        _
      $region20: #{carn_forward.7} parent=11 // pred_fallthru
        _
    $region12: #{carn_forward.7} parent=5 // pred_fallthru
      _
    %p124 = scmp.lt.s32.totalorder %s9, 2
    // Predicated region
    $region21: #{carn_forward.7} parent=5 // pred_check
      %p125 = pneg %p124
    $region22: #{carn_forward.7} parent=5 // pred_check_branch
      %127 = sbr.rel (%p125) target = $region24
    $region23: #{carn_forward.7} parent=5 // pred_region
      // Predicated region
      $region25: #{carn_forward.7} parent=23 // pred_check
        %p128 = pneg %p29
      $region26: #{carn_forward.7} parent=23 // pred_check_branch
        %130 = sbr.rel (%p128) target = $region28
      $region27: #{carn_forward.7} parent=23 // pred_region
        %p131 = scmp.lt.s32.totalorder %s9, 1
        %s132 = scalar_select %p131, %s9, 1
        %s133 = smul.addr %s132, 20
        %s134 = smul.addr %s133, 4
        %s135 = scalar_lea.vmem %s0, %s134
      $region28: #{carn_forward.7} parent=23 // pred_fallthru
        _
    $region24: #{carn_forward.7} parent=5 // pred_fallthru
      _
    %p136 = scmp.le.s32.totalorder 1, %s9
    %p137 = scmp.lt.s32.totalorder %s9, 3
    %p138 = pnand %p136, %p137
    %p139 = pneg %p138
    // Predicated region
    $region29: #{carn_forward.7} parent=5 // pred_check
      _
    $region30: #{carn_forward.7} parent=5 // pred_check_branch
      %141 = sbr.rel (%p138) target = $region32
    $region31: #{carn_forward.7} parent=5 // pred_region
      %s142 = ssub.s32 %s9, 1
      %p143 = scmp.lt.s32.totalorder %s14, 1
      %s144 = scalar_select %p143, %s14, 1
      %s145 = smul.addr %s144, 20
      %s146 = smul.addr %s145, 4
      %s147 = scalar_lea.vmem %s0, %s146
      %p148 = pneg %p35
      %p149 = pneg %p32
      %p150 = pneg %p56
      %p151 = pneg %p53
      %p152 = pneg %p77
      %p153 = pneg %p74
      %p154 = pneg %p103
      %p155 = pneg %p100
      %p156 = scmp.lt.s32.totalorder %s14, 1
      %s157 = scalar_select %p156, %s14, 1
      %s158 = smul.addr %s157, 8
      %s159 = smul.addr %s158, 4
      %s160 = scalar_lea.vmem %s3, %s159
      %p161 = scmp.lt.s32.totalorder %s14, 1
      %s162 = scalar_select %p161, %s14, 1
      %s163 = smul.addr %s162, 20
      %s164 = smul.addr %s163, 4
      %s165 = scalar_lea.vmem %s0, %s164
      %p166 = scmp.lt.s32.totalorder %s14, 1
      %s167 = scalar_select %p166, %s14, 1
      %s168 = smul.addr %s167, 8
      %s169 = smul.addr %s168, 4
      %s170 = scalar_lea.vmem %s3, %s169
      %v172 = vld [vmem:[%s165] sm:$0xf]
      %v173 = vld [vmem:[%s165 + $0x4] sm:$0x1]
      %v174 = vld [vmem:[%s165 + $0x8] sm:$0xf]
      %v175 = vld [vmem:[%s165 + $0xc] sm:$0x1]
      %v176 = vld [vmem:[%s165 + $0x10] sm:$0xf]
      %v177 = vld [vmem:[%s165 + $0x14] sm:$0x1]
      %v178 = vld [vmem:[%s165 + $0x18] sm:$0xf]
      %v179 = vld [vmem:[%s165 + $0x1c] sm:$0x1]
      %v180 = vld [vmem:[%s165 + $0x20] sm:$0xf]
      %v181 = vld [vmem:[%s165 + $0x24] sm:$0x1]
      %v182 = vld [vmem:[%s165 + $0x28] sm:$0xf]
      %v183 = vld [vmem:[%s165 + $0x2c] sm:$0x1]
      %v184 = vld [vmem:[%s165 + $0x30] sm:$0xf]
      %v185 = vld [vmem:[%s165 + $0x34] sm:$0x1]
      %v186 = vld [vmem:[%s165 + $0x38] sm:$0xf]
      %v187 = vld [vmem:[%s165 + $0x3c] sm:$0x1]
      %v188 = vld [vmem:[%s165 + $0x40] sm:$0xf]
      %v189 = vld [vmem:[%s165 + $0x44] sm:$0x1]
      %v190 = vld [vmem:[%s165 + $0x48] sm:$0xf]
      %v191 = vld [vmem:[%s165 + $0x4c] sm:$0x1]
      %v192 = vld [vmem:[%s1] sm:$0x3]
      %vm193 = vsmask.f32 3328
      %vm194 = vsmask.f32 7440
      %vm195 = vmor %vm193, %vm194
      %v197 = vshrl.u32 %v172, 16
      %v199 = vrot.slane %v197, 4
      %v200 = vshll.u32 %v172, 16
      %v202 = vrot.slane %v200, 5
      %v203 = vor.u32 %v199, %v202
      %v204 = vrot.slane %v203, 4
      %v206 = vshll.u32 %v173, 16
      %v208 = vrot.slane %v206, 5
      %v209 = vsel %vm195, %v204, %v208
      %v211 = vshrl.u32 %v174, 16
      %v213 = vrot.slane %v211, 4
      %v214 = vshll.u32 %v174, 16
      %v216 = vrot.slane %v214, 5
      %v217 = vor.u32 %v213, %v216
      %v218 = vrot.slane %v217, 4
      %v220 = vshll.u32 %v175, 16
      %v222 = vrot.slane %v220, 5
      %v223 = vsel %vm195, %v218, %v222
      %v225 = vshrl.u32 %v176, 16
      %v227 = vrot.slane %v225, 4
      %v228 = vshll.u32 %v176, 16
      %v230 = vrot.slane %v228, 5
      %v231 = vor.u32 %v227, %v230
      %v232 = vrot.slane %v231, 4
      %v234 = vshll.u32 %v177, 16
      %v236 = vrot.slane %v234, 5
      %v237 = vsel %vm195, %v232, %v236
      %v239 = vshrl.u32 %v178, 16
      %v241 = vrot.slane %v239, 4
      %v242 = vshll.u32 %v178, 16
      %v244 = vrot.slane %v242, 5
      %v245 = vor.u32 %v241, %v244
      %v246 = vrot.slane %v245, 4
      %v248 = vshll.u32 %v179, 16
      %v250 = vrot.slane %v248, 5
      %v251 = vsel %vm195, %v246, %v250
      %v253 = vshrl.u32 %v180, 16
      %v255 = vrot.slane %v253, 4
      %v256 = vshll.u32 %v180, 16
      %v258 = vrot.slane %v256, 5
      %v259 = vor.u32 %v255, %v258
      %v260 = vrot.slane %v259, 4
      %v262 = vshll.u32 %v181, 16
      %v264 = vrot.slane %v262, 5
      %v265 = vsel %vm195, %v260, %v264
      %v267 = vshrl.u32 %v182, 16
      %v269 = vrot.slane %v267, 4
      %v270 = vshll.u32 %v182, 16
      %v272 = vrot.slane %v270, 5
      %v273 = vor.u32 %v269, %v272
      %v274 = vrot.slane %v273, 4
      %v276 = vshll.u32 %v183, 16
      %v278 = vrot.slane %v276, 5
      %v279 = vsel %vm195, %v274, %v278
      %v281 = vshrl.u32 %v184, 16
      %v283 = vrot.slane %v281, 4
      %v284 = vshll.u32 %v184, 16
      %v286 = vrot.slane %v284, 5
      %v287 = vor.u32 %v283, %v286
      %v288 = vrot.slane %v287, 4
      %v290 = vshll.u32 %v185, 16
      %v292 = vrot.slane %v290, 5
      %v293 = vsel %vm195, %v288, %v292
      %v295 = vshrl.u32 %v186, 16
      %v297 = vrot.slane %v295, 4
      %v298 = vshll.u32 %v186, 16
      %v300 = vrot.slane %v298, 5
      %v301 = vor.u32 %v297, %v300
      %v302 = vrot.slane %v301, 4
      %v304 = vshll.u32 %v187, 16
      %v306 = vrot.slane %v304, 5
      %v307 = vsel %vm195, %v302, %v306
      %s308 = scalar_lea.vmem %s1, 2
      %v309 = vld [vmem:[%s308] sm:$0x3]
      %v310 = vunpack.c.l.b16 %v209
      %v311 = vunpack.c.l.b16 %v223
      %v312 = vunpack.c.l.b16 %v237
      %v313 = vunpack.c.l.b16 %v251
      %v314 = vunpack.c.l.b16 %v265
      %v315 = vunpack.c.l.b16 %v279
      %v316 = vunpack.c.l.b16 %v293
      %v317 = vunpack.c.l.b16 %v307
      %v318 = vpack.c.b16 %v311, %v310
      %v319 = vpack.c.b16 %v313, %v312
      %v320 = vpack.c.b16 %v315, %v314
      %v321 = vpack.c.b16 %v317, %v316
      %vm322 = vcmask 23552
      %v324 = vsel %vm322, %v318, 0
      %v327 = vsel %vm322, %v319, 0
      %v330 = vsel %vm322, %v320, 0
      %v333 = vsel %vm322, %v321, 0
      %vm335 = vcmask 1040384
      %vm336 = vcmask 1041408
      %v337 = vsel %vm335, 4294967295, 65535
      %v338 = vsel %vm336, %v337, 0
      %v340 = vand.u32 %v309, %v338
      %342 = vmatpush.bf16.msra.mxu0 0
      %343 = vmatpush.bf16.msra.mxu0 0
      %344 = vmatpush.bf16.msra.mxu0 0
      %345 = vmatpush.bf16.msra.mxu0 0
      %346 = vmatpush.bf16.msra.mxu0 0
      %347 = vmatpush.bf16.msra.mxu0 0
      %348 = vmatpush.bf16.msra.mxu0 0
      %349 = vmatpush.bf16.msra.mxu0 %v340
      %350 = vmatmul.bf16.gmra.mxu0 %v324
      %v351 = vpop.f32.mrf.mxu0
      %v352 = vadd.f32 0.0, %v351
      %v353 = vpop.f32.mrf.mxu0
      %v354 = vadd.f32 0.0, %v353
      %355 = vmatmul.bf16.gmra.mxu0 %v327
      %v356 = vpop.f32.mrf.mxu0
      %v357 = vadd.f32 0.0, %v356
      %v358 = vpop.f32.mrf.mxu0
      %v359 = vadd.f32 0.0, %v358
      %360 = vmatmul.bf16.gmra.mxu0 %v330
      %v361 = vpop.f32.mrf.mxu0
      %v362 = vadd.f32 0.0, %v361
      %v363 = vpop.f32.mrf.mxu0
      %v364 = vadd.f32 0.0, %v363
      %365 = vmatmul.bf16.gmra.mxu0 %v333
      %v366 = vpop.f32.mrf.mxu0
      %v367 = vadd.f32 0.0, %v366
      %v368 = vpop.f32.mrf.mxu0
      %v369 = vadd.f32 0.0, %v368
      %370 = vdwg.mxu0
      %v379 = vunpack.c.l.b16 %v172
      %v380 = vunpack.c.l.b16 %v174
      %v381 = vunpack.c.l.b16 %v176
      %v382 = vunpack.c.l.b16 %v178
      %v383 = vunpack.c.l.b16 %v180
      %v384 = vunpack.c.l.b16 %v182
      %v385 = vunpack.c.l.b16 %v184
      %v386 = vunpack.c.l.b16 %v186
      %v387 = vpack.c.b16 %v380, %v379
      %v388 = vpack.c.b16 %v382, %v381
      %v389 = vpack.c.b16 %v384, %v383
      %v390 = vpack.c.b16 %v386, %v385
      %v392 = vsel %vm322, %v387, 0
      %v395 = vsel %vm322, %v388, 0
      %v398 = vsel %vm322, %v389, 0
      %v401 = vsel %vm322, %v390, 0
      %v404 = vand.u32 %v192, %v338
      %406 = vmatpush.bf16.msra.mxu0 0
      %407 = vmatpush.bf16.msra.mxu0 0
      %408 = vmatpush.bf16.msra.mxu0 0
      %409 = vmatpush.bf16.msra.mxu0 0
      %410 = vmatpush.bf16.msra.mxu0 0
      %411 = vmatpush.bf16.msra.mxu0 0
      %412 = vmatpush.bf16.msra.mxu0 0
      %413 = vmatpush.bf16.msra.mxu0 %v404
      %414 = vmatmul.bf16.gmra.mxu0 %v392
      %v415 = vpop.f32.mrf.mxu0
      %v416 = vadd.f32 %v352, %v415
      %v417 = vpop.f32.mrf.mxu0
      %v418 = vadd.f32 %v354, %v417
      %419 = vmatmul.bf16.gmra.mxu0 %v395
      %v420 = vpop.f32.mrf.mxu0
      %v421 = vadd.f32 %v357, %v420
      %v422 = vpop.f32.mrf.mxu0
      %v423 = vadd.f32 %v359, %v422
      %424 = vmatmul.bf16.gmra.mxu0 %v398
      %v425 = vpop.f32.mrf.mxu0
      %v426 = vadd.f32 %v362, %v425
      %v427 = vpop.f32.mrf.mxu0
      %v428 = vadd.f32 %v364, %v427
      %429 = vmatmul.bf16.gmra.mxu0 %v401
      %v430 = vpop.f32.mrf.mxu0
      %v431 = vadd.f32 %v367, %v430
      %v432 = vpop.f32.mrf.mxu0
      %v433 = vadd.f32 %v369, %v432
      %434 = vdwg.mxu0
      %vm443 = vcmask 1042432
      %vm444 = vcmask 1046532
      %vm445 = vmor %vm443, %vm444
      %v446 = vrot.slane %v172, 5
      %v447 = vrot.slane %v446, 4
      %v448 = vrot.slane %v173, 5
      %v449 = vsel %vm445, %v447, %v448
      %v450 = vrot.slane %v174, 5
      %v451 = vrot.slane %v450, 4
      %v452 = vrot.slane %v175, 5
      %v453 = vsel %vm445, %v451, %v452
      %v454 = vrot.slane %v176, 5
      %v455 = vrot.slane %v454, 4
      %v456 = vrot.slane %v177, 5
      %v457 = vsel %vm445, %v455, %v456
      %v458 = vrot.slane %v178, 5
      %v459 = vrot.slane %v458, 4
      %v460 = vrot.slane %v179, 5
      %v461 = vsel %vm445, %v459, %v460
      %v462 = vrot.slane %v180, 5
      %v463 = vrot.slane %v462, 4
      %v464 = vrot.slane %v181, 5
      %v465 = vsel %vm445, %v463, %v464
      %v466 = vrot.slane %v182, 5
      %v467 = vrot.slane %v466, 4
      %v468 = vrot.slane %v183, 5
      %v469 = vsel %vm445, %v467, %v468
      %v470 = vrot.slane %v184, 5
      %v471 = vrot.slane %v470, 4
      %v472 = vrot.slane %v185, 5
      %v473 = vsel %vm445, %v471, %v472
      %v474 = vrot.slane %v186, 5
      %v475 = vrot.slane %v474, 4
      %v476 = vrot.slane %v187, 5
      %v477 = vsel %vm445, %v475, %v476
      %s478 = scalar_lea.vmem %s1, 4
      %v479 = vld [vmem:[%s478] sm:$0x3]
      %v480 = vunpack.c.l.b16 %v449
      %v481 = vunpack.c.l.b16 %v453
      %v482 = vunpack.c.l.b16 %v457
      %v483 = vunpack.c.l.b16 %v461
      %v484 = vunpack.c.l.b16 %v465
      %v485 = vunpack.c.l.b16 %v469
      %v486 = vunpack.c.l.b16 %v473
      %v487 = vunpack.c.l.b16 %v477
      %v488 = vpack.c.b16 %v481, %v480
      %v489 = vpack.c.b16 %v483, %v482
      %v490 = vpack.c.b16 %v485, %v484
      %v491 = vpack.c.b16 %v487, %v486
      %v493 = vsel %vm322, %v488, 0
      %v496 = vsel %vm322, %v489, 0
      %v499 = vsel %vm322, %v490, 0
      %v502 = vsel %vm322, %v491, 0
      %v505 = vand.u32 %v479, %v338
      %507 = vmatpush.bf16.msra.mxu0 0
      %508 = vmatpush.bf16.msra.mxu0 0
      %509 = vmatpush.bf16.msra.mxu0 0
      %510 = vmatpush.bf16.msra.mxu0 0
      %511 = vmatpush.bf16.msra.mxu0 0
      %512 = vmatpush.bf16.msra.mxu0 0
      %513 = vmatpush.bf16.msra.mxu0 0
      %514 = vmatpush.bf16.msra.mxu0 %v505
      %515 = vmatmul.bf16.gmra.mxu0 %v493
      %v516 = vpop.f32.mrf.mxu0
      %v517 = vadd.f32 0.0, %v516
      %v518 = vpop.f32.mrf.mxu0
      %v519 = vadd.f32 0.0, %v518
      %520 = vmatmul.bf16.gmra.mxu0 %v496
      %v521 = vpop.f32.mrf.mxu0
      %v522 = vadd.f32 0.0, %v521
      %v523 = vpop.f32.mrf.mxu0
      %v524 = vadd.f32 0.0, %v523
      %525 = vmatmul.bf16.gmra.mxu0 %v499
      %v526 = vpop.f32.mrf.mxu0
      %v527 = vadd.f32 0.0, %v526
      %v528 = vpop.f32.mrf.mxu0
      %v529 = vadd.f32 0.0, %v528
      %530 = vmatmul.bf16.gmra.mxu0 %v502
      %v531 = vpop.f32.mrf.mxu0
      %v532 = vadd.f32 0.0, %v531
      %v533 = vpop.f32.mrf.mxu0
      %v534 = vadd.f32 0.0, %v533
      %535 = vdwg.mxu0
      %v536 = vadd.f32 %v416, %v517
      %v537 = vadd.f32 %v418, %v519
      %v538 = vadd.f32 %v421, %v522
      %v539 = vadd.f32 %v423, %v524
      %v540 = vadd.f32 %v426, %v527
      %v541 = vadd.f32 %v428, %v529
      %v542 = vadd.f32 %v431, %v532
      %v543 = vadd.f32 %v433, %v534
      %s544 = scalar_lea.vmem %s1, 6
      %v545 = vld [vmem:[%s544] sm:$0x3]
      %v547 = vunpack.c.l.b16 %v188
      %v548 = vpack.c.b16 %v381, %v380
      %v549 = vpack.c.b16 %v383, %v382
      %v550 = vpack.c.b16 %v385, %v384
      %v551 = vpack.c.b16 %v547, %v386
      %v553 = vsel %vm322, %v548, 0
      %v556 = vsel %vm322, %v549, 0
      %v559 = vsel %vm322, %v550, 0
      %v562 = vsel %vm322, %v551, 0
      %v565 = vand.u32 %v545, %v338
      %567 = vmatpush.bf16.msra.mxu0 0
      %568 = vmatpush.bf16.msra.mxu0 0
      %569 = vmatpush.bf16.msra.mxu0 0
      %570 = vmatpush.bf16.msra.mxu0 0
      %571 = vmatpush.bf16.msra.mxu0 0
      %572 = vmatpush.bf16.msra.mxu0 0
      %573 = vmatpush.bf16.msra.mxu0 0
      %574 = vmatpush.bf16.msra.mxu0 %v565
      %575 = vmatmul.bf16.gmra.mxu0 %v553
      %v576 = vpop.f32.mrf.mxu0
      %v577 = vadd.f32 0.0, %v576
      %v578 = vpop.f32.mrf.mxu0
      %v579 = vadd.f32 0.0, %v578
      %580 = vmatmul.bf16.gmra.mxu0 %v556
      %v581 = vpop.f32.mrf.mxu0
      %v582 = vadd.f32 0.0, %v581
      %v583 = vpop.f32.mrf.mxu0
      %v584 = vadd.f32 0.0, %v583
      %585 = vmatmul.bf16.gmra.mxu0 %v559
      %v586 = vpop.f32.mrf.mxu0
      %v587 = vadd.f32 0.0, %v586
      %v588 = vpop.f32.mrf.mxu0
      %v589 = vadd.f32 0.0, %v588
      %590 = vmatmul.bf16.gmra.mxu0 %v562
      %v591 = vpop.f32.mrf.mxu0
      %v592 = vadd.f32 0.0, %v591
      %v593 = vpop.f32.mrf.mxu0
      %v594 = vadd.f32 0.0, %v593
      %595 = vdwg.mxu0
      %v596 = vadd.f32 %v536, %v577
      %v597 = vadd.f32 %v537, %v579
      %v598 = vadd.f32 %v538, %v582
      %v599 = vadd.f32 %v539, %v584
      %v600 = vadd.f32 %v540, %v587
      %v601 = vadd.f32 %v541, %v589
      %v602 = vadd.f32 %v542, %v592
      %v603 = vadd.f32 %v543, %v594
      %v605 = vshrl.u32 %v188, 16
      %v607 = vrot.slane %v605, 4
      %v608 = vshll.u32 %v188, 16
      %v610 = vrot.slane %v608, 5
      %v611 = vor.u32 %v607, %v610
      %v612 = vrot.slane %v611, 4
      %v614 = vshll.u32 %v189, 16
      %v616 = vrot.slane %v614, 5
      %v617 = vsel %vm195, %v612, %v616
      %s618 = scalar_lea.vmem %s1, 8
      %v619 = vld [vmem:[%s618] sm:$0x3]
      %v620 = vunpack.c.l.b16 %v617
      %v621 = vpack.c.b16 %v312, %v311
      %v622 = vpack.c.b16 %v314, %v313
      %v623 = vpack.c.b16 %v316, %v315
      %v624 = vpack.c.b16 %v620, %v317
      %v626 = vsel %vm322, %v621, 0
      %v629 = vsel %vm322, %v622, 0
      %v632 = vsel %vm322, %v623, 0
      %v635 = vsel %vm322, %v624, 0
      %v638 = vand.u32 %v619, %v338
      %640 = vmatpush.bf16.msra.mxu0 0
      %641 = vmatpush.bf16.msra.mxu0 0
      %642 = vmatpush.bf16.msra.mxu0 0
      %643 = vmatpush.bf16.msra.mxu0 0
      %644 = vmatpush.bf16.msra.mxu0 0
      %645 = vmatpush.bf16.msra.mxu0 0
      %646 = vmatpush.bf16.msra.mxu0 0
      %647 = vmatpush.bf16.msra.mxu0 %v638
      %648 = vmatmul.bf16.gmra.mxu0 %v626
      %v649 = vpop.f32.mrf.mxu0
      %v650 = vadd.f32 0.0, %v649
      %v651 = vpop.f32.mrf.mxu0
      %v652 = vadd.f32 0.0, %v651
      %653 = vmatmul.bf16.gmra.mxu0 %v629
      %v654 = vpop.f32.mrf.mxu0
      %v655 = vadd.f32 0.0, %v654
      %v656 = vpop.f32.mrf.mxu0
      %v657 = vadd.f32 0.0, %v656
      %658 = vmatmul.bf16.gmra.mxu0 %v632
      %v659 = vpop.f32.mrf.mxu0
      %v660 = vadd.f32 0.0, %v659
      %v661 = vpop.f32.mrf.mxu0
      %v662 = vadd.f32 0.0, %v661
      %663 = vmatmul.bf16.gmra.mxu0 %v635
      %v664 = vpop.f32.mrf.mxu0
      %v665 = vadd.f32 0.0, %v664
      %v666 = vpop.f32.mrf.mxu0
      %v667 = vadd.f32 0.0, %v666
      %668 = vdwg.mxu0
      %v669 = vadd.f32 %v596, %v650
      %v670 = vadd.f32 %v597, %v652
      %v671 = vadd.f32 %v598, %v655
      %v672 = vadd.f32 %v599, %v657
      %v673 = vadd.f32 %v600, %v660
      %v674 = vadd.f32 %v601, %v662
      %v675 = vadd.f32 %v602, %v665
      %v676 = vadd.f32 %v603, %v667
      %v678 = vrot.slane %v188, 5
      %v679 = vrot.slane %v678, 4
      %v680 = vrot.slane %v189, 5
      %v681 = vsel %vm445, %v679, %v680
      %s682 = scalar_lea.vmem %s1, 10
      %v683 = vld [vmem:[%s682] sm:$0x3]
      %v684 = vunpack.c.l.b16 %v681
      %v685 = vpack.c.b16 %v482, %v481
      %v686 = vpack.c.b16 %v484, %v483
      %v687 = vpack.c.b16 %v486, %v485
      %v688 = vpack.c.b16 %v684, %v487
      %v690 = vsel %vm322, %v685, 0
      %v693 = vsel %vm322, %v686, 0
      %v696 = vsel %vm322, %v687, 0
      %v699 = vsel %vm322, %v688, 0
      %v702 = vand.u32 %v683, %v338
      %704 = vmatpush.bf16.msra.mxu0 0
      %705 = vmatpush.bf16.msra.mxu0 0
      %706 = vmatpush.bf16.msra.mxu0 0
      %707 = vmatpush.bf16.msra.mxu0 0
      %708 = vmatpush.bf16.msra.mxu0 0
      %709 = vmatpush.bf16.msra.mxu0 0
      %710 = vmatpush.bf16.msra.mxu0 0
      %711 = vmatpush.bf16.msra.mxu0 %v702
      %712 = vmatmul.bf16.gmra.mxu0 %v690
      %v713 = vpop.f32.mrf.mxu0
      %v714 = vadd.f32 0.0, %v713
      %v715 = vpop.f32.mrf.mxu0
      %v716 = vadd.f32 0.0, %v715
      %717 = vmatmul.bf16.gmra.mxu0 %v693
      %v718 = vpop.f32.mrf.mxu0
      %v719 = vadd.f32 0.0, %v718
      %v720 = vpop.f32.mrf.mxu0
      %v721 = vadd.f32 0.0, %v720
      %722 = vmatmul.bf16.gmra.mxu0 %v696
      %v723 = vpop.f32.mrf.mxu0
      %v724 = vadd.f32 0.0, %v723
      %v725 = vpop.f32.mrf.mxu0
      %v726 = vadd.f32 0.0, %v725
      %727 = vmatmul.bf16.gmra.mxu0 %v699
      %v728 = vpop.f32.mrf.mxu0
      %v729 = vadd.f32 0.0, %v728
      %v730 = vpop.f32.mrf.mxu0
      %v731 = vadd.f32 0.0, %v730
      %732 = vdwg.mxu0
      %v733 = vadd.f32 %v669, %v714
      %v734 = vadd.f32 %v670, %v716
      %v735 = vadd.f32 %v671, %v719
      %v736 = vadd.f32 %v672, %v721
      %v737 = vadd.f32 %v673, %v724
      %v738 = vadd.f32 %v674, %v726
      %v739 = vadd.f32 %v675, %v729
      %v740 = vadd.f32 %v676, %v731
      %s741 = scalar_lea.vmem %s1, 12
      %v742 = vld [vmem:[%s741] sm:$0x3]
      %v744 = vunpack.c.l.b16 %v190
      %v745 = vpack.c.b16 %v744, %v547
      %v747 = vsel %vm322, %v745, 0
      %v750 = vand.u32 %v742, %v338
      %752 = vmatpush.bf16.msra.mxu0 0
      %753 = vmatpush.bf16.msra.mxu0 0
      %754 = vmatpush.bf16.msra.mxu0 0
      %755 = vmatpush.bf16.msra.mxu0 0
      %756 = vmatpush.bf16.msra.mxu0 0
      %757 = vmatpush.bf16.msra.mxu0 0
      %758 = vmatpush.bf16.msra.mxu0 0
      %759 = vmatpush.bf16.msra.mxu0 %v750
      %760 = vmatmul.bf16.gmra.mxu0 %v395
      %v761 = vpop.f32.mrf.mxu0
      %v762 = vadd.f32 0.0, %v761
      %v763 = vpop.f32.mrf.mxu0
      %v764 = vadd.f32 0.0, %v763
      %765 = vmatmul.bf16.gmra.mxu0 %v398
      %v766 = vpop.f32.mrf.mxu0
      %v767 = vadd.f32 0.0, %v766
      %v768 = vpop.f32.mrf.mxu0
      %v769 = vadd.f32 0.0, %v768
      %770 = vmatmul.bf16.gmra.mxu0 %v401
      %v771 = vpop.f32.mrf.mxu0
      %v772 = vadd.f32 0.0, %v771
      %v773 = vpop.f32.mrf.mxu0
      %v774 = vadd.f32 0.0, %v773
      %775 = vmatmul.bf16.gmra.mxu0 %v747
      %v776 = vpop.f32.mrf.mxu0
      %v777 = vadd.f32 0.0, %v776
      %v778 = vpop.f32.mrf.mxu0
      %v779 = vadd.f32 0.0, %v778
      %780 = vdwg.mxu0
      %v781 = vadd.f32 %v733, %v762
      %v782 = vadd.f32 %v734, %v764
      %v783 = vadd.f32 %v735, %v767
      %v784 = vadd.f32 %v736, %v769
      %v785 = vadd.f32 %v737, %v772
      %v786 = vadd.f32 %v738, %v774
      %v787 = vadd.f32 %v739, %v777
      %v788 = vadd.f32 %v740, %v779
      %v790 = vshrl.u32 %v190, 16
      %v792 = vrot.slane %v790, 4
      %v793 = vshll.u32 %v190, 16
      %v795 = vrot.slane %v793, 5
      %v796 = vor.u32 %v792, %v795
      %v797 = vrot.slane %v796, 4
      %v799 = vshll.u32 %v191, 16
      %v801 = vrot.slane %v799, 5
      %v802 = vsel %vm195, %v797, %v801
      %s803 = scalar_lea.vmem %s1, 14
      %v804 = vld [vmem:[%s803] sm:$0x3]
      %v805 = vunpack.c.l.b16 %v802
      %v806 = vpack.c.b16 %v805, %v620
      %v808 = vsel %vm322, %v806, 0
      %v811 = vand.u32 %v804, %v338
      %813 = vmatpush.bf16.msra.mxu0 0
      %814 = vmatpush.bf16.msra.mxu0 0
      %815 = vmatpush.bf16.msra.mxu0 0
      %816 = vmatpush.bf16.msra.mxu0 0
      %817 = vmatpush.bf16.msra.mxu0 0
      %818 = vmatpush.bf16.msra.mxu0 0
      %819 = vmatpush.bf16.msra.mxu0 0
      %820 = vmatpush.bf16.msra.mxu0 %v811
      %821 = vmatmul.bf16.gmra.mxu0 %v327
      %v822 = vpop.f32.mrf.mxu0
      %v823 = vadd.f32 0.0, %v822
      %v824 = vpop.f32.mrf.mxu0
      %v825 = vadd.f32 0.0, %v824
      %826 = vmatmul.bf16.gmra.mxu0 %v330
      %v827 = vpop.f32.mrf.mxu0
      %v828 = vadd.f32 0.0, %v827
      %v829 = vpop.f32.mrf.mxu0
      %v830 = vadd.f32 0.0, %v829
      %831 = vmatmul.bf16.gmra.mxu0 %v333
      %v832 = vpop.f32.mrf.mxu0
      %v833 = vadd.f32 0.0, %v832
      %v834 = vpop.f32.mrf.mxu0
      %v835 = vadd.f32 0.0, %v834
      %836 = vmatmul.bf16.gmra.mxu0 %v808
      %v837 = vpop.f32.mrf.mxu0
      %v838 = vadd.f32 0.0, %v837
      %v839 = vpop.f32.mrf.mxu0
      %v840 = vadd.f32 0.0, %v839
      %841 = vdwg.mxu0
      %v842 = vadd.f32 %v781, %v823
      %v843 = vadd.f32 %v782, %v825
      %v844 = vadd.f32 %v783, %v828
      %v845 = vadd.f32 %v784, %v830
      %v846 = vadd.f32 %v785, %v833
      %v847 = vadd.f32 %v786, %v835
      %v848 = vadd.f32 %v787, %v838
      %v849 = vadd.f32 %v788, %v840
      %v851 = vrot.slane %v190, 5
      %v852 = vrot.slane %v851, 4
      %v853 = vrot.slane %v191, 5
      %v854 = vsel %vm445, %v852, %v853
      %s855 = scalar_lea.vmem %s1, 16
      %v856 = vld [vmem:[%s855] sm:$0x3]
      %v857 = vunpack.c.l.b16 %v854
      %v858 = vpack.c.b16 %v857, %v684
      %v860 = vsel %vm322, %v858, 0
      %v863 = vand.u32 %v856, %v338
      %865 = vmatpush.bf16.msra.mxu0 0
      %866 = vmatpush.bf16.msra.mxu0 0
      %867 = vmatpush.bf16.msra.mxu0 0
      %868 = vmatpush.bf16.msra.mxu0 0
      %869 = vmatpush.bf16.msra.mxu0 0
      %870 = vmatpush.bf16.msra.mxu0 0
      %871 = vmatpush.bf16.msra.mxu0 0
      %872 = vmatpush.bf16.msra.mxu0 %v863
      %873 = vmatmul.bf16.gmra.mxu0 %v496
      %v874 = vpop.f32.mrf.mxu0
      %v875 = vadd.f32 0.0, %v874
      %v876 = vpop.f32.mrf.mxu0
      %v877 = vadd.f32 0.0, %v876
      %878 = vmatmul.bf16.gmra.mxu0 %v499
      %v879 = vpop.f32.mrf.mxu0
      %v880 = vadd.f32 0.0, %v879
      %v881 = vpop.f32.mrf.mxu0
      %v882 = vadd.f32 0.0, %v881
      %883 = vmatmul.bf16.gmra.mxu0 %v502
      %v884 = vpop.f32.mrf.mxu0
      %v885 = vadd.f32 0.0, %v884
      %v886 = vpop.f32.mrf.mxu0
      %v887 = vadd.f32 0.0, %v886
      %888 = vmatmul.bf16.gmra.mxu0 %v860
      %v889 = vpop.f32.mrf.mxu0
      %v890 = vadd.f32 0.0, %v889
      %v891 = vpop.f32.mrf.mxu0
      %v892 = vadd.f32 0.0, %v891
      %893 = vdwg.mxu0
      %v894 = vadd.f32 %v842, %v875
      %v895 = vadd.f32 %v843, %v877
      %v896 = vadd.f32 %v844, %v880
      %v897 = vadd.f32 %v845, %v882
      %v898 = vadd.f32 %v846, %v885
      %v899 = vadd.f32 %v847, %v887
      %v900 = vadd.f32 %v848, %v890
      %v901 = vadd.f32 %v849, %v892
      %v902 = vld [vmem:[%s2] sm:$0x1]
      %v904 = vperm.slane %v902, 0
      %v906 = vadd.f32 %v894, %v904
      %v907 = vadd.f32 %v895, %v904
      %v908 = vadd.f32 %v896, %v904
      %v909 = vadd.f32 %v897, %v904
      %v910 = vadd.f32 %v898, %v904
      %v911 = vadd.f32 %v899, %v904
      %v912 = vadd.f32 %v900, %v904
      %v913 = vadd.f32 %v901, %v904
      %v914 = vpack.c.bf16 %v906, %v906
      %v915 = vpack.c.bf16 %v907, %v907
      %v916 = vpack.c.bf16 %v908, %v908
      %v917 = vpack.c.bf16 %v909, %v909
      %v918 = vpack.c.bf16 %v910, %v910
      %v919 = vpack.c.bf16 %v911, %v911
      %v920 = vpack.c.bf16 %v912, %v912
      %v921 = vpack.c.bf16 %v913, %v913
      %vm922 = vcmask 125952
      %923 = vst.msk [vmem:[%s170] sm:$0xf] %vm922, %v914
      %924 = vst.msk [vmem:[%s170 + $0x4] sm:$0xf] %vm922, %v915
      %925 = vst.msk [vmem:[%s170 + $0x8] sm:$0xf] %vm922, %v916
      %926 = vst.msk [vmem:[%s170 + $0xc] sm:$0xf] %vm922, %v917
      %927 = vst.msk [vmem:[%s170 + $0x10] sm:$0xf] %vm922, %v918
      %928 = vst.msk [vmem:[%s170 + $0x14] sm:$0xf] %vm922, %v919
      %929 = vst.msk [vmem:[%s170 + $0x18] sm:$0xf] %vm922, %v920
      %930 = vst.msk [vmem:[%s170 + $0x1c] sm:$0xf] %vm922, %v921
      %p931 = scmp.lt.s32.totalorder %s14, 1
      %s932 = scalar_select %p931, %s14, 1
      %s933 = smul.addr %s932, 8
      %s934 = smul.addr %s933, 4
      %s935 = scalar_lea.vmem %s3, %s934
      // Predicated region
      $region33: #{carn_forward.7} parent=31 // pred_check
        %p936 = pneg %p100
      $region34: #{carn_forward.7} parent=31 // pred_check_branch
        %938 = sbr.rel (%p936) target = $region36
      $region35: #{carn_forward.7} parent=31 // pred_region
        _
      $region36: #{carn_forward.7} parent=31 // pred_fallthru
        _
    $region32: #{carn_forward.7} parent=5 // pred_fallthru
      _
    %p939 = scmp.le.s32.totalorder 2, %s9
    // Predicated region
    $region37: #{carn_forward.7} parent=5 // pred_check
      %p940 = pneg %p939
    $region38: #{carn_forward.7} parent=5 // pred_check_branch
      %942 = sbr.rel (%p940) target = $region40
    $region39: #{carn_forward.7} parent=5 // pred_region
      %s943 = ssub.s32 %s9, 2
      // Predicated region
      $region41: #{carn_forward.7} parent=39 // pred_check
        %p944 = pneg %p106
      $region42: #{carn_forward.7} parent=39 // pred_check_branch
        %946 = sbr.rel (%p944) target = $region44
      $region43: #{carn_forward.7} parent=39 // pred_region
        %p947 = scmp.lt.s32.totalorder %s15, 1
        %s948 = scalar_select %p947, %s15, 1
        %s949 = smul.addr %s948, 8
        %s950 = smul.addr %s949, 4
        %s951 = scalar_lea.vmem %s3, %s950
      $region44: #{carn_forward.7} parent=39 // pred_fallthru
        _
    $region40: #{carn_forward.7} parent=5 // pred_fallthru
      _
  $region6: #{carn_forward.7} parent=0 // loop_footer
    %s13 = sadd.s32 1, %s9
  $region7: #{carn_forward.7} parent=0 // loop_footer_branch
    %8 = sbr.rel target = $region3
  $region8: #{carn_forward.7} parent=0 // loop_exit
    _

// kernel: carn_forward.8
$region0: #{carn_forward.8}
  #allocation0 [shape = 'u32[]', space=smem, size = 0x4, offset = 0x4, fixed_abs, tag = 'smem constant byte address 0x4 - core index']
  #allocation1 [shape = 'u32[72,128]{1,0:T(1,128)}', space=vmem, size = 0x9000, scoped, tag = 'internal scratch']
  %s0 = inlined_call_operand.vmem [shape: bf16[2,12,18,16], index: 0, kind: input, shape index: {}]
  %s1 = inlined_call_operand.vmem [shape: bf16[9,16,16], index: 1, kind: input, shape index: {}]
  %s2 = inlined_call_operand.vmem [shape: f32[1,16], index: 2, kind: input, shape index: {}]
  %s3 = inlined_call_operand.vmem [shape: bf16[9,16,16], index: 3, kind: input, shape index: {}]
  %s4 = inlined_call_operand.vmem [shape: f32[1,16], index: 4, kind: input, shape index: {}]
  %s5 = inlined_call_operand.vmem [shape: bf16[2,8,8,16], index: 5, kind: output, shape index: {}]
  %s6 = sld [smem:[#allocation0]]
  $region53: #{carn_forward.8} parent=0
    _
  %s8 = ssub.s32 1, %s6
  %s9 = scalar_select 0, %s8, %s6
  loop: start=0, step=1, limit=4
  $region2: #{carn_forward.8} parent=0 // loop_pre_header
    _
  $region3: #{carn_forward.8} parent=0 // loop_header
    %s11 = sphi 0, %s15
    %p12 = scmp.ge.s32.totalorder %s11, 4
    %s21 = sphi 0, %s23
    %s24 = sphi 0, %s21
    %s25 = sphi 0, %s24
    %s41 = sphi 0, %s25
    %s45 = sphi 0, %s45
    %s47 = sphi 0, %s45
    %s48 = sphi 0, %s47
    %s62 = sphi 0, %s48
    %s66 = sphi 0, %s66
    %s68 = sphi 0, %s66
    %s69 = sphi 0, %s68
    %s83 = sphi 0, %s69
    %s87 = sphi 0, %s87
    %s89 = sphi 0, %s87
    %s90 = sphi 0, %s89
    %s104 = sphi 0, %s90
    %s108 = sphi 0, %s108
    %s110 = sphi 0, %s108
    %s111 = sphi 0, %s110
    %s125 = sphi 0, %s111
    %s131 = sphi 0, %s133
    %s134 = sphi 0, %s131
    %s135 = sphi 0, %s134
    %s151 = sphi 0, %s135
  $region4: #{carn_forward.8} parent=0 // loop_header_branch
    %14 = sbr.rel (%p12) target = $region8
  $region5: #{carn_forward.8} parent=0 // loop_body
    %s16 = ssub.s32 %s11, 1
    %s17 = ssub.s32 %s11, 2
    %s18 = sadd.s32 %s11, 1
    %s19 = ssub.s32 %s11, %s18
    %p20 = scmp.eq.s32.totalorder %s19, 0
    %s22 = sadd.s32 %s21, 1
    %s23 = scalar_select %p20, %s21, %s22
    %p26 = pneg %p20
    %p27 = scmp.eq.s32.totalorder %s11, 1
    %p28 = por %p26, %p27
    %p29 = scmp.ne.s32.totalorder %s21, %s24
    %p30 = scmp.eq.s32.totalorder %s11, 0
    %p31 = por %p29, %p30
    %p32 = scmp.ne.s32.totalorder %s21, %s24
    %p33 = scmp.eq.s32.totalorder %s16, 1
    %p34 = por %p32, %p33
    %p35 = scmp.ne.s32.totalorder %s24, %s25
    %p36 = scmp.eq.s32.totalorder %s16, 0
    %p37 = por %p35, %p36
    %p38 = scmp.ne.s32.totalorder %s24, %s25
    %p39 = scmp.eq.s32.totalorder %s17, 1
    %p40 = por %p38, %p39
    %p42 = scmp.ne.s32.totalorder %s25, %s41
    %p43 = scmp.eq.s32.totalorder %s17, 0
    %p44 = por %p42, %p43
    %s46 = sadd.s32 %s45, 1
    %p49 = scmp.eq.s32.totalorder %s11, 1
    %p50 = scmp.ne.s32.totalorder %s45, %s47
    %p51 = scmp.eq.s32.totalorder %s11, 0
    %p52 = por %p50, %p51
    %p53 = scmp.ne.s32.totalorder %s45, %s47
    %p54 = scmp.eq.s32.totalorder %s16, 1
    %p55 = por %p53, %p54
    %p56 = scmp.ne.s32.totalorder %s47, %s48
    %p57 = scmp.eq.s32.totalorder %s16, 0
    %p58 = por %p56, %p57
    %p59 = scmp.ne.s32.totalorder %s47, %s48
    %p60 = scmp.eq.s32.totalorder %s17, 1
    %p61 = por %p59, %p60
    %p63 = scmp.ne.s32.totalorder %s48, %s62
    %p64 = scmp.eq.s32.totalorder %s17, 0
    %p65 = por %p63, %p64
    %s67 = sadd.s32 %s66, 1
    %p70 = scmp.eq.s32.totalorder %s11, 1
    %p71 = scmp.ne.s32.totalorder %s66, %s68
    %p72 = scmp.eq.s32.totalorder %s11, 0
    %p73 = por %p71, %p72
    %p74 = scmp.ne.s32.totalorder %s66, %s68
    %p75 = scmp.eq.s32.totalorder %s16, 1
    %p76 = por %p74, %p75
    %p77 = scmp.ne.s32.totalorder %s68, %s69
    %p78 = scmp.eq.s32.totalorder %s16, 0
    %p79 = por %p77, %p78
    %p80 = scmp.ne.s32.totalorder %s68, %s69
    %p81 = scmp.eq.s32.totalorder %s17, 1
    %p82 = por %p80, %p81
    %p84 = scmp.ne.s32.totalorder %s69, %s83
    %p85 = scmp.eq.s32.totalorder %s17, 0
    %p86 = por %p84, %p85
    %s88 = sadd.s32 %s87, 1
    %p91 = scmp.eq.s32.totalorder %s11, 1
    %p92 = scmp.ne.s32.totalorder %s87, %s89
    %p93 = scmp.eq.s32.totalorder %s11, 0
    %p94 = por %p92, %p93
    %p95 = scmp.ne.s32.totalorder %s87, %s89
    %p96 = scmp.eq.s32.totalorder %s16, 1
    %p97 = por %p95, %p96
    %p98 = scmp.ne.s32.totalorder %s89, %s90
    %p99 = scmp.eq.s32.totalorder %s16, 0
    %p100 = por %p98, %p99
    %p101 = scmp.ne.s32.totalorder %s89, %s90
    %p102 = scmp.eq.s32.totalorder %s17, 1
    %p103 = por %p101, %p102
    %p105 = scmp.ne.s32.totalorder %s90, %s104
    %p106 = scmp.eq.s32.totalorder %s17, 0
    %p107 = por %p105, %p106
    %s109 = sadd.s32 %s108, 1
    %p112 = scmp.eq.s32.totalorder %s11, 1
    %p113 = scmp.ne.s32.totalorder %s108, %s110
    %p114 = scmp.eq.s32.totalorder %s11, 0
    %p115 = por %p113, %p114
    %p116 = scmp.ne.s32.totalorder %s108, %s110
    %p117 = scmp.eq.s32.totalorder %s16, 1
    %p118 = por %p116, %p117
    %p119 = scmp.ne.s32.totalorder %s110, %s111
    %p120 = scmp.eq.s32.totalorder %s16, 0
    %p121 = por %p119, %p120
    %p122 = scmp.ne.s32.totalorder %s110, %s111
    %p123 = scmp.eq.s32.totalorder %s17, 1
    %p124 = por %p122, %p123
    %p126 = scmp.ne.s32.totalorder %s111, %s125
    %p127 = scmp.eq.s32.totalorder %s17, 0
    %p128 = por %p126, %p127
    %s129 = ssub.s32 %s11, %s18
    %p130 = scmp.eq.s32.totalorder %s129, 0
    %s132 = sadd.s32 %s131, 1
    %s133 = scalar_select %p130, %s131, %s132
    %p136 = pneg %p130
    %p137 = scmp.eq.s32.totalorder %s11, 1
    %p138 = por %p136, %p137
    %p139 = scmp.ne.s32.totalorder %s131, %s134
    %p140 = scmp.eq.s32.totalorder %s11, 0
    %p141 = por %p139, %p140
    %p142 = scmp.ne.s32.totalorder %s131, %s134
    %p143 = scmp.eq.s32.totalorder %s16, 1
    %p144 = por %p142, %p143
    %p145 = scmp.ne.s32.totalorder %s134, %s135
    %p146 = scmp.eq.s32.totalorder %s16, 0
    %p147 = por %p145, %p146
    %p148 = scmp.ne.s32.totalorder %s134, %s135
    %p149 = scmp.eq.s32.totalorder %s17, 1
    %p150 = por %p148, %p149
    %p152 = scmp.ne.s32.totalorder %s135, %s151
    %p153 = scmp.eq.s32.totalorder %s17, 0
    %p154 = por %p152, %p153
    %p155 = scmp.le.s32.totalorder 1, %s11
    %p156 = scmp.lt.s32.totalorder %s11, 3
    %p157 = pnand %p155, %p156
    %p158 = pneg %p157
    // Predicated region
    $region9: #{carn_forward.8} parent=5 // pred_check
      _
    $region10: #{carn_forward.8} parent=5 // pred_check_branch
      %160 = sbr.rel (%p157) target = $region12
    $region11: #{carn_forward.8} parent=5 // pred_region
      %s161 = ssub.s32 %s11, 1
      // Predicated region
      $region13: #{carn_forward.8} parent=11 // pred_check
        %p162 = pneg %p58
      $region14: #{carn_forward.8} parent=11 // pred_check_branch
        %164 = sbr.rel (%p162) target = $region16
      $region15: #{carn_forward.8} parent=11 // pred_region
        _
      $region16: #{carn_forward.8} parent=11 // pred_fallthru
        _
      // Predicated region
      $region17: #{carn_forward.8} parent=11 // pred_check
        %p165 = pneg %p79
      $region18: #{carn_forward.8} parent=11 // pred_check_branch
        %167 = sbr.rel (%p165) target = $region20
      $region19: #{carn_forward.8} parent=11 // pred_region
        _
      $region20: #{carn_forward.8} parent=11 // pred_fallthru
        _
      // Predicated region
      $region21: #{carn_forward.8} parent=11 // pred_check
        %p168 = pneg %p100
      $region22: #{carn_forward.8} parent=11 // pred_check_branch
        %170 = sbr.rel (%p168) target = $region24
      $region23: #{carn_forward.8} parent=11 // pred_region
        _
      $region24: #{carn_forward.8} parent=11 // pred_fallthru
        _
      // Predicated region
      $region25: #{carn_forward.8} parent=11 // pred_check
        %p171 = pneg %p121
      $region26: #{carn_forward.8} parent=11 // pred_check_branch
        %173 = sbr.rel (%p171) target = $region28
      $region27: #{carn_forward.8} parent=11 // pred_region
        _
      $region28: #{carn_forward.8} parent=11 // pred_fallthru
        _
    $region12: #{carn_forward.8} parent=5 // pred_fallthru
      _
    %p174 = scmp.lt.s32.totalorder %s11, 2
    // Predicated region
    $region29: #{carn_forward.8} parent=5 // pred_check
      %p175 = pneg %p174
    $region30: #{carn_forward.8} parent=5 // pred_check_branch
      %177 = sbr.rel (%p175) target = $region32
    $region31: #{carn_forward.8} parent=5 // pred_region
      // Predicated region
      $region33: #{carn_forward.8} parent=31 // pred_check
        %p178 = pneg %p31
      $region34: #{carn_forward.8} parent=31 // pred_check_branch
        %180 = sbr.rel (%p178) target = $region36
      $region35: #{carn_forward.8} parent=31 // pred_region
        %p181 = scmp.lt.s32.totalorder %s11, 1
        %s182 = scalar_select %p181, %s11, 1
        %s183 = smul.addr %s182, 36
        %s184 = smul.addr %s183, 4
        %s185 = scalar_lea.vmem %s0, %s184
      $region36: #{carn_forward.8} parent=31 // pred_fallthru
        _
    $region32: #{carn_forward.8} parent=5 // pred_fallthru
      _
    %p186 = scmp.le.s32.totalorder 1, %s11
    %p187 = scmp.lt.s32.totalorder %s11, 3
    %p188 = pnand %p186, %p187
    %p189 = pneg %p188
    // Predicated region
    $region37: #{carn_forward.8} parent=5 // pred_check
      _
    $region38: #{carn_forward.8} parent=5 // pred_check_branch
      %191 = sbr.rel (%p188) target = $region40
    $region39: #{carn_forward.8} parent=5 // pred_region
      %s192 = ssub.s32 %s11, 1
      %p193 = scmp.lt.s32.totalorder %s16, 1
      %s194 = scalar_select %p193, %s16, 1
      %s195 = smul.addr %s194, 36
      %s196 = smul.addr %s195, 4
      %s197 = scalar_lea.vmem %s0, %s196
      %p198 = pneg %p37
      %p199 = pneg %p34
      %p200 = pneg %p58
      %p201 = pneg %p55
      %p202 = pneg %p79
      %p203 = pneg %p76
      %p204 = pneg %p100
      %p205 = pneg %p97
      %p206 = pneg %p121
      %p207 = pneg %p118
      %p208 = pneg %p147
      %p209 = pneg %p144
      %p210 = scmp.lt.s32.totalorder %s16, 1
      %s211 = scalar_select %p210, %s16, 1
      %s212 = smul.addr %s211, 8
      %s213 = smul.addr %s212, 4
      %s214 = scalar_lea.vmem %s5, %s213
      %p215 = scmp.lt.s32.totalorder %s16, 1
      %s216 = scalar_select %p215, %s16, 1
      %s217 = smul.addr %s216, 36
      %s218 = smul.addr %s217, 4
      %s219 = scalar_lea.vmem %s0, %s218
      %p220 = scmp.lt.s32.totalorder %s16, 1
      %s221 = scalar_select %p220, %s16, 1
      %s222 = smul.addr %s221, 8
      %s223 = smul.addr %s222, 4
      %s224 = scalar_lea.vmem %s5, %s223
      %v226 = vld [vmem:[%s219] sm:$0xf]
      %v227 = vld [vmem:[%s219 + $0x4] sm:$0xf]
      %v228 = vld [vmem:[%s219 + $0x8] sm:$0x1]
      %v229 = vld [vmem:[%s219 + $0xc] sm:$0xf]
      %v230 = vld [vmem:[%s219 + $0x10] sm:$0xf]
      %v231 = vld [vmem:[%s219 + $0x14] sm:$0x1]
      %v232 = vld [vmem:[%s219 + $0x18] sm:$0xf]
      %v233 = vld [vmem:[%s219 + $0x1c] sm:$0xf]
      %v234 = vld [vmem:[%s219 + $0x20] sm:$0x1]
      %v235 = vld [vmem:[%s219 + $0x24] sm:$0xf]
      %v236 = vld [vmem:[%s219 + $0x28] sm:$0xf]
      %v237 = vld [vmem:[%s219 + $0x2c] sm:$0x1]
      %v238 = vld [vmem:[%s219 + $0x30] sm:$0xf]
      %v239 = vld [vmem:[%s219 + $0x34] sm:$0xf]
      %v240 = vld [vmem:[%s219 + $0x38] sm:$0x1]
      %v241 = vld [vmem:[%s219 + $0x3c] sm:$0xf]
      %v242 = vld [vmem:[%s219 + $0x40] sm:$0xf]
      %v243 = vld [vmem:[%s219 + $0x44] sm:$0x1]
      %v244 = vld [vmem:[%s219 + $0x48] sm:$0xf]
      %v245 = vld [vmem:[%s219 + $0x4c] sm:$0xf]
      %v246 = vld [vmem:[%s219 + $0x50] sm:$0x1]
      %v247 = vld [vmem:[%s219 + $0x54] sm:$0xf]
      %v248 = vld [vmem:[%s219 + $0x58] sm:$0xf]
      %v249 = vld [vmem:[%s219 + $0x5c] sm:$0x1]
      %v250 = vld [vmem:[%s219 + $0x60] sm:$0xf]
      %v251 = vld [vmem:[%s219 + $0x64] sm:$0xf]
      %v252 = vld [vmem:[%s219 + $0x68] sm:$0x1]
      %v253 = vld [vmem:[%s219 + $0x6c] sm:$0xf]
      %v254 = vld [vmem:[%s219 + $0x70] sm:$0xf]
      %v255 = vld [vmem:[%s219 + $0x74] sm:$0x1]
      %v256 = vld [vmem:[%s219 + $0x78] sm:$0xf]
      %v257 = vld [vmem:[%s219 + $0x7c] sm:$0xf]
      %v258 = vld [vmem:[%s219 + $0x80] sm:$0x1]
      %v259 = vld [vmem:[%s219 + $0x84] sm:$0xf]
      %v260 = vld [vmem:[%s219 + $0x88] sm:$0xf]
      %v261 = vld [vmem:[%s219 + $0x8c] sm:$0x1]
      %v262 = vld [vmem:[%s1] sm:$0xf]
      %v263 = vld [vmem:[%s1 + $0x4] sm:$0xf]
      %vm264 = vsmask.f32 3328
      %vm265 = vsmask.f32 7440
      %vm266 = vmor %vm264, %vm265
      %v268 = vshrl.u32 %v226, 16
      %v270 = vrot.slane %v268, 4
      %v271 = vshll.u32 %v226, 16
      %v273 = vrot.slane %v271, 5
      %v274 = vor.u32 %v270, %v273
      %v275 = vrot.slane %v274, 4
      %v277 = vshll.u32 %v227, 16
      %v279 = vrot.slane %v277, 5
      %v280 = vsel %vm266, %v275, %v279
      %v281 = vshrl.u32 %v227, 16
      %v283 = vrot.slane %v281, 4
      %v284 = vor.u32 %v283, %v279
      %v285 = vrot.slane %v284, 4
      %v287 = vshll.u32 %v228, 16
      %v289 = vrot.slane %v287, 5
      %v290 = vsel %vm266, %v285, %v289
      %v292 = vshrl.u32 %v229, 16
      %v294 = vrot.slane %v292, 4
      %v295 = vshll.u32 %v229, 16
      %v297 = vrot.slane %v295, 5
      %v298 = vor.u32 %v294, %v297
      %v299 = vrot.slane %v298, 4
      %v301 = vshll.u32 %v230, 16
      %v303 = vrot.slane %v301, 5
      %v304 = vsel %vm266, %v299, %v303
      %v305 = vshrl.u32 %v230, 16
      %v307 = vrot.slane %v305, 4
      %v308 = vor.u32 %v307, %v303
      %v309 = vrot.slane %v308, 4
      %v311 = vshll.u32 %v231, 16
      %v313 = vrot.slane %v311, 5
      %v314 = vsel %vm266, %v309, %v313
      %v316 = vshrl.u32 %v232, 16
      %v318 = vrot.slane %v316, 4
      %v319 = vshll.u32 %v232, 16
      %v321 = vrot.slane %v319, 5
      %v322 = vor.u32 %v318, %v321
      %v323 = vrot.slane %v322, 4
      %v325 = vshll.u32 %v233, 16
      %v327 = vrot.slane %v325, 5
      %v328 = vsel %vm266, %v323, %v327
      %v329 = vshrl.u32 %v233, 16
      %v331 = vrot.slane %v329, 4
      %v332 = vor.u32 %v331, %v327
      %v333 = vrot.slane %v332, 4
      %v335 = vshll.u32 %v234, 16
      %v337 = vrot.slane %v335, 5
      %v338 = vsel %vm266, %v333, %v337
      %v340 = vshrl.u32 %v235, 16
      %v342 = vrot.slane %v340, 4
      %v343 = vshll.u32 %v235, 16
      %v345 = vrot.slane %v343, 5
      %v346 = vor.u32 %v342, %v345
      %v347 = vrot.slane %v346, 4
      %v349 = vshll.u32 %v236, 16
      %v351 = vrot.slane %v349, 5
      %v352 = vsel %vm266, %v347, %v351
      %v353 = vshrl.u32 %v236, 16
      %v355 = vrot.slane %v353, 4
      %v356 = vor.u32 %v355, %v351
      %v357 = vrot.slane %v356, 4
      %v359 = vshll.u32 %v237, 16
      %v361 = vrot.slane %v359, 5
      %v362 = vsel %vm266, %v357, %v361
      %v364 = vshrl.u32 %v238, 16
      %v366 = vrot.slane %v364, 4
      %v367 = vshll.u32 %v238, 16
      %v369 = vrot.slane %v367, 5
      %v370 = vor.u32 %v366, %v369
      %v371 = vrot.slane %v370, 4
      %v373 = vshll.u32 %v239, 16
      %v375 = vrot.slane %v373, 5
      %v376 = vsel %vm266, %v371, %v375
      %v377 = vshrl.u32 %v239, 16
      %v379 = vrot.slane %v377, 4
      %v380 = vor.u32 %v379, %v375
      %v381 = vrot.slane %v380, 4
      %v383 = vshll.u32 %v240, 16
      %v385 = vrot.slane %v383, 5
      %v386 = vsel %vm266, %v381, %v385
      %v388 = vshrl.u32 %v241, 16
      %v390 = vrot.slane %v388, 4
      %v391 = vshll.u32 %v241, 16
      %v393 = vrot.slane %v391, 5
      %v394 = vor.u32 %v390, %v393
      %v395 = vrot.slane %v394, 4
      %v397 = vshll.u32 %v242, 16
      %v399 = vrot.slane %v397, 5
      %v400 = vsel %vm266, %v395, %v399
      %v401 = vshrl.u32 %v242, 16
      %v403 = vrot.slane %v401, 4
      %v404 = vor.u32 %v403, %v399
      %v405 = vrot.slane %v404, 4
      %v407 = vshll.u32 %v243, 16
      %v409 = vrot.slane %v407, 5
      %v410 = vsel %vm266, %v405, %v409
      %v412 = vshrl.u32 %v244, 16
      %v414 = vrot.slane %v412, 4
      %v415 = vshll.u32 %v244, 16
      %v417 = vrot.slane %v415, 5
      %v418 = vor.u32 %v414, %v417
      %v419 = vrot.slane %v418, 4
      %v421 = vshll.u32 %v245, 16
      %v423 = vrot.slane %v421, 5
      %v424 = vsel %vm266, %v419, %v423
      %v425 = vshrl.u32 %v245, 16
      %v427 = vrot.slane %v425, 4
      %v428 = vor.u32 %v427, %v423
      %v429 = vrot.slane %v428, 4
      %v431 = vshll.u32 %v246, 16
      %v433 = vrot.slane %v431, 5
      %v434 = vsel %vm266, %v429, %v433
      %v436 = vshrl.u32 %v247, 16
      %v438 = vrot.slane %v436, 4
      %v439 = vshll.u32 %v247, 16
      %v441 = vrot.slane %v439, 5
      %v442 = vor.u32 %v438, %v441
      %v443 = vrot.slane %v442, 4
      %v445 = vshll.u32 %v248, 16
      %v447 = vrot.slane %v445, 5
      %v448 = vsel %vm266, %v443, %v447
      %v449 = vshrl.u32 %v248, 16
      %v451 = vrot.slane %v449, 4
      %v452 = vor.u32 %v451, %v447
      %v453 = vrot.slane %v452, 4
      %v455 = vshll.u32 %v249, 16
      %v457 = vrot.slane %v455, 5
      %v458 = vsel %vm266, %v453, %v457
      %v460 = vshrl.u32 %v250, 16
      %v462 = vrot.slane %v460, 4
      %v463 = vshll.u32 %v250, 16
      %v465 = vrot.slane %v463, 5
      %v466 = vor.u32 %v462, %v465
      %v467 = vrot.slane %v466, 4
      %v469 = vshll.u32 %v251, 16
      %v471 = vrot.slane %v469, 5
      %v472 = vsel %vm266, %v467, %v471
      %v473 = vshrl.u32 %v251, 16
      %v475 = vrot.slane %v473, 4
      %v476 = vor.u32 %v475, %v471
      %v477 = vrot.slane %v476, 4
      %v479 = vshll.u32 %v252, 16
      %v481 = vrot.slane %v479, 5
      %v482 = vsel %vm266, %v477, %v481
      %v484 = vshrl.u32 %v253, 16
      %v486 = vrot.slane %v484, 4
      %v487 = vshll.u32 %v253, 16
      %v489 = vrot.slane %v487, 5
      %v490 = vor.u32 %v486, %v489
      %v491 = vrot.slane %v490, 4
      %v493 = vshll.u32 %v254, 16
      %v495 = vrot.slane %v493, 5
      %v496 = vsel %vm266, %v491, %v495
      %v497 = vshrl.u32 %v254, 16
      %v499 = vrot.slane %v497, 4
      %v500 = vor.u32 %v499, %v495
      %v501 = vrot.slane %v500, 4
      %v503 = vshll.u32 %v255, 16
      %v505 = vrot.slane %v503, 5
      %v506 = vsel %vm266, %v501, %v505
      %s507 = scalar_lea.vmem %s1, 8
      %v508 = vld [vmem:[%s507] sm:$0xf]
      %v509 = vld [vmem:[%s507 + $0x4] sm:$0xf]
      %v510 = vunpack.c.l.b16 %v280
      %v511 = vunpack.c.l.b16 %v290
      %v512 = vunpack.c.l.b16 %v304
      %v513 = vunpack.c.l.b16 %v314
      %v514 = vunpack.c.l.b16 %v328
      %v515 = vunpack.c.l.b16 %v338
      %v516 = vunpack.c.l.b16 %v352
      %v517 = vunpack.c.l.b16 %v362
      %v518 = vunpack.c.l.b16 %v376
      %v519 = vunpack.c.l.b16 %v386
      %v520 = vunpack.c.l.b16 %v400
      %v521 = vunpack.c.l.b16 %v410
      %v522 = vunpack.c.l.b16 %v424
      %v523 = vunpack.c.l.b16 %v434
      %v524 = vunpack.c.l.b16 %v448
      %v525 = vunpack.c.l.b16 %v458
      %v526 = vunpack.c.l.b16 %v472
      %v527 = vunpack.c.l.b16 %v482
      %v528 = vunpack.c.l.b16 %v496
      %v529 = vunpack.c.l.b16 %v506
      %v530 = vpack.c.b16 %v511, %v510
      %v531 = vpack.c.b16 %v513, %v512
      %v532 = vpack.c.b16 %v515, %v514
      %v533 = vpack.c.b16 %v517, %v516
      %v534 = vpack.c.b16 %v519, %v518
      %v535 = vpack.c.b16 %v521, %v520
      %v536 = vpack.c.b16 %v523, %v522
      %v537 = vpack.c.b16 %v525, %v524
      %v538 = vpack.c.b16 %v527, %v526
      %v539 = vpack.c.b16 %v529, %v528
      %v542 = vunpack.c.l.b16 %v508
      %v543 = vunpack.c.l.b16 %v509
      %v544 = vpack.c.b16 %v543, %v542
      %vm546 = vcmask 130048
      %v548 = vsel %vm546, %v530, 0
      %v551 = vsel %vm546, %v531, 0
      %v554 = vsel %vm546, %v532, 0
      %v557 = vsel %vm546, %v533, 0
      %v560 = vsel %vm546, %v534, 0
      %v563 = vsel %vm546, %v535, 0
      %v566 = vsel %vm546, %v536, 0
      %v569 = vsel %vm546, %v537, 0
      %v572 = vsel %vm546, %v538, 0
      %v575 = vsel %vm546, %v539, 0
      %577 = vmatpush.bf16.msra.mxu0 0
      %578 = vmatpush.bf16.msra.mxu0 0
      %579 = vmatpush.bf16.msra.mxu0 0
      %580 = vmatpush.bf16.msra.mxu0 0
      %581 = vmatpush.bf16.msra.mxu0 0
      %582 = vmatpush.bf16.msra.mxu0 0
      %583 = vmatpush.bf16.msra.mxu0 0
      %584 = vmatpush.bf16.msra.mxu0 %v544
      %585 = vmatmul.bf16.gmra.mxu0 %v548
      %v586 = vpop.f32.mrf.mxu0
      %v587 = vadd.f32 0.0, %v586
      %v588 = vpop.f32.mrf.mxu0
      %v589 = vadd.f32 0.0, %v588
      %590 = vmatmul.bf16.gmra.mxu0 %v551
      %v591 = vpop.f32.mrf.mxu0
      %v592 = vadd.f32 0.0, %v591
      %v593 = vpop.f32.mrf.mxu0
      %v594 = vadd.f32 0.0, %v593
      %595 = vmatmul.bf16.gmra.mxu0 %v554
      %v596 = vpop.f32.mrf.mxu0
      %v597 = vadd.f32 0.0, %v596
      %v598 = vpop.f32.mrf.mxu0
      %v599 = vadd.f32 0.0, %v598
      %600 = vmatmul.bf16.gmra.mxu0 %v557
      %v601 = vpop.f32.mrf.mxu0
      %v602 = vadd.f32 0.0, %v601
      %v603 = vpop.f32.mrf.mxu0
      %v604 = vadd.f32 0.0, %v603
      %605 = vmatmul.bf16.gmra.mxu0 %v560
      %v606 = vpop.f32.mrf.mxu0
      %v607 = vadd.f32 0.0, %v606
      %v608 = vpop.f32.mrf.mxu0
      %v609 = vadd.f32 0.0, %v608
      %610 = vmatmul.bf16.gmra.mxu0 %v563
      %v611 = vpop.f32.mrf.mxu0
      %v612 = vadd.f32 0.0, %v611
      %v613 = vpop.f32.mrf.mxu0
      %v614 = vadd.f32 0.0, %v613
      %615 = vmatmul.bf16.gmra.mxu0 %v566
      %v616 = vpop.f32.mrf.mxu0
      %v617 = vadd.f32 0.0, %v616
      %v618 = vpop.f32.mrf.mxu0
      %v619 = vadd.f32 0.0, %v618
      %620 = vmatmul.bf16.gmra.mxu0 %v569
      %v621 = vpop.f32.mrf.mxu0
      %v622 = vadd.f32 0.0, %v621
      %v623 = vpop.f32.mrf.mxu0
      %v624 = vadd.f32 0.0, %v623
      %625 = vmatmul.bf16.gmra.mxu0 %v572
      %v626 = vpop.f32.mrf.mxu0
      %v627 = vadd.f32 0.0, %v626
      %v628 = vpop.f32.mrf.mxu0
      %v629 = vadd.f32 0.0, %v628
      %630 = vmatmul.bf16.gmra.mxu0 %v575
      %v631 = vpop.f32.mrf.mxu0
      %v632 = vadd.f32 0.0, %v631
      %v633 = vpop.f32.mrf.mxu0
      %v634 = vadd.f32 0.0, %v633
      %635 = vdwg.mxu0
      %v656 = vunpack.c.l.b16 %v226
      %v657 = vunpack.c.l.b16 %v227
      %v658 = vunpack.c.l.b16 %v229
      %v659 = vunpack.c.l.b16 %v230
      %v660 = vunpack.c.l.b16 %v232
      %v661 = vunpack.c.l.b16 %v233
      %v662 = vunpack.c.l.b16 %v235
      %v663 = vunpack.c.l.b16 %v236
      %v664 = vunpack.c.l.b16 %v238
      %v665 = vunpack.c.l.b16 %v239
      %v666 = vunpack.c.l.b16 %v241
      %v667 = vunpack.c.l.b16 %v242
      %v668 = vunpack.c.l.b16 %v244
      %v669 = vunpack.c.l.b16 %v245
      %v670 = vunpack.c.l.b16 %v247
      %v671 = vunpack.c.l.b16 %v248
      %v672 = vunpack.c.l.b16 %v250
      %v673 = vunpack.c.l.b16 %v251
      %v674 = vunpack.c.l.b16 %v253
      %v675 = vunpack.c.l.b16 %v254
      %v676 = vpack.c.b16 %v657, %v656
      %v677 = vpack.c.b16 %v659, %v658
      %v678 = vpack.c.b16 %v661, %v660
      %v679 = vpack.c.b16 %v663, %v662
      %v680 = vpack.c.b16 %v665, %v664
      %v681 = vpack.c.b16 %v667, %v666
      %v682 = vpack.c.b16 %v669, %v668
      %v683 = vpack.c.b16 %v671, %v670
      %v684 = vpack.c.b16 %v673, %v672
      %v685 = vpack.c.b16 %v675, %v674
      %v688 = vunpack.c.l.b16 %v262
      %v689 = vunpack.c.l.b16 %v263
      %v690 = vpack.c.b16 %v689, %v688
      %v693 = vsel %vm546, %v676, 0
      %v696 = vsel %vm546, %v677, 0
      %v699 = vsel %vm546, %v678, 0
      %v702 = vsel %vm546, %v679, 0
      %v705 = vsel %vm546, %v680, 0
      %v708 = vsel %vm546, %v681, 0
      %v711 = vsel %vm546, %v682, 0
      %v714 = vsel %vm546, %v683, 0
      %v717 = vsel %vm546, %v684, 0
      %v720 = vsel %vm546, %v685, 0
      %722 = vmatpush.bf16.msra.mxu0 0
      %723 = vmatpush.bf16.msra.mxu0 0
      %724 = vmatpush.bf16.msra.mxu0 0
      %725 = vmatpush.bf16.msra.mxu0 0
      %726 = vmatpush.bf16.msra.mxu0 0
      %727 = vmatpush.bf16.msra.mxu0 0
      %728 = vmatpush.bf16.msra.mxu0 0
      %729 = vmatpush.bf16.msra.mxu0 %v690
      %730 = vmatmul.bf16.gmra.mxu0 %v693
      %v731 = vpop.f32.mrf.mxu0
      %v732 = vadd.f32 %v587, %v731
      %v733 = vpop.f32.mrf.mxu0
      %v734 = vadd.f32 %v589, %v733
      %735 = vmatmul.bf16.gmra.mxu0 %v696
      %v736 = vpop.f32.mrf.mxu0
      %v737 = vadd.f32 %v592, %v736
      %v738 = vpop.f32.mrf.mxu0
      %v739 = vadd.f32 %v594, %v738
      %740 = vmatmul.bf16.gmra.mxu0 %v699
      %v741 = vpop.f32.mrf.mxu0
      %v742 = vadd.f32 %v597, %v741
      %v743 = vpop.f32.mrf.mxu0
      %v744 = vadd.f32 %v599, %v743
      %745 = vmatmul.bf16.gmra.mxu0 %v702
      %v746 = vpop.f32.mrf.mxu0
      %v747 = vadd.f32 %v602, %v746
      %v748 = vpop.f32.mrf.mxu0
      %v749 = vadd.f32 %v604, %v748
      %750 = vmatmul.bf16.gmra.mxu0 %v705
      %v751 = vpop.f32.mrf.mxu0
      %v752 = vadd.f32 %v607, %v751
      %v753 = vpop.f32.mrf.mxu0
      %v754 = vadd.f32 %v609, %v753
      %755 = vmatmul.bf16.gmra.mxu0 %v708
      %v756 = vpop.f32.mrf.mxu0
      %v757 = vadd.f32 %v612, %v756
      %v758 = vpop.f32.mrf.mxu0
      %v759 = vadd.f32 %v614, %v758
      %760 = vmatmul.bf16.gmra.mxu0 %v711
      %v761 = vpop.f32.mrf.mxu0
      %v762 = vadd.f32 %v617, %v761
      %v763 = vpop.f32.mrf.mxu0
      %v764 = vadd.f32 %v619, %v763
      %765 = vmatmul.bf16.gmra.mxu0 %v714
      %v766 = vpop.f32.mrf.mxu0
      %v767 = vadd.f32 %v622, %v766
      %v768 = vpop.f32.mrf.mxu0
      %v769 = vadd.f32 %v624, %v768
      %770 = vmatmul.bf16.gmra.mxu0 %v717
      %v771 = vpop.f32.mrf.mxu0
      %v772 = vadd.f32 %v627, %v771
      %v773 = vpop.f32.mrf.mxu0
      %v774 = vadd.f32 %v629, %v773
      %775 = vmatmul.bf16.gmra.mxu0 %v720
      %v776 = vpop.f32.mrf.mxu0
      %v777 = vadd.f32 %v632, %v776
      %v778 = vpop.f32.mrf.mxu0
      %v779 = vadd.f32 %v634, %v778
      %780 = vdwg.mxu0
      %vm791 = vcmask 1042432
      %vm792 = vcmask 1046532
      %vm793 = vmor %vm791, %vm792
      %v794 = vrot.slane %v226, 5
      %v795 = vrot.slane %v794, 4
      %v796 = vrot.slane %v227, 5
      %v797 = vsel %vm793, %v795, %v796
      %v798 = vrot.slane %v796, 4
      %v799 = vrot.slane %v228, 5
      %v800 = vsel %vm793, %v798, %v799
      %v801 = vrot.slane %v229, 5
      %v802 = vrot.slane %v801, 4
      %v803 = vrot.slane %v230, 5
      %v804 = vsel %vm793, %v802, %v803
      %v805 = vrot.slane %v803, 4
      %v806 = vrot.slane %v231, 5
      %v807 = vsel %vm793, %v805, %v806
      %v808 = vrot.slane %v232, 5
      %v809 = vrot.slane %v808, 4
      %v810 = vrot.slane %v233, 5
      %v811 = vsel %vm793, %v809, %v810
      %v812 = vrot.slane %v810, 4
      %v813 = vrot.slane %v234, 5
      %v814 = vsel %vm793, %v812, %v813
      %v815 = vrot.slane %v235, 5
      %v816 = vrot.slane %v815, 4
      %v817 = vrot.slane %v236, 5
      %v818 = vsel %vm793, %v816, %v817
      %v819 = vrot.slane %v817, 4
      %v820 = vrot.slane %v237, 5
      %v821 = vsel %vm793, %v819, %v820
      %v822 = vrot.slane %v238, 5
      %v823 = vrot.slane %v822, 4
      %v824 = vrot.slane %v239, 5
      %v825 = vsel %vm793, %v823, %v824
      %v826 = vrot.slane %v824, 4
      %v827 = vrot.slane %v240, 5
      %v828 = vsel %vm793, %v826, %v827
      %v829 = vrot.slane %v241, 5
      %v830 = vrot.slane %v829, 4
      %v831 = vrot.slane %v242, 5
      %v832 = vsel %vm793, %v830, %v831
      %v833 = vrot.slane %v831, 4
      %v834 = vrot.slane %v243, 5
      %v835 = vsel %vm793, %v833, %v834
      %v836 = vrot.slane %v244, 5
      %v837 = vrot.slane %v836, 4
      %v838 = vrot.slane %v245, 5
      %v839 = vsel %vm793, %v837, %v838
      %v840 = vrot.slane %v838, 4
      %v841 = vrot.slane %v246, 5
      %v842 = vsel %vm793, %v840, %v841
      %v843 = vrot.slane %v247, 5
      %v844 = vrot.slane %v843, 4
      %v845 = vrot.slane %v248, 5
      %v846 = vsel %vm793, %v844, %v845
      %v847 = vrot.slane %v845, 4
      %v848 = vrot.slane %v249, 5
      %v849 = vsel %vm793, %v847, %v848
      %v850 = vrot.slane %v250, 5
      %v851 = vrot.slane %v850, 4
      %v852 = vrot.slane %v251, 5
      %v853 = vsel %vm793, %v851, %v852
      %v854 = vrot.slane %v852, 4
      %v855 = vrot.slane %v252, 5
      %v856 = vsel %vm793, %v854, %v855
      %v857 = vrot.slane %v253, 5
      %v858 = vrot.slane %v857, 4
      %v859 = vrot.slane %v254, 5
      %v860 = vsel %vm793, %v858, %v859
      %v861 = vrot.slane %v859, 4
      %v862 = vrot.slane %v255, 5
      %v863 = vsel %vm793, %v861, %v862
      %s864 = scalar_lea.vmem %s1, 16
      %v865 = vld [vmem:[%s864] sm:$0xf]
      %v866 = vld [vmem:[%s864 + $0x4] sm:$0xf]
      %v867 = vunpack.c.l.b16 %v797
      %v868 = vunpack.c.l.b16 %v800
      %v869 = vunpack.c.l.b16 %v804
      %v870 = vunpack.c.l.b16 %v807
      %v871 = vunpack.c.l.b16 %v811
      %v872 = vunpack.c.l.b16 %v814
      %v873 = vunpack.c.l.b16 %v818
      %v874 = vunpack.c.l.b16 %v821
      %v875 = vunpack.c.l.b16 %v825
      %v876 = vunpack.c.l.b16 %v828
      %v877 = vunpack.c.l.b16 %v832
      %v878 = vunpack.c.l.b16 %v835
      %v879 = vunpack.c.l.b16 %v839
      %v880 = vunpack.c.l.b16 %v842
      %v881 = vunpack.c.l.b16 %v846
      %v882 = vunpack.c.l.b16 %v849
      %v883 = vunpack.c.l.b16 %v853
      %v884 = vunpack.c.l.b16 %v856
      %v885 = vunpack.c.l.b16 %v860
      %v886 = vunpack.c.l.b16 %v863
      %v887 = vpack.c.b16 %v868, %v867
      %v888 = vpack.c.b16 %v870, %v869
      %v889 = vpack.c.b16 %v872, %v871
      %v890 = vpack.c.b16 %v874, %v873
      %v891 = vpack.c.b16 %v876, %v875
      %v892 = vpack.c.b16 %v878, %v877
      %v893 = vpack.c.b16 %v880, %v879
      %v894 = vpack.c.b16 %v882, %v881
      %v895 = vpack.c.b16 %v884, %v883
      %v896 = vpack.c.b16 %v886, %v885
      %v899 = vunpack.c.l.b16 %v865
      %v900 = vunpack.c.l.b16 %v866
      %v901 = vpack.c.b16 %v900, %v899
      %v904 = vsel %vm546, %v887, 0
      %v907 = vsel %vm546, %v888, 0
      %v910 = vsel %vm546, %v889, 0
      %v913 = vsel %vm546, %v890, 0
      %v916 = vsel %vm546, %v891, 0
      %v919 = vsel %vm546, %v892, 0
      %v922 = vsel %vm546, %v893, 0
      %v925 = vsel %vm546, %v894, 0
      %v928 = vsel %vm546, %v895, 0
      %v931 = vsel %vm546, %v896, 0
      %933 = vmatpush.bf16.msra.mxu0 0
      %934 = vmatpush.bf16.msra.mxu0 0
      %935 = vmatpush.bf16.msra.mxu0 0
      %936 = vmatpush.bf16.msra.mxu0 0
      %937 = vmatpush.bf16.msra.mxu0 0
      %938 = vmatpush.bf16.msra.mxu0 0
      %939 = vmatpush.bf16.msra.mxu0 0
      %940 = vmatpush.bf16.msra.mxu0 %v901
      %941 = vmatmul.bf16.gmra.mxu0 %v904
      %v942 = vpop.f32.mrf.mxu0
      %v943 = vadd.f32 0.0, %v942
      %v944 = vpop.f32.mrf.mxu0
      %v945 = vadd.f32 0.0, %v944
      %946 = vmatmul.bf16.gmra.mxu0 %v907
      %v947 = vpop.f32.mrf.mxu0
      %v948 = vadd.f32 0.0, %v947
      %v949 = vpop.f32.mrf.mxu0
      %v950 = vadd.f32 0.0, %v949
      %951 = vmatmul.bf16.gmra.mxu0 %v910
      %v952 = vpop.f32.mrf.mxu0
      %v953 = vadd.f32 0.0, %v952
      %v954 = vpop.f32.mrf.mxu0
      %v955 = vadd.f32 0.0, %v954
      %956 = vmatmul.bf16.gmra.mxu0 %v913
      %v957 = vpop.f32.mrf.mxu0
      %v958 = vadd.f32 0.0, %v957
      %v959 = vpop.f32.mrf.mxu0
      %v960 = vadd.f32 0.0, %v959
      %961 = vmatmul.bf16.gmra.mxu0 %v916
      %v962 = vpop.f32.mrf.mxu0
      %v963 = vadd.f32 0.0, %v962
      %v964 = vpop.f32.mrf.mxu0
      %v965 = vadd.f32 0.0, %v964
      %966 = vmatmul.bf16.gmra.mxu0 %v919
      %v967 = vpop.f32.mrf.mxu0
      %v968 = vadd.f32 0.0, %v967
      %v969 = vpop.f32.mrf.mxu0
      %v970 = vadd.f32 0.0, %v969
      %971 = vmatmul.bf16.gmra.mxu0 %v922
      %v972 = vpop.f32.mrf.mxu0
      %v973 = vadd.f32 0.0, %v972
      %v974 = vpop.f32.mrf.mxu0
      %v975 = vadd.f32 0.0, %v974
      %976 = vmatmul.bf16.gmra.mxu0 %v925
      %v977 = vpop.f32.mrf.mxu0
      %v978 = vadd.f32 0.0, %v977
      %v979 = vpop.f32.mrf.mxu0
      %v980 = vadd.f32 0.0, %v979
      %981 = vmatmul.bf16.gmra.mxu0 %v928
      %v982 = vpop.f32.mrf.mxu0
      %v983 = vadd.f32 0.0, %v982
      %v984 = vpop.f32.mrf.mxu0
      %v985 = vadd.f32 0.0, %v984
      %986 = vmatmul.bf16.gmra.mxu0 %v931
      %v987 = vpop.f32.mrf.mxu0
      %v988 = vadd.f32 0.0, %v987
      %v989 = vpop.f32.mrf.mxu0
      %v990 = vadd.f32 0.0, %v989
      %991 = vdwg.mxu0
      %v992 = vadd.f32 %v732, %v943
      %v993 = vadd.f32 %v734, %v945
      %v994 = vadd.f32 %v737, %v948
      %v995 = vadd.f32 %v739, %v950
      %v996 = vadd.f32 %v742, %v953
      %v997 = vadd.f32 %v744, %v955
      %v998 = vadd.f32 %v747, %v958
      %v999 = vadd.f32 %v749, %v960
      %v1000 = vadd.f32 %v752, %v963
      %v1001 = vadd.f32 %v754, %v965
      %v1002 = vadd.f32 %v757, %v968
      %v1003 = vadd.f32 %v759, %v970
      %v1004 = vadd.f32 %v762, %v973
      %v1005 = vadd.f32 %v764, %v975
      %v1006 = vadd.f32 %v767, %v978
      %v1007 = vadd.f32 %v769, %v980
      %v1008 = vadd.f32 %v772, %v983
      %v1009 = vadd.f32 %v774, %v985
      %v1010 = vadd.f32 %v777, %v988
      %v1011 = vadd.f32 %v779, %v990
      %s1012 = scalar_lea.vmem %s1, 24
      %v1013 = vld [vmem:[%s1012] sm:$0xf]
      %v1014 = vld [vmem:[%s1012 + $0x4] sm:$0xf]
      %v1017 = vunpack.c.l.b16 %v256
      %v1018 = vunpack.c.l.b16 %v257
      %v1019 = vpack.c.b16 %v1018, %v1017
      %v1022 = vunpack.c.l.b16 %v1013
      %v1023 = vunpack.c.l.b16 %v1014
      %v1024 = vpack.c.b16 %v1023, %v1022
      %v1027 = vsel %vm546, %v1019, 0
      %1029 = vmatpush.bf16.msra.mxu0 0
      %1030 = vmatpush.bf16.msra.mxu0 0
      %1031 = vmatpush.bf16.msra.mxu0 0
      %1032 = vmatpush.bf16.msra.mxu0 0
      %1033 = vmatpush.bf16.msra.mxu0 0
      %1034 = vmatpush.bf16.msra.mxu0 0
      %1035 = vmatpush.bf16.msra.mxu0 0
      %1036 = vmatpush.bf16.msra.mxu0 %v1024
      %1037 = vmatmul.bf16.gmra.mxu0 %v696
      %v1038 = vpop.f32.mrf.mxu0
      %v1039 = vadd.f32 0.0, %v1038
      %v1040 = vpop.f32.mrf.mxu0
      %v1041 = vadd.f32 0.0, %v1040
      %1042 = vmatmul.bf16.gmra.mxu0 %v699
      %v1043 = vpop.f32.mrf.mxu0
      %v1044 = vadd.f32 0.0, %v1043
      %v1045 = vpop.f32.mrf.mxu0
      %v1046 = vadd.f32 0.0, %v1045
      %1047 = vmatmul.bf16.gmra.mxu0 %v702
      %v1048 = vpop.f32.mrf.mxu0
      %v1049 = vadd.f32 0.0, %v1048
      %v1050 = vpop.f32.mrf.mxu0
      %v1051 = vadd.f32 0.0, %v1050
      %1052 = vmatmul.bf16.gmra.mxu0 %v705
      %v1053 = vpop.f32.mrf.mxu0
      %v1054 = vadd.f32 0.0, %v1053
      %v1055 = vpop.f32.mrf.mxu0
      %v1056 = vadd.f32 0.0, %v1055
      %1057 = vmatmul.bf16.gmra.mxu0 %v708
      %v1058 = vpop.f32.mrf.mxu0
      %v1059 = vadd.f32 0.0, %v1058
      %v1060 = vpop.f32.mrf.mxu0
      %v1061 = vadd.f32 0.0, %v1060
      %1062 = vmatmul.bf16.gmra.mxu0 %v711
      %v1063 = vpop.f32.mrf.mxu0
      %v1064 = vadd.f32 0.0, %v1063
      %v1065 = vpop.f32.mrf.mxu0
      %v1066 = vadd.f32 0.0, %v1065
      %1067 = vmatmul.bf16.gmra.mxu0 %v714
      %v1068 = vpop.f32.mrf.mxu0
      %v1069 = vadd.f32 0.0, %v1068
      %v1070 = vpop.f32.mrf.mxu0
      %v1071 = vadd.f32 0.0, %v1070
      %1072 = vmatmul.bf16.gmra.mxu0 %v717
      %v1073 = vpop.f32.mrf.mxu0
      %v1074 = vadd.f32 0.0, %v1073
      %v1075 = vpop.f32.mrf.mxu0
      %v1076 = vadd.f32 0.0, %v1075
      %1077 = vmatmul.bf16.gmra.mxu0 %v720
      %v1078 = vpop.f32.mrf.mxu0
      %v1079 = vadd.f32 0.0, %v1078
      %v1080 = vpop.f32.mrf.mxu0
      %v1081 = vadd.f32 0.0, %v1080
      %1082 = vmatmul.bf16.gmra.mxu0 %v1027
      %v1083 = vpop.f32.mrf.mxu0
      %v1084 = vadd.f32 0.0, %v1083
      %v1085 = vpop.f32.mrf.mxu0
      %v1086 = vadd.f32 0.0, %v1085
      %1087 = vdwg.mxu0
      %v1088 = vadd.f32 %v992, %v1039
      %v1089 = vadd.f32 %v993, %v1041
      %v1090 = vadd.f32 %v994, %v1044
      %v1091 = vadd.f32 %v995, %v1046
      %v1092 = vadd.f32 %v996, %v1049
      %v1093 = vadd.f32 %v997, %v1051
      %v1094 = vadd.f32 %v998, %v1054
      %v1095 = vadd.f32 %v999, %v1056
      %v1096 = vadd.f32 %v1000, %v1059
      %v1097 = vadd.f32 %v1001, %v1061
      %v1098 = vadd.f32 %v1002, %v1064
      %v1099 = vadd.f32 %v1003, %v1066
      %v1100 = vadd.f32 %v1004, %v1069
      %v1101 = vadd.f32 %v1005, %v1071
      %v1102 = vadd.f32 %v1006, %v1074
      %v1103 = vadd.f32 %v1007, %v1076
      %v1104 = vadd.f32 %v1008, %v1079
      %v1105 = vadd.f32 %v1009, %v1081
      %v1106 = vadd.f32 %v1010, %v1084
      %v1107 = vadd.f32 %v1011, %v1086
      %v1109 = vshrl.u32 %v256, 16
      %v1111 = vrot.slane %v1109, 4
      %v1112 = vshll.u32 %v256, 16
      %v1114 = vrot.slane %v1112, 5
      %v1115 = vor.u32 %v1111, %v1114
      %v1116 = vrot.slane %v1115, 4
      %v1118 = vshll.u32 %v257, 16
      %v1120 = vrot.slane %v1118, 5
      %v1121 = vsel %vm266, %v1116, %v1120
      %v1122 = vshrl.u32 %v257, 16
      %v1124 = vrot.slane %v1122, 4
      %v1125 = vor.u32 %v1124, %v1120
      %v1126 = vrot.slane %v1125, 4
      %v1128 = vshll.u32 %v258, 16
      %v1130 = vrot.slane %v1128, 5
      %v1131 = vsel %vm266, %v1126, %v1130
      %s1132 = scalar_lea.vmem %s1, 32
      %v1133 = vld [vmem:[%s1132] sm:$0xf]
      %v1134 = vld [vmem:[%s1132 + $0x4] sm:$0xf]
      %v1135 = vunpack.c.l.b16 %v1121
      %v1136 = vunpack.c.l.b16 %v1131
      %v1137 = vpack.c.b16 %v1136, %v1135
      %v1140 = vunpack.c.l.b16 %v1133
      %v1141 = vunpack.c.l.b16 %v1134
      %v1142 = vpack.c.b16 %v1141, %v1140
      %v1145 = vsel %vm546, %v1137, 0
      %1147 = vmatpush.bf16.msra.mxu0 0
      %1148 = vmatpush.bf16.msra.mxu0 0
      %1149 = vmatpush.bf16.msra.mxu0 0
      %1150 = vmatpush.bf16.msra.mxu0 0
      %1151 = vmatpush.bf16.msra.mxu0 0
      %1152 = vmatpush.bf16.msra.mxu0 0
      %1153 = vmatpush.bf16.msra.mxu0 0
      %1154 = vmatpush.bf16.msra.mxu0 %v1142
      %1155 = vmatmul.bf16.gmra.mxu0 %v551
      %v1156 = vpop.f32.mrf.mxu0
      %v1157 = vadd.f32 0.0, %v1156
      %v1158 = vpop.f32.mrf.mxu0
      %v1159 = vadd.f32 0.0, %v1158
      %1160 = vmatmul.bf16.gmra.mxu0 %v554
      %v1161 = vpop.f32.mrf.mxu0
      %v1162 = vadd.f32 0.0, %v1161
      %v1163 = vpop.f32.mrf.mxu0
      %v1164 = vadd.f32 0.0, %v1163
      %1165 = vmatmul.bf16.gmra.mxu0 %v557
      %v1166 = vpop.f32.mrf.mxu0
      %v1167 = vadd.f32 0.0, %v1166
      %v1168 = vpop.f32.mrf.mxu0
      %v1169 = vadd.f32 0.0, %v1168
      %1170 = vmatmul.bf16.gmra.mxu0 %v560
      %v1171 = vpop.f32.mrf.mxu0
      %v1172 = vadd.f32 0.0, %v1171
      %v1173 = vpop.f32.mrf.mxu0
      %v1174 = vadd.f32 0.0, %v1173
      %1175 = vmatmul.bf16.gmra.mxu0 %v563
      %v1176 = vpop.f32.mrf.mxu0
      %v1177 = vadd.f32 0.0, %v1176
      %v1178 = vpop.f32.mrf.mxu0
      %v1179 = vadd.f32 0.0, %v1178
      %1180 = vmatmul.bf16.gmra.mxu0 %v566
      %v1181 = vpop.f32.mrf.mxu0
      %v1182 = vadd.f32 0.0, %v1181
      %v1183 = vpop.f32.mrf.mxu0
      %v1184 = vadd.f32 0.0, %v1183
      %1185 = vmatmul.bf16.gmra.mxu0 %v569
      %v1186 = vpop.f32.mrf.mxu0
      %v1187 = vadd.f32 0.0, %v1186
      %v1188 = vpop.f32.mrf.mxu0
      %v1189 = vadd.f32 0.0, %v1188
      %1190 = vmatmul.bf16.gmra.mxu0 %v572
      %v1191 = vpop.f32.mrf.mxu0
      %v1192 = vadd.f32 0.0, %v1191
      %v1193 = vpop.f32.mrf.mxu0
      %v1194 = vadd.f32 0.0, %v1193
      %1195 = vmatmul.bf16.gmra.mxu0 %v575
      %v1196 = vpop.f32.mrf.mxu0
      %v1197 = vadd.f32 0.0, %v1196
      %v1198 = vpop.f32.mrf.mxu0
      %v1199 = vadd.f32 0.0, %v1198
      %1200 = vmatmul.bf16.gmra.mxu0 %v1145
      %v1201 = vpop.f32.mrf.mxu0
      %v1202 = vadd.f32 0.0, %v1201
      %v1203 = vpop.f32.mrf.mxu0
      %v1204 = vadd.f32 0.0, %v1203
      %1205 = vdwg.mxu0
      %v1206 = vadd.f32 %v1088, %v1157
      %v1207 = vadd.f32 %v1089, %v1159
      %v1208 = vadd.f32 %v1090, %v1162
      %v1209 = vadd.f32 %v1091, %v1164
      %v1210 = vadd.f32 %v1092, %v1167
      %v1211 = vadd.f32 %v1093, %v1169
      %v1212 = vadd.f32 %v1094, %v1172
      %v1213 = vadd.f32 %v1095, %v1174
      %v1214 = vadd.f32 %v1096, %v1177
      %v1215 = vadd.f32 %v1097, %v1179
      %v1216 = vadd.f32 %v1098, %v1182
      %v1217 = vadd.f32 %v1099, %v1184
      %v1218 = vadd.f32 %v1100, %v1187
      %v1219 = vadd.f32 %v1101, %v1189
      %v1220 = vadd.f32 %v1102, %v1192
      %v1221 = vadd.f32 %v1103, %v1194
      %v1222 = vadd.f32 %v1104, %v1197
      %v1223 = vadd.f32 %v1105, %v1199
      %v1224 = vadd.f32 %v1106, %v1202
      %v1225 = vadd.f32 %v1107, %v1204
      %v1227 = vrot.slane %v256, 5
      %v1228 = vrot.slane %v1227, 4
      %v1229 = vrot.slane %v257, 5
      %v1230 = vsel %vm793, %v1228, %v1229
      %v1231 = vrot.slane %v1229, 4
      %v1232 = vrot.slane %v258, 5
      %v1233 = vsel %vm793, %v1231, %v1232
      %s1234 = scalar_lea.vmem %s1, 40
      %v1235 = vld [vmem:[%s1234] sm:$0xf]
      %v1236 = vld [vmem:[%s1234 + $0x4] sm:$0xf]
      %v1237 = vunpack.c.l.b16 %v1230
      %v1238 = vunpack.c.l.b16 %v1233
      %v1239 = vpack.c.b16 %v1238, %v1237
      %v1242 = vunpack.c.l.b16 %v1235
      %v1243 = vunpack.c.l.b16 %v1236
      %v1244 = vpack.c.b16 %v1243, %v1242
      %v1247 = vsel %vm546, %v1239, 0
      %1249 = vmatpush.bf16.msra.mxu0 0
      %1250 = vmatpush.bf16.msra.mxu0 0
      %1251 = vmatpush.bf16.msra.mxu0 0
      %1252 = vmatpush.bf16.msra.mxu0 0
      %1253 = vmatpush.bf16.msra.mxu0 0
      %1254 = vmatpush.bf16.msra.mxu0 0
      %1255 = vmatpush.bf16.msra.mxu0 0
      %1256 = vmatpush.bf16.msra.mxu0 %v1244
      %1257 = vmatmul.bf16.gmra.mxu0 %v907
      %v1258 = vpop.f32.mrf.mxu0
      %v1259 = vadd.f32 0.0, %v1258
      %v1260 = vpop.f32.mrf.mxu0
      %v1261 = vadd.f32 0.0, %v1260
      %1262 = vmatmul.bf16.gmra.mxu0 %v910
      %v1263 = vpop.f32.mrf.mxu0
      %v1264 = vadd.f32 0.0, %v1263
      %v1265 = vpop.f32.mrf.mxu0
      %v1266 = vadd.f32 0.0, %v1265
      %1267 = vmatmul.bf16.gmra.mxu0 %v913
      %v1268 = vpop.f32.mrf.mxu0
      %v1269 = vadd.f32 0.0, %v1268
      %v1270 = vpop.f32.mrf.mxu0
      %v1271 = vadd.f32 0.0, %v1270
      %1272 = vmatmul.bf16.gmra.mxu0 %v916
      %v1273 = vpop.f32.mrf.mxu0
      %v1274 = vadd.f32 0.0, %v1273
      %v1275 = vpop.f32.mrf.mxu0
      %v1276 = vadd.f32 0.0, %v1275
      %1277 = vmatmul.bf16.gmra.mxu0 %v919
      %v1278 = vpop.f32.mrf.mxu0
      %v1279 = vadd.f32 0.0, %v1278
      %v1280 = vpop.f32.mrf.mxu0
      %v1281 = vadd.f32 0.0, %v1280
      %1282 = vmatmul.bf16.gmra.mxu0 %v922
      %v1283 = vpop.f32.mrf.mxu0
      %v1284 = vadd.f32 0.0, %v1283
      %v1285 = vpop.f32.mrf.mxu0
      %v1286 = vadd.f32 0.0, %v1285
      %1287 = vmatmul.bf16.gmra.mxu0 %v925
      %v1288 = vpop.f32.mrf.mxu0
      %v1289 = vadd.f32 0.0, %v1288
      %v1290 = vpop.f32.mrf.mxu0
      %v1291 = vadd.f32 0.0, %v1290
      %1292 = vmatmul.bf16.gmra.mxu0 %v928
      %v1293 = vpop.f32.mrf.mxu0
      %v1294 = vadd.f32 0.0, %v1293
      %v1295 = vpop.f32.mrf.mxu0
      %v1296 = vadd.f32 0.0, %v1295
      %1297 = vmatmul.bf16.gmra.mxu0 %v931
      %v1298 = vpop.f32.mrf.mxu0
      %v1299 = vadd.f32 0.0, %v1298
      %v1300 = vpop.f32.mrf.mxu0
      %v1301 = vadd.f32 0.0, %v1300
      %1302 = vmatmul.bf16.gmra.mxu0 %v1247
      %v1303 = vpop.f32.mrf.mxu0
      %v1304 = vadd.f32 0.0, %v1303
      %v1305 = vpop.f32.mrf.mxu0
      %v1306 = vadd.f32 0.0, %v1305
      %1307 = vdwg.mxu0
      %v1308 = vadd.f32 %v1206, %v1259
      %v1309 = vadd.f32 %v1207, %v1261
      %v1310 = vadd.f32 %v1208, %v1264
      %v1311 = vadd.f32 %v1209, %v1266
      %v1312 = vadd.f32 %v1210, %v1269
      %v1313 = vadd.f32 %v1211, %v1271
      %v1314 = vadd.f32 %v1212, %v1274
      %v1315 = vadd.f32 %v1213, %v1276
      %v1316 = vadd.f32 %v1214, %v1279
      %v1317 = vadd.f32 %v1215, %v1281
      %v1318 = vadd.f32 %v1216, %v1284
      %v1319 = vadd.f32 %v1217, %v1286
      %v1320 = vadd.f32 %v1218, %v1289
      %v1321 = vadd.f32 %v1219, %v1291
      %v1322 = vadd.f32 %v1220, %v1294
      %v1323 = vadd.f32 %v1221, %v1296
      %v1324 = vadd.f32 %v1222, %v1299
      %v1325 = vadd.f32 %v1223, %v1301
      %v1326 = vadd.f32 %v1224, %v1304
      %v1327 = vadd.f32 %v1225, %v1306
      %s1328 = scalar_lea.vmem %s1, 48
      %v1329 = vld [vmem:[%s1328] sm:$0xf]
      %v1330 = vld [vmem:[%s1328 + $0x4] sm:$0xf]
      %v1333 = vunpack.c.l.b16 %v259
      %v1334 = vunpack.c.l.b16 %v260
      %v1335 = vpack.c.b16 %v1334, %v1333
      %v1338 = vunpack.c.l.b16 %v1329
      %v1339 = vunpack.c.l.b16 %v1330
      %v1340 = vpack.c.b16 %v1339, %v1338
      %v1343 = vsel %vm546, %v1335, 0
      %1345 = vmatpush.bf16.msra.mxu0 0
      %1346 = vmatpush.bf16.msra.mxu0 0
      %1347 = vmatpush.bf16.msra.mxu0 0
      %1348 = vmatpush.bf16.msra.mxu0 0
      %1349 = vmatpush.bf16.msra.mxu0 0
      %1350 = vmatpush.bf16.msra.mxu0 0
      %1351 = vmatpush.bf16.msra.mxu0 0
      %1352 = vmatpush.bf16.msra.mxu0 %v1340
      %1353 = vmatmul.bf16.gmra.mxu0 %v699
      %v1354 = vpop.f32.mrf.mxu0
      %v1355 = vadd.f32 0.0, %v1354
      %v1356 = vpop.f32.mrf.mxu0
      %v1357 = vadd.f32 0.0, %v1356
      %1358 = vmatmul.bf16.gmra.mxu0 %v702
      %v1359 = vpop.f32.mrf.mxu0
      %v1360 = vadd.f32 0.0, %v1359
      %v1361 = vpop.f32.mrf.mxu0
      %v1362 = vadd.f32 0.0, %v1361
      %1363 = vmatmul.bf16.gmra.mxu0 %v705
      %v1364 = vpop.f32.mrf.mxu0
      %v1365 = vadd.f32 0.0, %v1364
      %v1366 = vpop.f32.mrf.mxu0
      %v1367 = vadd.f32 0.0, %v1366
      %1368 = vmatmul.bf16.gmra.mxu0 %v708
      %v1369 = vpop.f32.mrf.mxu0
      %v1370 = vadd.f32 0.0, %v1369
      %v1371 = vpop.f32.mrf.mxu0
      %v1372 = vadd.f32 0.0, %v1371
      %1373 = vmatmul.bf16.gmra.mxu0 %v711
      %v1374 = vpop.f32.mrf.mxu0
      %v1375 = vadd.f32 0.0, %v1374
      %v1376 = vpop.f32.mrf.mxu0
      %v1377 = vadd.f32 0.0, %v1376
      %1378 = vmatmul.bf16.gmra.mxu0 %v714
      %v1379 = vpop.f32.mrf.mxu0
      %v1380 = vadd.f32 0.0, %v1379
      %v1381 = vpop.f32.mrf.mxu0
      %v1382 = vadd.f32 0.0, %v1381
      %1383 = vmatmul.bf16.gmra.mxu0 %v717
      %v1384 = vpop.f32.mrf.mxu0
      %v1385 = vadd.f32 0.0, %v1384
      %v1386 = vpop.f32.mrf.mxu0
      %v1387 = vadd.f32 0.0, %v1386
      %1388 = vmatmul.bf16.gmra.mxu0 %v720
      %v1389 = vpop.f32.mrf.mxu0
      %v1390 = vadd.f32 0.0, %v1389
      %v1391 = vpop.f32.mrf.mxu0
      %v1392 = vadd.f32 0.0, %v1391
      %1393 = vmatmul.bf16.gmra.mxu0 %v1027
      %v1394 = vpop.f32.mrf.mxu0
      %v1395 = vadd.f32 0.0, %v1394
      %v1396 = vpop.f32.mrf.mxu0
      %v1397 = vadd.f32 0.0, %v1396
      %1398 = vmatmul.bf16.gmra.mxu0 %v1343
      %v1399 = vpop.f32.mrf.mxu0
      %v1400 = vadd.f32 0.0, %v1399
      %v1401 = vpop.f32.mrf.mxu0
      %v1402 = vadd.f32 0.0, %v1401
      %1403 = vdwg.mxu0
      %v1404 = vadd.f32 %v1308, %v1355
      %v1405 = vadd.f32 %v1309, %v1357
      %v1406 = vadd.f32 %v1310, %v1360
      %v1407 = vadd.f32 %v1311, %v1362
      %v1408 = vadd.f32 %v1312, %v1365
      %v1409 = vadd.f32 %v1313, %v1367
      %v1410 = vadd.f32 %v1314, %v1370
      %v1411 = vadd.f32 %v1315, %v1372
      %v1412 = vadd.f32 %v1316, %v1375
      %v1413 = vadd.f32 %v1317, %v1377
      %v1414 = vadd.f32 %v1318, %v1380
      %v1415 = vadd.f32 %v1319, %v1382
      %v1416 = vadd.f32 %v1320, %v1385
      %v1417 = vadd.f32 %v1321, %v1387
      %v1418 = vadd.f32 %v1322, %v1390
      %v1419 = vadd.f32 %v1323, %v1392
      %v1420 = vadd.f32 %v1324, %v1395
      %v1421 = vadd.f32 %v1325, %v1397
      %v1422 = vadd.f32 %v1326, %v1400
      %v1423 = vadd.f32 %v1327, %v1402
      %v1425 = vshrl.u32 %v259, 16
      %v1427 = vrot.slane %v1425, 4
      %v1428 = vshll.u32 %v259, 16
      %v1430 = vrot.slane %v1428, 5
      %v1431 = vor.u32 %v1427, %v1430
      %v1432 = vrot.slane %v1431, 4
      %v1434 = vshll.u32 %v260, 16
      %v1436 = vrot.slane %v1434, 5
      %v1437 = vsel %vm266, %v1432, %v1436
      %v1438 = vshrl.u32 %v260, 16
      %v1440 = vrot.slane %v1438, 4
      %v1441 = vor.u32 %v1440, %v1436
      %v1442 = vrot.slane %v1441, 4
      %v1444 = vshll.u32 %v261, 16
      %v1446 = vrot.slane %v1444, 5
      %v1447 = vsel %vm266, %v1442, %v1446
      %s1448 = scalar_lea.vmem %s1, 56
      %v1449 = vld [vmem:[%s1448] sm:$0xf]
      %v1450 = vld [vmem:[%s1448 + $0x4] sm:$0xf]
      %v1451 = vunpack.c.l.b16 %v1437
      %v1452 = vunpack.c.l.b16 %v1447
      %v1453 = vpack.c.b16 %v1452, %v1451
      %v1456 = vunpack.c.l.b16 %v1449
      %v1457 = vunpack.c.l.b16 %v1450
      %v1458 = vpack.c.b16 %v1457, %v1456
      %v1461 = vsel %vm546, %v1453, 0
      %1463 = vmatpush.bf16.msra.mxu0 0
      %1464 = vmatpush.bf16.msra.mxu0 0
      %1465 = vmatpush.bf16.msra.mxu0 0
      %1466 = vmatpush.bf16.msra.mxu0 0
      %1467 = vmatpush.bf16.msra.mxu0 0
      %1468 = vmatpush.bf16.msra.mxu0 0
      %1469 = vmatpush.bf16.msra.mxu0 0
      %1470 = vmatpush.bf16.msra.mxu0 %v1458
      %1471 = vmatmul.bf16.gmra.mxu0 %v554
      %v1472 = vpop.f32.mrf.mxu0
      %v1473 = vadd.f32 0.0, %v1472
      %v1474 = vpop.f32.mrf.mxu0
      %v1475 = vadd.f32 0.0, %v1474
      %1476 = vmatmul.bf16.gmra.mxu0 %v557
      %v1477 = vpop.f32.mrf.mxu0
      %v1478 = vadd.f32 0.0, %v1477
      %v1479 = vpop.f32.mrf.mxu0
      %v1480 = vadd.f32 0.0, %v1479
      %1481 = vmatmul.bf16.gmra.mxu0 %v560
      %v1482 = vpop.f32.mrf.mxu0
      %v1483 = vadd.f32 0.0, %v1482
      %v1484 = vpop.f32.mrf.mxu0
      %v1485 = vadd.f32 0.0, %v1484
      %1486 = vmatmul.bf16.gmra.mxu0 %v563
      %v1487 = vpop.f32.mrf.mxu0
      %v1488 = vadd.f32 0.0, %v1487
      %v1489 = vpop.f32.mrf.mxu0
      %v1490 = vadd.f32 0.0, %v1489
      %1491 = vmatmul.bf16.gmra.mxu0 %v566
      %v1492 = vpop.f32.mrf.mxu0
      %v1493 = vadd.f32 0.0, %v1492
      %v1494 = vpop.f32.mrf.mxu0
      %v1495 = vadd.f32 0.0, %v1494
      %1496 = vmatmul.bf16.gmra.mxu0 %v569
      %v1497 = vpop.f32.mrf.mxu0
      %v1498 = vadd.f32 0.0, %v1497
      %v1499 = vpop.f32.mrf.mxu0
      %v1500 = vadd.f32 0.0, %v1499
      %1501 = vmatmul.bf16.gmra.mxu0 %v572
      %v1502 = vpop.f32.mrf.mxu0
      %v1503 = vadd.f32 0.0, %v1502
      %v1504 = vpop.f32.mrf.mxu0
      %v1505 = vadd.f32 0.0, %v1504
      %1506 = vmatmul.bf16.gmra.mxu0 %v575
      %v1507 = vpop.f32.mrf.mxu0
      %v1508 = vadd.f32 0.0, %v1507
      %v1509 = vpop.f32.mrf.mxu0
      %v1510 = vadd.f32 0.0, %v1509
      %1511 = vmatmul.bf16.gmra.mxu0 %v1145
      %v1512 = vpop.f32.mrf.mxu0
      %v1513 = vadd.f32 0.0, %v1512
      %v1514 = vpop.f32.mrf.mxu0
      %v1515 = vadd.f32 0.0, %v1514
      %1516 = vmatmul.bf16.gmra.mxu0 %v1461
      %v1517 = vpop.f32.mrf.mxu0
      %v1518 = vadd.f32 0.0, %v1517
      %v1519 = vpop.f32.mrf.mxu0
      %v1520 = vadd.f32 0.0, %v1519
      %1521 = vdwg.mxu0
      %v1522 = vadd.f32 %v1404, %v1473
      %v1523 = vadd.f32 %v1405, %v1475
      %v1524 = vadd.f32 %v1406, %v1478
      %v1525 = vadd.f32 %v1407, %v1480
      %v1526 = vadd.f32 %v1408, %v1483
      %v1527 = vadd.f32 %v1409, %v1485
      %v1528 = vadd.f32 %v1410, %v1488
      %v1529 = vadd.f32 %v1411, %v1490
      %v1530 = vadd.f32 %v1412, %v1493
      %v1531 = vadd.f32 %v1413, %v1495
      %v1532 = vadd.f32 %v1414, %v1498
      %v1533 = vadd.f32 %v1415, %v1500
      %v1534 = vadd.f32 %v1416, %v1503
      %v1535 = vadd.f32 %v1417, %v1505
      %v1536 = vadd.f32 %v1418, %v1508
      %v1537 = vadd.f32 %v1419, %v1510
      %v1538 = vadd.f32 %v1420, %v1513
      %v1539 = vadd.f32 %v1421, %v1515
      %v1540 = vadd.f32 %v1422, %v1518
      %v1541 = vadd.f32 %v1423, %v1520
      %v1543 = vrot.slane %v259, 5
      %v1544 = vrot.slane %v1543, 4
      %v1545 = vrot.slane %v260, 5
      %v1546 = vsel %vm793, %v1544, %v1545
      %v1547 = vrot.slane %v1545, 4
      %v1548 = vrot.slane %v261, 5
      %v1549 = vsel %vm793, %v1547, %v1548
      %s1550 = scalar_lea.vmem %s1, 64
      %v1551 = vld [vmem:[%s1550] sm:$0xf]
      %v1552 = vld [vmem:[%s1550 + $0x4] sm:$0xf]
      %v1553 = vunpack.c.l.b16 %v1546
      %v1554 = vunpack.c.l.b16 %v1549
      %v1555 = vpack.c.b16 %v1554, %v1553
      %v1558 = vunpack.c.l.b16 %v1551
      %v1559 = vunpack.c.l.b16 %v1552
      %v1560 = vpack.c.b16 %v1559, %v1558
      %v1563 = vsel %vm546, %v1555, 0
      %1565 = vmatpush.bf16.msra.mxu0 0
      %1566 = vmatpush.bf16.msra.mxu0 0
      %1567 = vmatpush.bf16.msra.mxu0 0
      %1568 = vmatpush.bf16.msra.mxu0 0
      %1569 = vmatpush.bf16.msra.mxu0 0
      %1570 = vmatpush.bf16.msra.mxu0 0
      %1571 = vmatpush.bf16.msra.mxu0 0
      %1572 = vmatpush.bf16.msra.mxu0 %v1560
      %1573 = vmatmul.bf16.gmra.mxu0 %v910
      %v1574 = vpop.f32.mrf.mxu0
      %v1575 = vadd.f32 0.0, %v1574
      %v1576 = vpop.f32.mrf.mxu0
      %v1577 = vadd.f32 0.0, %v1576
      %1578 = vmatmul.bf16.gmra.mxu0 %v913
      %v1579 = vpop.f32.mrf.mxu0
      %v1580 = vadd.f32 0.0, %v1579
      %v1581 = vpop.f32.mrf.mxu0
      %v1582 = vadd.f32 0.0, %v1581
      %1583 = vmatmul.bf16.gmra.mxu0 %v916
      %v1584 = vpop.f32.mrf.mxu0
      %v1585 = vadd.f32 0.0, %v1584
      %v1586 = vpop.f32.mrf.mxu0
      %v1587 = vadd.f32 0.0, %v1586
      %1588 = vmatmul.bf16.gmra.mxu0 %v919
      %v1589 = vpop.f32.mrf.mxu0
      %v1590 = vadd.f32 0.0, %v1589
      %v1591 = vpop.f32.mrf.mxu0
      %v1592 = vadd.f32 0.0, %v1591
      %1593 = vmatmul.bf16.gmra.mxu0 %v922
      %v1594 = vpop.f32.mrf.mxu0
      %v1595 = vadd.f32 0.0, %v1594
      %v1596 = vpop.f32.mrf.mxu0
      %v1597 = vadd.f32 0.0, %v1596
      %1598 = vmatmul.bf16.gmra.mxu0 %v925
      %v1599 = vpop.f32.mrf.mxu0
      %v1600 = vadd.f32 0.0, %v1599
      %v1601 = vpop.f32.mrf.mxu0
      %v1602 = vadd.f32 0.0, %v1601
      %1603 = vmatmul.bf16.gmra.mxu0 %v928
      %v1604 = vpop.f32.mrf.mxu0
      %v1605 = vadd.f32 0.0, %v1604
      %v1606 = vpop.f32.mrf.mxu0
      %v1607 = vadd.f32 0.0, %v1606
      %1608 = vmatmul.bf16.gmra.mxu0 %v931
      %v1609 = vpop.f32.mrf.mxu0
      %v1610 = vadd.f32 0.0, %v1609
      %v1611 = vpop.f32.mrf.mxu0
      %v1612 = vadd.f32 0.0, %v1611
      %1613 = vmatmul.bf16.gmra.mxu0 %v1247
      %v1614 = vpop.f32.mrf.mxu0
      %v1615 = vadd.f32 0.0, %v1614
      %v1616 = vpop.f32.mrf.mxu0
      %v1617 = vadd.f32 0.0, %v1616
      %1618 = vmatmul.bf16.gmra.mxu0 %v1563
      %v1619 = vpop.f32.mrf.mxu0
      %v1620 = vadd.f32 0.0, %v1619
      %v1621 = vpop.f32.mrf.mxu0
      %v1622 = vadd.f32 0.0, %v1621
      %1623 = vdwg.mxu0
      %v1624 = vadd.f32 %v1522, %v1575
      %v1625 = vadd.f32 %v1523, %v1577
      %v1626 = vadd.f32 %v1524, %v1580
      %v1627 = vadd.f32 %v1525, %v1582
      %v1628 = vadd.f32 %v1526, %v1585
      %v1629 = vadd.f32 %v1527, %v1587
      %v1630 = vadd.f32 %v1528, %v1590
      %v1631 = vadd.f32 %v1529, %v1592
      %v1632 = vadd.f32 %v1530, %v1595
      %v1633 = vadd.f32 %v1531, %v1597
      %v1634 = vadd.f32 %v1532, %v1600
      %v1635 = vadd.f32 %v1533, %v1602
      %v1636 = vadd.f32 %v1534, %v1605
      %v1637 = vadd.f32 %v1535, %v1607
      %v1638 = vadd.f32 %v1536, %v1610
      %v1639 = vadd.f32 %v1537, %v1612
      %v1640 = vadd.f32 %v1538, %v1615
      %v1641 = vadd.f32 %v1539, %v1617
      %v1642 = vadd.f32 %v1540, %v1620
      %v1643 = vadd.f32 %v1541, %v1622
      %v1644 = vld [vmem:[%s2] sm:$0x1]
      %v1646 = vperm.slane %v1644, 0
      %v1648 = vadd.f32 %v1624, %v1646
      %v1649 = vadd.f32 %v1625, %v1646
      %v1650 = vadd.f32 %v1626, %v1646
      %v1651 = vadd.f32 %v1627, %v1646
      %v1652 = vadd.f32 %v1628, %v1646
      %v1653 = vadd.f32 %v1629, %v1646
      %v1654 = vadd.f32 %v1630, %v1646
      %v1655 = vadd.f32 %v1631, %v1646
      %v1656 = vadd.f32 %v1632, %v1646
      %v1657 = vadd.f32 %v1633, %v1646
      %v1658 = vadd.f32 %v1634, %v1646
      %v1659 = vadd.f32 %v1635, %v1646
      %v1660 = vadd.f32 %v1636, %v1646
      %v1661 = vadd.f32 %v1637, %v1646
      %v1662 = vadd.f32 %v1638, %v1646
      %v1663 = vadd.f32 %v1639, %v1646
      %v1664 = vadd.f32 %v1640, %v1646
      %v1665 = vadd.f32 %v1641, %v1646
      %v1666 = vadd.f32 %v1642, %v1646
      %v1667 = vadd.f32 %v1643, %v1646
      %v1668 = vmax.f32 %v1648, 0.0
      %v1669 = vmax.f32 %v1649, 0.0
      %v1670 = vmax.f32 %v1650, 0.0
      %v1671 = vmax.f32 %v1651, 0.0
      %v1672 = vmax.f32 %v1652, 0.0
      %v1673 = vmax.f32 %v1653, 0.0
      %v1674 = vmax.f32 %v1654, 0.0
      %v1675 = vmax.f32 %v1655, 0.0
      %v1676 = vmax.f32 %v1656, 0.0
      %v1677 = vmax.f32 %v1657, 0.0
      %v1678 = vmax.f32 %v1658, 0.0
      %v1679 = vmax.f32 %v1659, 0.0
      %v1680 = vmax.f32 %v1660, 0.0
      %v1681 = vmax.f32 %v1661, 0.0
      %v1682 = vmax.f32 %v1662, 0.0
      %v1683 = vmax.f32 %v1663, 0.0
      %v1684 = vmax.f32 %v1664, 0.0
      %v1685 = vmax.f32 %v1665, 0.0
      %v1686 = vmax.f32 %v1666, 0.0
      %v1687 = vmax.f32 %v1667, 0.0
      %v1688 = vlaneseq
      %v1689 = vshrl.u32 %v1688, 7
      %v1690 = vadd.s32 %v1689, 8
      %vm1691 = vcmp.ge.s32.totalorder %v1689, 1
      %vm1692 = vcmp.ge.s32.totalorder %v1690, 1
      %vm1693 = vmand 0, %vm1691
      %vm1694 = vmand 0, %vm1692
      %vm1695 = vmand 1, %vm1691
      %vm1696 = vmand 1, %vm1692
      %vm1697 = vcmp.le.s32.totalorder %v1689, 8
      %vm1698 = vcmp.le.s32.totalorder %v1690, 8
      %vm1699 = vmand %vm1693, %vm1697
      %vm1700 = vmand %vm1694, %vm1698
      %vm1701 = vmand %vm1695, %vm1697
      %vm1702 = vmand %vm1696, %vm1698
      %v1703 = vsel %vm1699, %v1668, 0.0
      %v1704 = vsel %vm1700, %v1669, 0.0
      %v1705 = vsel %vm1701, %v1670, 0.0
      %v1706 = vsel %vm1702, %v1671, 0.0
      %v1707 = vsel %vm1701, %v1672, 0.0
      %v1708 = vsel %vm1702, %v1673, 0.0
      %v1709 = vsel %vm1701, %v1674, 0.0
      %v1710 = vsel %vm1702, %v1675, 0.0
      %v1711 = vsel %vm1701, %v1676, 0.0
      %v1712 = vsel %vm1702, %v1677, 0.0
      %v1713 = vsel %vm1701, %v1678, 0.0
      %v1714 = vsel %vm1702, %v1679, 0.0
      %v1715 = vsel %vm1701, %v1680, 0.0
      %v1716 = vsel %vm1702, %v1681, 0.0
      %v1717 = vsel %vm1701, %v1682, 0.0
      %v1718 = vsel %vm1702, %v1683, 0.0
      %v1719 = vsel %vm1701, %v1684, 0.0
      %v1720 = vsel %vm1702, %v1685, 0.0
      %v1721 = vsel %vm1699, %v1686, 0.0
      %v1722 = vsel %vm1700, %v1687, 0.0
      %v1723 = vpack.c.bf16 %v1703, %v1703
      %v1724 = vpack.c.bf16 %v1704, %v1704
      %v1725 = vpack.c.bf16 %v1705, %v1705
      %v1726 = vpack.c.bf16 %v1706, %v1706
      %v1727 = vpack.c.bf16 %v1707, %v1707
      %v1728 = vpack.c.bf16 %v1708, %v1708
      %v1729 = vpack.c.bf16 %v1709, %v1709
      %v1730 = vpack.c.bf16 %v1710, %v1710
      %v1731 = vpack.c.bf16 %v1711, %v1711
      %v1732 = vpack.c.bf16 %v1712, %v1712
      %v1733 = vpack.c.bf16 %v1713, %v1713
      %v1734 = vpack.c.bf16 %v1714, %v1714
      %v1735 = vpack.c.bf16 %v1715, %v1715
      %v1736 = vpack.c.bf16 %v1716, %v1716
      %v1737 = vpack.c.bf16 %v1717, %v1717
      %v1738 = vpack.c.bf16 %v1718, %v1718
      %v1739 = vpack.c.bf16 %v1719, %v1719
      %v1740 = vpack.c.bf16 %v1720, %v1720
      %v1741 = vpack.c.bf16 %v1721, %v1721
      %v1742 = vpack.c.bf16 %v1722, %v1722
      %v1743 = vld [vmem:[%s3] sm:$0xf]
      %v1744 = vld [vmem:[%s3 + $0x4] sm:$0xf]
      %v1746 = vshrl.u32 %v1723, 16
      %v1748 = vrot.slane %v1746, 4
      %v1749 = vshll.u32 %v1723, 16
      %v1751 = vrot.slane %v1749, 5
      %v1752 = vor.u32 %v1748, %v1751
      %v1753 = vrot.slane %v1752, 4
      %v1755 = vshll.u32 %v1724, 16
      %v1757 = vrot.slane %v1755, 5
      %v1758 = vsel %vm266, %v1753, %v1757
      %v1760 = vshrl.u32 %v1725, 16
      %v1762 = vrot.slane %v1760, 4
      %v1763 = vshll.u32 %v1725, 16
      %v1765 = vrot.slane %v1763, 5
      %v1766 = vor.u32 %v1762, %v1765
      %v1767 = vrot.slane %v1766, 4
      %v1769 = vshll.u32 %v1726, 16
      %v1771 = vrot.slane %v1769, 5
      %v1772 = vsel %vm266, %v1767, %v1771
      %v1774 = vshrl.u32 %v1727, 16
      %v1776 = vrot.slane %v1774, 4
      %v1777 = vshll.u32 %v1727, 16
      %v1779 = vrot.slane %v1777, 5
      %v1780 = vor.u32 %v1776, %v1779
      %v1781 = vrot.slane %v1780, 4
      %v1783 = vshll.u32 %v1728, 16
      %v1785 = vrot.slane %v1783, 5
      %v1786 = vsel %vm266, %v1781, %v1785
      %v1788 = vshrl.u32 %v1729, 16
      %v1790 = vrot.slane %v1788, 4
      %v1791 = vshll.u32 %v1729, 16
      %v1793 = vrot.slane %v1791, 5
      %v1794 = vor.u32 %v1790, %v1793
      %v1795 = vrot.slane %v1794, 4
      %v1797 = vshll.u32 %v1730, 16
      %v1799 = vrot.slane %v1797, 5
      %v1800 = vsel %vm266, %v1795, %v1799
      %v1802 = vshrl.u32 %v1731, 16
      %v1804 = vrot.slane %v1802, 4
      %v1805 = vshll.u32 %v1731, 16
      %v1807 = vrot.slane %v1805, 5
      %v1808 = vor.u32 %v1804, %v1807
      %v1809 = vrot.slane %v1808, 4
      %v1811 = vshll.u32 %v1732, 16
      %v1813 = vrot.slane %v1811, 5
      %v1814 = vsel %vm266, %v1809, %v1813
      %v1816 = vshrl.u32 %v1733, 16
      %v1818 = vrot.slane %v1816, 4
      %v1819 = vshll.u32 %v1733, 16
      %v1821 = vrot.slane %v1819, 5
      %v1822 = vor.u32 %v1818, %v1821
      %v1823 = vrot.slane %v1822, 4
      %v1825 = vshll.u32 %v1734, 16
      %v1827 = vrot.slane %v1825, 5
      %v1828 = vsel %vm266, %v1823, %v1827
      %v1830 = vshrl.u32 %v1735, 16
      %v1832 = vrot.slane %v1830, 4
      %v1833 = vshll.u32 %v1735, 16
      %v1835 = vrot.slane %v1833, 5
      %v1836 = vor.u32 %v1832, %v1835
      %v1837 = vrot.slane %v1836, 4
      %v1839 = vshll.u32 %v1736, 16
      %v1841 = vrot.slane %v1839, 5
      %v1842 = vsel %vm266, %v1837, %v1841
      %v1844 = vshrl.u32 %v1737, 16
      %v1846 = vrot.slane %v1844, 4
      %v1847 = vshll.u32 %v1737, 16
      %v1849 = vrot.slane %v1847, 5
      %v1850 = vor.u32 %v1846, %v1849
      %v1851 = vrot.slane %v1850, 4
      %v1853 = vshll.u32 %v1738, 16
      %v1855 = vrot.slane %v1853, 5
      %v1856 = vsel %vm266, %v1851, %v1855
      %s1857 = scalar_lea.vmem %s3, 8
      %v1858 = vld [vmem:[%s1857] sm:$0xf]
      %v1859 = vld [vmem:[%s1857 + $0x4] sm:$0xf]
      %v1860 = vunpack.c.l.b16 %v1758
      %v1861 = vunpack.c.l.b16 %v1772
      %v1862 = vunpack.c.l.b16 %v1786
      %v1863 = vunpack.c.l.b16 %v1800
      %v1864 = vunpack.c.l.b16 %v1814
      %v1865 = vunpack.c.l.b16 %v1828
      %v1866 = vunpack.c.l.b16 %v1842
      %v1867 = vunpack.c.l.b16 %v1856
      %v1868 = vpack.c.b16 %v1861, %v1860
      %v1869 = vpack.c.b16 %v1863, %v1862
      %v1870 = vpack.c.b16 %v1865, %v1864
      %v1871 = vpack.c.b16 %v1867, %v1866
      %v1874 = vunpack.c.l.b16 %v1858
      %v1875 = vunpack.c.l.b16 %v1859
      %v1876 = vpack.c.b16 %v1875, %v1874
      %v1879 = vsel %vm546, %v1868, 0
      %v1882 = vsel %vm546, %v1869, 0
      %v1885 = vsel %vm546, %v1870, 0
      %v1888 = vsel %vm546, %v1871, 0
      %1890 = vmatpush.bf16.msra.mxu0 0
      %1891 = vmatpush.bf16.msra.mxu0 0
      %1892 = vmatpush.bf16.msra.mxu0 0
      %1893 = vmatpush.bf16.msra.mxu0 0
      %1894 = vmatpush.bf16.msra.mxu0 0
      %1895 = vmatpush.bf16.msra.mxu0 0
      %1896 = vmatpush.bf16.msra.mxu0 0
      %1897 = vmatpush.bf16.msra.mxu0 %v1876
      %1898 = vmatmul.bf16.gmra.mxu0 %v1879
      %v1899 = vpop.f32.mrf.mxu0
      %v1900 = vadd.f32 0.0, %v1899
      %v1901 = vpop.f32.mrf.mxu0
      %v1902 = vadd.f32 0.0, %v1901
      %1903 = vmatmul.bf16.gmra.mxu0 %v1882
      %v1904 = vpop.f32.mrf.mxu0
      %v1905 = vadd.f32 0.0, %v1904
      %v1906 = vpop.f32.mrf.mxu0
      %v1907 = vadd.f32 0.0, %v1906
      %1908 = vmatmul.bf16.gmra.mxu0 %v1885
      %v1909 = vpop.f32.mrf.mxu0
      %v1910 = vadd.f32 0.0, %v1909
      %v1911 = vpop.f32.mrf.mxu0
      %v1912 = vadd.f32 0.0, %v1911
      %1913 = vmatmul.bf16.gmra.mxu0 %v1888
      %v1914 = vpop.f32.mrf.mxu0
      %v1915 = vadd.f32 0.0, %v1914
      %v1916 = vpop.f32.mrf.mxu0
      %v1917 = vadd.f32 0.0, %v1916
      %1918 = vdwg.mxu0
      %v1927 = vunpack.c.l.b16 %v1723
      %v1928 = vunpack.c.l.b16 %v1725
      %v1929 = vunpack.c.l.b16 %v1727
      %v1930 = vunpack.c.l.b16 %v1729
      %v1931 = vunpack.c.l.b16 %v1731
      %v1932 = vunpack.c.l.b16 %v1733
      %v1933 = vunpack.c.l.b16 %v1735
      %v1934 = vunpack.c.l.b16 %v1737
      %v1935 = vpack.c.b16 %v1928, %v1927
      %v1936 = vpack.c.b16 %v1930, %v1929
      %v1937 = vpack.c.b16 %v1932, %v1931
      %v1938 = vpack.c.b16 %v1934, %v1933
      %v1941 = vunpack.c.l.b16 %v1743
      %v1942 = vunpack.c.l.b16 %v1744
      %v1943 = vpack.c.b16 %v1942, %v1941
      %v1946 = vsel %vm546, %v1935, 0
      %v1949 = vsel %vm546, %v1936, 0
      %v1952 = vsel %vm546, %v1937, 0
      %v1955 = vsel %vm546, %v1938, 0
      %1957 = vmatpush.bf16.msra.mxu0 0
      %1958 = vmatpush.bf16.msra.mxu0 0
      %1959 = vmatpush.bf16.msra.mxu0 0
      %1960 = vmatpush.bf16.msra.mxu0 0
      %1961 = vmatpush.bf16.msra.mxu0 0
      %1962 = vmatpush.bf16.msra.mxu0 0
      %1963 = vmatpush.bf16.msra.mxu0 0
      %1964 = vmatpush.bf16.msra.mxu0 %v1943
      %1965 = vmatmul.bf16.gmra.mxu0 %v1946
      %v1966 = vpop.f32.mrf.mxu0
      %v1967 = vadd.f32 %v1900, %v1966
      %v1968 = vpop.f32.mrf.mxu0
      %v1969 = vadd.f32 %v1902, %v1968
      %1970 = vmatmul.bf16.gmra.mxu0 %v1949
      %v1971 = vpop.f32.mrf.mxu0
      %v1972 = vadd.f32 %v1905, %v1971
      %v1973 = vpop.f32.mrf.mxu0
      %v1974 = vadd.f32 %v1907, %v1973
      %1975 = vmatmul.bf16.gmra.mxu0 %v1952
      %v1976 = vpop.f32.mrf.mxu0
      %v1977 = vadd.f32 %v1910, %v1976
      %v1978 = vpop.f32.mrf.mxu0
      %v1979 = vadd.f32 %v1912, %v1978
      %1980 = vmatmul.bf16.gmra.mxu0 %v1955
      %v1981 = vpop.f32.mrf.mxu0
      %v1982 = vadd.f32 %v1915, %v1981
      %v1983 = vpop.f32.mrf.mxu0
      %v1984 = vadd.f32 %v1917, %v1983
      %1985 = vdwg.mxu0
      %v1994 = vrot.slane %v1723, 5
      %v1995 = vrot.slane %v1994, 4
      %v1996 = vrot.slane %v1724, 5
      %v1997 = vsel %vm793, %v1995, %v1996
      %v1998 = vrot.slane %v1725, 5
      %v1999 = vrot.slane %v1998, 4
      %v2000 = vrot.slane %v1726, 5
      %v2001 = vsel %vm793, %v1999, %v2000
      %v2002 = vrot.slane %v1727, 5
      %v2003 = vrot.slane %v2002, 4
      %v2004 = vrot.slane %v1728, 5
      %v2005 = vsel %vm793, %v2003, %v2004
      %v2006 = vrot.slane %v1729, 5
      %v2007 = vrot.slane %v2006, 4
      %v2008 = vrot.slane %v1730, 5
      %v2009 = vsel %vm793, %v2007, %v2008
      %v2010 = vrot.slane %v1731, 5
      %v2011 = vrot.slane %v2010, 4
      %v2012 = vrot.slane %v1732, 5
      %v2013 = vsel %vm793, %v2011, %v2012
      %v2014 = vrot.slane %v1733, 5
      %v2015 = vrot.slane %v2014, 4
      %v2016 = vrot.slane %v1734, 5
      %v2017 = vsel %vm793, %v2015, %v2016
      %v2018 = vrot.slane %v1735, 5
      %v2019 = vrot.slane %v2018, 4
      %v2020 = vrot.slane %v1736, 5
      %v2021 = vsel %vm793, %v2019, %v2020
      %v2022 = vrot.slane %v1737, 5
      %v2023 = vrot.slane %v2022, 4
      %v2024 = vrot.slane %v1738, 5
      %v2025 = vsel %vm793, %v2023, %v2024
      %s2026 = scalar_lea.vmem %s3, 16
      %v2027 = vld [vmem:[%s2026] sm:$0xf]
      %v2028 = vld [vmem:[%s2026 + $0x4] sm:$0xf]
      %v2029 = vunpack.c.l.b16 %v1997
      %v2030 = vunpack.c.l.b16 %v2001
      %v2031 = vunpack.c.l.b16 %v2005
      %v2032 = vunpack.c.l.b16 %v2009
      %v2033 = vunpack.c.l.b16 %v2013
      %v2034 = vunpack.c.l.b16 %v2017
      %v2035 = vunpack.c.l.b16 %v2021
      %v2036 = vunpack.c.l.b16 %v2025
      %v2037 = vpack.c.b16 %v2030, %v2029
      %v2038 = vpack.c.b16 %v2032, %v2031
      %v2039 = vpack.c.b16 %v2034, %v2033
      %v2040 = vpack.c.b16 %v2036, %v2035
      %v2043 = vunpack.c.l.b16 %v2027
      %v2044 = vunpack.c.l.b16 %v2028
      %v2045 = vpack.c.b16 %v2044, %v2043
      %v2048 = vsel %vm546, %v2037, 0
      %v2051 = vsel %vm546, %v2038, 0
      %v2054 = vsel %vm546, %v2039, 0
      %v2057 = vsel %vm546, %v2040, 0
      %2059 = vmatpush.bf16.msra.mxu0 0
      %2060 = vmatpush.bf16.msra.mxu0 0
      %2061 = vmatpush.bf16.msra.mxu0 0
      %2062 = vmatpush.bf16.msra.mxu0 0
      %2063 = vmatpush.bf16.msra.mxu0 0
      %2064 = vmatpush.bf16.msra.mxu0 0
      %2065 = vmatpush.bf16.msra.mxu0 0
      %2066 = vmatpush.bf16.msra.mxu0 %v2045
      %2067 = vmatmul.bf16.gmra.mxu0 %v2048
      %v2068 = vpop.f32.mrf.mxu0
      %v2069 = vadd.f32 0.0, %v2068
      %v2070 = vpop.f32.mrf.mxu0
      %v2071 = vadd.f32 0.0, %v2070
      %2072 = vmatmul.bf16.gmra.mxu0 %v2051
      %v2073 = vpop.f32.mrf.mxu0
      %v2074 = vadd.f32 0.0, %v2073
      %v2075 = vpop.f32.mrf.mxu0
      %v2076 = vadd.f32 0.0, %v2075
      %2077 = vmatmul.bf16.gmra.mxu0 %v2054
      %v2078 = vpop.f32.mrf.mxu0
      %v2079 = vadd.f32 0.0, %v2078
      %v2080 = vpop.f32.mrf.mxu0
      %v2081 = vadd.f32 0.0, %v2080
      %2082 = vmatmul.bf16.gmra.mxu0 %v2057
      %v2083 = vpop.f32.mrf.mxu0
      %v2084 = vadd.f32 0.0, %v2083
      %v2085 = vpop.f32.mrf.mxu0
      %v2086 = vadd.f32 0.0, %v2085
      %2087 = vdwg.mxu0
      %v2088 = vadd.f32 %v1967, %v2069
      %v2089 = vadd.f32 %v1969, %v2071
      %v2090 = vadd.f32 %v1972, %v2074
      %v2091 = vadd.f32 %v1974, %v2076
      %v2092 = vadd.f32 %v1977, %v2079
      %v2093 = vadd.f32 %v1979, %v2081
      %v2094 = vadd.f32 %v1982, %v2084
      %v2095 = vadd.f32 %v1984, %v2086
      %s2096 = scalar_lea.vmem %s3, 24
      %v2097 = vld [vmem:[%s2096] sm:$0xf]
      %v2098 = vld [vmem:[%s2096 + $0x4] sm:$0xf]
      %v2100 = vunpack.c.l.b16 %v1739
      %v2101 = vpack.c.b16 %v1929, %v1928
      %v2102 = vpack.c.b16 %v1931, %v1930
      %v2103 = vpack.c.b16 %v1933, %v1932
      %v2104 = vpack.c.b16 %v2100, %v1934
      %v2107 = vunpack.c.l.b16 %v2097
      %v2108 = vunpack.c.l.b16 %v2098
      %v2109 = vpack.c.b16 %v2108, %v2107
      %v2112 = vsel %vm546, %v2101, 0
      %v2115 = vsel %vm546, %v2102, 0
      %v2118 = vsel %vm546, %v2103, 0
      %v2121 = vsel %vm546, %v2104, 0
      %2123 = vmatpush.bf16.msra.mxu0 0
      %2124 = vmatpush.bf16.msra.mxu0 0
      %2125 = vmatpush.bf16.msra.mxu0 0
      %2126 = vmatpush.bf16.msra.mxu0 0
      %2127 = vmatpush.bf16.msra.mxu0 0
      %2128 = vmatpush.bf16.msra.mxu0 0
      %2129 = vmatpush.bf16.msra.mxu0 0
      %2130 = vmatpush.bf16.msra.mxu0 %v2109
      %2131 = vmatmul.bf16.gmra.mxu0 %v2112
      %v2132 = vpop.f32.mrf.mxu0
      %v2133 = vadd.f32 0.0, %v2132
      %v2134 = vpop.f32.mrf.mxu0
      %v2135 = vadd.f32 0.0, %v2134
      %2136 = vmatmul.bf16.gmra.mxu0 %v2115
      %v2137 = vpop.f32.mrf.mxu0
      %v2138 = vadd.f32 0.0, %v2137
      %v2139 = vpop.f32.mrf.mxu0
      %v2140 = vadd.f32 0.0, %v2139
      %2141 = vmatmul.bf16.gmra.mxu0 %v2118
      %v2142 = vpop.f32.mrf.mxu0
      %v2143 = vadd.f32 0.0, %v2142
      %v2144 = vpop.f32.mrf.mxu0
      %v2145 = vadd.f32 0.0, %v2144
      %2146 = vmatmul.bf16.gmra.mxu0 %v2121
      %v2147 = vpop.f32.mrf.mxu0
      %v2148 = vadd.f32 0.0, %v2147
      %v2149 = vpop.f32.mrf.mxu0
      %v2150 = vadd.f32 0.0, %v2149
      %2151 = vdwg.mxu0
      %v2152 = vadd.f32 %v2088, %v2133
      %v2153 = vadd.f32 %v2089, %v2135
      %v2154 = vadd.f32 %v2090, %v2138
      %v2155 = vadd.f32 %v2091, %v2140
      %v2156 = vadd.f32 %v2092, %v2143
      %v2157 = vadd.f32 %v2093, %v2145
      %v2158 = vadd.f32 %v2094, %v2148
      %v2159 = vadd.f32 %v2095, %v2150
      %v2161 = vshrl.u32 %v1739, 16
      %v2163 = vrot.slane %v2161, 4
      %v2164 = vshll.u32 %v1739, 16
      %v2166 = vrot.slane %v2164, 5
      %v2167 = vor.u32 %v2163, %v2166
      %v2168 = vrot.slane %v2167, 4
      %v2170 = vshll.u32 %v1740, 16
      %v2172 = vrot.slane %v2170, 5
      %v2173 = vsel %vm266, %v2168, %v2172
      %s2174 = scalar_lea.vmem %s3, 32
      %v2175 = vld [vmem:[%s2174] sm:$0xf]
      %v2176 = vld [vmem:[%s2174 + $0x4] sm:$0xf]
      %v2177 = vunpack.c.l.b16 %v2173
      %v2178 = vpack.c.b16 %v1862, %v1861
      %v2179 = vpack.c.b16 %v1864, %v1863
      %v2180 = vpack.c.b16 %v1866, %v1865
      %v2181 = vpack.c.b16 %v2177, %v1867
      %v2184 = vunpack.c.l.b16 %v2175
      %v2185 = vunpack.c.l.b16 %v2176
      %v2186 = vpack.c.b16 %v2185, %v2184
      %v2189 = vsel %vm546, %v2178, 0
      %v2192 = vsel %vm546, %v2179, 0
      %v2195 = vsel %vm546, %v2180, 0
      %v2198 = vsel %vm546, %v2181, 0
      %2200 = vmatpush.bf16.msra.mxu0 0
      %2201 = vmatpush.bf16.msra.mxu0 0
      %2202 = vmatpush.bf16.msra.mxu0 0
      %2203 = vmatpush.bf16.msra.mxu0 0
      %2204 = vmatpush.bf16.msra.mxu0 0
      %2205 = vmatpush.bf16.msra.mxu0 0
      %2206 = vmatpush.bf16.msra.mxu0 0
      %2207 = vmatpush.bf16.msra.mxu0 %v2186
      %2208 = vmatmul.bf16.gmra.mxu0 %v2189
      %v2209 = vpop.f32.mrf.mxu0
      %v2210 = vadd.f32 0.0, %v2209
      %v2211 = vpop.f32.mrf.mxu0
      %v2212 = vadd.f32 0.0, %v2211
      %2213 = vmatmul.bf16.gmra.mxu0 %v2192
      %v2214 = vpop.f32.mrf.mxu0
      %v2215 = vadd.f32 0.0, %v2214
      %v2216 = vpop.f32.mrf.mxu0
      %v2217 = vadd.f32 0.0, %v2216
      %2218 = vmatmul.bf16.gmra.mxu0 %v2195
      %v2219 = vpop.f32.mrf.mxu0
      %v2220 = vadd.f32 0.0, %v2219
      %v2221 = vpop.f32.mrf.mxu0
      %v2222 = vadd.f32 0.0, %v2221
      %2223 = vmatmul.bf16.gmra.mxu0 %v2198
      %v2224 = vpop.f32.mrf.mxu0
      %v2225 = vadd.f32 0.0, %v2224
      %v2226 = vpop.f32.mrf.mxu0
      %v2227 = vadd.f32 0.0, %v2226
      %2228 = vdwg.mxu0
      %v2229 = vadd.f32 %v2152, %v2210
      %v2230 = vadd.f32 %v2153, %v2212
      %v2231 = vadd.f32 %v2154, %v2215
      %v2232 = vadd.f32 %v2155, %v2217
      %v2233 = vadd.f32 %v2156, %v2220
      %v2234 = vadd.f32 %v2157, %v2222
      %v2235 = vadd.f32 %v2158, %v2225
      %v2236 = vadd.f32 %v2159, %v2227
      %v2238 = vrot.slane %v1739, 5
      %v2239 = vrot.slane %v2238, 4
      %v2240 = vrot.slane %v1740, 5
      %v2241 = vsel %vm793, %v2239, %v2240
      %s2242 = scalar_lea.vmem %s3, 40
      %v2243 = vld [vmem:[%s2242] sm:$0xf]
      %v2244 = vld [vmem:[%s2242 + $0x4] sm:$0xf]
      %v2245 = vunpack.c.l.b16 %v2241
      %v2246 = vpack.c.b16 %v2031, %v2030
      %v2247 = vpack.c.b16 %v2033, %v2032
      %v2248 = vpack.c.b16 %v2035, %v2034
      %v2249 = vpack.c.b16 %v2245, %v2036
      %v2252 = vunpack.c.l.b16 %v2243
      %v2253 = vunpack.c.l.b16 %v2244
      %v2254 = vpack.c.b16 %v2253, %v2252
      %v2257 = vsel %vm546, %v2246, 0
      %v2260 = vsel %vm546, %v2247, 0
      %v2263 = vsel %vm546, %v2248, 0
      %v2266 = vsel %vm546, %v2249, 0
      %2268 = vmatpush.bf16.msra.mxu0 0
      %2269 = vmatpush.bf16.msra.mxu0 0
      %2270 = vmatpush.bf16.msra.mxu0 0
      %2271 = vmatpush.bf16.msra.mxu0 0
      %2272 = vmatpush.bf16.msra.mxu0 0
      %2273 = vmatpush.bf16.msra.mxu0 0
      %2274 = vmatpush.bf16.msra.mxu0 0
      %2275 = vmatpush.bf16.msra.mxu0 %v2254
      %2276 = vmatmul.bf16.gmra.mxu0 %v2257
      %v2277 = vpop.f32.mrf.mxu0
      %v2278 = vadd.f32 0.0, %v2277
      %v2279 = vpop.f32.mrf.mxu0
      %v2280 = vadd.f32 0.0, %v2279
      %2281 = vmatmul.bf16.gmra.mxu0 %v2260
      %v2282 = vpop.f32.mrf.mxu0
      %v2283 = vadd.f32 0.0, %v2282
      %v2284 = vpop.f32.mrf.mxu0
      %v2285 = vadd.f32 0.0, %v2284
      %2286 = vmatmul.bf16.gmra.mxu0 %v2263
      %v2287 = vpop.f32.mrf.mxu0
      %v2288 = vadd.f32 0.0, %v2287
      %v2289 = vpop.f32.mrf.mxu0
      %v2290 = vadd.f32 0.0, %v2289
      %2291 = vmatmul.bf16.gmra.mxu0 %v2266
      %v2292 = vpop.f32.mrf.mxu0
      %v2293 = vadd.f32 0.0, %v2292
      %v2294 = vpop.f32.mrf.mxu0
      %v2295 = vadd.f32 0.0, %v2294
      %2296 = vdwg.mxu0
      %v2297 = vadd.f32 %v2229, %v2278
      %v2298 = vadd.f32 %v2230, %v2280
      %v2299 = vadd.f32 %v2231, %v2283
      %v2300 = vadd.f32 %v2232, %v2285
      %v2301 = vadd.f32 %v2233, %v2288
      %v2302 = vadd.f32 %v2234, %v2290
      %v2303 = vadd.f32 %v2235, %v2293
      %v2304 = vadd.f32 %v2236, %v2295
      %s2305 = scalar_lea.vmem %s3, 48
      %v2306 = vld [vmem:[%s2305] sm:$0xf]
      %v2307 = vld [vmem:[%s2305 + $0x4] sm:$0xf]
      %v2309 = vunpack.c.l.b16 %v1741
      %v2310 = vpack.c.b16 %v2309, %v2100
      %v2313 = vunpack.c.l.b16 %v2306
      %v2314 = vunpack.c.l.b16 %v2307
      %v2315 = vpack.c.b16 %v2314, %v2313
      %v2318 = vsel %vm546, %v2310, 0
      %2320 = vmatpush.bf16.msra.mxu0 0
      %2321 = vmatpush.bf16.msra.mxu0 0
      %2322 = vmatpush.bf16.msra.mxu0 0
      %2323 = vmatpush.bf16.msra.mxu0 0
      %2324 = vmatpush.bf16.msra.mxu0 0
      %2325 = vmatpush.bf16.msra.mxu0 0
      %2326 = vmatpush.bf16.msra.mxu0 0
      %2327 = vmatpush.bf16.msra.mxu0 %v2315
      %2328 = vmatmul.bf16.gmra.mxu0 %v1949
      %v2329 = vpop.f32.mrf.mxu0
      %v2330 = vadd.f32 0.0, %v2329
      %v2331 = vpop.f32.mrf.mxu0
      %v2332 = vadd.f32 0.0, %v2331
      %2333 = vmatmul.bf16.gmra.mxu0 %v1952
      %v2334 = vpop.f32.mrf.mxu0
      %v2335 = vadd.f32 0.0, %v2334
      %v2336 = vpop.f32.mrf.mxu0
      %v2337 = vadd.f32 0.0, %v2336
      %2338 = vmatmul.bf16.gmra.mxu0 %v1955
      %v2339 = vpop.f32.mrf.mxu0
      %v2340 = vadd.f32 0.0, %v2339
      %v2341 = vpop.f32.mrf.mxu0
      %v2342 = vadd.f32 0.0, %v2341
      %2343 = vmatmul.bf16.gmra.mxu0 %v2318
      %v2344 = vpop.f32.mrf.mxu0
      %v2345 = vadd.f32 0.0, %v2344
      %v2346 = vpop.f32.mrf.mxu0
      %v2347 = vadd.f32 0.0, %v2346
      %2348 = vdwg.mxu0
      %v2349 = vadd.f32 %v2297, %v2330
      %v2350 = vadd.f32 %v2298, %v2332
      %v2351 = vadd.f32 %v2299, %v2335
      %v2352 = vadd.f32 %v2300, %v2337
      %v2353 = vadd.f32 %v2301, %v2340
      %v2354 = vadd.f32 %v2302, %v2342
      %v2355 = vadd.f32 %v2303, %v2345
      %v2356 = vadd.f32 %v2304, %v2347
      %v2358 = vshrl.u32 %v1741, 16
      %v2360 = vrot.slane %v2358, 4
      %v2361 = vshll.u32 %v1741, 16
      %v2363 = vrot.slane %v2361, 5
      %v2364 = vor.u32 %v2360, %v2363
      %v2365 = vrot.slane %v2364, 4
      %v2367 = vshll.u32 %v1742, 16
      %v2369 = vrot.slane %v2367, 5
      %v2370 = vsel %vm266, %v2365, %v2369
      %s2371 = scalar_lea.vmem %s3, 56
      %v2372 = vld [vmem:[%s2371] sm:$0xf]
      %v2373 = vld [vmem:[%s2371 + $0x4] sm:$0xf]
      %v2374 = vunpack.c.l.b16 %v2370
      %v2375 = vpack.c.b16 %v2374, %v2177
      %v2378 = vunpack.c.l.b16 %v2372
      %v2379 = vunpack.c.l.b16 %v2373
      %v2380 = vpack.c.b16 %v2379, %v2378
      %v2383 = vsel %vm546, %v2375, 0
      %2385 = vmatpush.bf16.msra.mxu0 0
      %2386 = vmatpush.bf16.msra.mxu0 0
      %2387 = vmatpush.bf16.msra.mxu0 0
      %2388 = vmatpush.bf16.msra.mxu0 0
      %2389 = vmatpush.bf16.msra.mxu0 0
      %2390 = vmatpush.bf16.msra.mxu0 0
      %2391 = vmatpush.bf16.msra.mxu0 0
      %2392 = vmatpush.bf16.msra.mxu0 %v2380
      %2393 = vmatmul.bf16.gmra.mxu0 %v1882
      %v2394 = vpop.f32.mrf.mxu0
      %v2395 = vadd.f32 0.0, %v2394
      %v2396 = vpop.f32.mrf.mxu0
      %v2397 = vadd.f32 0.0, %v2396
      %2398 = vmatmul.bf16.gmra.mxu0 %v1885
      %v2399 = vpop.f32.mrf.mxu0
      %v2400 = vadd.f32 0.0, %v2399
      %v2401 = vpop.f32.mrf.mxu0
      %v2402 = vadd.f32 0.0, %v2401
      %2403 = vmatmul.bf16.gmra.mxu0 %v1888
      %v2404 = vpop.f32.mrf.mxu0
      %v2405 = vadd.f32 0.0, %v2404
      %v2406 = vpop.f32.mrf.mxu0
      %v2407 = vadd.f32 0.0, %v2406
      %2408 = vmatmul.bf16.gmra.mxu0 %v2383
      %v2409 = vpop.f32.mrf.mxu0
      %v2410 = vadd.f32 0.0, %v2409
      %v2411 = vpop.f32.mrf.mxu0
      %v2412 = vadd.f32 0.0, %v2411
      %2413 = vdwg.mxu0
      %v2414 = vadd.f32 %v2349, %v2395
      %v2415 = vadd.f32 %v2350, %v2397
      %v2416 = vadd.f32 %v2351, %v2400
      %v2417 = vadd.f32 %v2352, %v2402
      %v2418 = vadd.f32 %v2353, %v2405
      %v2419 = vadd.f32 %v2354, %v2407
      %v2420 = vadd.f32 %v2355, %v2410
      %v2421 = vadd.f32 %v2356, %v2412
      %v2423 = vrot.slane %v1741, 5
      %v2424 = vrot.slane %v2423, 4
      %v2425 = vrot.slane %v1742, 5
      %v2426 = vsel %vm793, %v2424, %v2425
      %s2427 = scalar_lea.vmem %s3, 64
      %v2428 = vld [vmem:[%s2427] sm:$0xf]
      %v2429 = vld [vmem:[%s2427 + $0x4] sm:$0xf]
      %v2430 = vunpack.c.l.b16 %v2426
      %v2431 = vpack.c.b16 %v2430, %v2245
      %v2434 = vunpack.c.l.b16 %v2428
      %v2435 = vunpack.c.l.b16 %v2429
      %v2436 = vpack.c.b16 %v2435, %v2434
      %v2439 = vsel %vm546, %v2431, 0
      %2441 = vmatpush.bf16.msra.mxu0 0
      %2442 = vmatpush.bf16.msra.mxu0 0
      %2443 = vmatpush.bf16.msra.mxu0 0
      %2444 = vmatpush.bf16.msra.mxu0 0
      %2445 = vmatpush.bf16.msra.mxu0 0
      %2446 = vmatpush.bf16.msra.mxu0 0
      %2447 = vmatpush.bf16.msra.mxu0 0
      %2448 = vmatpush.bf16.msra.mxu0 %v2436
      %2449 = vmatmul.bf16.gmra.mxu0 %v2051
      %v2450 = vpop.f32.mrf.mxu0
      %v2451 = vadd.f32 0.0, %v2450
      %v2452 = vpop.f32.mrf.mxu0
      %v2453 = vadd.f32 0.0, %v2452
      %2454 = vmatmul.bf16.gmra.mxu0 %v2054
      %v2455 = vpop.f32.mrf.mxu0
      %v2456 = vadd.f32 0.0, %v2455
      %v2457 = vpop.f32.mrf.mxu0
      %v2458 = vadd.f32 0.0, %v2457
      %2459 = vmatmul.bf16.gmra.mxu0 %v2057
      %v2460 = vpop.f32.mrf.mxu0
      %v2461 = vadd.f32 0.0, %v2460
      %v2462 = vpop.f32.mrf.mxu0
      %v2463 = vadd.f32 0.0, %v2462
      %2464 = vmatmul.bf16.gmra.mxu0 %v2439
      %v2465 = vpop.f32.mrf.mxu0
      %v2466 = vadd.f32 0.0, %v2465
      %v2467 = vpop.f32.mrf.mxu0
      %v2468 = vadd.f32 0.0, %v2467
      %2469 = vdwg.mxu0
      %v2470 = vadd.f32 %v2414, %v2451
      %v2471 = vadd.f32 %v2415, %v2453
      %v2472 = vadd.f32 %v2416, %v2456
      %v2473 = vadd.f32 %v2417, %v2458
      %v2474 = vadd.f32 %v2418, %v2461
      %v2475 = vadd.f32 %v2419, %v2463
      %v2476 = vadd.f32 %v2420, %v2466
      %v2477 = vadd.f32 %v2421, %v2468
      %v2486 = vunpack.c.l.bf16 %v811
      %v2487 = vunpack.c.l.bf16 %v818
      %v2488 = vunpack.c.l.bf16 %v825
      %v2489 = vunpack.c.l.bf16 %v832
      %v2490 = vunpack.c.l.bf16 %v839
      %v2491 = vunpack.c.l.bf16 %v846
      %v2492 = vunpack.c.l.bf16 %v853
      %v2493 = vunpack.c.l.bf16 %v860
      %v2494 = vld [vmem:[%s4] sm:$0x1]
      %v2496 = vperm.slane %v2494, 0
      %v2498 = vadd.f32 %v2470, %v2496
      %v2499 = vadd.f32 %v2471, %v2496
      %v2500 = vadd.f32 %v2472, %v2496
      %v2501 = vadd.f32 %v2473, %v2496
      %v2502 = vadd.f32 %v2474, %v2496
      %v2503 = vadd.f32 %v2475, %v2496
      %v2504 = vadd.f32 %v2476, %v2496
      %v2505 = vadd.f32 %v2477, %v2496
      %v2506 = vadd.f32 %v2498, %v2486
      %v2507 = vadd.f32 %v2499, %v2487
      %v2508 = vadd.f32 %v2500, %v2488
      %v2509 = vadd.f32 %v2501, %v2489
      %v2510 = vadd.f32 %v2502, %v2490
      %v2511 = vadd.f32 %v2503, %v2491
      %v2512 = vadd.f32 %v2504, %v2492
      %v2513 = vadd.f32 %v2505, %v2493
      %v2514 = vmax.f32 %v2506, 0.0
      %v2515 = vmax.f32 %v2507, 0.0
      %v2516 = vmax.f32 %v2508, 0.0
      %v2517 = vmax.f32 %v2509, 0.0
      %v2518 = vmax.f32 %v2510, 0.0
      %v2519 = vmax.f32 %v2511, 0.0
      %v2520 = vmax.f32 %v2512, 0.0
      %v2521 = vmax.f32 %v2513, 0.0
      %v2522 = vpack.c.bf16 %v2514, %v2514
      %v2523 = vpack.c.bf16 %v2515, %v2515
      %v2524 = vpack.c.bf16 %v2516, %v2516
      %v2525 = vpack.c.bf16 %v2517, %v2517
      %v2526 = vpack.c.bf16 %v2518, %v2518
      %v2527 = vpack.c.bf16 %v2519, %v2519
      %v2528 = vpack.c.bf16 %v2520, %v2520
      %v2529 = vpack.c.bf16 %v2521, %v2521
      %vm2530 = vcmask 125952
      %2531 = vst.msk [vmem:[%s224] sm:$0xf] %vm2530, %v2522
      %2532 = vst.msk [vmem:[%s224 + $0x4] sm:$0xf] %vm2530, %v2523
      %2533 = vst.msk [vmem:[%s224 + $0x8] sm:$0xf] %vm2530, %v2524
      %2534 = vst.msk [vmem:[%s224 + $0xc] sm:$0xf] %vm2530, %v2525
      %2535 = vst.msk [vmem:[%s224 + $0x10] sm:$0xf] %vm2530, %v2526
      %2536 = vst.msk [vmem:[%s224 + $0x14] sm:$0xf] %vm2530, %v2527
      %2537 = vst.msk [vmem:[%s224 + $0x18] sm:$0xf] %vm2530, %v2528
      %2538 = vst.msk [vmem:[%s224 + $0x1c] sm:$0xf] %vm2530, %v2529
      %p2539 = scmp.lt.s32.totalorder %s16, 1
      %s2540 = scalar_select %p2539, %s16, 1
      %s2541 = smul.addr %s2540, 8
      %s2542 = smul.addr %s2541, 4
      %s2543 = scalar_lea.vmem %s5, %s2542
      // Predicated region
      $region41: #{carn_forward.8} parent=39 // pred_check
        %p2544 = pneg %p144
      $region42: #{carn_forward.8} parent=39 // pred_check_branch
        %2546 = sbr.rel (%p2544) target = $region44
      $region43: #{carn_forward.8} parent=39 // pred_region
        _
      $region44: #{carn_forward.8} parent=39 // pred_fallthru
        _
    $region40: #{carn_forward.8} parent=5 // pred_fallthru
      _
    %p2547 = scmp.le.s32.totalorder 2, %s11
    // Predicated region
    $region45: #{carn_forward.8} parent=5 // pred_check
      %p2548 = pneg %p2547
    $region46: #{carn_forward.8} parent=5 // pred_check_branch
      %2550 = sbr.rel (%p2548) target = $region48
    $region47: #{carn_forward.8} parent=5 // pred_region
      %s2551 = ssub.s32 %s11, 2
      // Predicated region
      $region49: #{carn_forward.8} parent=47 // pred_check
        %p2552 = pneg %p150
      $region50: #{carn_forward.8} parent=47 // pred_check_branch
        %2554 = sbr.rel (%p2552) target = $region52
      $region51: #{carn_forward.8} parent=47 // pred_region
        %p2555 = scmp.lt.s32.totalorder %s17, 1
        %s2556 = scalar_select %p2555, %s17, 1
        %s2557 = smul.addr %s2556, 8
        %s2558 = smul.addr %s2557, 4
        %s2559 = scalar_lea.vmem %s5, %s2558
      $region52: #{carn_forward.8} parent=47 // pred_fallthru
        _
    $region48: #{carn_forward.8} parent=5 // pred_fallthru
      _
  $region6: #{carn_forward.8} parent=0 // loop_footer
    %s15 = sadd.s32 1, %s11
  $region7: #{carn_forward.8} parent=0 // loop_footer_branch
    %10 = sbr.rel target = $region3
  $region8: #{carn_forward.8} parent=0 // loop_exit
    _

// kernel: carn_forward.12
$region0: #{carn_forward.12}
  #allocation0 [shape = 'u32[]', space=smem, size = 0x4, offset = 0x4, fixed_abs, tag = 'smem constant byte address 0x4 - core index']
  #allocation1 [shape = 'u32[72,128]{1,0:T(1,128)}', space=vmem, size = 0x9000, scoped, tag = 'internal scratch']
  %s0 = inlined_call_operand.vmem [shape: bf16[2,10,10,16], index: 0, kind: input, shape index: {}]
  %s1 = inlined_call_operand.vmem [shape: bf16[9,16,64], index: 1, kind: input, shape index: {}]
  %s2 = inlined_call_operand.vmem [shape: f32[1,64], index: 2, kind: input, shape index: {}]
  %s3 = inlined_call_operand.vmem [shape: bf16[2,8,8,64], index: 3, kind: output, shape index: {}]
  %s4 = sld [smem:[#allocation0]]
  $region45: #{carn_forward.12} parent=0
    _
  %s6 = ssub.s32 1, %s4
  %s7 = scalar_select 0, %s6, %s4
  loop: start=0, step=1, limit=4
  $region2: #{carn_forward.12} parent=0 // loop_pre_header
    _
  $region3: #{carn_forward.12} parent=0 // loop_header
    %s9 = sphi 0, %s13
    %p10 = scmp.ge.s32.totalorder %s9, 4
    %s19 = sphi 0, %s21
    %s22 = sphi 0, %s19
    %s23 = sphi 0, %s22
    %s39 = sphi 0, %s23
    %s43 = sphi 0, %s43
    %s45 = sphi 0, %s43
    %s46 = sphi 0, %s45
    %s60 = sphi 0, %s46
    %s64 = sphi 0, %s64
    %s66 = sphi 0, %s64
    %s67 = sphi 0, %s66
    %s81 = sphi 0, %s67
    %s87 = sphi 0, %s89
    %s90 = sphi 0, %s87
    %s91 = sphi 0, %s90
    %s107 = sphi 0, %s91
  $region4: #{carn_forward.12} parent=0 // loop_header_branch
    %12 = sbr.rel (%p10) target = $region8
  $region5: #{carn_forward.12} parent=0 // loop_body
    %s14 = ssub.s32 %s9, 1
    %s15 = ssub.s32 %s9, 2
    %s16 = sadd.s32 %s9, 1
    %s17 = ssub.s32 %s9, %s16
    %p18 = scmp.eq.s32.totalorder %s17, 0
    %s20 = sadd.s32 %s19, 1
    %s21 = scalar_select %p18, %s19, %s20
    %p24 = pneg %p18
    %p25 = scmp.eq.s32.totalorder %s9, 1
    %p26 = por %p24, %p25
    %p27 = scmp.ne.s32.totalorder %s19, %s22
    %p28 = scmp.eq.s32.totalorder %s9, 0
    %p29 = por %p27, %p28
    %p30 = scmp.ne.s32.totalorder %s19, %s22
    %p31 = scmp.eq.s32.totalorder %s14, 1
    %p32 = por %p30, %p31
    %p33 = scmp.ne.s32.totalorder %s22, %s23
    %p34 = scmp.eq.s32.totalorder %s14, 0
    %p35 = por %p33, %p34
    %p36 = scmp.ne.s32.totalorder %s22, %s23
    %p37 = scmp.eq.s32.totalorder %s15, 1
    %p38 = por %p36, %p37
    %p40 = scmp.ne.s32.totalorder %s23, %s39
    %p41 = scmp.eq.s32.totalorder %s15, 0
    %p42 = por %p40, %p41
    %s44 = sadd.s32 %s43, 1
    %p47 = scmp.eq.s32.totalorder %s9, 1
    %p48 = scmp.ne.s32.totalorder %s43, %s45
    %p49 = scmp.eq.s32.totalorder %s9, 0
    %p50 = por %p48, %p49
    %p51 = scmp.ne.s32.totalorder %s43, %s45
    %p52 = scmp.eq.s32.totalorder %s14, 1
    %p53 = por %p51, %p52
    %p54 = scmp.ne.s32.totalorder %s45, %s46
    %p55 = scmp.eq.s32.totalorder %s14, 0
    %p56 = por %p54, %p55
    %p57 = scmp.ne.s32.totalorder %s45, %s46
    %p58 = scmp.eq.s32.totalorder %s15, 1
    %p59 = por %p57, %p58
    %p61 = scmp.ne.s32.totalorder %s46, %s60
    %p62 = scmp.eq.s32.totalorder %s15, 0
    %p63 = por %p61, %p62
    %s65 = sadd.s32 %s64, 1
    %p68 = scmp.eq.s32.totalorder %s9, 1
    %p69 = scmp.ne.s32.totalorder %s64, %s66
    %p70 = scmp.eq.s32.totalorder %s9, 0
    %p71 = por %p69, %p70
    %p72 = scmp.ne.s32.totalorder %s64, %s66
    %p73 = scmp.eq.s32.totalorder %s14, 1
    %p74 = por %p72, %p73
    %p75 = scmp.ne.s32.totalorder %s66, %s67
    %p76 = scmp.eq.s32.totalorder %s14, 0
    %p77 = por %p75, %p76
    %p78 = scmp.ne.s32.totalorder %s66, %s67
    %p79 = scmp.eq.s32.totalorder %s15, 1
    %p80 = por %p78, %p79
    %p82 = scmp.ne.s32.totalorder %s67, %s81
    %p83 = scmp.eq.s32.totalorder %s15, 0
    %p84 = por %p82, %p83
    %s85 = ssub.s32 %s9, %s16
    %p86 = scmp.eq.s32.totalorder %s85, 0
    %s88 = sadd.s32 %s87, 1
    %s89 = scalar_select %p86, %s87, %s88
    %p92 = pneg %p86
    %p93 = scmp.eq.s32.totalorder %s9, 1
    %p94 = por %p92, %p93
    %p95 = scmp.ne.s32.totalorder %s87, %s90
    %p96 = scmp.eq.s32.totalorder %s9, 0
    %p97 = por %p95, %p96
    %p98 = scmp.ne.s32.totalorder %s87, %s90
    %p99 = scmp.eq.s32.totalorder %s14, 1
    %p100 = por %p98, %p99
    %p101 = scmp.ne.s32.totalorder %s90, %s91
    %p102 = scmp.eq.s32.totalorder %s14, 0
    %p103 = por %p101, %p102
    %p104 = scmp.ne.s32.totalorder %s90, %s91
    %p105 = scmp.eq.s32.totalorder %s15, 1
    %p106 = por %p104, %p105
    %p108 = scmp.ne.s32.totalorder %s91, %s107
    %p109 = scmp.eq.s32.totalorder %s15, 0
    %p110 = por %p108, %p109
    %p111 = scmp.le.s32.totalorder 1, %s9
    %p112 = scmp.lt.s32.totalorder %s9, 3
    %p113 = pnand %p111, %p112
    %p114 = pneg %p113
    // Predicated region
    $region9: #{carn_forward.12} parent=5 // pred_check
      _
    $region10: #{carn_forward.12} parent=5 // pred_check_branch
      %116 = sbr.rel (%p113) target = $region12
    $region11: #{carn_forward.12} parent=5 // pred_region
      %s117 = ssub.s32 %s9, 1
      // Predicated region
      $region13: #{carn_forward.12} parent=11 // pred_check
        %p118 = pneg %p56
      $region14: #{carn_forward.12} parent=11 // pred_check_branch
        %120 = sbr.rel (%p118) target = $region16
      $region15: #{carn_forward.12} parent=11 // pred_region
        _
      $region16: #{carn_forward.12} parent=11 // pred_fallthru
        _
      // Predicated region
      $region17: #{carn_forward.12} parent=11 // pred_check
        %p121 = pneg %p77
      $region18: #{carn_forward.12} parent=11 // pred_check_branch
        %123 = sbr.rel (%p121) target = $region20
      $region19: #{carn_forward.12} parent=11 // pred_region
        _
      $region20: #{carn_forward.12} parent=11 // pred_fallthru
        _
    $region12: #{carn_forward.12} parent=5 // pred_fallthru
      _
    %p124 = scmp.lt.s32.totalorder %s9, 2
    // Predicated region
    $region21: #{carn_forward.12} parent=5 // pred_check
      %p125 = pneg %p124
    $region22: #{carn_forward.12} parent=5 // pred_check_branch
      %127 = sbr.rel (%p125) target = $region24
    $region23: #{carn_forward.12} parent=5 // pred_region
      // Predicated region
      $region25: #{carn_forward.12} parent=23 // pred_check
        %p128 = pneg %p29
      $region26: #{carn_forward.12} parent=23 // pred_check_branch
        %130 = sbr.rel (%p128) target = $region28
      $region27: #{carn_forward.12} parent=23 // pred_region
        %p131 = scmp.lt.s32.totalorder %s9, 1
        %s132 = scalar_select %p131, %s9, 1
        %s133 = smul.addr %s132, 20
        %s134 = smul.addr %s133, 4
        %s135 = scalar_lea.vmem %s0, %s134
      $region28: #{carn_forward.12} parent=23 // pred_fallthru
        _
    $region24: #{carn_forward.12} parent=5 // pred_fallthru
      _
    %p136 = scmp.le.s32.totalorder 1, %s9
    %p137 = scmp.lt.s32.totalorder %s9, 3
    %p138 = pnand %p136, %p137
    %p139 = pneg %p138
    // Predicated region
    $region29: #{carn_forward.12} parent=5 // pred_check
      _
    $region30: #{carn_forward.12} parent=5 // pred_check_branch
      %141 = sbr.rel (%p138) target = $region32
    $region31: #{carn_forward.12} parent=5 // pred_region
      %s142 = ssub.s32 %s9, 1
      %p143 = scmp.lt.s32.totalorder %s14, 1
      %s144 = scalar_select %p143, %s14, 1
      %s145 = smul.addr %s144, 20
      %s146 = smul.addr %s145, 4
      %s147 = scalar_lea.vmem %s0, %s146
      %p148 = pneg %p35
      %p149 = pneg %p32
      %p150 = pneg %p56
      %p151 = pneg %p53
      %p152 = pneg %p77
      %p153 = pneg %p74
      %p154 = pneg %p103
      %p155 = pneg %p100
      %p156 = scmp.lt.s32.totalorder %s14, 1
      %s157 = scalar_select %p156, %s14, 1
      %s158 = smul.addr %s157, 8
      %s159 = smul.addr %s158, 4
      %s160 = scalar_lea.vmem %s3, %s159
      %p161 = scmp.lt.s32.totalorder %s14, 1
      %s162 = scalar_select %p161, %s14, 1
      %s163 = smul.addr %s162, 20
      %s164 = smul.addr %s163, 4
      %s165 = scalar_lea.vmem %s0, %s164
      %p166 = scmp.lt.s32.totalorder %s14, 1
      %s167 = scalar_select %p166, %s14, 1
      %s168 = smul.addr %s167, 8
      %s169 = smul.addr %s168, 4
      %s170 = scalar_lea.vmem %s3, %s169
      %v172 = vld [vmem:[%s165] sm:$0xf]
      %v173 = vld [vmem:[%s165 + $0x4] sm:$0x1]
      %v174 = vld [vmem:[%s165 + $0x8] sm:$0xf]
      %v175 = vld [vmem:[%s165 + $0xc] sm:$0x1]
      %v176 = vld [vmem:[%s165 + $0x10] sm:$0xf]
      %v177 = vld [vmem:[%s165 + $0x14] sm:$0x1]
      %v178 = vld [vmem:[%s165 + $0x18] sm:$0xf]
      %v179 = vld [vmem:[%s165 + $0x1c] sm:$0x1]
      %v180 = vld [vmem:[%s165 + $0x20] sm:$0xf]
      %v181 = vld [vmem:[%s165 + $0x24] sm:$0x1]
      %v182 = vld [vmem:[%s165 + $0x28] sm:$0xf]
      %v183 = vld [vmem:[%s165 + $0x2c] sm:$0x1]
      %v184 = vld [vmem:[%s165 + $0x30] sm:$0xf]
      %v185 = vld [vmem:[%s165 + $0x34] sm:$0x1]
      %v186 = vld [vmem:[%s165 + $0x38] sm:$0xf]
      %v187 = vld [vmem:[%s165 + $0x3c] sm:$0x1]
      %v188 = vld [vmem:[%s165 + $0x40] sm:$0xf]
      %v189 = vld [vmem:[%s165 + $0x44] sm:$0x1]
      %v190 = vld [vmem:[%s165 + $0x48] sm:$0xf]
      %v191 = vld [vmem:[%s165 + $0x4c] sm:$0x1]
      %v192 = vld [vmem:[%s1] sm:$0xf]
      %v193 = vld [vmem:[%s1 + $0x4] sm:$0xf]
      %vm194 = vsmask.f32 3328
      %vm195 = vsmask.f32 7440
      %vm196 = vmor %vm194, %vm195
      %v198 = vshrl.u32 %v172, 16
      %v200 = vrot.slane %v198, 4
      %v201 = vshll.u32 %v172, 16
      %v203 = vrot.slane %v201, 5
      %v204 = vor.u32 %v200, %v203
      %v205 = vrot.slane %v204, 4
      %v207 = vshll.u32 %v173, 16
      %v209 = vrot.slane %v207, 5
      %v210 = vsel %vm196, %v205, %v209
      %v212 = vshrl.u32 %v174, 16
      %v214 = vrot.slane %v212, 4
      %v215 = vshll.u32 %v174, 16
      %v217 = vrot.slane %v215, 5
      %v218 = vor.u32 %v214, %v217
      %v219 = vrot.slane %v218, 4
      %v221 = vshll.u32 %v175, 16
      %v223 = vrot.slane %v221, 5
      %v224 = vsel %vm196, %v219, %v223
      %v226 = vshrl.u32 %v176, 16
      %v228 = vrot.slane %v226, 4
      %v229 = vshll.u32 %v176, 16
      %v231 = vrot.slane %v229, 5
      %v232 = vor.u32 %v228, %v231
      %v233 = vrot.slane %v232, 4
      %v235 = vshll.u32 %v177, 16
      %v237 = vrot.slane %v235, 5
      %v238 = vsel %vm196, %v233, %v237
      %v240 = vshrl.u32 %v178, 16
      %v242 = vrot.slane %v240, 4
      %v243 = vshll.u32 %v178, 16
      %v245 = vrot.slane %v243, 5
      %v246 = vor.u32 %v242, %v245
      %v247 = vrot.slane %v246, 4
      %v249 = vshll.u32 %v179, 16
      %v251 = vrot.slane %v249, 5
      %v252 = vsel %vm196, %v247, %v251
      %v254 = vshrl.u32 %v180, 16
      %v256 = vrot.slane %v254, 4
      %v257 = vshll.u32 %v180, 16
      %v259 = vrot.slane %v257, 5
      %v260 = vor.u32 %v256, %v259
      %v261 = vrot.slane %v260, 4
      %v263 = vshll.u32 %v181, 16
      %v265 = vrot.slane %v263, 5
      %v266 = vsel %vm196, %v261, %v265
      %v268 = vshrl.u32 %v182, 16
      %v270 = vrot.slane %v268, 4
      %v271 = vshll.u32 %v182, 16
      %v273 = vrot.slane %v271, 5
      %v274 = vor.u32 %v270, %v273
      %v275 = vrot.slane %v274, 4
      %v277 = vshll.u32 %v183, 16
      %v279 = vrot.slane %v277, 5
      %v280 = vsel %vm196, %v275, %v279
      %v282 = vshrl.u32 %v184, 16
      %v284 = vrot.slane %v282, 4
      %v285 = vshll.u32 %v184, 16
      %v287 = vrot.slane %v285, 5
      %v288 = vor.u32 %v284, %v287
      %v289 = vrot.slane %v288, 4
      %v291 = vshll.u32 %v185, 16
      %v293 = vrot.slane %v291, 5
      %v294 = vsel %vm196, %v289, %v293
      %v296 = vshrl.u32 %v186, 16
      %v298 = vrot.slane %v296, 4
      %v299 = vshll.u32 %v186, 16
      %v301 = vrot.slane %v299, 5
      %v302 = vor.u32 %v298, %v301
      %v303 = vrot.slane %v302, 4
      %v305 = vshll.u32 %v187, 16
      %v307 = vrot.slane %v305, 5
      %v308 = vsel %vm196, %v303, %v307
      %s309 = scalar_lea.vmem %s1, 8
      %v310 = vld [vmem:[%s309] sm:$0xf]
      %v311 = vld [vmem:[%s309 + $0x4] sm:$0xf]
      %v312 = vunpack.c.l.b16 %v210
      %v313 = vunpack.c.l.b16 %v224
      %v314 = vunpack.c.l.b16 %v238
      %v315 = vunpack.c.l.b16 %v252
      %v316 = vunpack.c.l.b16 %v266
      %v317 = vunpack.c.l.b16 %v280
      %v318 = vunpack.c.l.b16 %v294
      %v319 = vunpack.c.l.b16 %v308
      %v320 = vpack.c.b16 %v313, %v312
      %v321 = vpack.c.b16 %v315, %v314
      %v322 = vpack.c.b16 %v317, %v316
      %v323 = vpack.c.b16 %v319, %v318
      %v326 = vunpack.c.l.b16 %v310
      %v327 = vunpack.c.l.b16 %v311
      %v328 = vpack.c.b16 %v327, %v326
      %vm330 = vcmask 130048
      %v332 = vsel %vm330, %v320, 0
      %v335 = vsel %vm330, %v321, 0
      %v338 = vsel %vm330, %v322, 0
      %v341 = vsel %vm330, %v323, 0
      %343 = vmatpush.bf16.msra.mxu0 0
      %344 = vmatpush.bf16.msra.mxu0 0
      %345 = vmatpush.bf16.msra.mxu0 0
      %346 = vmatpush.bf16.msra.mxu0 0
      %347 = vmatpush.bf16.msra.mxu0 0
      %348 = vmatpush.bf16.msra.mxu0 0
      %349 = vmatpush.bf16.msra.mxu0 0
      %350 = vmatpush.bf16.msra.mxu0 %v328
      %351 = vmatmul.bf16.gmra.mxu0 %v332
      %v352 = vpop.f32.mrf.mxu0
      %v353 = vadd.f32 0.0, %v352
      %v354 = vpop.f32.mrf.mxu0
      %v355 = vadd.f32 0.0, %v354
      %356 = vmatmul.bf16.gmra.mxu0 %v335
      %v357 = vpop.f32.mrf.mxu0
      %v358 = vadd.f32 0.0, %v357
      %v359 = vpop.f32.mrf.mxu0
      %v360 = vadd.f32 0.0, %v359
      %361 = vmatmul.bf16.gmra.mxu0 %v338
      %v362 = vpop.f32.mrf.mxu0
      %v363 = vadd.f32 0.0, %v362
      %v364 = vpop.f32.mrf.mxu0
      %v365 = vadd.f32 0.0, %v364
      %366 = vmatmul.bf16.gmra.mxu0 %v341
      %v367 = vpop.f32.mrf.mxu0
      %v368 = vadd.f32 0.0, %v367
      %v369 = vpop.f32.mrf.mxu0
      %v370 = vadd.f32 0.0, %v369
      %371 = vdwg.mxu0
      %v380 = vunpack.c.l.b16 %v172
      %v381 = vunpack.c.l.b16 %v174
      %v382 = vunpack.c.l.b16 %v176
      %v383 = vunpack.c.l.b16 %v178
      %v384 = vunpack.c.l.b16 %v180
      %v385 = vunpack.c.l.b16 %v182
      %v386 = vunpack.c.l.b16 %v184
      %v387 = vunpack.c.l.b16 %v186
      %v388 = vpack.c.b16 %v381, %v380
      %v389 = vpack.c.b16 %v383, %v382
      %v390 = vpack.c.b16 %v385, %v384
      %v391 = vpack.c.b16 %v387, %v386
      %v394 = vunpack.c.l.b16 %v192
      %v395 = vunpack.c.l.b16 %v193
      %v396 = vpack.c.b16 %v395, %v394
      %v399 = vsel %vm330, %v388, 0
      %v402 = vsel %vm330, %v389, 0
      %v405 = vsel %vm330, %v390, 0
      %v408 = vsel %vm330, %v391, 0
      %410 = vmatpush.bf16.msra.mxu0 0
      %411 = vmatpush.bf16.msra.mxu0 0
      %412 = vmatpush.bf16.msra.mxu0 0
      %413 = vmatpush.bf16.msra.mxu0 0
      %414 = vmatpush.bf16.msra.mxu0 0
      %415 = vmatpush.bf16.msra.mxu0 0
      %416 = vmatpush.bf16.msra.mxu0 0
      %417 = vmatpush.bf16.msra.mxu0 %v396
      %418 = vmatmul.bf16.gmra.mxu0 %v399
      %v419 = vpop.f32.mrf.mxu0
      %v420 = vadd.f32 %v353, %v419
      %v421 = vpop.f32.mrf.mxu0
      %v422 = vadd.f32 %v355, %v421
      %423 = vmatmul.bf16.gmra.mxu0 %v402
      %v424 = vpop.f32.mrf.mxu0
      %v425 = vadd.f32 %v358, %v424
      %v426 = vpop.f32.mrf.mxu0
      %v427 = vadd.f32 %v360, %v426
      %428 = vmatmul.bf16.gmra.mxu0 %v405
      %v429 = vpop.f32.mrf.mxu0
      %v430 = vadd.f32 %v363, %v429
      %v431 = vpop.f32.mrf.mxu0
      %v432 = vadd.f32 %v365, %v431
      %433 = vmatmul.bf16.gmra.mxu0 %v408
      %v434 = vpop.f32.mrf.mxu0
      %v435 = vadd.f32 %v368, %v434
      %v436 = vpop.f32.mrf.mxu0
      %v437 = vadd.f32 %v370, %v436
      %438 = vdwg.mxu0
      %vm447 = vcmask 1042432
      %vm448 = vcmask 1046532
      %vm449 = vmor %vm447, %vm448
      %v450 = vrot.slane %v172, 5
      %v451 = vrot.slane %v450, 4
      %v452 = vrot.slane %v173, 5
      %v453 = vsel %vm449, %v451, %v452
      %v454 = vrot.slane %v174, 5
      %v455 = vrot.slane %v454, 4
      %v456 = vrot.slane %v175, 5
      %v457 = vsel %vm449, %v455, %v456
      %v458 = vrot.slane %v176, 5
      %v459 = vrot.slane %v458, 4
      %v460 = vrot.slane %v177, 5
      %v461 = vsel %vm449, %v459, %v460
      %v462 = vrot.slane %v178, 5
      %v463 = vrot.slane %v462, 4
      %v464 = vrot.slane %v179, 5
      %v465 = vsel %vm449, %v463, %v464
      %v466 = vrot.slane %v180, 5
      %v467 = vrot.slane %v466, 4
      %v468 = vrot.slane %v181, 5
      %v469 = vsel %vm449, %v467, %v468
      %v470 = vrot.slane %v182, 5
      %v471 = vrot.slane %v470, 4
      %v472 = vrot.slane %v183, 5
      %v473 = vsel %vm449, %v471, %v472
      %v474 = vrot.slane %v184, 5
      %v475 = vrot.slane %v474, 4
      %v476 = vrot.slane %v185, 5
      %v477 = vsel %vm449, %v475, %v476
      %v478 = vrot.slane %v186, 5
      %v479 = vrot.slane %v478, 4
      %v480 = vrot.slane %v187, 5
      %v481 = vsel %vm449, %v479, %v480
      %s482 = scalar_lea.vmem %s1, 16
      %v483 = vld [vmem:[%s482] sm:$0xf]
      %v484 = vld [vmem:[%s482 + $0x4] sm:$0xf]
      %v485 = vunpack.c.l.b16 %v453
      %v486 = vunpack.c.l.b16 %v457
      %v487 = vunpack.c.l.b16 %v461
      %v488 = vunpack.c.l.b16 %v465
      %v489 = vunpack.c.l.b16 %v469
      %v490 = vunpack.c.l.b16 %v473
      %v491 = vunpack.c.l.b16 %v477
      %v492 = vunpack.c.l.b16 %v481
      %v493 = vpack.c.b16 %v486, %v485
      %v494 = vpack.c.b16 %v488, %v487
      %v495 = vpack.c.b16 %v490, %v489
      %v496 = vpack.c.b16 %v492, %v491
      %v499 = vunpack.c.l.b16 %v483
      %v500 = vunpack.c.l.b16 %v484
      %v501 = vpack.c.b16 %v500, %v499
      %v504 = vsel %vm330, %v493, 0
      %v507 = vsel %vm330, %v494, 0
      %v510 = vsel %vm330, %v495, 0
      %v513 = vsel %vm330, %v496, 0
      %515 = vmatpush.bf16.msra.mxu0 0
      %516 = vmatpush.bf16.msra.mxu0 0
      %517 = vmatpush.bf16.msra.mxu0 0
      %518 = vmatpush.bf16.msra.mxu0 0
      %519 = vmatpush.bf16.msra.mxu0 0
      %520 = vmatpush.bf16.msra.mxu0 0
      %521 = vmatpush.bf16.msra.mxu0 0
      %522 = vmatpush.bf16.msra.mxu0 %v501
      %523 = vmatmul.bf16.gmra.mxu0 %v504
      %v524 = vpop.f32.mrf.mxu0
      %v525 = vadd.f32 0.0, %v524
      %v526 = vpop.f32.mrf.mxu0
      %v527 = vadd.f32 0.0, %v526
      %528 = vmatmul.bf16.gmra.mxu0 %v507
      %v529 = vpop.f32.mrf.mxu0
      %v530 = vadd.f32 0.0, %v529
      %v531 = vpop.f32.mrf.mxu0
      %v532 = vadd.f32 0.0, %v531
      %533 = vmatmul.bf16.gmra.mxu0 %v510
      %v534 = vpop.f32.mrf.mxu0
      %v535 = vadd.f32 0.0, %v534
      %v536 = vpop.f32.mrf.mxu0
      %v537 = vadd.f32 0.0, %v536
      %538 = vmatmul.bf16.gmra.mxu0 %v513
      %v539 = vpop.f32.mrf.mxu0
      %v540 = vadd.f32 0.0, %v539
      %v541 = vpop.f32.mrf.mxu0
      %v542 = vadd.f32 0.0, %v541
      %543 = vdwg.mxu0
      %v544 = vadd.f32 %v420, %v525
      %v545 = vadd.f32 %v422, %v527
      %v546 = vadd.f32 %v425, %v530
      %v547 = vadd.f32 %v427, %v532
      %v548 = vadd.f32 %v430, %v535
      %v549 = vadd.f32 %v432, %v537
      %v550 = vadd.f32 %v435, %v540
      %v551 = vadd.f32 %v437, %v542
      %s552 = scalar_lea.vmem %s1, 24
      %v553 = vld [vmem:[%s552] sm:$0xf]
      %v554 = vld [vmem:[%s552 + $0x4] sm:$0xf]
      %v556 = vunpack.c.l.b16 %v188
      %v557 = vpack.c.b16 %v382, %v381
      %v558 = vpack.c.b16 %v384, %v383
      %v559 = vpack.c.b16 %v386, %v385
      %v560 = vpack.c.b16 %v556, %v387
      %v563 = vunpack.c.l.b16 %v553
      %v564 = vunpack.c.l.b16 %v554
      %v565 = vpack.c.b16 %v564, %v563
      %v568 = vsel %vm330, %v557, 0
      %v571 = vsel %vm330, %v558, 0
      %v574 = vsel %vm330, %v559, 0
      %v577 = vsel %vm330, %v560, 0
      %579 = vmatpush.bf16.msra.mxu0 0
      %580 = vmatpush.bf16.msra.mxu0 0
      %581 = vmatpush.bf16.msra.mxu0 0
      %582 = vmatpush.bf16.msra.mxu0 0
      %583 = vmatpush.bf16.msra.mxu0 0
      %584 = vmatpush.bf16.msra.mxu0 0
      %585 = vmatpush.bf16.msra.mxu0 0
      %586 = vmatpush.bf16.msra.mxu0 %v565
      %587 = vmatmul.bf16.gmra.mxu0 %v568
      %v588 = vpop.f32.mrf.mxu0
      %v589 = vadd.f32 0.0, %v588
      %v590 = vpop.f32.mrf.mxu0
      %v591 = vadd.f32 0.0, %v590
      %592 = vmatmul.bf16.gmra.mxu0 %v571
      %v593 = vpop.f32.mrf.mxu0
      %v594 = vadd.f32 0.0, %v593
      %v595 = vpop.f32.mrf.mxu0
      %v596 = vadd.f32 0.0, %v595
      %597 = vmatmul.bf16.gmra.mxu0 %v574
      %v598 = vpop.f32.mrf.mxu0
      %v599 = vadd.f32 0.0, %v598
      %v600 = vpop.f32.mrf.mxu0
      %v601 = vadd.f32 0.0, %v600
      %602 = vmatmul.bf16.gmra.mxu0 %v577
      %v603 = vpop.f32.mrf.mxu0
      %v604 = vadd.f32 0.0, %v603
      %v605 = vpop.f32.mrf.mxu0
      %v606 = vadd.f32 0.0, %v605
      %607 = vdwg.mxu0
      %v608 = vadd.f32 %v544, %v589
      %v609 = vadd.f32 %v545, %v591
      %v610 = vadd.f32 %v546, %v594
      %v611 = vadd.f32 %v547, %v596
      %v612 = vadd.f32 %v548, %v599
      %v613 = vadd.f32 %v549, %v601
      %v614 = vadd.f32 %v550, %v604
      %v615 = vadd.f32 %v551, %v606
      %v617 = vshrl.u32 %v188, 16
      %v619 = vrot.slane %v617, 4
      %v620 = vshll.u32 %v188, 16
      %v622 = vrot.slane %v620, 5
      %v623 = vor.u32 %v619, %v622
      %v624 = vrot.slane %v623, 4
      %v626 = vshll.u32 %v189, 16
      %v628 = vrot.slane %v626, 5
      %v629 = vsel %vm196, %v624, %v628
      %s630 = scalar_lea.vmem %s1, 32
      %v631 = vld [vmem:[%s630] sm:$0xf]
      %v632 = vld [vmem:[%s630 + $0x4] sm:$0xf]
      %v633 = vunpack.c.l.b16 %v629
      %v634 = vpack.c.b16 %v314, %v313
      %v635 = vpack.c.b16 %v316, %v315
      %v636 = vpack.c.b16 %v318, %v317
      %v637 = vpack.c.b16 %v633, %v319
      %v640 = vunpack.c.l.b16 %v631
      %v641 = vunpack.c.l.b16 %v632
      %v642 = vpack.c.b16 %v641, %v640
      %v645 = vsel %vm330, %v634, 0
      %v648 = vsel %vm330, %v635, 0
      %v651 = vsel %vm330, %v636, 0
      %v654 = vsel %vm330, %v637, 0
      %656 = vmatpush.bf16.msra.mxu0 0
      %657 = vmatpush.bf16.msra.mxu0 0
      %658 = vmatpush.bf16.msra.mxu0 0
      %659 = vmatpush.bf16.msra.mxu0 0
      %660 = vmatpush.bf16.msra.mxu0 0
      %661 = vmatpush.bf16.msra.mxu0 0
      %662 = vmatpush.bf16.msra.mxu0 0
      %663 = vmatpush.bf16.msra.mxu0 %v642
      %664 = vmatmul.bf16.gmra.mxu0 %v645
      %v665 = vpop.f32.mrf.mxu0
      %v666 = vadd.f32 0.0, %v665
      %v667 = vpop.f32.mrf.mxu0
      %v668 = vadd.f32 0.0, %v667
      %669 = vmatmul.bf16.gmra.mxu0 %v648
      %v670 = vpop.f32.mrf.mxu0
      %v671 = vadd.f32 0.0, %v670
      %v672 = vpop.f32.mrf.mxu0
      %v673 = vadd.f32 0.0, %v672
      %674 = vmatmul.bf16.gmra.mxu0 %v651
      %v675 = vpop.f32.mrf.mxu0
      %v676 = vadd.f32 0.0, %v675
      %v677 = vpop.f32.mrf.mxu0
      %v678 = vadd.f32 0.0, %v677
      %679 = vmatmul.bf16.gmra.mxu0 %v654
      %v680 = vpop.f32.mrf.mxu0
      %v681 = vadd.f32 0.0, %v680
      %v682 = vpop.f32.mrf.mxu0
      %v683 = vadd.f32 0.0, %v682
      %684 = vdwg.mxu0
      %v685 = vadd.f32 %v608, %v666
      %v686 = vadd.f32 %v609, %v668
      %v687 = vadd.f32 %v610, %v671
      %v688 = vadd.f32 %v611, %v673
      %v689 = vadd.f32 %v612, %v676
      %v690 = vadd.f32 %v613, %v678
      %v691 = vadd.f32 %v614, %v681
      %v692 = vadd.f32 %v615, %v683
      %v694 = vrot.slane %v188, 5
      %v695 = vrot.slane %v694, 4
      %v696 = vrot.slane %v189, 5
      %v697 = vsel %vm449, %v695, %v696
      %s698 = scalar_lea.vmem %s1, 40
      %v699 = vld [vmem:[%s698] sm:$0xf]
      %v700 = vld [vmem:[%s698 + $0x4] sm:$0xf]
      %v701 = vunpack.c.l.b16 %v697
      %v702 = vpack.c.b16 %v487, %v486
      %v703 = vpack.c.b16 %v489, %v488
      %v704 = vpack.c.b16 %v491, %v490
      %v705 = vpack.c.b16 %v701, %v492
      %v708 = vunpack.c.l.b16 %v699
      %v709 = vunpack.c.l.b16 %v700
      %v710 = vpack.c.b16 %v709, %v708
      %v713 = vsel %vm330, %v702, 0
      %v716 = vsel %vm330, %v703, 0
      %v719 = vsel %vm330, %v704, 0
      %v722 = vsel %vm330, %v705, 0
      %724 = vmatpush.bf16.msra.mxu0 0
      %725 = vmatpush.bf16.msra.mxu0 0
      %726 = vmatpush.bf16.msra.mxu0 0
      %727 = vmatpush.bf16.msra.mxu0 0
      %728 = vmatpush.bf16.msra.mxu0 0
      %729 = vmatpush.bf16.msra.mxu0 0
      %730 = vmatpush.bf16.msra.mxu0 0
      %731 = vmatpush.bf16.msra.mxu0 %v710
      %732 = vmatmul.bf16.gmra.mxu0 %v713
      %v733 = vpop.f32.mrf.mxu0
      %v734 = vadd.f32 0.0, %v733
      %v735 = vpop.f32.mrf.mxu0
      %v736 = vadd.f32 0.0, %v735
      %737 = vmatmul.bf16.gmra.mxu0 %v716
      %v738 = vpop.f32.mrf.mxu0
      %v739 = vadd.f32 0.0, %v738
      %v740 = vpop.f32.mrf.mxu0
      %v741 = vadd.f32 0.0, %v740
      %742 = vmatmul.bf16.gmra.mxu0 %v719
      %v743 = vpop.f32.mrf.mxu0
      %v744 = vadd.f32 0.0, %v743
      %v745 = vpop.f32.mrf.mxu0
      %v746 = vadd.f32 0.0, %v745
      %747 = vmatmul.bf16.gmra.mxu0 %v722
      %v748 = vpop.f32.mrf.mxu0
      %v749 = vadd.f32 0.0, %v748
      %v750 = vpop.f32.mrf.mxu0
      %v751 = vadd.f32 0.0, %v750
      %752 = vdwg.mxu0
      %v753 = vadd.f32 %v685, %v734
      %v754 = vadd.f32 %v686, %v736
      %v755 = vadd.f32 %v687, %v739
      %v756 = vadd.f32 %v688, %v741
      %v757 = vadd.f32 %v689, %v744
      %v758 = vadd.f32 %v690, %v746
      %v759 = vadd.f32 %v691, %v749
      %v760 = vadd.f32 %v692, %v751
      %s761 = scalar_lea.vmem %s1, 48
      %v762 = vld [vmem:[%s761] sm:$0xf]
      %v763 = vld [vmem:[%s761 + $0x4] sm:$0xf]
      %v765 = vunpack.c.l.b16 %v190
      %v766 = vpack.c.b16 %v765, %v556
      %v769 = vunpack.c.l.b16 %v762
      %v770 = vunpack.c.l.b16 %v763
      %v771 = vpack.c.b16 %v770, %v769
      %v774 = vsel %vm330, %v766, 0
      %776 = vmatpush.bf16.msra.mxu0 0
      %777 = vmatpush.bf16.msra.mxu0 0
      %778 = vmatpush.bf16.msra.mxu0 0
      %779 = vmatpush.bf16.msra.mxu0 0
      %780 = vmatpush.bf16.msra.mxu0 0
      %781 = vmatpush.bf16.msra.mxu0 0
      %782 = vmatpush.bf16.msra.mxu0 0
      %783 = vmatpush.bf16.msra.mxu0 %v771
      %784 = vmatmul.bf16.gmra.mxu0 %v402
      %v785 = vpop.f32.mrf.mxu0
      %v786 = vadd.f32 0.0, %v785
      %v787 = vpop.f32.mrf.mxu0
      %v788 = vadd.f32 0.0, %v787
      %789 = vmatmul.bf16.gmra.mxu0 %v405
      %v790 = vpop.f32.mrf.mxu0
      %v791 = vadd.f32 0.0, %v790
      %v792 = vpop.f32.mrf.mxu0
      %v793 = vadd.f32 0.0, %v792
      %794 = vmatmul.bf16.gmra.mxu0 %v408
      %v795 = vpop.f32.mrf.mxu0
      %v796 = vadd.f32 0.0, %v795
      %v797 = vpop.f32.mrf.mxu0
      %v798 = vadd.f32 0.0, %v797
      %799 = vmatmul.bf16.gmra.mxu0 %v774
      %v800 = vpop.f32.mrf.mxu0
      %v801 = vadd.f32 0.0, %v800
      %v802 = vpop.f32.mrf.mxu0
      %v803 = vadd.f32 0.0, %v802
      %804 = vdwg.mxu0
      %v805 = vadd.f32 %v753, %v786
      %v806 = vadd.f32 %v754, %v788
      %v807 = vadd.f32 %v755, %v791
      %v808 = vadd.f32 %v756, %v793
      %v809 = vadd.f32 %v757, %v796
      %v810 = vadd.f32 %v758, %v798
      %v811 = vadd.f32 %v759, %v801
      %v812 = vadd.f32 %v760, %v803
      %v814 = vshrl.u32 %v190, 16
      %v816 = vrot.slane %v814, 4
      %v817 = vshll.u32 %v190, 16
      %v819 = vrot.slane %v817, 5
      %v820 = vor.u32 %v816, %v819
      %v821 = vrot.slane %v820, 4
      %v823 = vshll.u32 %v191, 16
      %v825 = vrot.slane %v823, 5
      %v826 = vsel %vm196, %v821, %v825
      %s827 = scalar_lea.vmem %s1, 56
      %v828 = vld [vmem:[%s827] sm:$0xf]
      %v829 = vld [vmem:[%s827 + $0x4] sm:$0xf]
      %v830 = vunpack.c.l.b16 %v826
      %v831 = vpack.c.b16 %v830, %v633
      %v834 = vunpack.c.l.b16 %v828
      %v835 = vunpack.c.l.b16 %v829
      %v836 = vpack.c.b16 %v835, %v834
      %v839 = vsel %vm330, %v831, 0
      %841 = vmatpush.bf16.msra.mxu0 0
      %842 = vmatpush.bf16.msra.mxu0 0
      %843 = vmatpush.bf16.msra.mxu0 0
      %844 = vmatpush.bf16.msra.mxu0 0
      %845 = vmatpush.bf16.msra.mxu0 0
      %846 = vmatpush.bf16.msra.mxu0 0
      %847 = vmatpush.bf16.msra.mxu0 0
      %848 = vmatpush.bf16.msra.mxu0 %v836
      %849 = vmatmul.bf16.gmra.mxu0 %v335
      %v850 = vpop.f32.mrf.mxu0
      %v851 = vadd.f32 0.0, %v850
      %v852 = vpop.f32.mrf.mxu0
      %v853 = vadd.f32 0.0, %v852
      %854 = vmatmul.bf16.gmra.mxu0 %v338
      %v855 = vpop.f32.mrf.mxu0
      %v856 = vadd.f32 0.0, %v855
      %v857 = vpop.f32.mrf.mxu0
      %v858 = vadd.f32 0.0, %v857
      %859 = vmatmul.bf16.gmra.mxu0 %v341
      %v860 = vpop.f32.mrf.mxu0
      %v861 = vadd.f32 0.0, %v860
      %v862 = vpop.f32.mrf.mxu0
      %v863 = vadd.f32 0.0, %v862
      %864 = vmatmul.bf16.gmra.mxu0 %v839
      %v865 = vpop.f32.mrf.mxu0
      %v866 = vadd.f32 0.0, %v865
      %v867 = vpop.f32.mrf.mxu0
      %v868 = vadd.f32 0.0, %v867
      %869 = vdwg.mxu0
      %v870 = vadd.f32 %v805, %v851
      %v871 = vadd.f32 %v806, %v853
      %v872 = vadd.f32 %v807, %v856
      %v873 = vadd.f32 %v808, %v858
      %v874 = vadd.f32 %v809, %v861
      %v875 = vadd.f32 %v810, %v863
      %v876 = vadd.f32 %v811, %v866
      %v877 = vadd.f32 %v812, %v868
      %v879 = vrot.slane %v190, 5
      %v880 = vrot.slane %v879, 4
      %v881 = vrot.slane %v191, 5
      %v882 = vsel %vm449, %v880, %v881
      %s883 = scalar_lea.vmem %s1, 64
      %v884 = vld [vmem:[%s883] sm:$0xf]
      %v885 = vld [vmem:[%s883 + $0x4] sm:$0xf]
      %v886 = vunpack.c.l.b16 %v882
      %v887 = vpack.c.b16 %v886, %v701
      %v890 = vunpack.c.l.b16 %v884
      %v891 = vunpack.c.l.b16 %v885
      %v892 = vpack.c.b16 %v891, %v890
      %v895 = vsel %vm330, %v887, 0
      %897 = vmatpush.bf16.msra.mxu0 0
      %898 = vmatpush.bf16.msra.mxu0 0
      %899 = vmatpush.bf16.msra.mxu0 0
      %900 = vmatpush.bf16.msra.mxu0 0
      %901 = vmatpush.bf16.msra.mxu0 0
      %902 = vmatpush.bf16.msra.mxu0 0
      %903 = vmatpush.bf16.msra.mxu0 0
      %904 = vmatpush.bf16.msra.mxu0 %v892
      %905 = vmatmul.bf16.gmra.mxu0 %v507
      %v906 = vpop.f32.mrf.mxu0
      %v907 = vadd.f32 0.0, %v906
      %v908 = vpop.f32.mrf.mxu0
      %v909 = vadd.f32 0.0, %v908
      %910 = vmatmul.bf16.gmra.mxu0 %v510
      %v911 = vpop.f32.mrf.mxu0
      %v912 = vadd.f32 0.0, %v911
      %v913 = vpop.f32.mrf.mxu0
      %v914 = vadd.f32 0.0, %v913
      %915 = vmatmul.bf16.gmra.mxu0 %v513
      %v916 = vpop.f32.mrf.mxu0
      %v917 = vadd.f32 0.0, %v916
      %v918 = vpop.f32.mrf.mxu0
      %v919 = vadd.f32 0.0, %v918
      %920 = vmatmul.bf16.gmra.mxu0 %v895
      %v921 = vpop.f32.mrf.mxu0
      %v922 = vadd.f32 0.0, %v921
      %v923 = vpop.f32.mrf.mxu0
      %v924 = vadd.f32 0.0, %v923
      %925 = vdwg.mxu0
      %v926 = vadd.f32 %v870, %v907
      %v927 = vadd.f32 %v871, %v909
      %v928 = vadd.f32 %v872, %v912
      %v929 = vadd.f32 %v873, %v914
      %v930 = vadd.f32 %v874, %v917
      %v931 = vadd.f32 %v875, %v919
      %v932 = vadd.f32 %v876, %v922
      %v933 = vadd.f32 %v877, %v924
      %v934 = vld [vmem:[%s2] sm:$0x1]
      %v936 = vperm.slane %v934, 0
      %v938 = vadd.f32 %v926, %v936
      %v939 = vadd.f32 %v927, %v936
      %v940 = vadd.f32 %v928, %v936
      %v941 = vadd.f32 %v929, %v936
      %v942 = vadd.f32 %v930, %v936
      %v943 = vadd.f32 %v931, %v936
      %v944 = vadd.f32 %v932, %v936
      %v945 = vadd.f32 %v933, %v936
      %v946 = vmax.f32 %v938, 0.0
      %v947 = vmax.f32 %v939, 0.0
      %v948 = vmax.f32 %v940, 0.0
      %v949 = vmax.f32 %v941, 0.0
      %v950 = vmax.f32 %v942, 0.0
      %v951 = vmax.f32 %v943, 0.0
      %v952 = vmax.f32 %v944, 0.0
      %v953 = vmax.f32 %v945, 0.0
      %v954 = vpack.c.bf16 %v946, %v946
      %v955 = vpack.c.bf16 %v947, %v947
      %v956 = vpack.c.bf16 %v948, %v948
      %v957 = vpack.c.bf16 %v949, %v949
      %v958 = vpack.c.bf16 %v950, %v950
      %v959 = vpack.c.bf16 %v951, %v951
      %v960 = vpack.c.bf16 %v952, %v952
      %v961 = vpack.c.bf16 %v953, %v953
      %vm962 = vcmask 519168
      %963 = vst.msk [vmem:[%s170] sm:$0xf] %vm962, %v954
      %964 = vst.msk [vmem:[%s170 + $0x4] sm:$0xf] %vm962, %v955
      %965 = vst.msk [vmem:[%s170 + $0x8] sm:$0xf] %vm962, %v956
      %966 = vst.msk [vmem:[%s170 + $0xc] sm:$0xf] %vm962, %v957
      %967 = vst.msk [vmem:[%s170 + $0x10] sm:$0xf] %vm962, %v958
      %968 = vst.msk [vmem:[%s170 + $0x14] sm:$0xf] %vm962, %v959
      %969 = vst.msk [vmem:[%s170 + $0x18] sm:$0xf] %vm962, %v960
      %970 = vst.msk [vmem:[%s170 + $0x1c] sm:$0xf] %vm962, %v961
      %p971 = scmp.lt.s32.totalorder %s14, 1
      %s972 = scalar_select %p971, %s14, 1
      %s973 = smul.addr %s972, 8
      %s974 = smul.addr %s973, 4
      %s975 = scalar_lea.vmem %s3, %s974
      // Predicated region
      $region33: #{carn_forward.12} parent=31 // pred_check
        %p976 = pneg %p100
      $region34: #{carn_forward.12} parent=31 // pred_check_branch
        %978 = sbr.rel (%p976) target = $region36
      $region35: #{carn_forward.12} parent=31 // pred_region
        _
      $region36: #{carn_forward.12} parent=31 // pred_fallthru
        _
    $region32: #{carn_forward.12} parent=5 // pred_fallthru
      _
    %p979 = scmp.le.s32.totalorder 2, %s9
    // Predicated region
    $region37: #{carn_forward.12} parent=5 // pred_check
      %p980 = pneg %p979
    $region38: #{carn_forward.12} parent=5 // pred_check_branch
      %982 = sbr.rel (%p980) target = $region40
    $region39: #{carn_forward.12} parent=5 // pred_region
      %s983 = ssub.s32 %s9, 2
      // Predicated region
      $region41: #{carn_forward.12} parent=39 // pred_check
        %p984 = pneg %p106
      $region42: #{carn_forward.12} parent=39 // pred_check_branch
        %986 = sbr.rel (%p984) target = $region44
      $region43: #{carn_forward.12} parent=39 // pred_region
        %p987 = scmp.lt.s32.totalorder %s15, 1
        %s988 = scalar_select %p987, %s15, 1
        %s989 = smul.addr %s988, 8
        %s990 = smul.addr %s989, 4
        %s991 = scalar_lea.vmem %s3, %s990
      $region44: #{carn_forward.12} parent=39 // pred_fallthru
        _
    $region40: #{carn_forward.12} parent=5 // pred_fallthru
      _
  $region6: #{carn_forward.12} parent=0 // loop_footer
    %s13 = sadd.s32 1, %s9
  $region7: #{carn_forward.12} parent=0 // loop_footer_branch
    %8 = sbr.rel target = $region3
  $region8: #{carn_forward.12} parent=0 // loop_exit
    _

// kernel: carn_forward.13
$region0: #{carn_forward.13}
  #allocation0 [shape = 'u32[]', space=smem, size = 0x4, offset = 0x4, fixed_abs, tag = 'smem constant byte address 0x4 - core index']
  #allocation1 [shape = 'u32[72,128]{1,0:T(1,128)}', space=vmem, size = 0x9000, scoped, tag = 'internal scratch']
  %s0 = inlined_call_operand.vmem [shape: bf16[2,18,18,16], index: 0, kind: input, shape index: {}]
  %s1 = inlined_call_operand.vmem [shape: bf16[9,16,3], index: 1, kind: input, shape index: {}]
  %s2 = inlined_call_operand.vmem [shape: f32[1,3], index: 2, kind: input, shape index: {}]
  %s3 = inlined_call_operand.vmem [shape: f32[2,16,16,3], index: 3, kind: output, shape index: {}]
  %s4 = sld [smem:[#allocation0]]
  $region45: #{carn_forward.13} parent=0
    _
  %s6 = ssub.s32 1, %s4
  %s7 = scalar_select 0, %s6, %s4
  loop: start=0, step=1, limit=4
  $region2: #{carn_forward.13} parent=0 // loop_pre_header
    _
  $region3: #{carn_forward.13} parent=0 // loop_header
    %s9 = sphi 0, %s13
    %p10 = scmp.ge.s32.totalorder %s9, 4
    %s19 = sphi 0, %s21
    %s22 = sphi 0, %s19
    %s23 = sphi 0, %s22
    %s39 = sphi 0, %s23
    %s43 = sphi 0, %s43
    %s45 = sphi 0, %s43
    %s46 = sphi 0, %s45
    %s60 = sphi 0, %s46
    %s64 = sphi 0, %s64
    %s66 = sphi 0, %s64
    %s67 = sphi 0, %s66
    %s81 = sphi 0, %s67
    %s87 = sphi 0, %s89
    %s90 = sphi 0, %s87
    %s91 = sphi 0, %s90
    %s107 = sphi 0, %s91
  $region4: #{carn_forward.13} parent=0 // loop_header_branch
    %12 = sbr.rel (%p10) target = $region8
  $region5: #{carn_forward.13} parent=0 // loop_body
    %s14 = ssub.s32 %s9, 1
    %s15 = ssub.s32 %s9, 2
    %s16 = sadd.s32 %s9, 1
    %s17 = ssub.s32 %s9, %s16
    %p18 = scmp.eq.s32.totalorder %s17, 0
    %s20 = sadd.s32 %s19, 1
    %s21 = scalar_select %p18, %s19, %s20
    %p24 = pneg %p18
    %p25 = scmp.eq.s32.totalorder %s9, 1
    %p26 = por %p24, %p25
    %p27 = scmp.ne.s32.totalorder %s19, %s22
    %p28 = scmp.eq.s32.totalorder %s9, 0
    %p29 = por %p27, %p28
    %p30 = scmp.ne.s32.totalorder %s19, %s22
    %p31 = scmp.eq.s32.totalorder %s14, 1
    %p32 = por %p30, %p31
    %p33 = scmp.ne.s32.totalorder %s22, %s23
    %p34 = scmp.eq.s32.totalorder %s14, 0
    %p35 = por %p33, %p34
    %p36 = scmp.ne.s32.totalorder %s22, %s23
    %p37 = scmp.eq.s32.totalorder %s15, 1
    %p38 = por %p36, %p37
    %p40 = scmp.ne.s32.totalorder %s23, %s39
    %p41 = scmp.eq.s32.totalorder %s15, 0
    %p42 = por %p40, %p41
    %s44 = sadd.s32 %s43, 1
    %p47 = scmp.eq.s32.totalorder %s9, 1
    %p48 = scmp.ne.s32.totalorder %s43, %s45
    %p49 = scmp.eq.s32.totalorder %s9, 0
    %p50 = por %p48, %p49
    %p51 = scmp.ne.s32.totalorder %s43, %s45
    %p52 = scmp.eq.s32.totalorder %s14, 1
    %p53 = por %p51, %p52
    %p54 = scmp.ne.s32.totalorder %s45, %s46
    %p55 = scmp.eq.s32.totalorder %s14, 0
    %p56 = por %p54, %p55
    %p57 = scmp.ne.s32.totalorder %s45, %s46
    %p58 = scmp.eq.s32.totalorder %s15, 1
    %p59 = por %p57, %p58
    %p61 = scmp.ne.s32.totalorder %s46, %s60
    %p62 = scmp.eq.s32.totalorder %s15, 0
    %p63 = por %p61, %p62
    %s65 = sadd.s32 %s64, 1
    %p68 = scmp.eq.s32.totalorder %s9, 1
    %p69 = scmp.ne.s32.totalorder %s64, %s66
    %p70 = scmp.eq.s32.totalorder %s9, 0
    %p71 = por %p69, %p70
    %p72 = scmp.ne.s32.totalorder %s64, %s66
    %p73 = scmp.eq.s32.totalorder %s14, 1
    %p74 = por %p72, %p73
    %p75 = scmp.ne.s32.totalorder %s66, %s67
    %p76 = scmp.eq.s32.totalorder %s14, 0
    %p77 = por %p75, %p76
    %p78 = scmp.ne.s32.totalorder %s66, %s67
    %p79 = scmp.eq.s32.totalorder %s15, 1
    %p80 = por %p78, %p79
    %p82 = scmp.ne.s32.totalorder %s67, %s81
    %p83 = scmp.eq.s32.totalorder %s15, 0
    %p84 = por %p82, %p83
    %s85 = ssub.s32 %s9, %s16
    %p86 = scmp.eq.s32.totalorder %s85, 0
    %s88 = sadd.s32 %s87, 1
    %s89 = scalar_select %p86, %s87, %s88
    %p92 = pneg %p86
    %p93 = scmp.eq.s32.totalorder %s9, 1
    %p94 = por %p92, %p93
    %p95 = scmp.ne.s32.totalorder %s87, %s90
    %p96 = scmp.eq.s32.totalorder %s9, 0
    %p97 = por %p95, %p96
    %p98 = scmp.ne.s32.totalorder %s87, %s90
    %p99 = scmp.eq.s32.totalorder %s14, 1
    %p100 = por %p98, %p99
    %p101 = scmp.ne.s32.totalorder %s90, %s91
    %p102 = scmp.eq.s32.totalorder %s14, 0
    %p103 = por %p101, %p102
    %p104 = scmp.ne.s32.totalorder %s90, %s91
    %p105 = scmp.eq.s32.totalorder %s15, 1
    %p106 = por %p104, %p105
    %p108 = scmp.ne.s32.totalorder %s91, %s107
    %p109 = scmp.eq.s32.totalorder %s15, 0
    %p110 = por %p108, %p109
    %p111 = scmp.le.s32.totalorder 1, %s9
    %p112 = scmp.lt.s32.totalorder %s9, 3
    %p113 = pnand %p111, %p112
    %p114 = pneg %p113
    // Predicated region
    $region9: #{carn_forward.13} parent=5 // pred_check
      _
    $region10: #{carn_forward.13} parent=5 // pred_check_branch
      %116 = sbr.rel (%p113) target = $region12
    $region11: #{carn_forward.13} parent=5 // pred_region
      %s117 = ssub.s32 %s9, 1
      // Predicated region
      $region13: #{carn_forward.13} parent=11 // pred_check
        %p118 = pneg %p56
      $region14: #{carn_forward.13} parent=11 // pred_check_branch
        %120 = sbr.rel (%p118) target = $region16
      $region15: #{carn_forward.13} parent=11 // pred_region
        _
      $region16: #{carn_forward.13} parent=11 // pred_fallthru
        _
      // Predicated region
      $region17: #{carn_forward.13} parent=11 // pred_check
        %p121 = pneg %p77
      $region18: #{carn_forward.13} parent=11 // pred_check_branch
        %123 = sbr.rel (%p121) target = $region20
      $region19: #{carn_forward.13} parent=11 // pred_region
        _
      $region20: #{carn_forward.13} parent=11 // pred_fallthru
        _
    $region12: #{carn_forward.13} parent=5 // pred_fallthru
      _
    %p124 = scmp.lt.s32.totalorder %s9, 2
    // Predicated region
    $region21: #{carn_forward.13} parent=5 // pred_check
      %p125 = pneg %p124
    $region22: #{carn_forward.13} parent=5 // pred_check_branch
      %127 = sbr.rel (%p125) target = $region24
    $region23: #{carn_forward.13} parent=5 // pred_region
      // Predicated region
      $region25: #{carn_forward.13} parent=23 // pred_check
        %p128 = pneg %p29
      $region26: #{carn_forward.13} parent=23 // pred_check_branch
        %130 = sbr.rel (%p128) target = $region28
      $region27: #{carn_forward.13} parent=23 // pred_region
        %p131 = scmp.lt.s32.totalorder %s9, 1
        %s132 = scalar_select %p131, %s9, 1
        %s133 = smul.addr %s132, 54
        %s134 = smul.addr %s133, 4
        %s135 = scalar_lea.vmem %s0, %s134
      $region28: #{carn_forward.13} parent=23 // pred_fallthru
        _
    $region24: #{carn_forward.13} parent=5 // pred_fallthru
      _
    %p136 = scmp.le.s32.totalorder 1, %s9
    %p137 = scmp.lt.s32.totalorder %s9, 3
    %p138 = pnand %p136, %p137
    %p139 = pneg %p138
    // Predicated region
    $region29: #{carn_forward.13} parent=5 // pred_check
      _
    $region30: #{carn_forward.13} parent=5 // pred_check_branch
      %141 = sbr.rel (%p138) target = $region32
    $region31: #{carn_forward.13} parent=5 // pred_region
      %s142 = ssub.s32 %s9, 1
      %p143 = scmp.lt.s32.totalorder %s14, 1
      %s144 = scalar_select %p143, %s14, 1
      %s145 = smul.addr %s144, 54
      %s146 = smul.addr %s145, 4
      %s147 = scalar_lea.vmem %s0, %s146
      %p148 = pneg %p35
      %p149 = pneg %p32
      %p150 = pneg %p56
      %p151 = pneg %p53
      %p152 = pneg %p77
      %p153 = pneg %p74
      %p154 = pneg %p103
      %p155 = pneg %p100
      %p156 = scmp.lt.s32.totalorder %s14, 1
      %s157 = scalar_select %p156, %s14, 1
      %s158 = smul.addr %s157, 32
      %s159 = smul.addr %s158, 8
      %s160 = scalar_lea.vmem %s3, %s159
      %p161 = scmp.lt.s32.totalorder %s14, 1
      %s162 = scalar_select %p161, %s14, 1
      %s163 = smul.addr %s162, 54
      %s164 = smul.addr %s163, 4
      %s165 = scalar_lea.vmem %s0, %s164
      %p166 = scmp.lt.s32.totalorder %s14, 1
      %s167 = scalar_select %p166, %s14, 1
      %s168 = smul.addr %s167, 32
      %s169 = smul.addr %s168, 8
      %s170 = scalar_lea.vmem %s3, %s169
      %v172 = vld [vmem:[%s165] sm:$0xf]
      %v173 = vld [vmem:[%s165 + $0x4] sm:$0xf]
      %v174 = vld [vmem:[%s165 + $0x8] sm:$0x1]
      %v175 = vld [vmem:[%s165 + $0xc] sm:$0xf]
      %v176 = vld [vmem:[%s165 + $0x10] sm:$0xf]
      %v177 = vld [vmem:[%s165 + $0x14] sm:$0x1]
      %v178 = vld [vmem:[%s165 + $0x18] sm:$0xf]
      %v179 = vld [vmem:[%s165 + $0x1c] sm:$0xf]
      %v180 = vld [vmem:[%s165 + $0x20] sm:$0x1]
      %v181 = vld [vmem:[%s165 + $0x24] sm:$0xf]
      %v182 = vld [vmem:[%s165 + $0x28] sm:$0xf]
      %v183 = vld [vmem:[%s165 + $0x2c] sm:$0x1]
      %v184 = vld [vmem:[%s165 + $0x30] sm:$0xf]
      %v185 = vld [vmem:[%s165 + $0x34] sm:$0xf]
      %v186 = vld [vmem:[%s165 + $0x38] sm:$0x1]
      %v187 = vld [vmem:[%s165 + $0x3c] sm:$0xf]
      %v188 = vld [vmem:[%s165 + $0x40] sm:$0xf]
      %v189 = vld [vmem:[%s165 + $0x44] sm:$0x1]
      %v190 = vld [vmem:[%s165 + $0x48] sm:$0xf]
      %v191 = vld [vmem:[%s165 + $0x4c] sm:$0xf]
      %v192 = vld [vmem:[%s165 + $0x50] sm:$0x1]
      %v193 = vld [vmem:[%s165 + $0x54] sm:$0xf]
      %v194 = vld [vmem:[%s165 + $0x58] sm:$0xf]
      %v195 = vld [vmem:[%s165 + $0x5c] sm:$0x1]
      %v196 = vld [vmem:[%s165 + $0x60] sm:$0xf]
      %v197 = vld [vmem:[%s165 + $0x64] sm:$0xf]
      %v198 = vld [vmem:[%s165 + $0x68] sm:$0x1]
      %v199 = vld [vmem:[%s165 + $0x6c] sm:$0xf]
      %v200 = vld [vmem:[%s165 + $0x70] sm:$0xf]
      %v201 = vld [vmem:[%s165 + $0x74] sm:$0x1]
      %v202 = vld [vmem:[%s165 + $0x78] sm:$0xf]
      %v203 = vld [vmem:[%s165 + $0x7c] sm:$0xf]
      %v204 = vld [vmem:[%s165 + $0x80] sm:$0x1]
      %v205 = vld [vmem:[%s165 + $0x84] sm:$0xf]
      %v206 = vld [vmem:[%s165 + $0x88] sm:$0xf]
      %v207 = vld [vmem:[%s165 + $0x8c] sm:$0x1]
      %v208 = vld [vmem:[%s165 + $0x90] sm:$0xf]
      %v209 = vld [vmem:[%s165 + $0x94] sm:$0xf]
      %v210 = vld [vmem:[%s165 + $0x98] sm:$0x1]
      %v211 = vld [vmem:[%s165 + $0x9c] sm:$0xf]
      %v212 = vld [vmem:[%s165 + $0xa0] sm:$0xf]
      %v213 = vld [vmem:[%s165 + $0xa4] sm:$0x1]
      %v214 = vld [vmem:[%s165 + $0xa8] sm:$0xf]
      %v215 = vld [vmem:[%s165 + $0xac] sm:$0xf]
      %v216 = vld [vmem:[%s165 + $0xb0] sm:$0x1]
      %v217 = vld [vmem:[%s165 + $0xb4] sm:$0xf]
      %v218 = vld [vmem:[%s165 + $0xb8] sm:$0xf]
      %v219 = vld [vmem:[%s165 + $0xbc] sm:$0x1]
      %v220 = vld [vmem:[%s165 + $0xc0] sm:$0xf]
      %v221 = vld [vmem:[%s165 + $0xc4] sm:$0xf]
      %v222 = vld [vmem:[%s165 + $0xc8] sm:$0x1]
      %v223 = vld [vmem:[%s165 + $0xcc] sm:$0xf]
      %v224 = vld [vmem:[%s165 + $0xd0] sm:$0xf]
      %v225 = vld [vmem:[%s165 + $0xd4] sm:$0x1]
      %v226 = vld [vmem:[%s1] sm:$0xf]
      %v227 = vld [vmem:[%s1 + $0x4] sm:$0xf]
      %vm228 = vsmask.f32 3328
      %vm229 = vsmask.f32 7440
      %vm230 = vmor %vm228, %vm229
      %v232 = vshrl.u32 %v172, 16
      %v234 = vrot.slane %v232, 4
      %v235 = vshll.u32 %v172, 16
      %v237 = vrot.slane %v235, 5
      %v238 = vor.u32 %v234, %v237
      %v239 = vrot.slane %v238, 4
      %v241 = vshll.u32 %v173, 16
      %v243 = vrot.slane %v241, 5
      %v244 = vsel %vm230, %v239, %v243
      %v245 = vshrl.u32 %v173, 16
      %v247 = vrot.slane %v245, 4
      %v248 = vor.u32 %v247, %v243
      %v249 = vrot.slane %v248, 4
      %v251 = vshll.u32 %v174, 16
      %v253 = vrot.slane %v251, 5
      %v254 = vsel %vm230, %v249, %v253
      %v256 = vshrl.u32 %v175, 16
      %v258 = vrot.slane %v256, 4
      %v259 = vshll.u32 %v175, 16
      %v261 = vrot.slane %v259, 5
      %v262 = vor.u32 %v258, %v261
      %v263 = vrot.slane %v262, 4
      %v265 = vshll.u32 %v176, 16
      %v267 = vrot.slane %v265, 5
      %v268 = vsel %vm230, %v263, %v267
      %v269 = vshrl.u32 %v176, 16
      %v271 = vrot.slane %v269, 4
      %v272 = vor.u32 %v271, %v267
      %v273 = vrot.slane %v272, 4
      %v275 = vshll.u32 %v177, 16
      %v277 = vrot.slane %v275, 5
      %v278 = vsel %vm230, %v273, %v277
      %v280 = vshrl.u32 %v178, 16
      %v282 = vrot.slane %v280, 4
      %v283 = vshll.u32 %v178, 16
      %v285 = vrot.slane %v283, 5
      %v286 = vor.u32 %v282, %v285
      %v287 = vrot.slane %v286, 4
      %v289 = vshll.u32 %v179, 16
      %v291 = vrot.slane %v289, 5
      %v292 = vsel %vm230, %v287, %v291
      %v293 = vshrl.u32 %v179, 16
      %v295 = vrot.slane %v293, 4
      %v296 = vor.u32 %v295, %v291
      %v297 = vrot.slane %v296, 4
      %v299 = vshll.u32 %v180, 16
      %v301 = vrot.slane %v299, 5
      %v302 = vsel %vm230, %v297, %v301
      %v304 = vshrl.u32 %v181, 16
      %v306 = vrot.slane %v304, 4
      %v307 = vshll.u32 %v181, 16
      %v309 = vrot.slane %v307, 5
      %v310 = vor.u32 %v306, %v309
      %v311 = vrot.slane %v310, 4
      %v313 = vshll.u32 %v182, 16
      %v315 = vrot.slane %v313, 5
      %v316 = vsel %vm230, %v311, %v315
      %v317 = vshrl.u32 %v182, 16
      %v319 = vrot.slane %v317, 4
      %v320 = vor.u32 %v319, %v315
      %v321 = vrot.slane %v320, 4
      %v323 = vshll.u32 %v183, 16
      %v325 = vrot.slane %v323, 5
      %v326 = vsel %vm230, %v321, %v325
      %v328 = vshrl.u32 %v184, 16
      %v330 = vrot.slane %v328, 4
      %v331 = vshll.u32 %v184, 16
      %v333 = vrot.slane %v331, 5
      %v334 = vor.u32 %v330, %v333
      %v335 = vrot.slane %v334, 4
      %v337 = vshll.u32 %v185, 16
      %v339 = vrot.slane %v337, 5
      %v340 = vsel %vm230, %v335, %v339
      %v341 = vshrl.u32 %v185, 16
      %v343 = vrot.slane %v341, 4
      %v344 = vor.u32 %v343, %v339
      %v345 = vrot.slane %v344, 4
      %v347 = vshll.u32 %v186, 16
      %v349 = vrot.slane %v347, 5
      %v350 = vsel %vm230, %v345, %v349
      %v352 = vshrl.u32 %v187, 16
      %v354 = vrot.slane %v352, 4
      %v355 = vshll.u32 %v187, 16
      %v357 = vrot.slane %v355, 5
      %v358 = vor.u32 %v354, %v357
      %v359 = vrot.slane %v358, 4
      %v361 = vshll.u32 %v188, 16
      %v363 = vrot.slane %v361, 5
      %v364 = vsel %vm230, %v359, %v363
      %v365 = vshrl.u32 %v188, 16
      %v367 = vrot.slane %v365, 4
      %v368 = vor.u32 %v367, %v363
      %v369 = vrot.slane %v368, 4
      %v371 = vshll.u32 %v189, 16
      %v373 = vrot.slane %v371, 5
      %v374 = vsel %vm230, %v369, %v373
      %v376 = vshrl.u32 %v190, 16
      %v378 = vrot.slane %v376, 4
      %v379 = vshll.u32 %v190, 16
      %v381 = vrot.slane %v379, 5
      %v382 = vor.u32 %v378, %v381
      %v383 = vrot.slane %v382, 4
      %v385 = vshll.u32 %v191, 16
      %v387 = vrot.slane %v385, 5
      %v388 = vsel %vm230, %v383, %v387
      %v389 = vshrl.u32 %v191, 16
      %v391 = vrot.slane %v389, 4
      %v392 = vor.u32 %v391, %v387
      %v393 = vrot.slane %v392, 4
      %v395 = vshll.u32 %v192, 16
      %v397 = vrot.slane %v395, 5
      %v398 = vsel %vm230, %v393, %v397
      %v400 = vshrl.u32 %v193, 16
      %v402 = vrot.slane %v400, 4
      %v403 = vshll.u32 %v193, 16
      %v405 = vrot.slane %v403, 5
      %v406 = vor.u32 %v402, %v405
      %v407 = vrot.slane %v406, 4
      %v409 = vshll.u32 %v194, 16
      %v411 = vrot.slane %v409, 5
      %v412 = vsel %vm230, %v407, %v411
      %v413 = vshrl.u32 %v194, 16
      %v415 = vrot.slane %v413, 4
      %v416 = vor.u32 %v415, %v411
      %v417 = vrot.slane %v416, 4
      %v419 = vshll.u32 %v195, 16
      %v421 = vrot.slane %v419, 5
      %v422 = vsel %vm230, %v417, %v421
      %v424 = vshrl.u32 %v196, 16
      %v426 = vrot.slane %v424, 4
      %v427 = vshll.u32 %v196, 16
      %v429 = vrot.slane %v427, 5
      %v430 = vor.u32 %v426, %v429
      %v431 = vrot.slane %v430, 4
      %v433 = vshll.u32 %v197, 16
      %v435 = vrot.slane %v433, 5
      %v436 = vsel %vm230, %v431, %v435
      %v437 = vshrl.u32 %v197, 16
      %v439 = vrot.slane %v437, 4
      %v440 = vor.u32 %v439, %v435
      %v441 = vrot.slane %v440, 4
      %v443 = vshll.u32 %v198, 16
      %v445 = vrot.slane %v443, 5
      %v446 = vsel %vm230, %v441, %v445
      %v448 = vshrl.u32 %v199, 16
      %v450 = vrot.slane %v448, 4
      %v451 = vshll.u32 %v199, 16
      %v453 = vrot.slane %v451, 5
      %v454 = vor.u32 %v450, %v453
      %v455 = vrot.slane %v454, 4
      %v457 = vshll.u32 %v200, 16
      %v459 = vrot.slane %v457, 5
      %v460 = vsel %vm230, %v455, %v459
      %v461 = vshrl.u32 %v200, 16
      %v463 = vrot.slane %v461, 4
      %v464 = vor.u32 %v463, %v459
      %v465 = vrot.slane %v464, 4
      %v467 = vshll.u32 %v201, 16
      %v469 = vrot.slane %v467, 5
      %v470 = vsel %vm230, %v465, %v469
      %v472 = vshrl.u32 %v202, 16
      %v474 = vrot.slane %v472, 4
      %v475 = vshll.u32 %v202, 16
      %v477 = vrot.slane %v475, 5
      %v478 = vor.u32 %v474, %v477
      %v479 = vrot.slane %v478, 4
      %v481 = vshll.u32 %v203, 16
      %v483 = vrot.slane %v481, 5
      %v484 = vsel %vm230, %v479, %v483
      %v485 = vshrl.u32 %v203, 16
      %v487 = vrot.slane %v485, 4
      %v488 = vor.u32 %v487, %v483
      %v489 = vrot.slane %v488, 4
      %v491 = vshll.u32 %v204, 16
      %v493 = vrot.slane %v491, 5
      %v494 = vsel %vm230, %v489, %v493
      %v496 = vshrl.u32 %v205, 16
      %v498 = vrot.slane %v496, 4
      %v499 = vshll.u32 %v205, 16
      %v501 = vrot.slane %v499, 5
      %v502 = vor.u32 %v498, %v501
      %v503 = vrot.slane %v502, 4
      %v505 = vshll.u32 %v206, 16
      %v507 = vrot.slane %v505, 5
      %v508 = vsel %vm230, %v503, %v507
      %v509 = vshrl.u32 %v206, 16
      %v511 = vrot.slane %v509, 4
      %v512 = vor.u32 %v511, %v507
      %v513 = vrot.slane %v512, 4
      %v515 = vshll.u32 %v207, 16
      %v517 = vrot.slane %v515, 5
      %v518 = vsel %vm230, %v513, %v517
      %v520 = vshrl.u32 %v208, 16
      %v522 = vrot.slane %v520, 4
      %v523 = vshll.u32 %v208, 16
      %v525 = vrot.slane %v523, 5
      %v526 = vor.u32 %v522, %v525
      %v527 = vrot.slane %v526, 4
      %v529 = vshll.u32 %v209, 16
      %v531 = vrot.slane %v529, 5
      %v532 = vsel %vm230, %v527, %v531
      %v533 = vshrl.u32 %v209, 16
      %v535 = vrot.slane %v533, 4
      %v536 = vor.u32 %v535, %v531
      %v537 = vrot.slane %v536, 4
      %v539 = vshll.u32 %v210, 16
      %v541 = vrot.slane %v539, 5
      %v542 = vsel %vm230, %v537, %v541
      %v544 = vshrl.u32 %v211, 16
      %v546 = vrot.slane %v544, 4
      %v547 = vshll.u32 %v211, 16
      %v549 = vrot.slane %v547, 5
      %v550 = vor.u32 %v546, %v549
      %v551 = vrot.slane %v550, 4
      %v553 = vshll.u32 %v212, 16
      %v555 = vrot.slane %v553, 5
      %v556 = vsel %vm230, %v551, %v555
      %v557 = vshrl.u32 %v212, 16
      %v559 = vrot.slane %v557, 4
      %v560 = vor.u32 %v559, %v555
      %v561 = vrot.slane %v560, 4
      %v563 = vshll.u32 %v213, 16
      %v565 = vrot.slane %v563, 5
      %v566 = vsel %vm230, %v561, %v565
      %v568 = vshrl.u32 %v214, 16
      %v570 = vrot.slane %v568, 4
      %v571 = vshll.u32 %v214, 16
      %v573 = vrot.slane %v571, 5
      %v574 = vor.u32 %v570, %v573
      %v575 = vrot.slane %v574, 4
      %v577 = vshll.u32 %v215, 16
      %v579 = vrot.slane %v577, 5
      %v580 = vsel %vm230, %v575, %v579
      %v581 = vshrl.u32 %v215, 16
      %v583 = vrot.slane %v581, 4
      %v584 = vor.u32 %v583, %v579
      %v585 = vrot.slane %v584, 4
      %v587 = vshll.u32 %v216, 16
      %v589 = vrot.slane %v587, 5
      %v590 = vsel %vm230, %v585, %v589
      %v592 = vshrl.u32 %v217, 16
      %v594 = vrot.slane %v592, 4
      %v595 = vshll.u32 %v217, 16
      %v597 = vrot.slane %v595, 5
      %v598 = vor.u32 %v594, %v597
      %v599 = vrot.slane %v598, 4
      %v601 = vshll.u32 %v218, 16
      %v603 = vrot.slane %v601, 5
      %v604 = vsel %vm230, %v599, %v603
      %v605 = vshrl.u32 %v218, 16
      %v607 = vrot.slane %v605, 4
      %v608 = vor.u32 %v607, %v603
      %v609 = vrot.slane %v608, 4
      %v611 = vshll.u32 %v219, 16
      %v613 = vrot.slane %v611, 5
      %v614 = vsel %vm230, %v609, %v613
      %s615 = scalar_lea.vmem %s1, 8
      %v616 = vld [vmem:[%s615] sm:$0xf]
      %v617 = vld [vmem:[%s615 + $0x4] sm:$0xf]
      %v618 = vunpack.c.l.b16 %v244
      %v619 = vunpack.c.l.b16 %v254
      %v620 = vunpack.c.l.b16 %v268
      %v621 = vunpack.c.l.b16 %v278
      %v622 = vunpack.c.l.b16 %v292
      %v623 = vunpack.c.l.b16 %v302
      %v624 = vunpack.c.l.b16 %v316
      %v625 = vunpack.c.l.b16 %v326
      %v626 = vunpack.c.l.b16 %v340
      %v627 = vunpack.c.l.b16 %v350
      %v628 = vunpack.c.l.b16 %v364
      %v629 = vunpack.c.l.b16 %v374
      %v630 = vunpack.c.l.b16 %v388
      %v631 = vunpack.c.l.b16 %v398
      %v632 = vunpack.c.l.b16 %v412
      %v633 = vunpack.c.l.b16 %v422
      %v634 = vunpack.c.l.b16 %v436
      %v635 = vunpack.c.l.b16 %v446
      %v636 = vunpack.c.l.b16 %v460
      %v637 = vunpack.c.l.b16 %v470
      %v638 = vunpack.c.l.b16 %v484
      %v639 = vunpack.c.l.b16 %v494
      %v640 = vunpack.c.l.b16 %v508
      %v641 = vunpack.c.l.b16 %v518
      %v642 = vunpack.c.l.b16 %v532
      %v643 = vunpack.c.l.b16 %v542
      %v644 = vunpack.c.l.b16 %v556
      %v645 = vunpack.c.l.b16 %v566
      %v646 = vunpack.c.l.b16 %v580
      %v647 = vunpack.c.l.b16 %v590
      %v648 = vunpack.c.l.b16 %v604
      %v649 = vunpack.c.l.b16 %v614
      %v650 = vpack.c.b16 %v619, %v618
      %v651 = vpack.c.b16 %v621, %v620
      %v652 = vpack.c.b16 %v623, %v622
      %v653 = vpack.c.b16 %v625, %v624
      %v654 = vpack.c.b16 %v627, %v626
      %v655 = vpack.c.b16 %v629, %v628
      %v656 = vpack.c.b16 %v631, %v630
      %v657 = vpack.c.b16 %v633, %v632
      %v658 = vpack.c.b16 %v635, %v634
      %v659 = vpack.c.b16 %v637, %v636
      %v660 = vpack.c.b16 %v639, %v638
      %v661 = vpack.c.b16 %v641, %v640
      %v662 = vpack.c.b16 %v643, %v642
      %v663 = vpack.c.b16 %v645, %v644
      %v664 = vpack.c.b16 %v647, %v646
      %v665 = vpack.c.b16 %v649, %v648
      %v668 = vunpack.c.l.b16 %v616
      %v669 = vunpack.c.l.b16 %v617
      %v670 = vpack.c.b16 %v669, %v668
      %vm672 = vcmask 130048
      %v674 = vsel %vm672, %v650, 0
      %v677 = vsel %vm672, %v651, 0
      %v680 = vsel %vm672, %v652, 0
      %v683 = vsel %vm672, %v653, 0
      %v686 = vsel %vm672, %v654, 0
      %v689 = vsel %vm672, %v655, 0
      %v692 = vsel %vm672, %v656, 0
      %v695 = vsel %vm672, %v657, 0
      %v698 = vsel %vm672, %v658, 0
      %v701 = vsel %vm672, %v659, 0
      %v704 = vsel %vm672, %v660, 0
      %v707 = vsel %vm672, %v661, 0
      %v710 = vsel %vm672, %v662, 0
      %v713 = vsel %vm672, %v663, 0
      %v716 = vsel %vm672, %v664, 0
      %v719 = vsel %vm672, %v665, 0
      %721 = vmatpush.bf16.msra.mxu0 0
      %722 = vmatpush.bf16.msra.mxu0 0
      %723 = vmatpush.bf16.msra.mxu0 0
      %724 = vmatpush.bf16.msra.mxu0 0
      %725 = vmatpush.bf16.msra.mxu0 0
      %726 = vmatpush.bf16.msra.mxu0 0
      %727 = vmatpush.bf16.msra.mxu0 0
      %728 = vmatpush.bf16.msra.mxu0 %v670
      %729 = vmatmul.bf16.gmra.mxu0 %v674
      %v730 = vpop.f32.mrf.mxu0
      %v731 = vadd.f32 0.0, %v730
      %v732 = vpop.f32.mrf.mxu0
      %v733 = vadd.f32 0.0, %v732
      %734 = vmatmul.bf16.gmra.mxu0 %v677
      %v735 = vpop.f32.mrf.mxu0
      %v736 = vadd.f32 0.0, %v735
      %v737 = vpop.f32.mrf.mxu0
      %v738 = vadd.f32 0.0, %v737
      %739 = vmatmul.bf16.gmra.mxu0 %v680
      %v740 = vpop.f32.mrf.mxu0
      %v741 = vadd.f32 0.0, %v740
      %v742 = vpop.f32.mrf.mxu0
      %v743 = vadd.f32 0.0, %v742
      %744 = vmatmul.bf16.gmra.mxu0 %v683
      %v745 = vpop.f32.mrf.mxu0
      %v746 = vadd.f32 0.0, %v745
      %v747 = vpop.f32.mrf.mxu0
      %v748 = vadd.f32 0.0, %v747
      %749 = vmatmul.bf16.gmra.mxu0 %v686
      %v750 = vpop.f32.mrf.mxu0
      %v751 = vadd.f32 0.0, %v750
      %v752 = vpop.f32.mrf.mxu0
      %v753 = vadd.f32 0.0, %v752
      %754 = vmatmul.bf16.gmra.mxu0 %v689
      %v755 = vpop.f32.mrf.mxu0
      %v756 = vadd.f32 0.0, %v755
      %v757 = vpop.f32.mrf.mxu0
      %v758 = vadd.f32 0.0, %v757
      %759 = vmatmul.bf16.gmra.mxu0 %v692
      %v760 = vpop.f32.mrf.mxu0
      %v761 = vadd.f32 0.0, %v760
      %v762 = vpop.f32.mrf.mxu0
      %v763 = vadd.f32 0.0, %v762
      %764 = vmatmul.bf16.gmra.mxu0 %v695
      %v765 = vpop.f32.mrf.mxu0
      %v766 = vadd.f32 0.0, %v765
      %v767 = vpop.f32.mrf.mxu0
      %v768 = vadd.f32 0.0, %v767
      %769 = vmatmul.bf16.gmra.mxu0 %v698
      %v770 = vpop.f32.mrf.mxu0
      %v771 = vadd.f32 0.0, %v770
      %v772 = vpop.f32.mrf.mxu0
      %v773 = vadd.f32 0.0, %v772
      %774 = vmatmul.bf16.gmra.mxu0 %v701
      %v775 = vpop.f32.mrf.mxu0
      %v776 = vadd.f32 0.0, %v775
      %v777 = vpop.f32.mrf.mxu0
      %v778 = vadd.f32 0.0, %v777
      %779 = vmatmul.bf16.gmra.mxu0 %v704
      %v780 = vpop.f32.mrf.mxu0
      %v781 = vadd.f32 0.0, %v780
      %v782 = vpop.f32.mrf.mxu0
      %v783 = vadd.f32 0.0, %v782
      %784 = vmatmul.bf16.gmra.mxu0 %v707
      %v785 = vpop.f32.mrf.mxu0
      %v786 = vadd.f32 0.0, %v785
      %v787 = vpop.f32.mrf.mxu0
      %v788 = vadd.f32 0.0, %v787
      %789 = vmatmul.bf16.gmra.mxu0 %v710
      %v790 = vpop.f32.mrf.mxu0
      %v791 = vadd.f32 0.0, %v790
      %v792 = vpop.f32.mrf.mxu0
      %v793 = vadd.f32 0.0, %v792
      %794 = vmatmul.bf16.gmra.mxu0 %v713
      %v795 = vpop.f32.mrf.mxu0
      %v796 = vadd.f32 0.0, %v795
      %v797 = vpop.f32.mrf.mxu0
      %v798 = vadd.f32 0.0, %v797
      %799 = vmatmul.bf16.gmra.mxu0 %v716
      %v800 = vpop.f32.mrf.mxu0
      %v801 = vadd.f32 0.0, %v800
      %v802 = vpop.f32.mrf.mxu0
      %v803 = vadd.f32 0.0, %v802
      %804 = vmatmul.bf16.gmra.mxu0 %v719
      %v805 = vpop.f32.mrf.mxu0
      %v806 = vadd.f32 0.0, %v805
      %v807 = vpop.f32.mrf.mxu0
      %v808 = vadd.f32 0.0, %v807
      %809 = vdwg.mxu0
      %v842 = vunpack.c.l.b16 %v172
      %v843 = vunpack.c.l.b16 %v173
      %v844 = vunpack.c.l.b16 %v175
      %v845 = vunpack.c.l.b16 %v176
      %v846 = vunpack.c.l.b16 %v178
      %v847 = vunpack.c.l.b16 %v179
      %v848 = vunpack.c.l.b16 %v181
      %v849 = vunpack.c.l.b16 %v182
      %v850 = vunpack.c.l.b16 %v184
      %v851 = vunpack.c.l.b16 %v185
      %v852 = vunpack.c.l.b16 %v187
      %v853 = vunpack.c.l.b16 %v188
      %v854 = vunpack.c.l.b16 %v190
      %v855 = vunpack.c.l.b16 %v191
      %v856 = vunpack.c.l.b16 %v193
      %v857 = vunpack.c.l.b16 %v194
      %v858 = vunpack.c.l.b16 %v196
      %v859 = vunpack.c.l.b16 %v197
      %v860 = vunpack.c.l.b16 %v199
      %v861 = vunpack.c.l.b16 %v200
      %v862 = vunpack.c.l.b16 %v202
      %v863 = vunpack.c.l.b16 %v203
      %v864 = vunpack.c.l.b16 %v205
      %v865 = vunpack.c.l.b16 %v206
      %v866 = vunpack.c.l.b16 %v208
      %v867 = vunpack.c.l.b16 %v209
      %v868 = vunpack.c.l.b16 %v211
      %v869 = vunpack.c.l.b16 %v212
      %v870 = vunpack.c.l.b16 %v214
      %v871 = vunpack.c.l.b16 %v215
      %v872 = vunpack.c.l.b16 %v217
      %v873 = vunpack.c.l.b16 %v218
      %v874 = vpack.c.b16 %v843, %v842
      %v875 = vpack.c.b16 %v845, %v844
      %v876 = vpack.c.b16 %v847, %v846
      %v877 = vpack.c.b16 %v849, %v848
      %v878 = vpack.c.b16 %v851, %v850
      %v879 = vpack.c.b16 %v853, %v852
      %v880 = vpack.c.b16 %v855, %v854
      %v881 = vpack.c.b16 %v857, %v856
      %v882 = vpack.c.b16 %v859, %v858
      %v883 = vpack.c.b16 %v861, %v860
      %v884 = vpack.c.b16 %v863, %v862
      %v885 = vpack.c.b16 %v865, %v864
      %v886 = vpack.c.b16 %v867, %v866
      %v887 = vpack.c.b16 %v869, %v868
      %v888 = vpack.c.b16 %v871, %v870
      %v889 = vpack.c.b16 %v873, %v872
      %v892 = vunpack.c.l.b16 %v226
      %v893 = vunpack.c.l.b16 %v227
      %v894 = vpack.c.b16 %v893, %v892
      %v897 = vsel %vm672, %v874, 0
      %v900 = vsel %vm672, %v875, 0
      %v903 = vsel %vm672, %v876, 0
      %v906 = vsel %vm672, %v877, 0
      %v909 = vsel %vm672, %v878, 0
      %v912 = vsel %vm672, %v879, 0
      %v915 = vsel %vm672, %v880, 0
      %v918 = vsel %vm672, %v881, 0
      %v921 = vsel %vm672, %v882, 0
      %v924 = vsel %vm672, %v883, 0
      %v927 = vsel %vm672, %v884, 0
      %v930 = vsel %vm672, %v885, 0
      %v933 = vsel %vm672, %v886, 0
      %v936 = vsel %vm672, %v887, 0
      %v939 = vsel %vm672, %v888, 0
      %v942 = vsel %vm672, %v889, 0
      %944 = vmatpush.bf16.msra.mxu0 0
      %945 = vmatpush.bf16.msra.mxu0 0
      %946 = vmatpush.bf16.msra.mxu0 0
      %947 = vmatpush.bf16.msra.mxu0 0
      %948 = vmatpush.bf16.msra.mxu0 0
      %949 = vmatpush.bf16.msra.mxu0 0
      %950 = vmatpush.bf16.msra.mxu0 0
      %951 = vmatpush.bf16.msra.mxu0 %v894
      %952 = vmatmul.bf16.gmra.mxu0 %v897
      %v953 = vpop.f32.mrf.mxu0
      %v954 = vadd.f32 %v731, %v953
      %v955 = vpop.f32.mrf.mxu0
      %v956 = vadd.f32 %v733, %v955
      %957 = vmatmul.bf16.gmra.mxu0 %v900
      %v958 = vpop.f32.mrf.mxu0
      %v959 = vadd.f32 %v736, %v958
      %v960 = vpop.f32.mrf.mxu0
      %v961 = vadd.f32 %v738, %v960
      %962 = vmatmul.bf16.gmra.mxu0 %v903
      %v963 = vpop.f32.mrf.mxu0
      %v964 = vadd.f32 %v741, %v963
      %v965 = vpop.f32.mrf.mxu0
      %v966 = vadd.f32 %v743, %v965
      %967 = vmatmul.bf16.gmra.mxu0 %v906
      %v968 = vpop.f32.mrf.mxu0
      %v969 = vadd.f32 %v746, %v968
      %v970 = vpop.f32.mrf.mxu0
      %v971 = vadd.f32 %v748, %v970
      %972 = vmatmul.bf16.gmra.mxu0 %v909
      %v973 = vpop.f32.mrf.mxu0
      %v974 = vadd.f32 %v751, %v973
      %v975 = vpop.f32.mrf.mxu0
      %v976 = vadd.f32 %v753, %v975
      %977 = vmatmul.bf16.gmra.mxu0 %v912
      %v978 = vpop.f32.mrf.mxu0
      %v979 = vadd.f32 %v756, %v978
      %v980 = vpop.f32.mrf.mxu0
      %v981 = vadd.f32 %v758, %v980
      %982 = vmatmul.bf16.gmra.mxu0 %v915
      %v983 = vpop.f32.mrf.mxu0
      %v984 = vadd.f32 %v761, %v983
      %v985 = vpop.f32.mrf.mxu0
      %v986 = vadd.f32 %v763, %v985
      %987 = vmatmul.bf16.gmra.mxu0 %v918
      %v988 = vpop.f32.mrf.mxu0
      %v989 = vadd.f32 %v766, %v988
      %v990 = vpop.f32.mrf.mxu0
      %v991 = vadd.f32 %v768, %v990
      %992 = vmatmul.bf16.gmra.mxu0 %v921
      %v993 = vpop.f32.mrf.mxu0
      %v994 = vadd.f32 %v771, %v993
      %v995 = vpop.f32.mrf.mxu0
      %v996 = vadd.f32 %v773, %v995
      %997 = vmatmul.bf16.gmra.mxu0 %v924
      %v998 = vpop.f32.mrf.mxu0
      %v999 = vadd.f32 %v776, %v998
      %v1000 = vpop.f32.mrf.mxu0
      %v1001 = vadd.f32 %v778, %v1000
      %1002 = vmatmul.bf16.gmra.mxu0 %v927
      %v1003 = vpop.f32.mrf.mxu0
      %v1004 = vadd.f32 %v781, %v1003
      %v1005 = vpop.f32.mrf.mxu0
      %v1006 = vadd.f32 %v783, %v1005
      %1007 = vmatmul.bf16.gmra.mxu0 %v930
      %v1008 = vpop.f32.mrf.mxu0
      %v1009 = vadd.f32 %v786, %v1008
      %v1010 = vpop.f32.mrf.mxu0
      %v1011 = vadd.f32 %v788, %v1010
      %1012 = vmatmul.bf16.gmra.mxu0 %v933
      %v1013 = vpop.f32.mrf.mxu0
      %v1014 = vadd.f32 %v791, %v1013
      %v1015 = vpop.f32.mrf.mxu0
      %v1016 = vadd.f32 %v793, %v1015
      %1017 = vmatmul.bf16.gmra.mxu0 %v936
      %v1018 = vpop.f32.mrf.mxu0
      %v1019 = vadd.f32 %v796, %v1018
      %v1020 = vpop.f32.mrf.mxu0
      %v1021 = vadd.f32 %v798, %v1020
      %1022 = vmatmul.bf16.gmra.mxu0 %v939
      %v1023 = vpop.f32.mrf.mxu0
      %v1024 = vadd.f32 %v801, %v1023
      %v1025 = vpop.f32.mrf.mxu0
      %v1026 = vadd.f32 %v803, %v1025
      %1027 = vmatmul.bf16.gmra.mxu0 %v942
      %v1028 = vpop.f32.mrf.mxu0
      %v1029 = vadd.f32 %v806, %v1028
      %v1030 = vpop.f32.mrf.mxu0
      %v1031 = vadd.f32 %v808, %v1030
      %1032 = vdwg.mxu0
      %vm1049 = vcmask 1042432
      %vm1050 = vcmask 1046532
      %vm1051 = vmor %vm1049, %vm1050
      %v1052 = vrot.slane %v172, 5
      %v1053 = vrot.slane %v1052, 4
      %v1054 = vrot.slane %v173, 5
      %v1055 = vsel %vm1051, %v1053, %v1054
      %v1056 = vrot.slane %v1054, 4
      %v1057 = vrot.slane %v174, 5
      %v1058 = vsel %vm1051, %v1056, %v1057
      %v1059 = vrot.slane %v175, 5
      %v1060 = vrot.slane %v1059, 4
      %v1061 = vrot.slane %v176, 5
      %v1062 = vsel %vm1051, %v1060, %v1061
      %v1063 = vrot.slane %v1061, 4
      %v1064 = vrot.slane %v177, 5
      %v1065 = vsel %vm1051, %v1063, %v1064
      %v1066 = vrot.slane %v178, 5
      %v1067 = vrot.slane %v1066, 4
      %v1068 = vrot.slane %v179, 5
      %v1069 = vsel %vm1051, %v1067, %v1068
      %v1070 = vrot.slane %v1068, 4
      %v1071 = vrot.slane %v180, 5
      %v1072 = vsel %vm1051, %v1070, %v1071
      %v1073 = vrot.slane %v181, 5
      %v1074 = vrot.slane %v1073, 4
      %v1075 = vrot.slane %v182, 5
      %v1076 = vsel %vm1051, %v1074, %v1075
      %v1077 = vrot.slane %v1075, 4
      %v1078 = vrot.slane %v183, 5
      %v1079 = vsel %vm1051, %v1077, %v1078
      %v1080 = vrot.slane %v184, 5
      %v1081 = vrot.slane %v1080, 4
      %v1082 = vrot.slane %v185, 5
      %v1083 = vsel %vm1051, %v1081, %v1082
      %v1084 = vrot.slane %v1082, 4
      %v1085 = vrot.slane %v186, 5
      %v1086 = vsel %vm1051, %v1084, %v1085
      %v1087 = vrot.slane %v187, 5
      %v1088 = vrot.slane %v1087, 4
      %v1089 = vrot.slane %v188, 5
      %v1090 = vsel %vm1051, %v1088, %v1089
      %v1091 = vrot.slane %v1089, 4
      %v1092 = vrot.slane %v189, 5
      %v1093 = vsel %vm1051, %v1091, %v1092
      %v1094 = vrot.slane %v190, 5
      %v1095 = vrot.slane %v1094, 4
      %v1096 = vrot.slane %v191, 5
      %v1097 = vsel %vm1051, %v1095, %v1096
      %v1098 = vrot.slane %v1096, 4
      %v1099 = vrot.slane %v192, 5
      %v1100 = vsel %vm1051, %v1098, %v1099
      %v1101 = vrot.slane %v193, 5
      %v1102 = vrot.slane %v1101, 4
      %v1103 = vrot.slane %v194, 5
      %v1104 = vsel %vm1051, %v1102, %v1103
      %v1105 = vrot.slane %v1103, 4
      %v1106 = vrot.slane %v195, 5
      %v1107 = vsel %vm1051, %v1105, %v1106
      %v1108 = vrot.slane %v196, 5
      %v1109 = vrot.slane %v1108, 4
      %v1110 = vrot.slane %v197, 5
      %v1111 = vsel %vm1051, %v1109, %v1110
      %v1112 = vrot.slane %v1110, 4
      %v1113 = vrot.slane %v198, 5
      %v1114 = vsel %vm1051, %v1112, %v1113
      %v1115 = vrot.slane %v199, 5
      %v1116 = vrot.slane %v1115, 4
      %v1117 = vrot.slane %v200, 5
      %v1118 = vsel %vm1051, %v1116, %v1117
      %v1119 = vrot.slane %v1117, 4
      %v1120 = vrot.slane %v201, 5
      %v1121 = vsel %vm1051, %v1119, %v1120
      %v1122 = vrot.slane %v202, 5
      %v1123 = vrot.slane %v1122, 4
      %v1124 = vrot.slane %v203, 5
      %v1125 = vsel %vm1051, %v1123, %v1124
      %v1126 = vrot.slane %v1124, 4
      %v1127 = vrot.slane %v204, 5
      %v1128 = vsel %vm1051, %v1126, %v1127
      %v1129 = vrot.slane %v205, 5
      %v1130 = vrot.slane %v1129, 4
      %v1131 = vrot.slane %v206, 5
      %v1132 = vsel %vm1051, %v1130, %v1131
      %v1133 = vrot.slane %v1131, 4
      %v1134 = vrot.slane %v207, 5
      %v1135 = vsel %vm1051, %v1133, %v1134
      %v1136 = vrot.slane %v208, 5
      %v1137 = vrot.slane %v1136, 4
      %v1138 = vrot.slane %v209, 5
      %v1139 = vsel %vm1051, %v1137, %v1138
      %v1140 = vrot.slane %v1138, 4
      %v1141 = vrot.slane %v210, 5
      %v1142 = vsel %vm1051, %v1140, %v1141
      %v1143 = vrot.slane %v211, 5
      %v1144 = vrot.slane %v1143, 4
      %v1145 = vrot.slane %v212, 5
      %v1146 = vsel %vm1051, %v1144, %v1145
      %v1147 = vrot.slane %v1145, 4
      %v1148 = vrot.slane %v213, 5
      %v1149 = vsel %vm1051, %v1147, %v1148
      %v1150 = vrot.slane %v214, 5
      %v1151 = vrot.slane %v1150, 4
      %v1152 = vrot.slane %v215, 5
      %v1153 = vsel %vm1051, %v1151, %v1152
      %v1154 = vrot.slane %v1152, 4
      %v1155 = vrot.slane %v216, 5
      %v1156 = vsel %vm1051, %v1154, %v1155
      %v1157 = vrot.slane %v217, 5
      %v1158 = vrot.slane %v1157, 4
      %v1159 = vrot.slane %v218, 5
      %v1160 = vsel %vm1051, %v1158, %v1159
      %v1161 = vrot.slane %v1159, 4
      %v1162 = vrot.slane %v219, 5
      %v1163 = vsel %vm1051, %v1161, %v1162
      %s1164 = scalar_lea.vmem %s1, 16
      %v1165 = vld [vmem:[%s1164] sm:$0xf]
      %v1166 = vld [vmem:[%s1164 + $0x4] sm:$0xf]
      %v1167 = vunpack.c.l.b16 %v1055
      %v1168 = vunpack.c.l.b16 %v1058
      %v1169 = vunpack.c.l.b16 %v1062
      %v1170 = vunpack.c.l.b16 %v1065
      %v1171 = vunpack.c.l.b16 %v1069
      %v1172 = vunpack.c.l.b16 %v1072
      %v1173 = vunpack.c.l.b16 %v1076
      %v1174 = vunpack.c.l.b16 %v1079
      %v1175 = vunpack.c.l.b16 %v1083
      %v1176 = vunpack.c.l.b16 %v1086
      %v1177 = vunpack.c.l.b16 %v1090
      %v1178 = vunpack.c.l.b16 %v1093
      %v1179 = vunpack.c.l.b16 %v1097
      %v1180 = vunpack.c.l.b16 %v1100
      %v1181 = vunpack.c.l.b16 %v1104
      %v1182 = vunpack.c.l.b16 %v1107
      %v1183 = vunpack.c.l.b16 %v1111
      %v1184 = vunpack.c.l.b16 %v1114
      %v1185 = vunpack.c.l.b16 %v1118
      %v1186 = vunpack.c.l.b16 %v1121
      %v1187 = vunpack.c.l.b16 %v1125
      %v1188 = vunpack.c.l.b16 %v1128
      %v1189 = vunpack.c.l.b16 %v1132
      %v1190 = vunpack.c.l.b16 %v1135
      %v1191 = vunpack.c.l.b16 %v1139
      %v1192 = vunpack.c.l.b16 %v1142
      %v1193 = vunpack.c.l.b16 %v1146
      %v1194 = vunpack.c.l.b16 %v1149
      %v1195 = vunpack.c.l.b16 %v1153
      %v1196 = vunpack.c.l.b16 %v1156
      %v1197 = vunpack.c.l.b16 %v1160
      %v1198 = vunpack.c.l.b16 %v1163
      %v1199 = vpack.c.b16 %v1168, %v1167
      %v1200 = vpack.c.b16 %v1170, %v1169
      %v1201 = vpack.c.b16 %v1172, %v1171
      %v1202 = vpack.c.b16 %v1174, %v1173
      %v1203 = vpack.c.b16 %v1176, %v1175
      %v1204 = vpack.c.b16 %v1178, %v1177
      %v1205 = vpack.c.b16 %v1180, %v1179
      %v1206 = vpack.c.b16 %v1182, %v1181
      %v1207 = vpack.c.b16 %v1184, %v1183
      %v1208 = vpack.c.b16 %v1186, %v1185
      %v1209 = vpack.c.b16 %v1188, %v1187
      %v1210 = vpack.c.b16 %v1190, %v1189
      %v1211 = vpack.c.b16 %v1192, %v1191
      %v1212 = vpack.c.b16 %v1194, %v1193
      %v1213 = vpack.c.b16 %v1196, %v1195
      %v1214 = vpack.c.b16 %v1198, %v1197
      %v1217 = vunpack.c.l.b16 %v1165
      %v1218 = vunpack.c.l.b16 %v1166
      %v1219 = vpack.c.b16 %v1218, %v1217
      %v1222 = vsel %vm672, %v1199, 0
      %v1225 = vsel %vm672, %v1200, 0
      %v1228 = vsel %vm672, %v1201, 0
      %v1231 = vsel %vm672, %v1202, 0
      %v1234 = vsel %vm672, %v1203, 0
      %v1237 = vsel %vm672, %v1204, 0
      %v1240 = vsel %vm672, %v1205, 0
      %v1243 = vsel %vm672, %v1206, 0
      %v1246 = vsel %vm672, %v1207, 0
      %v1249 = vsel %vm672, %v1208, 0
      %v1252 = vsel %vm672, %v1209, 0
      %v1255 = vsel %vm672, %v1210, 0
      %v1258 = vsel %vm672, %v1211, 0
      %v1261 = vsel %vm672, %v1212, 0
      %v1264 = vsel %vm672, %v1213, 0
      %v1267 = vsel %vm672, %v1214, 0
      %1269 = vmatpush.bf16.msra.mxu0 0
      %1270 = vmatpush.bf16.msra.mxu0 0
      %1271 = vmatpush.bf16.msra.mxu0 0
      %1272 = vmatpush.bf16.msra.mxu0 0
      %1273 = vmatpush.bf16.msra.mxu0 0
      %1274 = vmatpush.bf16.msra.mxu0 0
      %1275 = vmatpush.bf16.msra.mxu0 0
      %1276 = vmatpush.bf16.msra.mxu0 %v1219
      %1277 = vmatmul.bf16.gmra.mxu0 %v1222
      %v1278 = vpop.f32.mrf.mxu0
      %v1279 = vadd.f32 0.0, %v1278
      %v1280 = vpop.f32.mrf.mxu0
      %v1281 = vadd.f32 0.0, %v1280
      %1282 = vmatmul.bf16.gmra.mxu0 %v1225
      %v1283 = vpop.f32.mrf.mxu0
      %v1284 = vadd.f32 0.0, %v1283
      %v1285 = vpop.f32.mrf.mxu0
      %v1286 = vadd.f32 0.0, %v1285
      %1287 = vmatmul.bf16.gmra.mxu0 %v1228
      %v1288 = vpop.f32.mrf.mxu0
      %v1289 = vadd.f32 0.0, %v1288
      %v1290 = vpop.f32.mrf.mxu0
      %v1291 = vadd.f32 0.0, %v1290
      %1292 = vmatmul.bf16.gmra.mxu0 %v1231
      %v1293 = vpop.f32.mrf.mxu0
      %v1294 = vadd.f32 0.0, %v1293
      %v1295 = vpop.f32.mrf.mxu0
      %v1296 = vadd.f32 0.0, %v1295
      %1297 = vmatmul.bf16.gmra.mxu0 %v1234
      %v1298 = vpop.f32.mrf.mxu0
      %v1299 = vadd.f32 0.0, %v1298
      %v1300 = vpop.f32.mrf.mxu0
      %v1301 = vadd.f32 0.0, %v1300
      %1302 = vmatmul.bf16.gmra.mxu0 %v1237
      %v1303 = vpop.f32.mrf.mxu0
      %v1304 = vadd.f32 0.0, %v1303
      %v1305 = vpop.f32.mrf.mxu0
      %v1306 = vadd.f32 0.0, %v1305
      %1307 = vmatmul.bf16.gmra.mxu0 %v1240
      %v1308 = vpop.f32.mrf.mxu0
      %v1309 = vadd.f32 0.0, %v1308
      %v1310 = vpop.f32.mrf.mxu0
      %v1311 = vadd.f32 0.0, %v1310
      %1312 = vmatmul.bf16.gmra.mxu0 %v1243
      %v1313 = vpop.f32.mrf.mxu0
      %v1314 = vadd.f32 0.0, %v1313
      %v1315 = vpop.f32.mrf.mxu0
      %v1316 = vadd.f32 0.0, %v1315
      %1317 = vmatmul.bf16.gmra.mxu0 %v1246
      %v1318 = vpop.f32.mrf.mxu0
      %v1319 = vadd.f32 0.0, %v1318
      %v1320 = vpop.f32.mrf.mxu0
      %v1321 = vadd.f32 0.0, %v1320
      %1322 = vmatmul.bf16.gmra.mxu0 %v1249
      %v1323 = vpop.f32.mrf.mxu0
      %v1324 = vadd.f32 0.0, %v1323
      %v1325 = vpop.f32.mrf.mxu0
      %v1326 = vadd.f32 0.0, %v1325
      %1327 = vmatmul.bf16.gmra.mxu0 %v1252
      %v1328 = vpop.f32.mrf.mxu0
      %v1329 = vadd.f32 0.0, %v1328
      %v1330 = vpop.f32.mrf.mxu0
      %v1331 = vadd.f32 0.0, %v1330
      %1332 = vmatmul.bf16.gmra.mxu0 %v1255
      %v1333 = vpop.f32.mrf.mxu0
      %v1334 = vadd.f32 0.0, %v1333
      %v1335 = vpop.f32.mrf.mxu0
      %v1336 = vadd.f32 0.0, %v1335
      %1337 = vmatmul.bf16.gmra.mxu0 %v1258
      %v1338 = vpop.f32.mrf.mxu0
      %v1339 = vadd.f32 0.0, %v1338
      %v1340 = vpop.f32.mrf.mxu0
      %v1341 = vadd.f32 0.0, %v1340
      %1342 = vmatmul.bf16.gmra.mxu0 %v1261
      %v1343 = vpop.f32.mrf.mxu0
      %v1344 = vadd.f32 0.0, %v1343
      %v1345 = vpop.f32.mrf.mxu0
      %v1346 = vadd.f32 0.0, %v1345
      %1347 = vmatmul.bf16.gmra.mxu0 %v1264
      %v1348 = vpop.f32.mrf.mxu0
      %v1349 = vadd.f32 0.0, %v1348
      %v1350 = vpop.f32.mrf.mxu0
      %v1351 = vadd.f32 0.0, %v1350
      %1352 = vmatmul.bf16.gmra.mxu0 %v1267
      %v1353 = vpop.f32.mrf.mxu0
      %v1354 = vadd.f32 0.0, %v1353
      %v1355 = vpop.f32.mrf.mxu0
      %v1356 = vadd.f32 0.0, %v1355
      %1357 = vdwg.mxu0
      %v1358 = vadd.f32 %v954, %v1279
      %v1359 = vadd.f32 %v956, %v1281
      %v1360 = vadd.f32 %v959, %v1284
      %v1361 = vadd.f32 %v961, %v1286
      %v1362 = vadd.f32 %v964, %v1289
      %v1363 = vadd.f32 %v966, %v1291
      %v1364 = vadd.f32 %v969, %v1294
      %v1365 = vadd.f32 %v971, %v1296
      %v1366 = vadd.f32 %v974, %v1299
      %v1367 = vadd.f32 %v976, %v1301
      %v1368 = vadd.f32 %v979, %v1304
      %v1369 = vadd.f32 %v981, %v1306
      %v1370 = vadd.f32 %v984, %v1309
      %v1371 = vadd.f32 %v986, %v1311
      %v1372 = vadd.f32 %v989, %v1314
      %v1373 = vadd.f32 %v991, %v1316
      %v1374 = vadd.f32 %v994, %v1319
      %v1375 = vadd.f32 %v996, %v1321
      %v1376 = vadd.f32 %v999, %v1324
      %v1377 = vadd.f32 %v1001, %v1326
      %v1378 = vadd.f32 %v1004, %v1329
      %v1379 = vadd.f32 %v1006, %v1331
      %v1380 = vadd.f32 %v1009, %v1334
      %v1381 = vadd.f32 %v1011, %v1336
      %v1382 = vadd.f32 %v1014, %v1339
      %v1383 = vadd.f32 %v1016, %v1341
      %v1384 = vadd.f32 %v1019, %v1344
      %v1385 = vadd.f32 %v1021, %v1346
      %v1386 = vadd.f32 %v1024, %v1349
      %v1387 = vadd.f32 %v1026, %v1351
      %v1388 = vadd.f32 %v1029, %v1354
      %v1389 = vadd.f32 %v1031, %v1356
      %s1390 = scalar_lea.vmem %s1, 24
      %v1391 = vld [vmem:[%s1390] sm:$0xf]
      %v1392 = vld [vmem:[%s1390 + $0x4] sm:$0xf]
      %v1395 = vunpack.c.l.b16 %v220
      %v1396 = vunpack.c.l.b16 %v221
      %v1397 = vpack.c.b16 %v1396, %v1395
      %v1400 = vunpack.c.l.b16 %v1391
      %v1401 = vunpack.c.l.b16 %v1392
      %v1402 = vpack.c.b16 %v1401, %v1400
      %v1405 = vsel %vm672, %v1397, 0
      %1407 = vmatpush.bf16.msra.mxu0 0
      %1408 = vmatpush.bf16.msra.mxu0 0
      %1409 = vmatpush.bf16.msra.mxu0 0
      %1410 = vmatpush.bf16.msra.mxu0 0
      %1411 = vmatpush.bf16.msra.mxu0 0
      %1412 = vmatpush.bf16.msra.mxu0 0
      %1413 = vmatpush.bf16.msra.mxu0 0
      %1414 = vmatpush.bf16.msra.mxu0 %v1402
      %1415 = vmatmul.bf16.gmra.mxu0 %v900
      %v1416 = vpop.f32.mrf.mxu0
      %v1417 = vadd.f32 0.0, %v1416
      %v1418 = vpop.f32.mrf.mxu0
      %v1419 = vadd.f32 0.0, %v1418
      %1420 = vmatmul.bf16.gmra.mxu0 %v903
      %v1421 = vpop.f32.mrf.mxu0
      %v1422 = vadd.f32 0.0, %v1421
      %v1423 = vpop.f32.mrf.mxu0
      %v1424 = vadd.f32 0.0, %v1423
      %1425 = vmatmul.bf16.gmra.mxu0 %v906
      %v1426 = vpop.f32.mrf.mxu0
      %v1427 = vadd.f32 0.0, %v1426
      %v1428 = vpop.f32.mrf.mxu0
      %v1429 = vadd.f32 0.0, %v1428
      %1430 = vmatmul.bf16.gmra.mxu0 %v909
      %v1431 = vpop.f32.mrf.mxu0
      %v1432 = vadd.f32 0.0, %v1431
      %v1433 = vpop.f32.mrf.mxu0
      %v1434 = vadd.f32 0.0, %v1433
      %1435 = vmatmul.bf16.gmra.mxu0 %v912
      %v1436 = vpop.f32.mrf.mxu0
      %v1437 = vadd.f32 0.0, %v1436
      %v1438 = vpop.f32.mrf.mxu0
      %v1439 = vadd.f32 0.0, %v1438
      %1440 = vmatmul.bf16.gmra.mxu0 %v915
      %v1441 = vpop.f32.mrf.mxu0
      %v1442 = vadd.f32 0.0, %v1441
      %v1443 = vpop.f32.mrf.mxu0
      %v1444 = vadd.f32 0.0, %v1443
      %1445 = vmatmul.bf16.gmra.mxu0 %v918
      %v1446 = vpop.f32.mrf.mxu0
      %v1447 = vadd.f32 0.0, %v1446
      %v1448 = vpop.f32.mrf.mxu0
      %v1449 = vadd.f32 0.0, %v1448
      %1450 = vmatmul.bf16.gmra.mxu0 %v921
      %v1451 = vpop.f32.mrf.mxu0
      %v1452 = vadd.f32 0.0, %v1451
      %v1453 = vpop.f32.mrf.mxu0
      %v1454 = vadd.f32 0.0, %v1453
      %1455 = vmatmul.bf16.gmra.mxu0 %v924
      %v1456 = vpop.f32.mrf.mxu0
      %v1457 = vadd.f32 0.0, %v1456
      %v1458 = vpop.f32.mrf.mxu0
      %v1459 = vadd.f32 0.0, %v1458
      %1460 = vmatmul.bf16.gmra.mxu0 %v927
      %v1461 = vpop.f32.mrf.mxu0
      %v1462 = vadd.f32 0.0, %v1461
      %v1463 = vpop.f32.mrf.mxu0
      %v1464 = vadd.f32 0.0, %v1463
      %1465 = vmatmul.bf16.gmra.mxu0 %v930
      %v1466 = vpop.f32.mrf.mxu0
      %v1467 = vadd.f32 0.0, %v1466
      %v1468 = vpop.f32.mrf.mxu0
      %v1469 = vadd.f32 0.0, %v1468
      %1470 = vmatmul.bf16.gmra.mxu0 %v933
      %v1471 = vpop.f32.mrf.mxu0
      %v1472 = vadd.f32 0.0, %v1471
      %v1473 = vpop.f32.mrf.mxu0
      %v1474 = vadd.f32 0.0, %v1473
      %1475 = vmatmul.bf16.gmra.mxu0 %v936
      %v1476 = vpop.f32.mrf.mxu0
      %v1477 = vadd.f32 0.0, %v1476
      %v1478 = vpop.f32.mrf.mxu0
      %v1479 = vadd.f32 0.0, %v1478
      %1480 = vmatmul.bf16.gmra.mxu0 %v939
      %v1481 = vpop.f32.mrf.mxu0
      %v1482 = vadd.f32 0.0, %v1481
      %v1483 = vpop.f32.mrf.mxu0
      %v1484 = vadd.f32 0.0, %v1483
      %1485 = vmatmul.bf16.gmra.mxu0 %v942
      %v1486 = vpop.f32.mrf.mxu0
      %v1487 = vadd.f32 0.0, %v1486
      %v1488 = vpop.f32.mrf.mxu0
      %v1489 = vadd.f32 0.0, %v1488
      %1490 = vmatmul.bf16.gmra.mxu0 %v1405
      %v1491 = vpop.f32.mrf.mxu0
      %v1492 = vadd.f32 0.0, %v1491
      %v1493 = vpop.f32.mrf.mxu0
      %v1494 = vadd.f32 0.0, %v1493
      %1495 = vdwg.mxu0
      %v1496 = vadd.f32 %v1358, %v1417
      %v1497 = vadd.f32 %v1359, %v1419
      %v1498 = vadd.f32 %v1360, %v1422
      %v1499 = vadd.f32 %v1361, %v1424
      %v1500 = vadd.f32 %v1362, %v1427
      %v1501 = vadd.f32 %v1363, %v1429
      %v1502 = vadd.f32 %v1364, %v1432
      %v1503 = vadd.f32 %v1365, %v1434
      %v1504 = vadd.f32 %v1366, %v1437
      %v1505 = vadd.f32 %v1367, %v1439
      %v1506 = vadd.f32 %v1368, %v1442
      %v1507 = vadd.f32 %v1369, %v1444
      %v1508 = vadd.f32 %v1370, %v1447
      %v1509 = vadd.f32 %v1371, %v1449
      %v1510 = vadd.f32 %v1372, %v1452
      %v1511 = vadd.f32 %v1373, %v1454
      %v1512 = vadd.f32 %v1374, %v1457
      %v1513 = vadd.f32 %v1375, %v1459
      %v1514 = vadd.f32 %v1376, %v1462
      %v1515 = vadd.f32 %v1377, %v1464
      %v1516 = vadd.f32 %v1378, %v1467
      %v1517 = vadd.f32 %v1379, %v1469
      %v1518 = vadd.f32 %v1380, %v1472
      %v1519 = vadd.f32 %v1381, %v1474
      %v1520 = vadd.f32 %v1382, %v1477
      %v1521 = vadd.f32 %v1383, %v1479
      %v1522 = vadd.f32 %v1384, %v1482
      %v1523 = vadd.f32 %v1385, %v1484
      %v1524 = vadd.f32 %v1386, %v1487
      %v1525 = vadd.f32 %v1387, %v1489
      %v1526 = vadd.f32 %v1388, %v1492
      %v1527 = vadd.f32 %v1389, %v1494
      %v1529 = vshrl.u32 %v220, 16
      %v1531 = vrot.slane %v1529, 4
      %v1532 = vshll.u32 %v220, 16
      %v1534 = vrot.slane %v1532, 5
      %v1535 = vor.u32 %v1531, %v1534
      %v1536 = vrot.slane %v1535, 4
      %v1538 = vshll.u32 %v221, 16
      %v1540 = vrot.slane %v1538, 5
      %v1541 = vsel %vm230, %v1536, %v1540
      %v1542 = vshrl.u32 %v221, 16
      %v1544 = vrot.slane %v1542, 4
      %v1545 = vor.u32 %v1544, %v1540
      %v1546 = vrot.slane %v1545, 4
      %v1548 = vshll.u32 %v222, 16
      %v1550 = vrot.slane %v1548, 5
      %v1551 = vsel %vm230, %v1546, %v1550
      %s1552 = scalar_lea.vmem %s1, 32
      %v1553 = vld [vmem:[%s1552] sm:$0xf]
      %v1554 = vld [vmem:[%s1552 + $0x4] sm:$0xf]
      %v1555 = vunpack.c.l.b16 %v1541
      %v1556 = vunpack.c.l.b16 %v1551
      %v1557 = vpack.c.b16 %v1556, %v1555
      %v1560 = vunpack.c.l.b16 %v1553
      %v1561 = vunpack.c.l.b16 %v1554
      %v1562 = vpack.c.b16 %v1561, %v1560
      %v1565 = vsel %vm672, %v1557, 0
      %1567 = vmatpush.bf16.msra.mxu0 0
      %1568 = vmatpush.bf16.msra.mxu0 0
      %1569 = vmatpush.bf16.msra.mxu0 0
      %1570 = vmatpush.bf16.msra.mxu0 0
      %1571 = vmatpush.bf16.msra.mxu0 0
      %1572 = vmatpush.bf16.msra.mxu0 0
      %1573 = vmatpush.bf16.msra.mxu0 0
      %1574 = vmatpush.bf16.msra.mxu0 %v1562
      %1575 = vmatmul.bf16.gmra.mxu0 %v677
      %v1576 = vpop.f32.mrf.mxu0
      %v1577 = vadd.f32 0.0, %v1576
      %v1578 = vpop.f32.mrf.mxu0
      %v1579 = vadd.f32 0.0, %v1578
      %1580 = vmatmul.bf16.gmra.mxu0 %v680
      %v1581 = vpop.f32.mrf.mxu0
      %v1582 = vadd.f32 0.0, %v1581
      %v1583 = vpop.f32.mrf.mxu0
      %v1584 = vadd.f32 0.0, %v1583
      %1585 = vmatmul.bf16.gmra.mxu0 %v683
      %v1586 = vpop.f32.mrf.mxu0
      %v1587 = vadd.f32 0.0, %v1586
      %v1588 = vpop.f32.mrf.mxu0
      %v1589 = vadd.f32 0.0, %v1588
      %1590 = vmatmul.bf16.gmra.mxu0 %v686
      %v1591 = vpop.f32.mrf.mxu0
      %v1592 = vadd.f32 0.0, %v1591
      %v1593 = vpop.f32.mrf.mxu0
      %v1594 = vadd.f32 0.0, %v1593
      %1595 = vmatmul.bf16.gmra.mxu0 %v689
      %v1596 = vpop.f32.mrf.mxu0
      %v1597 = vadd.f32 0.0, %v1596
      %v1598 = vpop.f32.mrf.mxu0
      %v1599 = vadd.f32 0.0, %v1598
      %1600 = vmatmul.bf16.gmra.mxu0 %v692
      %v1601 = vpop.f32.mrf.mxu0
      %v1602 = vadd.f32 0.0, %v1601
      %v1603 = vpop.f32.mrf.mxu0
      %v1604 = vadd.f32 0.0, %v1603
      %1605 = vmatmul.bf16.gmra.mxu0 %v695
      %v1606 = vpop.f32.mrf.mxu0
      %v1607 = vadd.f32 0.0, %v1606
      %v1608 = vpop.f32.mrf.mxu0
      %v1609 = vadd.f32 0.0, %v1608
      %1610 = vmatmul.bf16.gmra.mxu0 %v698
      %v1611 = vpop.f32.mrf.mxu0
      %v1612 = vadd.f32 0.0, %v1611
      %v1613 = vpop.f32.mrf.mxu0
      %v1614 = vadd.f32 0.0, %v1613
      %1615 = vmatmul.bf16.gmra.mxu0 %v701
      %v1616 = vpop.f32.mrf.mxu0
      %v1617 = vadd.f32 0.0, %v1616
      %v1618 = vpop.f32.mrf.mxu0
      %v1619 = vadd.f32 0.0, %v1618
      %1620 = vmatmul.bf16.gmra.mxu0 %v704
      %v1621 = vpop.f32.mrf.mxu0
      %v1622 = vadd.f32 0.0, %v1621
      %v1623 = vpop.f32.mrf.mxu0
      %v1624 = vadd.f32 0.0, %v1623
      %1625 = vmatmul.bf16.gmra.mxu0 %v707
      %v1626 = vpop.f32.mrf.mxu0
      %v1627 = vadd.f32 0.0, %v1626
      %v1628 = vpop.f32.mrf.mxu0
      %v1629 = vadd.f32 0.0, %v1628
      %1630 = vmatmul.bf16.gmra.mxu0 %v710
      %v1631 = vpop.f32.mrf.mxu0
      %v1632 = vadd.f32 0.0, %v1631
      %v1633 = vpop.f32.mrf.mxu0
      %v1634 = vadd.f32 0.0, %v1633
      %1635 = vmatmul.bf16.gmra.mxu0 %v713
      %v1636 = vpop.f32.mrf.mxu0
      %v1637 = vadd.f32 0.0, %v1636
      %v1638 = vpop.f32.mrf.mxu0
      %v1639 = vadd.f32 0.0, %v1638
      %1640 = vmatmul.bf16.gmra.mxu0 %v716
      %v1641 = vpop.f32.mrf.mxu0
      %v1642 = vadd.f32 0.0, %v1641
      %v1643 = vpop.f32.mrf.mxu0
      %v1644 = vadd.f32 0.0, %v1643
      %1645 = vmatmul.bf16.gmra.mxu0 %v719
      %v1646 = vpop.f32.mrf.mxu0
      %v1647 = vadd.f32 0.0, %v1646
      %v1648 = vpop.f32.mrf.mxu0
      %v1649 = vadd.f32 0.0, %v1648
      %1650 = vmatmul.bf16.gmra.mxu0 %v1565
      %v1651 = vpop.f32.mrf.mxu0
      %v1652 = vadd.f32 0.0, %v1651
      %v1653 = vpop.f32.mrf.mxu0
      %v1654 = vadd.f32 0.0, %v1653
      %1655 = vdwg.mxu0
      %v1656 = vadd.f32 %v1496, %v1577
      %v1657 = vadd.f32 %v1497, %v1579
      %v1658 = vadd.f32 %v1498, %v1582
      %v1659 = vadd.f32 %v1499, %v1584
      %v1660 = vadd.f32 %v1500, %v1587
      %v1661 = vadd.f32 %v1501, %v1589
      %v1662 = vadd.f32 %v1502, %v1592
      %v1663 = vadd.f32 %v1503, %v1594
      %v1664 = vadd.f32 %v1504, %v1597
      %v1665 = vadd.f32 %v1505, %v1599
      %v1666 = vadd.f32 %v1506, %v1602
      %v1667 = vadd.f32 %v1507, %v1604
      %v1668 = vadd.f32 %v1508, %v1607
      %v1669 = vadd.f32 %v1509, %v1609
      %v1670 = vadd.f32 %v1510, %v1612
      %v1671 = vadd.f32 %v1511, %v1614
      %v1672 = vadd.f32 %v1512, %v1617
      %v1673 = vadd.f32 %v1513, %v1619
      %v1674 = vadd.f32 %v1514, %v1622
      %v1675 = vadd.f32 %v1515, %v1624
      %v1676 = vadd.f32 %v1516, %v1627
      %v1677 = vadd.f32 %v1517, %v1629
      %v1678 = vadd.f32 %v1518, %v1632
      %v1679 = vadd.f32 %v1519, %v1634
      %v1680 = vadd.f32 %v1520, %v1637
      %v1681 = vadd.f32 %v1521, %v1639
      %v1682 = vadd.f32 %v1522, %v1642
      %v1683 = vadd.f32 %v1523, %v1644
      %v1684 = vadd.f32 %v1524, %v1647
      %v1685 = vadd.f32 %v1525, %v1649
      %v1686 = vadd.f32 %v1526, %v1652
      %v1687 = vadd.f32 %v1527, %v1654
      %v1689 = vrot.slane %v220, 5
      %v1690 = vrot.slane %v1689, 4
      %v1691 = vrot.slane %v221, 5
      %v1692 = vsel %vm1051, %v1690, %v1691
      %v1693 = vrot.slane %v1691, 4
      %v1694 = vrot.slane %v222, 5
      %v1695 = vsel %vm1051, %v1693, %v1694
      %s1696 = scalar_lea.vmem %s1, 40
      %v1697 = vld [vmem:[%s1696] sm:$0xf]
      %v1698 = vld [vmem:[%s1696 + $0x4] sm:$0xf]
      %v1699 = vunpack.c.l.b16 %v1692
      %v1700 = vunpack.c.l.b16 %v1695
      %v1701 = vpack.c.b16 %v1700, %v1699
      %v1704 = vunpack.c.l.b16 %v1697
      %v1705 = vunpack.c.l.b16 %v1698
      %v1706 = vpack.c.b16 %v1705, %v1704
      %v1709 = vsel %vm672, %v1701, 0
      %1711 = vmatpush.bf16.msra.mxu0 0
      %1712 = vmatpush.bf16.msra.mxu0 0
      %1713 = vmatpush.bf16.msra.mxu0 0
      %1714 = vmatpush.bf16.msra.mxu0 0
      %1715 = vmatpush.bf16.msra.mxu0 0
      %1716 = vmatpush.bf16.msra.mxu0 0
      %1717 = vmatpush.bf16.msra.mxu0 0
      %1718 = vmatpush.bf16.msra.mxu0 %v1706
      %1719 = vmatmul.bf16.gmra.mxu0 %v1225
      %v1720 = vpop.f32.mrf.mxu0
      %v1721 = vadd.f32 0.0, %v1720
      %v1722 = vpop.f32.mrf.mxu0
      %v1723 = vadd.f32 0.0, %v1722
      %1724 = vmatmul.bf16.gmra.mxu0 %v1228
      %v1725 = vpop.f32.mrf.mxu0
      %v1726 = vadd.f32 0.0, %v1725
      %v1727 = vpop.f32.mrf.mxu0
      %v1728 = vadd.f32 0.0, %v1727
      %1729 = vmatmul.bf16.gmra.mxu0 %v1231
      %v1730 = vpop.f32.mrf.mxu0
      %v1731 = vadd.f32 0.0, %v1730
      %v1732 = vpop.f32.mrf.mxu0
      %v1733 = vadd.f32 0.0, %v1732
      %1734 = vmatmul.bf16.gmra.mxu0 %v1234
      %v1735 = vpop.f32.mrf.mxu0
      %v1736 = vadd.f32 0.0, %v1735
      %v1737 = vpop.f32.mrf.mxu0
      %v1738 = vadd.f32 0.0, %v1737
      %1739 = vmatmul.bf16.gmra.mxu0 %v1237
      %v1740 = vpop.f32.mrf.mxu0
      %v1741 = vadd.f32 0.0, %v1740
      %v1742 = vpop.f32.mrf.mxu0
      %v1743 = vadd.f32 0.0, %v1742
      %1744 = vmatmul.bf16.gmra.mxu0 %v1240
      %v1745 = vpop.f32.mrf.mxu0
      %v1746 = vadd.f32 0.0, %v1745
      %v1747 = vpop.f32.mrf.mxu0
      %v1748 = vadd.f32 0.0, %v1747
      %1749 = vmatmul.bf16.gmra.mxu0 %v1243
      %v1750 = vpop.f32.mrf.mxu0
      %v1751 = vadd.f32 0.0, %v1750
      %v1752 = vpop.f32.mrf.mxu0
      %v1753 = vadd.f32 0.0, %v1752
      %1754 = vmatmul.bf16.gmra.mxu0 %v1246
      %v1755 = vpop.f32.mrf.mxu0
      %v1756 = vadd.f32 0.0, %v1755
      %v1757 = vpop.f32.mrf.mxu0
      %v1758 = vadd.f32 0.0, %v1757
      %1759 = vmatmul.bf16.gmra.mxu0 %v1249
      %v1760 = vpop.f32.mrf.mxu0
      %v1761 = vadd.f32 0.0, %v1760
      %v1762 = vpop.f32.mrf.mxu0
      %v1763 = vadd.f32 0.0, %v1762
      %1764 = vmatmul.bf16.gmra.mxu0 %v1252
      %v1765 = vpop.f32.mrf.mxu0
      %v1766 = vadd.f32 0.0, %v1765
      %v1767 = vpop.f32.mrf.mxu0
      %v1768 = vadd.f32 0.0, %v1767
      %1769 = vmatmul.bf16.gmra.mxu0 %v1255
      %v1770 = vpop.f32.mrf.mxu0
      %v1771 = vadd.f32 0.0, %v1770
      %v1772 = vpop.f32.mrf.mxu0
      %v1773 = vadd.f32 0.0, %v1772
      %1774 = vmatmul.bf16.gmra.mxu0 %v1258
      %v1775 = vpop.f32.mrf.mxu0
      %v1776 = vadd.f32 0.0, %v1775
      %v1777 = vpop.f32.mrf.mxu0
      %v1778 = vadd.f32 0.0, %v1777
      %1779 = vmatmul.bf16.gmra.mxu0 %v1261
      %v1780 = vpop.f32.mrf.mxu0
      %v1781 = vadd.f32 0.0, %v1780
      %v1782 = vpop.f32.mrf.mxu0
      %v1783 = vadd.f32 0.0, %v1782
      %1784 = vmatmul.bf16.gmra.mxu0 %v1264
      %v1785 = vpop.f32.mrf.mxu0
      %v1786 = vadd.f32 0.0, %v1785
      %v1787 = vpop.f32.mrf.mxu0
      %v1788 = vadd.f32 0.0, %v1787
      %1789 = vmatmul.bf16.gmra.mxu0 %v1267
      %v1790 = vpop.f32.mrf.mxu0
      %v1791 = vadd.f32 0.0, %v1790
      %v1792 = vpop.f32.mrf.mxu0
      %v1793 = vadd.f32 0.0, %v1792
      %1794 = vmatmul.bf16.gmra.mxu0 %v1709
      %v1795 = vpop.f32.mrf.mxu0
      %v1796 = vadd.f32 0.0, %v1795
      %v1797 = vpop.f32.mrf.mxu0
      %v1798 = vadd.f32 0.0, %v1797
      %1799 = vdwg.mxu0
      %v1800 = vadd.f32 %v1656, %v1721
      %v1801 = vadd.f32 %v1657, %v1723
      %v1802 = vadd.f32 %v1658, %v1726
      %v1803 = vadd.f32 %v1659, %v1728
      %v1804 = vadd.f32 %v1660, %v1731
      %v1805 = vadd.f32 %v1661, %v1733
      %v1806 = vadd.f32 %v1662, %v1736
      %v1807 = vadd.f32 %v1663, %v1738
      %v1808 = vadd.f32 %v1664, %v1741
      %v1809 = vadd.f32 %v1665, %v1743
      %v1810 = vadd.f32 %v1666, %v1746
      %v1811 = vadd.f32 %v1667, %v1748
      %v1812 = vadd.f32 %v1668, %v1751
      %v1813 = vadd.f32 %v1669, %v1753
      %v1814 = vadd.f32 %v1670, %v1756
      %v1815 = vadd.f32 %v1671, %v1758
      %v1816 = vadd.f32 %v1672, %v1761
      %v1817 = vadd.f32 %v1673, %v1763
      %v1818 = vadd.f32 %v1674, %v1766
      %v1819 = vadd.f32 %v1675, %v1768
      %v1820 = vadd.f32 %v1676, %v1771
      %v1821 = vadd.f32 %v1677, %v1773
      %v1822 = vadd.f32 %v1678, %v1776
      %v1823 = vadd.f32 %v1679, %v1778
      %v1824 = vadd.f32 %v1680, %v1781
      %v1825 = vadd.f32 %v1681, %v1783
      %v1826 = vadd.f32 %v1682, %v1786
      %v1827 = vadd.f32 %v1683, %v1788
      %v1828 = vadd.f32 %v1684, %v1791
      %v1829 = vadd.f32 %v1685, %v1793
      %v1830 = vadd.f32 %v1686, %v1796
      %v1831 = vadd.f32 %v1687, %v1798
      %s1832 = scalar_lea.vmem %s1, 48
      %v1833 = vld [vmem:[%s1832] sm:$0xf]
      %v1834 = vld [vmem:[%s1832 + $0x4] sm:$0xf]
      %v1837 = vunpack.c.l.b16 %v223
      %v1838 = vunpack.c.l.b16 %v224
      %v1839 = vpack.c.b16 %v1838, %v1837
      %v1842 = vunpack.c.l.b16 %v1833
      %v1843 = vunpack.c.l.b16 %v1834
      %v1844 = vpack.c.b16 %v1843, %v1842
      %v1847 = vsel %vm672, %v1839, 0
      %1849 = vmatpush.bf16.msra.mxu0 0
      %1850 = vmatpush.bf16.msra.mxu0 0
      %1851 = vmatpush.bf16.msra.mxu0 0
      %1852 = vmatpush.bf16.msra.mxu0 0
      %1853 = vmatpush.bf16.msra.mxu0 0
      %1854 = vmatpush.bf16.msra.mxu0 0
      %1855 = vmatpush.bf16.msra.mxu0 0
      %1856 = vmatpush.bf16.msra.mxu0 %v1844
      %1857 = vmatmul.bf16.gmra.mxu0 %v903
      %v1858 = vpop.f32.mrf.mxu0
      %v1859 = vadd.f32 0.0, %v1858
      %v1860 = vpop.f32.mrf.mxu0
      %v1861 = vadd.f32 0.0, %v1860
      %1862 = vmatmul.bf16.gmra.mxu0 %v906
      %v1863 = vpop.f32.mrf.mxu0
      %v1864 = vadd.f32 0.0, %v1863
      %v1865 = vpop.f32.mrf.mxu0
      %v1866 = vadd.f32 0.0, %v1865
      %1867 = vmatmul.bf16.gmra.mxu0 %v909
      %v1868 = vpop.f32.mrf.mxu0
      %v1869 = vadd.f32 0.0, %v1868
      %v1870 = vpop.f32.mrf.mxu0
      %v1871 = vadd.f32 0.0, %v1870
      %1872 = vmatmul.bf16.gmra.mxu0 %v912
      %v1873 = vpop.f32.mrf.mxu0
      %v1874 = vadd.f32 0.0, %v1873
      %v1875 = vpop.f32.mrf.mxu0
      %v1876 = vadd.f32 0.0, %v1875
      %1877 = vmatmul.bf16.gmra.mxu0 %v915
      %v1878 = vpop.f32.mrf.mxu0
      %v1879 = vadd.f32 0.0, %v1878
      %v1880 = vpop.f32.mrf.mxu0
      %v1881 = vadd.f32 0.0, %v1880
      %1882 = vmatmul.bf16.gmra.mxu0 %v918
      %v1883 = vpop.f32.mrf.mxu0
      %v1884 = vadd.f32 0.0, %v1883
      %v1885 = vpop.f32.mrf.mxu0
      %v1886 = vadd.f32 0.0, %v1885
      %1887 = vmatmul.bf16.gmra.mxu0 %v921
      %v1888 = vpop.f32.mrf.mxu0
      %v1889 = vadd.f32 0.0, %v1888
      %v1890 = vpop.f32.mrf.mxu0
      %v1891 = vadd.f32 0.0, %v1890
      %1892 = vmatmul.bf16.gmra.mxu0 %v924
      %v1893 = vpop.f32.mrf.mxu0
      %v1894 = vadd.f32 0.0, %v1893
      %v1895 = vpop.f32.mrf.mxu0
      %v1896 = vadd.f32 0.0, %v1895
      %1897 = vmatmul.bf16.gmra.mxu0 %v927
      %v1898 = vpop.f32.mrf.mxu0
      %v1899 = vadd.f32 0.0, %v1898
      %v1900 = vpop.f32.mrf.mxu0
      %v1901 = vadd.f32 0.0, %v1900
      %1902 = vmatmul.bf16.gmra.mxu0 %v930
      %v1903 = vpop.f32.mrf.mxu0
      %v1904 = vadd.f32 0.0, %v1903
      %v1905 = vpop.f32.mrf.mxu0
      %v1906 = vadd.f32 0.0, %v1905
      %1907 = vmatmul.bf16.gmra.mxu0 %v933
      %v1908 = vpop.f32.mrf.mxu0
      %v1909 = vadd.f32 0.0, %v1908
      %v1910 = vpop.f32.mrf.mxu0
      %v1911 = vadd.f32 0.0, %v1910
      %1912 = vmatmul.bf16.gmra.mxu0 %v936
      %v1913 = vpop.f32.mrf.mxu0
      %v1914 = vadd.f32 0.0, %v1913
      %v1915 = vpop.f32.mrf.mxu0
      %v1916 = vadd.f32 0.0, %v1915
      %1917 = vmatmul.bf16.gmra.mxu0 %v939
      %v1918 = vpop.f32.mrf.mxu0
      %v1919 = vadd.f32 0.0, %v1918
      %v1920 = vpop.f32.mrf.mxu0
      %v1921 = vadd.f32 0.0, %v1920
      %1922 = vmatmul.bf16.gmra.mxu0 %v942
      %v1923 = vpop.f32.mrf.mxu0
      %v1924 = vadd.f32 0.0, %v1923
      %v1925 = vpop.f32.mrf.mxu0
      %v1926 = vadd.f32 0.0, %v1925
      %1927 = vmatmul.bf16.gmra.mxu0 %v1405
      %v1928 = vpop.f32.mrf.mxu0
      %v1929 = vadd.f32 0.0, %v1928
      %v1930 = vpop.f32.mrf.mxu0
      %v1931 = vadd.f32 0.0, %v1930
      %1932 = vmatmul.bf16.gmra.mxu0 %v1847
      %v1933 = vpop.f32.mrf.mxu0
      %v1934 = vadd.f32 0.0, %v1933
      %v1935 = vpop.f32.mrf.mxu0
      %v1936 = vadd.f32 0.0, %v1935
      %1937 = vdwg.mxu0
      %v1938 = vadd.f32 %v1800, %v1859
      %v1939 = vadd.f32 %v1801, %v1861
      %v1940 = vadd.f32 %v1802, %v1864
      %v1941 = vadd.f32 %v1803, %v1866
      %v1942 = vadd.f32 %v1804, %v1869
      %v1943 = vadd.f32 %v1805, %v1871
      %v1944 = vadd.f32 %v1806, %v1874
      %v1945 = vadd.f32 %v1807, %v1876
      %v1946 = vadd.f32 %v1808, %v1879
      %v1947 = vadd.f32 %v1809, %v1881
      %v1948 = vadd.f32 %v1810, %v1884
      %v1949 = vadd.f32 %v1811, %v1886
      %v1950 = vadd.f32 %v1812, %v1889
      %v1951 = vadd.f32 %v1813, %v1891
      %v1952 = vadd.f32 %v1814, %v1894
      %v1953 = vadd.f32 %v1815, %v1896
      %v1954 = vadd.f32 %v1816, %v1899
      %v1955 = vadd.f32 %v1817, %v1901
      %v1956 = vadd.f32 %v1818, %v1904
      %v1957 = vadd.f32 %v1819, %v1906
      %v1958 = vadd.f32 %v1820, %v1909
      %v1959 = vadd.f32 %v1821, %v1911
      %v1960 = vadd.f32 %v1822, %v1914
      %v1961 = vadd.f32 %v1823, %v1916
      %v1962 = vadd.f32 %v1824, %v1919
      %v1963 = vadd.f32 %v1825, %v1921
      %v1964 = vadd.f32 %v1826, %v1924
      %v1965 = vadd.f32 %v1827, %v1926
      %v1966 = vadd.f32 %v1828, %v1929
      %v1967 = vadd.f32 %v1829, %v1931
      %v1968 = vadd.f32 %v1830, %v1934
      %v1969 = vadd.f32 %v1831, %v1936
      %v1971 = vshrl.u32 %v223, 16
      %v1973 = vrot.slane %v1971, 4
      %v1974 = vshll.u32 %v223, 16
      %v1976 = vrot.slane %v1974, 5
      %v1977 = vor.u32 %v1973, %v1976
      %v1978 = vrot.slane %v1977, 4
      %v1980 = vshll.u32 %v224, 16
      %v1982 = vrot.slane %v1980, 5
      %v1983 = vsel %vm230, %v1978, %v1982
      %v1984 = vshrl.u32 %v224, 16
      %v1986 = vrot.slane %v1984, 4
      %v1987 = vor.u32 %v1986, %v1982
      %v1988 = vrot.slane %v1987, 4
      %v1990 = vshll.u32 %v225, 16
      %v1992 = vrot.slane %v1990, 5
      %v1993 = vsel %vm230, %v1988, %v1992
      %s1994 = scalar_lea.vmem %s1, 56
      %v1995 = vld [vmem:[%s1994] sm:$0xf]
      %v1996 = vld [vmem:[%s1994 + $0x4] sm:$0xf]
      %v1997 = vunpack.c.l.b16 %v1983
      %v1998 = vunpack.c.l.b16 %v1993
      %v1999 = vpack.c.b16 %v1998, %v1997
      %v2002 = vunpack.c.l.b16 %v1995
      %v2003 = vunpack.c.l.b16 %v1996
      %v2004 = vpack.c.b16 %v2003, %v2002
      %v2007 = vsel %vm672, %v1999, 0
      %2009 = vmatpush.bf16.msra.mxu0 0
      %2010 = vmatpush.bf16.msra.mxu0 0
      %2011 = vmatpush.bf16.msra.mxu0 0
      %2012 = vmatpush.bf16.msra.mxu0 0
      %2013 = vmatpush.bf16.msra.mxu0 0
      %2014 = vmatpush.bf16.msra.mxu0 0
      %2015 = vmatpush.bf16.msra.mxu0 0
      %2016 = vmatpush.bf16.msra.mxu0 %v2004
      %2017 = vmatmul.bf16.gmra.mxu0 %v680
      %v2018 = vpop.f32.mrf.mxu0
      %v2019 = vadd.f32 0.0, %v2018
      %v2020 = vpop.f32.mrf.mxu0
      %v2021 = vadd.f32 0.0, %v2020
      %2022 = vmatmul.bf16.gmra.mxu0 %v683
      %v2023 = vpop.f32.mrf.mxu0
      %v2024 = vadd.f32 0.0, %v2023
      %v2025 = vpop.f32.mrf.mxu0
      %v2026 = vadd.f32 0.0, %v2025
      %2027 = vmatmul.bf16.gmra.mxu0 %v686
      %v2028 = vpop.f32.mrf.mxu0
      %v2029 = vadd.f32 0.0, %v2028
      %v2030 = vpop.f32.mrf.mxu0
      %v2031 = vadd.f32 0.0, %v2030
      %2032 = vmatmul.bf16.gmra.mxu0 %v689
      %v2033 = vpop.f32.mrf.mxu0
      %v2034 = vadd.f32 0.0, %v2033
      %v2035 = vpop.f32.mrf.mxu0
      %v2036 = vadd.f32 0.0, %v2035
      %2037 = vmatmul.bf16.gmra.mxu0 %v692
      %v2038 = vpop.f32.mrf.mxu0
      %v2039 = vadd.f32 0.0, %v2038
      %v2040 = vpop.f32.mrf.mxu0
      %v2041 = vadd.f32 0.0, %v2040
      %2042 = vmatmul.bf16.gmra.mxu0 %v695
      %v2043 = vpop.f32.mrf.mxu0
      %v2044 = vadd.f32 0.0, %v2043
      %v2045 = vpop.f32.mrf.mxu0
      %v2046 = vadd.f32 0.0, %v2045
      %2047 = vmatmul.bf16.gmra.mxu0 %v698
      %v2048 = vpop.f32.mrf.mxu0
      %v2049 = vadd.f32 0.0, %v2048
      %v2050 = vpop.f32.mrf.mxu0
      %v2051 = vadd.f32 0.0, %v2050
      %2052 = vmatmul.bf16.gmra.mxu0 %v701
      %v2053 = vpop.f32.mrf.mxu0
      %v2054 = vadd.f32 0.0, %v2053
      %v2055 = vpop.f32.mrf.mxu0
      %v2056 = vadd.f32 0.0, %v2055
      %2057 = vmatmul.bf16.gmra.mxu0 %v704
      %v2058 = vpop.f32.mrf.mxu0
      %v2059 = vadd.f32 0.0, %v2058
      %v2060 = vpop.f32.mrf.mxu0
      %v2061 = vadd.f32 0.0, %v2060
      %2062 = vmatmul.bf16.gmra.mxu0 %v707
      %v2063 = vpop.f32.mrf.mxu0
      %v2064 = vadd.f32 0.0, %v2063
      %v2065 = vpop.f32.mrf.mxu0
      %v2066 = vadd.f32 0.0, %v2065
      %2067 = vmatmul.bf16.gmra.mxu0 %v710
      %v2068 = vpop.f32.mrf.mxu0
      %v2069 = vadd.f32 0.0, %v2068
      %v2070 = vpop.f32.mrf.mxu0
      %v2071 = vadd.f32 0.0, %v2070
      %2072 = vmatmul.bf16.gmra.mxu0 %v713
      %v2073 = vpop.f32.mrf.mxu0
      %v2074 = vadd.f32 0.0, %v2073
      %v2075 = vpop.f32.mrf.mxu0
      %v2076 = vadd.f32 0.0, %v2075
      %2077 = vmatmul.bf16.gmra.mxu0 %v716
      %v2078 = vpop.f32.mrf.mxu0
      %v2079 = vadd.f32 0.0, %v2078
      %v2080 = vpop.f32.mrf.mxu0
      %v2081 = vadd.f32 0.0, %v2080
      %2082 = vmatmul.bf16.gmra.mxu0 %v719
      %v2083 = vpop.f32.mrf.mxu0
      %v2084 = vadd.f32 0.0, %v2083
      %v2085 = vpop.f32.mrf.mxu0
      %v2086 = vadd.f32 0.0, %v2085
      %2087 = vmatmul.bf16.gmra.mxu0 %v1565
      %v2088 = vpop.f32.mrf.mxu0
      %v2089 = vadd.f32 0.0, %v2088
      %v2090 = vpop.f32.mrf.mxu0
      %v2091 = vadd.f32 0.0, %v2090
      %2092 = vmatmul.bf16.gmra.mxu0 %v2007
      %v2093 = vpop.f32.mrf.mxu0
      %v2094 = vadd.f32 0.0, %v2093
      %v2095 = vpop.f32.mrf.mxu0
      %v2096 = vadd.f32 0.0, %v2095
      %2097 = vdwg.mxu0
      %v2098 = vadd.f32 %v1938, %v2019
      %v2099 = vadd.f32 %v1939, %v2021
      %v2100 = vadd.f32 %v1940, %v2024
      %v2101 = vadd.f32 %v1941, %v2026
      %v2102 = vadd.f32 %v1942, %v2029
      %v2103 = vadd.f32 %v1943, %v2031
      %v2104 = vadd.f32 %v1944, %v2034
      %v2105 = vadd.f32 %v1945, %v2036
      %v2106 = vadd.f32 %v1946, %v2039
      %v2107 = vadd.f32 %v1947, %v2041
      %v2108 = vadd.f32 %v1948, %v2044
      %v2109 = vadd.f32 %v1949, %v2046
      %v2110 = vadd.f32 %v1950, %v2049
      %v2111 = vadd.f32 %v1951, %v2051
      %v2112 = vadd.f32 %v1952, %v2054
      %v2113 = vadd.f32 %v1953, %v2056
      %v2114 = vadd.f32 %v1954, %v2059
      %v2115 = vadd.f32 %v1955, %v2061
      %v2116 = vadd.f32 %v1956, %v2064
      %v2117 = vadd.f32 %v1957, %v2066
      %v2118 = vadd.f32 %v1958, %v2069
      %v2119 = vadd.f32 %v1959, %v2071
      %v2120 = vadd.f32 %v1960, %v2074
      %v2121 = vadd.f32 %v1961, %v2076
      %v2122 = vadd.f32 %v1962, %v2079
      %v2123 = vadd.f32 %v1963, %v2081
      %v2124 = vadd.f32 %v1964, %v2084
      %v2125 = vadd.f32 %v1965, %v2086
      %v2126 = vadd.f32 %v1966, %v2089
      %v2127 = vadd.f32 %v1967, %v2091
      %v2128 = vadd.f32 %v1968, %v2094
      %v2129 = vadd.f32 %v1969, %v2096
      %v2131 = vrot.slane %v223, 5
      %v2132 = vrot.slane %v2131, 4
      %v2133 = vrot.slane %v224, 5
      %v2134 = vsel %vm1051, %v2132, %v2133
      %v2135 = vrot.slane %v2133, 4
      %v2136 = vrot.slane %v225, 5
      %v2137 = vsel %vm1051, %v2135, %v2136
      %s2138 = scalar_lea.vmem %s1, 64
      %v2139 = vld [vmem:[%s2138] sm:$0xf]
      %v2140 = vld [vmem:[%s2138 + $0x4] sm:$0xf]
      %v2141 = vunpack.c.l.b16 %v2134
      %v2142 = vunpack.c.l.b16 %v2137
      %v2143 = vpack.c.b16 %v2142, %v2141
      %v2146 = vunpack.c.l.b16 %v2139
      %v2147 = vunpack.c.l.b16 %v2140
      %v2148 = vpack.c.b16 %v2147, %v2146
      %v2151 = vsel %vm672, %v2143, 0
      %2153 = vmatpush.bf16.msra.mxu0 0
      %2154 = vmatpush.bf16.msra.mxu0 0
      %2155 = vmatpush.bf16.msra.mxu0 0
      %2156 = vmatpush.bf16.msra.mxu0 0
      %2157 = vmatpush.bf16.msra.mxu0 0
      %2158 = vmatpush.bf16.msra.mxu0 0
      %2159 = vmatpush.bf16.msra.mxu0 0
      %2160 = vmatpush.bf16.msra.mxu0 %v2148
      %2161 = vmatmul.bf16.gmra.mxu0 %v1228
      %v2162 = vpop.f32.mrf.mxu0
      %v2163 = vadd.f32 0.0, %v2162
      %v2164 = vpop.f32.mrf.mxu0
      %v2165 = vadd.f32 0.0, %v2164
      %2166 = vmatmul.bf16.gmra.mxu0 %v1231
      %v2167 = vpop.f32.mrf.mxu0
      %v2168 = vadd.f32 0.0, %v2167
      %v2169 = vpop.f32.mrf.mxu0
      %v2170 = vadd.f32 0.0, %v2169
      %2171 = vmatmul.bf16.gmra.mxu0 %v1234
      %v2172 = vpop.f32.mrf.mxu0
      %v2173 = vadd.f32 0.0, %v2172
      %v2174 = vpop.f32.mrf.mxu0
      %v2175 = vadd.f32 0.0, %v2174
      %2176 = vmatmul.bf16.gmra.mxu0 %v1237
      %v2177 = vpop.f32.mrf.mxu0
      %v2178 = vadd.f32 0.0, %v2177
      %v2179 = vpop.f32.mrf.mxu0
      %v2180 = vadd.f32 0.0, %v2179
      %2181 = vmatmul.bf16.gmra.mxu0 %v1240
      %v2182 = vpop.f32.mrf.mxu0
      %v2183 = vadd.f32 0.0, %v2182
      %v2184 = vpop.f32.mrf.mxu0
      %v2185 = vadd.f32 0.0, %v2184
      %2186 = vmatmul.bf16.gmra.mxu0 %v1243
      %v2187 = vpop.f32.mrf.mxu0
      %v2188 = vadd.f32 0.0, %v2187
      %v2189 = vpop.f32.mrf.mxu0
      %v2190 = vadd.f32 0.0, %v2189
      %2191 = vmatmul.bf16.gmra.mxu0 %v1246
      %v2192 = vpop.f32.mrf.mxu0
      %v2193 = vadd.f32 0.0, %v2192
      %v2194 = vpop.f32.mrf.mxu0
      %v2195 = vadd.f32 0.0, %v2194
      %2196 = vmatmul.bf16.gmra.mxu0 %v1249
      %v2197 = vpop.f32.mrf.mxu0
      %v2198 = vadd.f32 0.0, %v2197
      %v2199 = vpop.f32.mrf.mxu0
      %v2200 = vadd.f32 0.0, %v2199
      %2201 = vmatmul.bf16.gmra.mxu0 %v1252
      %v2202 = vpop.f32.mrf.mxu0
      %v2203 = vadd.f32 0.0, %v2202
      %v2204 = vpop.f32.mrf.mxu0
      %v2205 = vadd.f32 0.0, %v2204
      %2206 = vmatmul.bf16.gmra.mxu0 %v1255
      %v2207 = vpop.f32.mrf.mxu0
      %v2208 = vadd.f32 0.0, %v2207
      %v2209 = vpop.f32.mrf.mxu0
      %v2210 = vadd.f32 0.0, %v2209
      %2211 = vmatmul.bf16.gmra.mxu0 %v1258
      %v2212 = vpop.f32.mrf.mxu0
      %v2213 = vadd.f32 0.0, %v2212
      %v2214 = vpop.f32.mrf.mxu0
      %v2215 = vadd.f32 0.0, %v2214
      %2216 = vmatmul.bf16.gmra.mxu0 %v1261
      %v2217 = vpop.f32.mrf.mxu0
      %v2218 = vadd.f32 0.0, %v2217
      %v2219 = vpop.f32.mrf.mxu0
      %v2220 = vadd.f32 0.0, %v2219
      %2221 = vmatmul.bf16.gmra.mxu0 %v1264
      %v2222 = vpop.f32.mrf.mxu0
      %v2223 = vadd.f32 0.0, %v2222
      %v2224 = vpop.f32.mrf.mxu0
      %v2225 = vadd.f32 0.0, %v2224
      %2226 = vmatmul.bf16.gmra.mxu0 %v1267
      %v2227 = vpop.f32.mrf.mxu0
      %v2228 = vadd.f32 0.0, %v2227
      %v2229 = vpop.f32.mrf.mxu0
      %v2230 = vadd.f32 0.0, %v2229
      %2231 = vmatmul.bf16.gmra.mxu0 %v1709
      %v2232 = vpop.f32.mrf.mxu0
      %v2233 = vadd.f32 0.0, %v2232
      %v2234 = vpop.f32.mrf.mxu0
      %v2235 = vadd.f32 0.0, %v2234
      %2236 = vmatmul.bf16.gmra.mxu0 %v2151
      %v2237 = vpop.f32.mrf.mxu0
      %v2238 = vadd.f32 0.0, %v2237
      %v2239 = vpop.f32.mrf.mxu0
      %v2240 = vadd.f32 0.0, %v2239
      %2241 = vdwg.mxu0
      %v2242 = vadd.f32 %v2098, %v2163
      %v2243 = vadd.f32 %v2099, %v2165
      %v2244 = vadd.f32 %v2100, %v2168
      %v2245 = vadd.f32 %v2101, %v2170
      %v2246 = vadd.f32 %v2102, %v2173
      %v2247 = vadd.f32 %v2103, %v2175
      %v2248 = vadd.f32 %v2104, %v2178
      %v2249 = vadd.f32 %v2105, %v2180
      %v2250 = vadd.f32 %v2106, %v2183
      %v2251 = vadd.f32 %v2107, %v2185
      %v2252 = vadd.f32 %v2108, %v2188
      %v2253 = vadd.f32 %v2109, %v2190
      %v2254 = vadd.f32 %v2110, %v2193
      %v2255 = vadd.f32 %v2111, %v2195
      %v2256 = vadd.f32 %v2112, %v2198
      %v2257 = vadd.f32 %v2113, %v2200
      %v2258 = vadd.f32 %v2114, %v2203
      %v2259 = vadd.f32 %v2115, %v2205
      %v2260 = vadd.f32 %v2116, %v2208
      %v2261 = vadd.f32 %v2117, %v2210
      %v2262 = vadd.f32 %v2118, %v2213
      %v2263 = vadd.f32 %v2119, %v2215
      %v2264 = vadd.f32 %v2120, %v2218
      %v2265 = vadd.f32 %v2121, %v2220
      %v2266 = vadd.f32 %v2122, %v2223
      %v2267 = vadd.f32 %v2123, %v2225
      %v2268 = vadd.f32 %v2124, %v2228
      %v2269 = vadd.f32 %v2125, %v2230
      %v2270 = vadd.f32 %v2126, %v2233
      %v2271 = vadd.f32 %v2127, %v2235
      %v2272 = vadd.f32 %v2128, %v2238
      %v2273 = vadd.f32 %v2129, %v2240
      %v2274 = vld [vmem:[%s2] sm:$0x1]
      %v2276 = vperm.slane %v2274, 0
      %v2278 = vadd.f32 %v2242, %v2276
      %v2279 = vadd.f32 %v2243, %v2276
      %v2280 = vadd.f32 %v2244, %v2276
      %v2281 = vadd.f32 %v2245, %v2276
      %v2282 = vadd.f32 %v2246, %v2276
      %v2283 = vadd.f32 %v2247, %v2276
      %v2284 = vadd.f32 %v2248, %v2276
      %v2285 = vadd.f32 %v2249, %v2276
      %v2286 = vadd.f32 %v2250, %v2276
      %v2287 = vadd.f32 %v2251, %v2276
      %v2288 = vadd.f32 %v2252, %v2276
      %v2289 = vadd.f32 %v2253, %v2276
      %v2290 = vadd.f32 %v2254, %v2276
      %v2291 = vadd.f32 %v2255, %v2276
      %v2292 = vadd.f32 %v2256, %v2276
      %v2293 = vadd.f32 %v2257, %v2276
      %v2294 = vadd.f32 %v2258, %v2276
      %v2295 = vadd.f32 %v2259, %v2276
      %v2296 = vadd.f32 %v2260, %v2276
      %v2297 = vadd.f32 %v2261, %v2276
      %v2298 = vadd.f32 %v2262, %v2276
      %v2299 = vadd.f32 %v2263, %v2276
      %v2300 = vadd.f32 %v2264, %v2276
      %v2301 = vadd.f32 %v2265, %v2276
      %v2302 = vadd.f32 %v2266, %v2276
      %v2303 = vadd.f32 %v2267, %v2276
      %v2304 = vadd.f32 %v2268, %v2276
      %v2305 = vadd.f32 %v2269, %v2276
      %v2306 = vadd.f32 %v2270, %v2276
      %v2307 = vadd.f32 %v2271, %v2276
      %v2308 = vadd.f32 %v2272, %v2276
      %v2309 = vadd.f32 %v2273, %v2276
      %vm2310 = vcmask 23552
      %2311 = vst.msk [vmem:[%s170] sm:$0xff] %vm2310, %v2278
      %2312 = vst.msk [vmem:[%s170 + $0x8] sm:$0xff] %vm2310, %v2279
      %2313 = vst.msk [vmem:[%s170 + $0x10] sm:$0xff] %vm2310, %v2280
      %2314 = vst.msk [vmem:[%s170 + $0x18] sm:$0xff] %vm2310, %v2281
      %2315 = vst.msk [vmem:[%s170 + $0x20] sm:$0xff] %vm2310, %v2282
      %2316 = vst.msk [vmem:[%s170 + $0x28] sm:$0xff] %vm2310, %v2283
      %2317 = vst.msk [vmem:[%s170 + $0x30] sm:$0xff] %vm2310, %v2284
      %2318 = vst.msk [vmem:[%s170 + $0x38] sm:$0xff] %vm2310, %v2285
      %2319 = vst.msk [vmem:[%s170 + $0x40] sm:$0xff] %vm2310, %v2286
      %2320 = vst.msk [vmem:[%s170 + $0x48] sm:$0xff] %vm2310, %v2287
      %2321 = vst.msk [vmem:[%s170 + $0x50] sm:$0xff] %vm2310, %v2288
      %2322 = vst.msk [vmem:[%s170 + $0x58] sm:$0xff] %vm2310, %v2289
      %2323 = vst.msk [vmem:[%s170 + $0x60] sm:$0xff] %vm2310, %v2290
      %2324 = vst.msk [vmem:[%s170 + $0x68] sm:$0xff] %vm2310, %v2291
      %2325 = vst.msk [vmem:[%s170 + $0x70] sm:$0xff] %vm2310, %v2292
      %2326 = vst.msk [vmem:[%s170 + $0x78] sm:$0xff] %vm2310, %v2293
      %2327 = vst.msk [vmem:[%s170 + $0x80] sm:$0xff] %vm2310, %v2294
      %2328 = vst.msk [vmem:[%s170 + $0x88] sm:$0xff] %vm2310, %v2295
      %2329 = vst.msk [vmem:[%s170 + $0x90] sm:$0xff] %vm2310, %v2296
      %2330 = vst.msk [vmem:[%s170 + $0x98] sm:$0xff] %vm2310, %v2297
      %2331 = vst.msk [vmem:[%s170 + $0xa0] sm:$0xff] %vm2310, %v2298
      %2332 = vst.msk [vmem:[%s170 + $0xa8] sm:$0xff] %vm2310, %v2299
      %2333 = vst.msk [vmem:[%s170 + $0xb0] sm:$0xff] %vm2310, %v2300
      %2334 = vst.msk [vmem:[%s170 + $0xb8] sm:$0xff] %vm2310, %v2301
      %2335 = vst.msk [vmem:[%s170 + $0xc0] sm:$0xff] %vm2310, %v2302
      %2336 = vst.msk [vmem:[%s170 + $0xc8] sm:$0xff] %vm2310, %v2303
      %2337 = vst.msk [vmem:[%s170 + $0xd0] sm:$0xff] %vm2310, %v2304
      %2338 = vst.msk [vmem:[%s170 + $0xd8] sm:$0xff] %vm2310, %v2305
      %2339 = vst.msk [vmem:[%s170 + $0xe0] sm:$0xff] %vm2310, %v2306
      %2340 = vst.msk [vmem:[%s170 + $0xe8] sm:$0xff] %vm2310, %v2307
      %2341 = vst.msk [vmem:[%s170 + $0xf0] sm:$0xff] %vm2310, %v2308
      %2342 = vst.msk [vmem:[%s170 + $0xf8] sm:$0xff] %vm2310, %v2309
      %p2343 = scmp.lt.s32.totalorder %s14, 1
      %s2344 = scalar_select %p2343, %s14, 1
      %s2345 = smul.addr %s2344, 32
      %s2346 = smul.addr %s2345, 8
      %s2347 = scalar_lea.vmem %s3, %s2346
      // Predicated region
      $region33: #{carn_forward.13} parent=31 // pred_check
        %p2348 = pneg %p100
      $region34: #{carn_forward.13} parent=31 // pred_check_branch
        %2350 = sbr.rel (%p2348) target = $region36
      $region35: #{carn_forward.13} parent=31 // pred_region
        _
      $region36: #{carn_forward.13} parent=31 // pred_fallthru
        _
    $region32: #{carn_forward.13} parent=5 // pred_fallthru
      _
    %p2351 = scmp.le.s32.totalorder 2, %s9
    // Predicated region
    $region37: #{carn_forward.13} parent=5 // pred_check
      %p2352 = pneg %p2351
    $region38: #{carn_forward.13} parent=5 // pred_check_branch
      %2354 = sbr.rel (%p2352) target = $region40
    $region39: #{carn_forward.13} parent=5 // pred_region
      %s2355 = ssub.s32 %s9, 2
      // Predicated region
      $region41: #{carn_forward.13} parent=39 // pred_check
        %p2356 = pneg %p106
      $region42: #{carn_forward.13} parent=39 // pred_check_branch
        %2358 = sbr.rel (%p2356) target = $region44
      $region43: #{carn_forward.13} parent=39 // pred_region
        %p2359 = scmp.lt.s32.totalorder %s15, 1
        %s2360 = scalar_select %p2359, %s15, 1
        %s2361 = smul.addr %s2360, 32
        %s2362 = smul.addr %s2361, 8
        %s2363 = scalar_lea.vmem %s3, %s2362
      $region44: #{carn_forward.13} parent=39 // pred_fallthru
        _
    $region40: #{carn_forward.13} parent=5 // pred_fallthru
      _
  $region6: #{carn_forward.13} parent=0 // loop_footer
    %s13 = sadd.s32 1, %s9
  $region7: #{carn_forward.13} parent=0 // loop_footer_branch
    %8 = sbr.rel target = $region3
  $region8: #{carn_forward.13} parent=0 // loop_exit
    _

</llo_original>
